<compile_context>
chip_gen: v5e
topology: v5e:2x2
jax: 0.10.0
libtpu: 0.0.40
codegen_flags: <defaults>
</compile_context>

<pallas_src>
import functools

import jax
import jax.numpy as jnp
from jax.experimental import pallas as pl
from jax.experimental.pallas import tpu as pltpu


# ----------------------------- Pallas kernels --------------------------------
def _mm_bias_kernel(p_ref, w_ref, b_ref, o_ref):
    # p_ref: (tm, K) bf16 im2col patches tile
    # w_ref: (K, N)  bf16 reshaped conv weight
    # b_ref: (1, N)  f32 bias
    y = jnp.dot(p_ref[...], w_ref[...], preferred_element_type=jnp.float32)
    o_ref[...] = y + b_ref[...]


def _mm_bias_acc_kernel(p_ref, w_ref, b_ref, a_ref, o_ref):
    # Same as above, fused with the running branch-sum a_ref (f32, HBM-aliased
    # with o_ref via input_output_aliases).
    y = jnp.dot(p_ref[...], w_ref[...], preferred_element_type=jnp.float32)
    o_ref[...] = y + b_ref[...] + a_ref[...]


# ------------------------------ helpers ---------------------------------------
def _choose_tile_m(M):
    """Pick a large M tile that divides M (no padding of the big patches array).

    Prefers >= 4 grid steps so the 'parallel' M axis still shards across the
    two TensorCores on v7x and the DMA pipeline has work to overlap.
    """
    candidates = (1024, 512, 256, 128, 64, 32, 16)
    divisors = [t for t in candidates if M % t == 0]
    for t in divisors:
        if M // t >= 4:
            return t, M
    if divisors:
        return divisors[0], M
    if M <= 16:
        return M, M
    tm = 256
    return tm, ((M + tm - 1) // tm) * tm


def _im2col_cl(x, ksize, stride, pad):
    """Channels-last im2col.

    x: [B, T, H, W, C]  ->  patches [M, K], M = B*To*Ho*Wo,
    K = kt*kh*kw*C ordered (kt, kh, kw, c) (tap-major, channel-minor), which is
    exactly what concatenating the shifted channels-last slices produces -- no
    large transpose needed.
    """
    B, T, H, W, C = x.shape
    kt, kh, kw = ksize
    st, sh, sw = stride
    pt, ph, pw = pad
    xp = jnp.pad(x, ((0, 0), (pt, pt), (ph, ph), (pw, pw), (0, 0)))
    To = (T + 2 * pt - kt) // st + 1
    Ho = (H + 2 * ph - kh) // sh + 1
    Wo = (W + 2 * pw - kw) // sw + 1

    cols = []
    for dt in range(kt):
        for dh in range(kh):
            for dw in range(kw):
                cols.append(xp[:,
                               dt: dt + (To - 1) * st + 1: st,
                               dh: dh + (Ho - 1) * sh + 1: sh,
                               dw: dw + (Wo - 1) * sw + 1: sw, :])
    patches = jnp.concatenate(cols, axis=-1)          # [B, To, Ho, Wo, taps*C]
    patches = patches.reshape(B * To * Ho * Wo, kt * kh * kw * C)
    return patches, (B, To, Ho, Wo)


def _weight_matrix(w):
    """[Cout, Cin, kt, kh, kw] -> [K, Cout], K ordered (kt, kh, kw, Cin)."""
    Cout, Cin, kt, kh, kw = w.shape
    return jnp.transpose(w, (2, 3, 4, 1, 0)).reshape(kt * kh * kw * Cin, Cout)


# ------------------- fused matmul + bias (+acc) via Pallas ---------------------
def _conv_matmul(patches, wmat, bias, acc=None):
    """out[M, N] = patches[M, K] @ wmat[K, N] + bias[N] (+ acc[M, N]).

    patches / wmat feed the MXU as bf16 (f32 accumulate); bias, acc and the
    output stay f32.  When acc is given, the output HBM buffer is aliased onto
    it (in-place branch-sum).
    """
    M, K = patches.shape
    N = wmat.shape[1]
    tm, M_pad = _choose_tile_m(M)
    nm = M_pad // tm

    p = patches.astype(jnp.bfloat16)
    w = wmat.astype(jnp.bfloat16)
    b = bias.reshape(1, N).astype(jnp.float32)
    if acc is not None:
        acc = acc.astype(jnp.float32)

    if M_pad != M:  # only hit when no nice divisor of M exists
        p = jnp.pad(p, ((0, M_pad - M), (0, 0)))
        if acc is not None:
            acc = jnp.pad(acc, ((0, M_pad - M), (0, 0)))

    # Explicit VMEM budget (double-buffered patches dominate); keeps the tile
    # choice portable to v7x's smaller (64 MiB) physical VMEM.
    vmem_est = (2 * tm * K * 2                          # patches, 2 bufs, bf16
                + 2 * (K * N * 2 + N * 4)               # weight + bias
                + (4 if acc is not None else 2) * tm * N * 4)   # out (+acc) bufs
    vmem_limit = int(min(max(2 * vmem_est + (4 << 20), 16 << 20), 48 << 20))
    cparams = pltpu.CompilerParams(
        dimension_semantics=("parallel",),
        vmem_limit_bytes=vmem_limit)

    out_shape = jax.ShapeDtypeStruct((M_pad, N), jnp.float32)
    if acc is None:
        out = pl.pallas_call(
            _mm_bias_kernel,
            out_shape=out_shape,
            grid=(nm,),
            in_specs=[
                pl.BlockSpec((tm, K), lambda i: (i, 0)),
                pl.BlockSpec((K, N), lambda i: (0, 0)),
                pl.BlockSpec((1, N), lambda i: (0, 0)),
            ],
            out_specs=pl.BlockSpec((tm, N), lambda i: (i, 0)),
            compiler_params=cparams,
        )(p, w, b)
    else:
        out = pl.pallas_call(
            _mm_bias_acc_kernel,
            out_shape=out_shape,
            grid=(nm,),
            in_specs=[
                pl.BlockSpec((tm, K), lambda i: (i, 0)),
                pl.BlockSpec((K, N), lambda i: (0, 0)),
                pl.BlockSpec((1, N), lambda i: (0, 0)),
                pl.BlockSpec((tm, N), lambda i: (i, 0)),
            ],
            out_specs=pl.BlockSpec((tm, N), lambda i: (i, 0)),
            input_output_aliases={3: 0},   # write the branch-sum in place
            compiler_params=cparams,
        )(p, w, b, acc)

    if M_pad != M:
        out = out[:M]
    return out


# ------------------------ InceptionLayerPlus forward ---------------------------
def inception_layer_plus(x, params, kernal_size, stride):
    """x: [B, Cin, T, H, W] (NCDHW) -> [B, Cout, To, Ho, Wo] (NCDHW)."""
    stride = tuple(stride)
    pX = kernal_size[0] // 2
    pY = kernal_size[1] // 2
    Cout = params["w3"].shape[0]
    k1 = (3, kernal_size[0], kernal_size[1])

    # Channels-last + bf16 internally (halves patches HBM traffic);
    # NCDHW / f32 only at the edges.
    x_cl = jnp.transpose(x, (0, 2, 3, 4, 1)).astype(jnp.bfloat16)

    w3 = _weight_matrix(params["w3"])
    w7a = _weight_matrix(params["w7a"])
    w9a = _weight_matrix(params["w9a"])
    w7b = _weight_matrix(params["w7b"])
    w9b = _weight_matrix(params["w9b"])

    # ---- Stage 1: the (3, kX, kY) convs share one im2col patches tensor. ----
    if stride == (1, 1, 1):
        # branch3 / branch7x7a / branch9x9a have identical geometry ->
        # one pallas_call against the concatenated weight [K1, 3*Cout].
        patches1, geom1 = _im2col_cl(x_cl, k1, (1, 1, 1), (1, pX, pY))
        w_cat = jnp.concatenate([w3, w7a, w9a], axis=1)
        b_cat = jnp.concatenate([params["b3"], params["b7a"], params["b9a"]])
        out1 = _conv_matmul(patches1, w_cat, b_cat)            # [M1, 3*Cout]
        B1, To1, Ho1, Wo1 = geom1
        b3_flat = out1[:, :Cout]                               # stays flat (acc)
        b7a_cl = out1[:, Cout:2 * Cout].astype(jnp.bfloat16).reshape(
            B1, To1, Ho1, Wo1, Cout)
        b9a_cl = out1[:, 2 * Cout:].astype(jnp.bfloat16).reshape(
            B1, To1, Ho1, Wo1, Cout)
    else:
        # branch3 has a different (strided) output geometry; fuse only 7a+9a.
        patches3, _ = _im2col_cl(x_cl, k1, stride, (1, pX, pY))
        b3_flat = _conv_matmul(patches3, w3, params["b3"])
        patches1, geom1 = _im2col_cl(x_cl, k1, (1, 1, 1), (1, pX, pY))
        w_cat = jnp.concatenate([w7a, w9a], axis=1)
        b_cat = jnp.concatenate([params["b7a"], params["b9a"]])
        out1 = _conv_matmul(patches1, w_cat, b_cat)            # [M1, 2*Cout]
        B1, To1, Ho1, Wo1 = geom1
        b7a_cl = out1[:, :Cout].astype(jnp.bfloat16).reshape(
            B1, To1, Ho1, Wo1, Cout)
        b9a_cl = out1[:, Cout:].astype(jnp.bfloat16).reshape(
            B1, To1, Ho1, Wo1, Cout)

    # ---- Stage 2: big-K convs, fused with the running branch-sum. -----------
    # TODO(synk): for non-toy activation sizes, replace the materialized im2col
    # here with an in-kernel temporal-tap loop over a VMEM-resident (haloed)
    # activation tile to avoid the 63x/81x patches HBM expansion, and present a
    # lane-dense (>=128-wide) output slab instead of the narrow (tm, Cout) one.
    patches7, geom2 = _im2col_cl(b7a_cl, (7, kernal_size[0], kernal_size[1]),
                                 stride, (3, pX, pY))
    b37_flat = _conv_matmul(patches7, w7b, params["b7b"], acc=b3_flat)

    patches9, _ = _im2col_cl(b9a_cl, (9, kernal_size[0], kernal_size[1]),
                             stride, (4, pX, pY))
    out_flat = _conv_matmul(patches9, w9b, params["b9b"], acc=b37_flat)

    B, To, Ho, Wo = geom2
    out_cl = out_flat.reshape(B, To, Ho, Wo, Cout)
    return jnp.transpose(out_cl, (0, 4, 1, 2, 3))              # back to NCDHW


# -------------------------------- Reference ------------------------------------
def _conv3d_ref(x, w, b, stride, pad):
    out = jax.lax.conv_general_dilated(
        x, w, window_strides=stride,
        padding=[(pad[0], pad[0]), (pad[1], pad[1]), (pad[2], pad[2])],
        dimension_numbers=("NCDHW", "OIDHW", "NCDHW"))
    return out + b[None, :, None, None, None]


def _inception_ref(x, params, kernal_size, stride):
    pX, pY = kernal_size[0] // 2, kernal_size[1] // 2
    b3 = _conv3d_ref(x, params["w3"], params["b3"], stride, (1, pX, pY))
    b7 = _conv3d_ref(x, params["w7a"], params["b7a"], (1, 1, 1), (1, pX, pY))
    b7 = _conv3d_ref(b7, params["w7b"], params["b7b"], stride, (3, pX, pY))
    b9 = _conv3d_ref(x, params["w9a"], params["b9a"], (1, 1, 1), (1, pX, pY))
    b9 = _conv3d_ref(b9, params["w9b"], params["b9b"], stride, (4, pX, pY))
    return b9 + b3 + b7


# ---------------------------------- Main ----------------------------------------
if __name__ == "__main__":
    key = jax.random.PRNGKey(0)
    B, Cin, T, H, W = 2, 4, 8, 16, 16
    Cout = 8
    kernal_size = (3, 3)
    stride = (1, 1, 1)

    keys = jax.random.split(key, 11)
    x = jax.random.normal(keys[0], (B, Cin, T, H, W), jnp.float32)

    def mk(k, shape, scale=0.05):
        return jax.random.normal(k, shape, jnp.float32) * scale

    params = {
        "w3":  mk(keys[1], (Cout, Cin, 3, 3, 3)),  "b3":  mk(keys[2],  (Cout,)),
        "w7a": mk(keys[3], (Cout, Cin, 3, 3, 3)),  "b7a": mk(keys[4],  (Cout,)),
        "w7b": mk(keys[5], (Cout, Cout, 7, 3, 3)), "b7b": mk(keys[6],  (Cout,)),
        "w9a": mk(keys[7], (Cout, Cin, 3, 3, 3)),  "b9a": mk(keys[8],  (Cout,)),
        "w9b": mk(keys[9], (Cout, Cout, 9, 3, 3)), "b9b": mk(keys[10], (Cout,)),
    }

    fwd = jax.jit(functools.partial(inception_layer_plus,
                                    kernal_size=kernal_size, stride=stride))
    out = fwd(x, params)
    jax.block_until_ready(out)

    ref = _inception_ref(x, params, kernal_size, stride)
    assert out.shape == (B, Cout, T, H, W), out.shape
    # bf16 matmul operands with f32 accumulation -> loose-ish tolerance.
    assert jnp.allclose(out, ref, rtol=2e-2, atol=2e-2), "mismatch vs reference conv"

    print("KERNEL_OK")
</pallas_src>

<mosaic_0001>
module attributes {stable_mosaic.version = 11 : i64} {
  func.func @_mm_bias_kernel(%arg0: i32, %arg1: memref<1024x108xbf16, #tpu.memory_space<vmem>>, %arg2: memref<108x24xbf16, #tpu.memory_space<vmem>>, %arg3: memref<1x24xf32, #tpu.memory_space<vmem>>, %arg4: memref<1024x24xf32, #tpu.memory_space<vmem>>) attributes {dimension_semantics = [#tpu.dimension_semantics<parallel>], iteration_bounds = array<i64: 4>, scalar_prefetch = 0 : i64, scratch_operands = 0 : i64, tpu.core_type = #tpu.core_type<tc>, window_params = [{transform_indices = @transform_0, window_bounds = array<i64: 1024, 108>}, {pipeline_mode = #tpu.pipeline_mode<synchronous>, transform_indices = @transform_1, window_bounds = array<i64: 108, 24>}, {pipeline_mode = #tpu.pipeline_mode<synchronous>, transform_indices = @transform_2, window_bounds = array<i64: 1, 24>}, {transform_indices = @transform_3, window_bounds = array<i64: 1024, 24>}]} {
    %c0 = arith.constant 0 : index
    %c0_0 = arith.constant 0 : index
    %0 = vector.load %arg1[%c0, %c0_0] : memref<1024x108xbf16, #tpu.memory_space<vmem>>, vector<1024x108xbf16>
    %c0_1 = arith.constant 0 : index
    %c0_2 = arith.constant 0 : index
    %1 = vector.load %arg2[%c0_1, %c0_2] : memref<108x24xbf16, #tpu.memory_space<vmem>>, vector<108x24xbf16>
    %cst = arith.constant dense<0.000000e+00> : vector<1024x24xf32>
    %2 = tpu.matmul %0, %1, %cst {dimension_numbers = #tpu.dot_dimension_numbers<[1], [0], [0], [1], [0, 0, 1, 1], [], []>} : vector<1024x108xbf16>, vector<108x24xbf16>, vector<1024x24xf32> -> vector<1024x24xf32>
    %c0_3 = arith.constant 0 : index
    %c0_4 = arith.constant 0 : index
    %3 = vector.load %arg3[%c0_3, %c0_4] : memref<1x24xf32, #tpu.memory_space<vmem>>, vector<1x24xf32>
    %4 = vector.broadcast %3 : vector<1x24xf32> to vector<1024x24xf32>
    %5 = arith.addf %2, %4 : vector<1024x24xf32>
    %c0_5 = arith.constant 0 : index
    %c0_6 = arith.constant 0 : index
    %6 = vector.load %arg4[%c0_5, %c0_6] : memref<1024x24xf32, #tpu.memory_space<vmem>>, vector<1024x24xf32>
    tpu.vector_store %arg4[%c0_5, %c0_6], %5 {strides = array<i32>} : memref<1024x24xf32, #tpu.memory_space<vmem>>, vector<1024x24xf32>,
    return
  }
  func.func @transform_0(%arg0: i32) -> (i32, i32) {
    %c0_i32 = arith.constant 0 : i32
    %c0_i32_0 = arith.constant 0 : i32
    return %arg0, %c0_i32 : i32, i32
  }
  func.func @transform_1(%arg0: i32) -> (i32, i32) {
    %c0_i32 = arith.constant 0 : i32
    %c0_i32_0 = arith.constant 0 : i32
    %c0_i32_1 = arith.constant 0 : i32
    return %c0_i32, %c0_i32_0 : i32, i32
  }
  func.func @transform_2(%arg0: i32) -> (i32, i32) {
    %c0_i32 = arith.constant 0 : i32
    %c0_i32_0 = arith.constant 0 : i32
    %c0_i32_1 = arith.constant 0 : i32
    return %c0_i32, %c0_i32_0 : i32, i32
  }
  func.func @transform_3(%arg0: i32) -> (i32, i32) {
    %c0_i32 = arith.constant 0 : i32
    %c0_i32_0 = arith.constant 0 : i32
    return %arg0, %c0_i32 : i32, i32
  }
}

module attributes {stable_mosaic.version = 11 : i64} {
  func.func @_mm_bias_acc_kernel(%arg0: i32, %arg1: memref<1024x504xbf16, #tpu.memory_space<vmem>>, %arg2: memref<504x8xbf16, #tpu.memory_space<vmem>>, %arg3: memref<1x8xf32, #tpu.memory_space<vmem>>, %arg4: memref<1024x8xf32, #tpu.memory_space<vmem>>, %arg5: memref<1024x8xf32, #tpu.memory_space<vmem>>) attributes {dimension_semantics = [#tpu.dimension_semantics<parallel>], iteration_bounds = array<i64: 4>, scalar_prefetch = 0 : i64, scratch_operands = 0 : i64, tpu.core_type = #tpu.core_type<tc>, window_params = [{transform_indices = @transform_0, window_bounds = array<i64: 1024, 504>}, {pipeline_mode = #tpu.pipeline_mode<synchronous>, transform_indices = @transform_1, window_bounds = array<i64: 504, 8>}, {pipeline_mode = #tpu.pipeline_mode<synchronous>, transform_indices = @transform_2, window_bounds = array<i64: 1, 8>}, {transform_indices = @transform_3, window_bounds = array<i64: 1024, 8>}, {transform_indices = @transform_4, window_bounds = array<i64: 1024, 8>}]} {
    %c0 = arith.constant 0 : index
    %c0_0 = arith.constant 0 : index
    %0 = vector.load %arg1[%c0, %c0_0] : memref<1024x504xbf16, #tpu.memory_space<vmem>>, vector<1024x504xbf16>
    %c0_1 = arith.constant 0 : index
    %c0_2 = arith.constant 0 : index
    %1 = vector.load %arg2[%c0_1, %c0_2] : memref<504x8xbf16, #tpu.memory_space<vmem>>, vector<504x8xbf16>
    %cst = arith.constant dense<0.000000e+00> : vector<1024x8xf32>
    %2 = tpu.matmul %0, %1, %cst {dimension_numbers = #tpu.dot_dimension_numbers<[1], [0], [0], [1], [0, 0, 1, 1], [], []>} : vector<1024x504xbf16>, vector<504x8xbf16>, vector<1024x8xf32> -> vector<1024x8xf32>
    %c0_3 = arith.constant 0 : index
    %c0_4 = arith.constant 0 : index
    %3 = vector.load %arg3[%c0_3, %c0_4] : memref<1x8xf32, #tpu.memory_space<vmem>>, vector<1x8xf32>
    %4 = vector.broadcast %3 : vector<1x8xf32> to vector<1024x8xf32>
    %5 = arith.addf %2, %4 : vector<1024x8xf32>
    %c0_5 = arith.constant 0 : index
    %c0_6 = arith.constant 0 : index
    %6 = vector.load %arg4[%c0_5, %c0_6] : memref<1024x8xf32, #tpu.memory_space<vmem>>, vector<1024x8xf32>
    %7 = arith.addf %5, %6 : vector<1024x8xf32>
    %c0_7 = arith.constant 0 : index
    %c0_8 = arith.constant 0 : index
    %8 = vector.load %arg5[%c0_7, %c0_8] : memref<1024x8xf32, #tpu.memory_space<vmem>>, vector<1024x8xf32>
    tpu.vector_store %arg5[%c0_7, %c0_8], %7 {strides = array<i32>} : memref<1024x8xf32, #tpu.memory_space<vmem>>, vector<1024x8xf32>,
    return
  }
  func.func @transform_0(%arg0: i32) -> (i32, i32) {
    %c0_i32 = arith.constant 0 : i32
    %c0_i32_0 = arith.constant 0 : i32
    return %arg0, %c0_i32 : i32, i32
  }
  func.func @transform_1(%arg0: i32) -> (i32, i32) {
    %c0_i32 = arith.constant 0 : i32
    %c0_i32_0 = arith.constant 0 : i32
    %c0_i32_1 = arith.constant 0 : i32
    return %c0_i32, %c0_i32_0 : i32, i32
  }
  func.func @transform_2(%arg0: i32) -> (i32, i32) {
    %c0_i32 = arith.constant 0 : i32
    %c0_i32_0 = arith.constant 0 : i32
    %c0_i32_1 = arith.constant 0 : i32
    return %c0_i32, %c0_i32_0 : i32, i32
  }
  func.func @transform_3(%arg0: i32) -> (i32, i32) {
    %c0_i32 = arith.constant 0 : i32
    %c0_i32_0 = arith.constant 0 : i32
    return %arg0, %c0_i32 : i32, i32
  }
  func.func @transform_4(%arg0: i32) -> (i32, i32) {
    %c0_i32 = arith.constant 0 : i32
    %c0_i32_0 = arith.constant 0 : i32
    return %arg0, %c0_i32 : i32, i32
  }
}

module attributes {stable_mosaic.version = 11 : i64} {
  func.func @_mm_bias_acc_kernel(%arg0: i32, %arg1: memref<1024x648xbf16, #tpu.memory_space<vmem>>, %arg2: memref<648x8xbf16, #tpu.memory_space<vmem>>, %arg3: memref<1x8xf32, #tpu.memory_space<vmem>>, %arg4: memref<1024x8xf32, #tpu.memory_space<vmem>>, %arg5: memref<1024x8xf32, #tpu.memory_space<vmem>>) attributes {dimension_semantics = [#tpu.dimension_semantics<parallel>], iteration_bounds = array<i64: 4>, scalar_prefetch = 0 : i64, scratch_operands = 0 : i64, tpu.core_type = #tpu.core_type<tc>, window_params = [{transform_indices = @transform_0, window_bounds = array<i64: 1024, 648>}, {pipeline_mode = #tpu.pipeline_mode<synchronous>, transform_indices = @transform_1, window_bounds = array<i64: 648, 8>}, {pipeline_mode = #tpu.pipeline_mode<synchronous>, transform_indices = @transform_2, window_bounds = array<i64: 1, 8>}, {transform_indices = @transform_3, window_bounds = array<i64: 1024, 8>}, {transform_indices = @transform_4, window_bounds = array<i64: 1024, 8>}]} {
    %c0 = arith.constant 0 : index
    %c0_0 = arith.constant 0 : index
    %0 = vector.load %arg1[%c0, %c0_0] : memref<1024x648xbf16, #tpu.memory_space<vmem>>, vector<1024x648xbf16>
    %c0_1 = arith.constant 0 : index
    %c0_2 = arith.constant 0 : index
    %1 = vector.load %arg2[%c0_1, %c0_2] : memref<648x8xbf16, #tpu.memory_space<vmem>>, vector<648x8xbf16>
    %cst = arith.constant dense<0.000000e+00> : vector<1024x8xf32>
    %2 = tpu.matmul %0, %1, %cst {dimension_numbers = #tpu.dot_dimension_numbers<[1], [0], [0], [1], [0, 0, 1, 1], [], []>} : vector<1024x648xbf16>, vector<648x8xbf16>, vector<1024x8xf32> -> vector<1024x8xf32>
    %c0_3 = arith.constant 0 : index
    %c0_4 = arith.constant 0 : index
    %3 = vector.load %arg3[%c0_3, %c0_4] : memref<1x8xf32, #tpu.memory_space<vmem>>, vector<1x8xf32>
    %4 = vector.broadcast %3 : vector<1x8xf32> to vector<1024x8xf32>
    %5 = arith.addf %2, %4 : vector<1024x8xf32>
    %c0_5 = arith.constant 0 : index
    %c0_6 = arith.constant 0 : index
    %6 = vector.load %arg4[%c0_5, %c0_6] : memref<1024x8xf32, #tpu.memory_space<vmem>>, vector<1024x8xf32>
    %7 = arith.addf %5, %6 : vector<1024x8xf32>
    %c0_7 = arith.constant 0 : index
    %c0_8 = arith.constant 0 : index
    %8 = vector.load %arg5[%c0_7, %c0_8] : memref<1024x8xf32, #tpu.memory_space<vmem>>, vector<1024x8xf32>
    tpu.vector_store %arg5[%c0_7, %c0_8], %7 {strides = array<i32>} : memref<1024x8xf32, #tpu.memory_space<vmem>>, vector<1024x8xf32>,
    return
  }
  func.func @transform_0(%arg0: i32) -> (i32, i32) {
    %c0_i32 = arith.constant 0 : i32
    %c0_i32_0 = arith.constant 0 : i32
    return %arg0, %c0_i32 : i32, i32
  }
  func.func @transform_1(%arg0: i32) -> (i32, i32) {
    %c0_i32 = arith.constant 0 : i32
    %c0_i32_0 = arith.constant 0 : i32
    %c0_i32_1 = arith.constant 0 : i32
    return %c0_i32, %c0_i32_0 : i32, i32
  }
  func.func @transform_2(%arg0: i32) -> (i32, i32) {
    %c0_i32 = arith.constant 0 : i32
    %c0_i32_0 = arith.constant 0 : i32
    %c0_i32_1 = arith.constant 0 : i32
    return %c0_i32, %c0_i32_0 : i32, i32
  }
  func.func @transform_3(%arg0: i32) -> (i32, i32) {
    %c0_i32 = arith.constant 0 : i32
    %c0_i32_0 = arith.constant 0 : i32
    return %arg0, %c0_i32 : i32, i32
  }
  func.func @transform_4(%arg0: i32) -> (i32, i32) {
    %c0_i32 = arith.constant 0 : i32
    %c0_i32_0 = arith.constant 0 : i32
    return %arg0, %c0_i32 : i32, i32
  }
}

</mosaic_0001>

<llo_original>
// kernel: inception_layer_plus.3
$region0: #{inception_layer_plus.3}
  #allocation0 [shape = 'u32[]', space=smem, size = 0x4, offset = 0x4, fixed_abs, tag = 'smem constant byte address 0x4 - core index']
  #allocation1 [shape = 'u32[72,128]{1,0:T(1,128)}', space=vmem, size = 0x9000, scoped, tag = 'internal scratch']
  %s0 = inlined_call_operand.vmem [shape: bf16[4096,108], index: 0, kind: input, shape index: {}]
  %s1 = inlined_call_operand.vmem [shape: bf16[108,24], index: 1, kind: input, shape index: {}]
  %s2 = inlined_call_operand.vmem [shape: f32[1,24], index: 2, kind: input, shape index: {}]
  %s3 = inlined_call_operand.vmem [shape: f32[4096,24], index: 3, kind: output, shape index: {}]
  %s4 = sld [smem:[#allocation0]]
  $region45: #{inception_layer_plus.3} parent=0
    _
  %s6 = ssub.s32 1, %s4
  %s7 = scalar_select 0, %s6, %s4
  loop: start=0, step=1, limit=6
  $region2: #{inception_layer_plus.3} parent=0 // loop_pre_header
    _
  $region3: #{inception_layer_plus.3} parent=0 // loop_header
    %s9 = sphi 0, %s13
    %p10 = scmp.ge.s32.totalorder %s9, 6
    %s19 = sphi 0, %s21
    %s22 = sphi 0, %s19
    %s23 = sphi 0, %s22
    %s39 = sphi 0, %s23
    %s43 = sphi 0, %s43
    %s45 = sphi 0, %s43
    %s46 = sphi 0, %s45
    %s60 = sphi 0, %s46
    %s64 = sphi 0, %s64
    %s66 = sphi 0, %s64
    %s67 = sphi 0, %s66
    %s81 = sphi 0, %s67
    %s87 = sphi 0, %s89
    %s90 = sphi 0, %s87
    %s91 = sphi 0, %s90
    %s107 = sphi 0, %s91
  $region4: #{inception_layer_plus.3} parent=0 // loop_header_branch
    %12 = sbr.rel (%p10) target = $region8
  $region5: #{inception_layer_plus.3} parent=0 // loop_body
    %s14 = ssub.s32 %s9, 1
    %s15 = ssub.s32 %s9, 2
    %s16 = sadd.s32 %s9, 1
    %s17 = ssub.s32 %s9, %s16
    %p18 = scmp.eq.s32.totalorder %s17, 0
    %s20 = sadd.s32 %s19, 1
    %s21 = scalar_select %p18, %s19, %s20
    %p24 = pneg %p18
    %p25 = scmp.eq.s32.totalorder %s9, 3
    %p26 = por %p24, %p25
    %p27 = scmp.ne.s32.totalorder %s19, %s22
    %p28 = scmp.eq.s32.totalorder %s9, 0
    %p29 = por %p27, %p28
    %p30 = scmp.ne.s32.totalorder %s19, %s22
    %p31 = scmp.eq.s32.totalorder %s14, 3
    %p32 = por %p30, %p31
    %p33 = scmp.ne.s32.totalorder %s22, %s23
    %p34 = scmp.eq.s32.totalorder %s14, 0
    %p35 = por %p33, %p34
    %p36 = scmp.ne.s32.totalorder %s22, %s23
    %p37 = scmp.eq.s32.totalorder %s15, 3
    %p38 = por %p36, %p37
    %p40 = scmp.ne.s32.totalorder %s23, %s39
    %p41 = scmp.eq.s32.totalorder %s15, 0
    %p42 = por %p40, %p41
    %s44 = sadd.s32 %s43, 1
    %p47 = scmp.eq.s32.totalorder %s9, 3
    %p48 = scmp.ne.s32.totalorder %s43, %s45
    %p49 = scmp.eq.s32.totalorder %s9, 0
    %p50 = por %p48, %p49
    %p51 = scmp.ne.s32.totalorder %s43, %s45
    %p52 = scmp.eq.s32.totalorder %s14, 3
    %p53 = por %p51, %p52
    %p54 = scmp.ne.s32.totalorder %s45, %s46
    %p55 = scmp.eq.s32.totalorder %s14, 0
    %p56 = por %p54, %p55
    %p57 = scmp.ne.s32.totalorder %s45, %s46
    %p58 = scmp.eq.s32.totalorder %s15, 3
    %p59 = por %p57, %p58
    %p61 = scmp.ne.s32.totalorder %s46, %s60
    %p62 = scmp.eq.s32.totalorder %s15, 0
    %p63 = por %p61, %p62
    %s65 = sadd.s32 %s64, 1
    %p68 = scmp.eq.s32.totalorder %s9, 3
    %p69 = scmp.ne.s32.totalorder %s64, %s66
    %p70 = scmp.eq.s32.totalorder %s9, 0
    %p71 = por %p69, %p70
    %p72 = scmp.ne.s32.totalorder %s64, %s66
    %p73 = scmp.eq.s32.totalorder %s14, 3
    %p74 = por %p72, %p73
    %p75 = scmp.ne.s32.totalorder %s66, %s67
    %p76 = scmp.eq.s32.totalorder %s14, 0
    %p77 = por %p75, %p76
    %p78 = scmp.ne.s32.totalorder %s66, %s67
    %p79 = scmp.eq.s32.totalorder %s15, 3
    %p80 = por %p78, %p79
    %p82 = scmp.ne.s32.totalorder %s67, %s81
    %p83 = scmp.eq.s32.totalorder %s15, 0
    %p84 = por %p82, %p83
    %s85 = ssub.s32 %s9, %s16
    %p86 = scmp.eq.s32.totalorder %s85, 0
    %s88 = sadd.s32 %s87, 1
    %s89 = scalar_select %p86, %s87, %s88
    %p92 = pneg %p86
    %p93 = scmp.eq.s32.totalorder %s9, 3
    %p94 = por %p92, %p93
    %p95 = scmp.ne.s32.totalorder %s87, %s90
    %p96 = scmp.eq.s32.totalorder %s9, 0
    %p97 = por %p95, %p96
    %p98 = scmp.ne.s32.totalorder %s87, %s90
    %p99 = scmp.eq.s32.totalorder %s14, 3
    %p100 = por %p98, %p99
    %p101 = scmp.ne.s32.totalorder %s90, %s91
    %p102 = scmp.eq.s32.totalorder %s14, 0
    %p103 = por %p101, %p102
    %p104 = scmp.ne.s32.totalorder %s90, %s91
    %p105 = scmp.eq.s32.totalorder %s15, 3
    %p106 = por %p104, %p105
    %p108 = scmp.ne.s32.totalorder %s91, %s107
    %p109 = scmp.eq.s32.totalorder %s15, 0
    %p110 = por %p108, %p109
    %p111 = scmp.le.s32.totalorder 1, %s9
    %p112 = scmp.lt.s32.totalorder %s9, 5
    %p113 = pnand %p111, %p112
    %p114 = pneg %p113
    // Predicated region
    $region9: #{inception_layer_plus.3} parent=5 // pred_check
      _
    $region10: #{inception_layer_plus.3} parent=5 // pred_check_branch
      %116 = sbr.rel (%p113) target = $region12
    $region11: #{inception_layer_plus.3} parent=5 // pred_region
      %s117 = ssub.s32 %s9, 1
      // Predicated region
      $region13: #{inception_layer_plus.3} parent=11 // pred_check
        %p118 = pneg %p56
      $region14: #{inception_layer_plus.3} parent=11 // pred_check_branch
        %120 = sbr.rel (%p118) target = $region16
      $region15: #{inception_layer_plus.3} parent=11 // pred_region
        _
      $region16: #{inception_layer_plus.3} parent=11 // pred_fallthru
        _
      // Predicated region
      $region17: #{inception_layer_plus.3} parent=11 // pred_check
        %p121 = pneg %p77
      $region18: #{inception_layer_plus.3} parent=11 // pred_check_branch
        %123 = sbr.rel (%p121) target = $region20
      $region19: #{inception_layer_plus.3} parent=11 // pred_region
        _
      $region20: #{inception_layer_plus.3} parent=11 // pred_fallthru
        _
    $region12: #{inception_layer_plus.3} parent=5 // pred_fallthru
      _
    %p124 = scmp.lt.s32.totalorder %s9, 4
    // Predicated region
    $region21: #{inception_layer_plus.3} parent=5 // pred_check
      %p125 = pneg %p124
    $region22: #{inception_layer_plus.3} parent=5 // pred_check_branch
      %127 = sbr.rel (%p125) target = $region24
    $region23: #{inception_layer_plus.3} parent=5 // pred_region
      // Predicated region
      $region25: #{inception_layer_plus.3} parent=23 // pred_check
        %p128 = pneg %p29
      $region26: #{inception_layer_plus.3} parent=23 // pred_check_branch
        %130 = sbr.rel (%p128) target = $region28
      $region27: #{inception_layer_plus.3} parent=23 // pred_region
        %s131 = smul.u32 128, %s9
        %p132 = scmp.lt.s32.totalorder %s131, 511
        %s133 = scalar_select %p132, %s131, 511
        %s134 = smul.addr %s133, 4
        %s135 = scalar_lea.vmem %s0, %s134
        %s136 = smul.u32 128, %s9
      $region28: #{inception_layer_plus.3} parent=23 // pred_fallthru
        _
    $region24: #{inception_layer_plus.3} parent=5 // pred_fallthru
      _
    %p137 = scmp.le.s32.totalorder 1, %s9
    %p138 = scmp.lt.s32.totalorder %s9, 5
    %p139 = pnand %p137, %p138
    %p140 = pneg %p139
    // Predicated region
    $region29: #{inception_layer_plus.3} parent=5 // pred_check
      _
    $region30: #{inception_layer_plus.3} parent=5 // pred_check_branch
      %142 = sbr.rel (%p139) target = $region32
    $region31: #{inception_layer_plus.3} parent=5 // pred_region
      %s143 = ssub.s32 %s9, 1
      %s144 = smul.u32 128, %s14
      %p145 = scmp.lt.s32.totalorder %s144, 511
      %s146 = scalar_select %p145, %s144, 511
      %s147 = smul.addr %s146, 4
      %s148 = scalar_lea.vmem %s0, %s147
      %p149 = pneg %p35
      %p150 = pneg %p32
      %p151 = pneg %p56
      %p152 = pneg %p53
      %p153 = pneg %p77
      %p154 = pneg %p74
      %p155 = pneg %p103
      %p156 = pneg %p100
      %s157 = smul.u32 128, %s14
      %p158 = scmp.lt.s32.totalorder %s157, 511
      %s159 = scalar_select %p158, %s157, 511
      %s160 = smul.addr %s159, 8
      %s161 = scalar_lea.vmem %s3, %s160
      %s162 = smul.u32 128, %s14
      %p163 = scmp.lt.s32.totalorder %s162, 511
      %s164 = scalar_select %p163, %s162, 511
      %s165 = smul.addr %s164, 4
      %s166 = scalar_lea.vmem %s0, %s165
      %s167 = smul.u32 128, %s14
      %s168 = smul.u32 128, %s14
      %p169 = scmp.lt.s32.totalorder %s168, 511
      %s170 = scalar_select %p169, %s168, 511
      %s171 = smul.addr %s170, 8
      %s172 = scalar_lea.vmem %s3, %s171
      %s173 = smul.u32 128, %s14
      %v175 = vld [vmem:[%s166] sm:$0xf]
      %v176 = vld [vmem:[%s166 + $0x4] sm:$0xf]
      %v177 = vld [vmem:[%s166 + $0x8] sm:$0xf]
      %v178 = vld [vmem:[%s166 + $0xc] sm:$0xf]
      %v179 = vld [vmem:[%s166 + $0x10] sm:$0xf]
      %v180 = vld [vmem:[%s166 + $0x14] sm:$0xf]
      %v181 = vld [vmem:[%s166 + $0x18] sm:$0xf]
      %v182 = vld [vmem:[%s166 + $0x1c] sm:$0xf]
      %v183 = vld [vmem:[%s166 + $0x20] sm:$0xf]
      %v184 = vld [vmem:[%s166 + $0x24] sm:$0xf]
      %v185 = vld [vmem:[%s166 + $0x28] sm:$0xf]
      %v186 = vld [vmem:[%s166 + $0x2c] sm:$0xf]
      %v187 = vld [vmem:[%s166 + $0x30] sm:$0xf]
      %v188 = vld [vmem:[%s166 + $0x34] sm:$0xf]
      %v189 = vld [vmem:[%s166 + $0x38] sm:$0xf]
      %v190 = vld [vmem:[%s166 + $0x3c] sm:$0xf]
      %v191 = vld [vmem:[%s166 + $0x40] sm:$0xf]
      %v192 = vld [vmem:[%s166 + $0x44] sm:$0xf]
      %v193 = vld [vmem:[%s166 + $0x48] sm:$0xf]
      %v194 = vld [vmem:[%s166 + $0x4c] sm:$0xf]
      %v195 = vld [vmem:[%s166 + $0x50] sm:$0xf]
      %v196 = vld [vmem:[%s166 + $0x54] sm:$0xf]
      %v197 = vld [vmem:[%s166 + $0x58] sm:$0xf]
      %v198 = vld [vmem:[%s166 + $0x5c] sm:$0xf]
      %v199 = vld [vmem:[%s166 + $0x60] sm:$0xf]
      %v200 = vld [vmem:[%s166 + $0x64] sm:$0xf]
      %v201 = vld [vmem:[%s166 + $0x68] sm:$0xf]
      %v202 = vld [vmem:[%s166 + $0x6c] sm:$0xf]
      %v203 = vld [vmem:[%s166 + $0x70] sm:$0xf]
      %v204 = vld [vmem:[%s166 + $0x74] sm:$0xf]
      %v205 = vld [vmem:[%s166 + $0x78] sm:$0xf]
      %v206 = vld [vmem:[%s166 + $0x7c] sm:$0xf]
      %v207 = vld [vmem:[%s166 + $0x80] sm:$0xf]
      %v208 = vld [vmem:[%s166 + $0x84] sm:$0xf]
      %v209 = vld [vmem:[%s166 + $0x88] sm:$0xf]
      %v210 = vld [vmem:[%s166 + $0x8c] sm:$0xf]
      %v211 = vld [vmem:[%s166 + $0x90] sm:$0xf]
      %v212 = vld [vmem:[%s166 + $0x94] sm:$0xf]
      %v213 = vld [vmem:[%s166 + $0x98] sm:$0xf]
      %v214 = vld [vmem:[%s166 + $0x9c] sm:$0xf]
      %v215 = vld [vmem:[%s166 + $0xa0] sm:$0xf]
      %v216 = vld [vmem:[%s166 + $0xa4] sm:$0xf]
      %v217 = vld [vmem:[%s166 + $0xa8] sm:$0xf]
      %v218 = vld [vmem:[%s166 + $0xac] sm:$0xf]
      %v219 = vld [vmem:[%s166 + $0xb0] sm:$0xf]
      %v220 = vld [vmem:[%s166 + $0xb4] sm:$0xf]
      %v221 = vld [vmem:[%s166 + $0xb8] sm:$0xf]
      %v222 = vld [vmem:[%s166 + $0xbc] sm:$0xf]
      %v223 = vld [vmem:[%s166 + $0xc0] sm:$0xf]
      %v224 = vld [vmem:[%s166 + $0xc4] sm:$0xf]
      %v225 = vld [vmem:[%s166 + $0xc8] sm:$0xf]
      %v226 = vld [vmem:[%s166 + $0xcc] sm:$0xf]
      %v227 = vld [vmem:[%s166 + $0xd0] sm:$0xf]
      %v228 = vld [vmem:[%s166 + $0xd4] sm:$0xf]
      %v229 = vld [vmem:[%s166 + $0xd8] sm:$0xf]
      %v230 = vld [vmem:[%s166 + $0xdc] sm:$0xf]
      %v231 = vld [vmem:[%s166 + $0xe0] sm:$0xf]
      %v232 = vld [vmem:[%s166 + $0xe4] sm:$0xf]
      %v233 = vld [vmem:[%s166 + $0xe8] sm:$0xf]
      %v234 = vld [vmem:[%s166 + $0xec] sm:$0xf]
      %v235 = vld [vmem:[%s166 + $0xf0] sm:$0xf]
      %v236 = vld [vmem:[%s166 + $0xf4] sm:$0xf]
      %v237 = vld [vmem:[%s166 + $0xf8] sm:$0xf]
      %v238 = vld [vmem:[%s166 + $0xfc] sm:$0xf]
      %v239 = vld [vmem:[%s166 + $0x100] sm:$0xf]
      %v240 = vld [vmem:[%s166 + $0x104] sm:$0xf]
      %v241 = vld [vmem:[%s166 + $0x108] sm:$0xf]
      %v242 = vld [vmem:[%s166 + $0x10c] sm:$0xf]
      %v243 = vld [vmem:[%s166 + $0x110] sm:$0xf]
      %v244 = vld [vmem:[%s166 + $0x114] sm:$0xf]
      %v245 = vld [vmem:[%s166 + $0x118] sm:$0xf]
      %v246 = vld [vmem:[%s166 + $0x11c] sm:$0xf]
      %v247 = vld [vmem:[%s166 + $0x120] sm:$0xf]
      %v248 = vld [vmem:[%s166 + $0x124] sm:$0xf]
      %v249 = vld [vmem:[%s166 + $0x128] sm:$0xf]
      %v250 = vld [vmem:[%s166 + $0x12c] sm:$0xf]
      %v251 = vld [vmem:[%s166 + $0x130] sm:$0xf]
      %v252 = vld [vmem:[%s166 + $0x134] sm:$0xf]
      %v253 = vld [vmem:[%s166 + $0x138] sm:$0xf]
      %v254 = vld [vmem:[%s166 + $0x13c] sm:$0xf]
      %v255 = vld [vmem:[%s166 + $0x140] sm:$0xf]
      %v256 = vld [vmem:[%s166 + $0x144] sm:$0xf]
      %v257 = vld [vmem:[%s166 + $0x148] sm:$0xf]
      %v258 = vld [vmem:[%s166 + $0x14c] sm:$0xf]
      %v259 = vld [vmem:[%s166 + $0x150] sm:$0xf]
      %v260 = vld [vmem:[%s166 + $0x154] sm:$0xf]
      %v261 = vld [vmem:[%s166 + $0x158] sm:$0xf]
      %v262 = vld [vmem:[%s166 + $0x15c] sm:$0xf]
      %v263 = vld [vmem:[%s166 + $0x160] sm:$0xf]
      %v264 = vld [vmem:[%s166 + $0x164] sm:$0xf]
      %v265 = vld [vmem:[%s166 + $0x168] sm:$0xf]
      %v266 = vld [vmem:[%s166 + $0x16c] sm:$0xf]
      %v267 = vld [vmem:[%s166 + $0x170] sm:$0xf]
      %v268 = vld [vmem:[%s166 + $0x174] sm:$0xf]
      %v269 = vld [vmem:[%s166 + $0x178] sm:$0xf]
      %v270 = vld [vmem:[%s166 + $0x17c] sm:$0xf]
      %v271 = vld [vmem:[%s166 + $0x180] sm:$0xf]
      %v272 = vld [vmem:[%s166 + $0x184] sm:$0xf]
      %v273 = vld [vmem:[%s166 + $0x188] sm:$0xf]
      %v274 = vld [vmem:[%s166 + $0x18c] sm:$0xf]
      %v275 = vld [vmem:[%s166 + $0x190] sm:$0xf]
      %v276 = vld [vmem:[%s166 + $0x194] sm:$0xf]
      %v277 = vld [vmem:[%s166 + $0x198] sm:$0xf]
      %v278 = vld [vmem:[%s166 + $0x19c] sm:$0xf]
      %v279 = vld [vmem:[%s166 + $0x1a0] sm:$0xf]
      %v280 = vld [vmem:[%s166 + $0x1a4] sm:$0xf]
      %v281 = vld [vmem:[%s166 + $0x1a8] sm:$0xf]
      %v282 = vld [vmem:[%s166 + $0x1ac] sm:$0xf]
      %v283 = vld [vmem:[%s166 + $0x1b0] sm:$0xf]
      %v284 = vld [vmem:[%s166 + $0x1b4] sm:$0xf]
      %v285 = vld [vmem:[%s166 + $0x1b8] sm:$0xf]
      %v286 = vld [vmem:[%s166 + $0x1bc] sm:$0xf]
      %v287 = vld [vmem:[%s166 + $0x1c0] sm:$0xf]
      %v288 = vld [vmem:[%s166 + $0x1c4] sm:$0xf]
      %v289 = vld [vmem:[%s166 + $0x1c8] sm:$0xf]
      %v290 = vld [vmem:[%s166 + $0x1cc] sm:$0xf]
      %v291 = vld [vmem:[%s166 + $0x1d0] sm:$0xf]
      %v292 = vld [vmem:[%s166 + $0x1d4] sm:$0xf]
      %v293 = vld [vmem:[%s166 + $0x1d8] sm:$0xf]
      %v294 = vld [vmem:[%s166 + $0x1dc] sm:$0xf]
      %v295 = vld [vmem:[%s166 + $0x1e0] sm:$0xf]
      %v296 = vld [vmem:[%s166 + $0x1e4] sm:$0xf]
      %v297 = vld [vmem:[%s166 + $0x1e8] sm:$0xf]
      %v298 = vld [vmem:[%s166 + $0x1ec] sm:$0xf]
      %v299 = vld [vmem:[%s166 + $0x1f0] sm:$0xf]
      %v300 = vld [vmem:[%s166 + $0x1f4] sm:$0xf]
      %v301 = vld [vmem:[%s166 + $0x1f8] sm:$0xf]
      %v302 = vld [vmem:[%s166 + $0x1fc] sm:$0xf]
      %v303 = vld [vmem:[%s1] sm:$0xf]
      %v304 = vld [vmem:[%s1 + $0x4] sm:$0xf]
      %v305 = vld [vmem:[%s1 + $0x8] sm:$0xf]
      %v306 = vld [vmem:[%s1 + $0xc] sm:$0xf]
      %v307 = vld [vmem:[%s1 + $0x10] sm:$0xf]
      %v308 = vld [vmem:[%s1 + $0x14] sm:$0xf]
      %v309 = vld [vmem:[%s1 + $0x18] sm:$0xf]
      %v310 = vld [vmem:[%s1 + $0x1c] sm:$0xf]
      %v311 = vld [vmem:[%s1 + $0x20] sm:$0xf]
      %v312 = vld [vmem:[%s1 + $0x24] sm:$0xf]
      %v313 = vld [vmem:[%s1 + $0x28] sm:$0xf]
      %v314 = vld [vmem:[%s1 + $0x2c] sm:$0xf]
      %v315 = vld [vmem:[%s1 + $0x30] sm:$0xf]
      %v316 = vld [vmem:[%s1 + $0x34] sm:$0x3]
      %v317 = vld [vmem:[%s2] sm:$0x1]
      %v319 = vperm.slane %v317, 0
      %v449 = vunpack.c.l.b16 %v175
      %v450 = vunpack.c.l.b16 %v176
      %v451 = vunpack.c.l.b16 %v177
      %v452 = vunpack.c.l.b16 %v178
      %v453 = vunpack.c.l.b16 %v179
      %v454 = vunpack.c.l.b16 %v180
      %v455 = vunpack.c.l.b16 %v181
      %v456 = vunpack.c.l.b16 %v182
      %v457 = vunpack.c.l.b16 %v183
      %v458 = vunpack.c.l.b16 %v184
      %v459 = vunpack.c.l.b16 %v185
      %v460 = vunpack.c.l.b16 %v186
      %v461 = vunpack.c.l.b16 %v187
      %v462 = vunpack.c.l.b16 %v188
      %v463 = vunpack.c.l.b16 %v189
      %v464 = vunpack.c.l.b16 %v190
      %v465 = vunpack.c.l.b16 %v191
      %v466 = vunpack.c.l.b16 %v192
      %v467 = vunpack.c.l.b16 %v193
      %v468 = vunpack.c.l.b16 %v194
      %v469 = vunpack.c.l.b16 %v195
      %v470 = vunpack.c.l.b16 %v196
      %v471 = vunpack.c.l.b16 %v197
      %v472 = vunpack.c.l.b16 %v198
      %v473 = vunpack.c.l.b16 %v199
      %v474 = vunpack.c.l.b16 %v200
      %v475 = vunpack.c.l.b16 %v201
      %v476 = vunpack.c.l.b16 %v202
      %v477 = vunpack.c.l.b16 %v203
      %v478 = vunpack.c.l.b16 %v204
      %v479 = vunpack.c.l.b16 %v205
      %v480 = vunpack.c.l.b16 %v206
      %v481 = vunpack.c.l.b16 %v207
      %v482 = vunpack.c.l.b16 %v208
      %v483 = vunpack.c.l.b16 %v209
      %v484 = vunpack.c.l.b16 %v210
      %v485 = vunpack.c.l.b16 %v211
      %v486 = vunpack.c.l.b16 %v212
      %v487 = vunpack.c.l.b16 %v213
      %v488 = vunpack.c.l.b16 %v214
      %v489 = vunpack.c.l.b16 %v215
      %v490 = vunpack.c.l.b16 %v216
      %v491 = vunpack.c.l.b16 %v217
      %v492 = vunpack.c.l.b16 %v218
      %v493 = vunpack.c.l.b16 %v219
      %v494 = vunpack.c.l.b16 %v220
      %v495 = vunpack.c.l.b16 %v221
      %v496 = vunpack.c.l.b16 %v222
      %v497 = vunpack.c.l.b16 %v223
      %v498 = vunpack.c.l.b16 %v224
      %v499 = vunpack.c.l.b16 %v225
      %v500 = vunpack.c.l.b16 %v226
      %v501 = vunpack.c.l.b16 %v227
      %v502 = vunpack.c.l.b16 %v228
      %v503 = vunpack.c.l.b16 %v229
      %v504 = vunpack.c.l.b16 %v230
      %v505 = vunpack.c.l.b16 %v231
      %v506 = vunpack.c.l.b16 %v232
      %v507 = vunpack.c.l.b16 %v233
      %v508 = vunpack.c.l.b16 %v234
      %v509 = vunpack.c.l.b16 %v235
      %v510 = vunpack.c.l.b16 %v236
      %v511 = vunpack.c.l.b16 %v237
      %v512 = vunpack.c.l.b16 %v238
      %v513 = vunpack.c.l.b16 %v239
      %v514 = vunpack.c.l.b16 %v240
      %v515 = vunpack.c.l.b16 %v241
      %v516 = vunpack.c.l.b16 %v242
      %v517 = vunpack.c.l.b16 %v243
      %v518 = vunpack.c.l.b16 %v244
      %v519 = vunpack.c.l.b16 %v245
      %v520 = vunpack.c.l.b16 %v246
      %v521 = vunpack.c.l.b16 %v247
      %v522 = vunpack.c.l.b16 %v248
      %v523 = vunpack.c.l.b16 %v249
      %v524 = vunpack.c.l.b16 %v250
      %v525 = vunpack.c.l.b16 %v251
      %v526 = vunpack.c.l.b16 %v252
      %v527 = vunpack.c.l.b16 %v253
      %v528 = vunpack.c.l.b16 %v254
      %v529 = vunpack.c.l.b16 %v255
      %v530 = vunpack.c.l.b16 %v256
      %v531 = vunpack.c.l.b16 %v257
      %v532 = vunpack.c.l.b16 %v258
      %v533 = vunpack.c.l.b16 %v259
      %v534 = vunpack.c.l.b16 %v260
      %v535 = vunpack.c.l.b16 %v261
      %v536 = vunpack.c.l.b16 %v262
      %v537 = vunpack.c.l.b16 %v263
      %v538 = vunpack.c.l.b16 %v264
      %v539 = vunpack.c.l.b16 %v265
      %v540 = vunpack.c.l.b16 %v266
      %v541 = vunpack.c.l.b16 %v267
      %v542 = vunpack.c.l.b16 %v268
      %v543 = vunpack.c.l.b16 %v269
      %v544 = vunpack.c.l.b16 %v270
      %v545 = vunpack.c.l.b16 %v271
      %v546 = vunpack.c.l.b16 %v272
      %v547 = vunpack.c.l.b16 %v273
      %v548 = vunpack.c.l.b16 %v274
      %v549 = vunpack.c.l.b16 %v275
      %v550 = vunpack.c.l.b16 %v276
      %v551 = vunpack.c.l.b16 %v277
      %v552 = vunpack.c.l.b16 %v278
      %v553 = vunpack.c.l.b16 %v279
      %v554 = vunpack.c.l.b16 %v280
      %v555 = vunpack.c.l.b16 %v281
      %v556 = vunpack.c.l.b16 %v282
      %v557 = vunpack.c.l.b16 %v283
      %v558 = vunpack.c.l.b16 %v284
      %v559 = vunpack.c.l.b16 %v285
      %v560 = vunpack.c.l.b16 %v286
      %v561 = vunpack.c.l.b16 %v287
      %v562 = vunpack.c.l.b16 %v288
      %v563 = vunpack.c.l.b16 %v289
      %v564 = vunpack.c.l.b16 %v290
      %v565 = vunpack.c.l.b16 %v291
      %v566 = vunpack.c.l.b16 %v292
      %v567 = vunpack.c.l.b16 %v293
      %v568 = vunpack.c.l.b16 %v294
      %v569 = vunpack.c.l.b16 %v295
      %v570 = vunpack.c.l.b16 %v296
      %v571 = vunpack.c.l.b16 %v297
      %v572 = vunpack.c.l.b16 %v298
      %v573 = vunpack.c.l.b16 %v299
      %v574 = vunpack.c.l.b16 %v300
      %v575 = vunpack.c.l.b16 %v301
      %v576 = vunpack.c.l.b16 %v302
      %v577 = vpack.c.b16 %v450, %v449
      %v578 = vpack.c.b16 %v452, %v451
      %v579 = vpack.c.b16 %v454, %v453
      %v580 = vpack.c.b16 %v456, %v455
      %v581 = vpack.c.b16 %v458, %v457
      %v582 = vpack.c.b16 %v460, %v459
      %v583 = vpack.c.b16 %v462, %v461
      %v584 = vpack.c.b16 %v464, %v463
      %v585 = vpack.c.b16 %v466, %v465
      %v586 = vpack.c.b16 %v468, %v467
      %v587 = vpack.c.b16 %v470, %v469
      %v588 = vpack.c.b16 %v472, %v471
      %v589 = vpack.c.b16 %v474, %v473
      %v590 = vpack.c.b16 %v476, %v475
      %v591 = vpack.c.b16 %v478, %v477
      %v592 = vpack.c.b16 %v480, %v479
      %v593 = vpack.c.b16 %v482, %v481
      %v594 = vpack.c.b16 %v484, %v483
      %v595 = vpack.c.b16 %v486, %v485
      %v596 = vpack.c.b16 %v488, %v487
      %v597 = vpack.c.b16 %v490, %v489
      %v598 = vpack.c.b16 %v492, %v491
      %v599 = vpack.c.b16 %v494, %v493
      %v600 = vpack.c.b16 %v496, %v495
      %v601 = vpack.c.b16 %v498, %v497
      %v602 = vpack.c.b16 %v500, %v499
      %v603 = vpack.c.b16 %v502, %v501
      %v604 = vpack.c.b16 %v504, %v503
      %v605 = vpack.c.b16 %v506, %v505
      %v606 = vpack.c.b16 %v508, %v507
      %v607 = vpack.c.b16 %v510, %v509
      %v608 = vpack.c.b16 %v512, %v511
      %v609 = vpack.c.b16 %v514, %v513
      %v610 = vpack.c.b16 %v516, %v515
      %v611 = vpack.c.b16 %v518, %v517
      %v612 = vpack.c.b16 %v520, %v519
      %v613 = vpack.c.b16 %v522, %v521
      %v614 = vpack.c.b16 %v524, %v523
      %v615 = vpack.c.b16 %v526, %v525
      %v616 = vpack.c.b16 %v528, %v527
      %v617 = vpack.c.b16 %v530, %v529
      %v618 = vpack.c.b16 %v532, %v531
      %v619 = vpack.c.b16 %v534, %v533
      %v620 = vpack.c.b16 %v536, %v535
      %v621 = vpack.c.b16 %v538, %v537
      %v622 = vpack.c.b16 %v540, %v539
      %v623 = vpack.c.b16 %v542, %v541
      %v624 = vpack.c.b16 %v544, %v543
      %v625 = vpack.c.b16 %v546, %v545
      %v626 = vpack.c.b16 %v548, %v547
      %v627 = vpack.c.b16 %v550, %v549
      %v628 = vpack.c.b16 %v552, %v551
      %v629 = vpack.c.b16 %v554, %v553
      %v630 = vpack.c.b16 %v556, %v555
      %v631 = vpack.c.b16 %v558, %v557
      %v632 = vpack.c.b16 %v560, %v559
      %v633 = vpack.c.b16 %v562, %v561
      %v634 = vpack.c.b16 %v564, %v563
      %v635 = vpack.c.b16 %v566, %v565
      %v636 = vpack.c.b16 %v568, %v567
      %v637 = vpack.c.b16 %v570, %v569
      %v638 = vpack.c.b16 %v572, %v571
      %v639 = vpack.c.b16 %v574, %v573
      %v640 = vpack.c.b16 %v576, %v575
      %v655 = vunpack.c.l.b16 %v303
      %v656 = vunpack.c.l.b16 %v304
      %v657 = vunpack.c.l.b16 %v305
      %v658 = vunpack.c.l.b16 %v306
      %v659 = vunpack.c.l.b16 %v307
      %v660 = vunpack.c.l.b16 %v308
      %v661 = vunpack.c.l.b16 %v309
      %v662 = vunpack.c.l.b16 %v310
      %v663 = vunpack.c.l.b16 %v311
      %v664 = vunpack.c.l.b16 %v312
      %v665 = vunpack.c.l.b16 %v313
      %v666 = vunpack.c.l.b16 %v314
      %v667 = vunpack.c.l.b16 %v315
      %v668 = vunpack.c.l.b16 %v316
      %v669 = vpack.c.b16 %v656, %v655
      %v670 = vpack.c.b16 %v658, %v657
      %v671 = vpack.c.b16 %v660, %v659
      %v672 = vpack.c.b16 %v662, %v661
      %v673 = vpack.c.b16 %v664, %v663
      %v674 = vpack.c.b16 %v666, %v665
      %v675 = vpack.c.b16 %v668, %v667
      %vm682 = vcmask 883712
      %v684 = vsel %vm682, %v577, 0
      %v687 = vsel %vm682, %v578, 0
      %v690 = vsel %vm682, %v579, 0
      %v693 = vsel %vm682, %v580, 0
      %v696 = vsel %vm682, %v581, 0
      %v699 = vsel %vm682, %v582, 0
      %v702 = vsel %vm682, %v583, 0
      %v705 = vsel %vm682, %v584, 0
      %v708 = vsel %vm682, %v585, 0
      %v711 = vsel %vm682, %v586, 0
      %v714 = vsel %vm682, %v587, 0
      %v717 = vsel %vm682, %v588, 0
      %v720 = vsel %vm682, %v589, 0
      %v723 = vsel %vm682, %v590, 0
      %v726 = vsel %vm682, %v591, 0
      %v729 = vsel %vm682, %v592, 0
      %v732 = vsel %vm682, %v593, 0
      %v735 = vsel %vm682, %v594, 0
      %v738 = vsel %vm682, %v595, 0
      %v741 = vsel %vm682, %v596, 0
      %v744 = vsel %vm682, %v597, 0
      %v747 = vsel %vm682, %v598, 0
      %v750 = vsel %vm682, %v599, 0
      %v753 = vsel %vm682, %v600, 0
      %v756 = vsel %vm682, %v601, 0
      %v759 = vsel %vm682, %v602, 0
      %v762 = vsel %vm682, %v603, 0
      %v765 = vsel %vm682, %v604, 0
      %v768 = vsel %vm682, %v605, 0
      %v771 = vsel %vm682, %v606, 0
      %v774 = vsel %vm682, %v607, 0
      %v777 = vsel %vm682, %v608, 0
      %v780 = vsel %vm682, %v609, 0
      %v783 = vsel %vm682, %v610, 0
      %v786 = vsel %vm682, %v611, 0
      %v789 = vsel %vm682, %v612, 0
      %v792 = vsel %vm682, %v613, 0
      %v795 = vsel %vm682, %v614, 0
      %v798 = vsel %vm682, %v615, 0
      %v801 = vsel %vm682, %v616, 0
      %v804 = vsel %vm682, %v617, 0
      %v807 = vsel %vm682, %v618, 0
      %v810 = vsel %vm682, %v619, 0
      %v813 = vsel %vm682, %v620, 0
      %v816 = vsel %vm682, %v621, 0
      %v819 = vsel %vm682, %v622, 0
      %v822 = vsel %vm682, %v623, 0
      %v825 = vsel %vm682, %v624, 0
      %v828 = vsel %vm682, %v625, 0
      %v831 = vsel %vm682, %v626, 0
      %v834 = vsel %vm682, %v627, 0
      %v837 = vsel %vm682, %v628, 0
      %v840 = vsel %vm682, %v629, 0
      %v843 = vsel %vm682, %v630, 0
      %v846 = vsel %vm682, %v631, 0
      %v849 = vsel %vm682, %v632, 0
      %v852 = vsel %vm682, %v633, 0
      %v855 = vsel %vm682, %v634, 0
      %v858 = vsel %vm682, %v635, 0
      %v861 = vsel %vm682, %v636, 0
      %v864 = vsel %vm682, %v637, 0
      %v867 = vsel %vm682, %v638, 0
      %v870 = vsel %vm682, %v639, 0
      %v873 = vsel %vm682, %v640, 0
      %vm875 = vcmask 1045504
      %v877 = vsel %vm875, %v675, 0
      %879 = vmatpush.bf16.msra.mxu0 0
      %880 = vmatpush.bf16.msra.mxu0 %v877
      %881 = vmatpush.bf16.msra.mxu0 %v674
      %882 = vmatpush.bf16.msra.mxu0 %v673
      %883 = vmatpush.bf16.msra.mxu0 %v672
      %884 = vmatpush.bf16.msra.mxu0 %v671
      %885 = vmatpush.bf16.msra.mxu0 %v670
      %886 = vmatpush.bf16.msra.mxu0 %v669
      %887 = vmatmul.bf16.gmra.mxu0 %v684
      %v888 = vpop.f32.mrf.mxu0
      %v889 = vadd.f32 %v319, %v888
      %v890 = vpop.f32.mrf.mxu0
      %v891 = vadd.f32 %v319, %v890
      %892 = vmatmul.bf16.gmra.mxu0 %v687
      %v893 = vpop.f32.mrf.mxu0
      %v894 = vadd.f32 %v319, %v893
      %v895 = vpop.f32.mrf.mxu0
      %v896 = vadd.f32 %v319, %v895
      %897 = vmatmul.bf16.gmra.mxu0 %v690
      %v898 = vpop.f32.mrf.mxu0
      %v899 = vadd.f32 %v319, %v898
      %v900 = vpop.f32.mrf.mxu0
      %v901 = vadd.f32 %v319, %v900
      %902 = vmatmul.bf16.gmra.mxu0 %v693
      %v903 = vpop.f32.mrf.mxu0
      %v904 = vadd.f32 %v319, %v903
      %v905 = vpop.f32.mrf.mxu0
      %v906 = vadd.f32 %v319, %v905
      %907 = vmatmul.bf16.gmra.mxu0 %v696
      %v908 = vpop.f32.mrf.mxu0
      %v909 = vadd.f32 %v319, %v908
      %v910 = vpop.f32.mrf.mxu0
      %v911 = vadd.f32 %v319, %v910
      %912 = vmatmul.bf16.gmra.mxu0 %v699
      %v913 = vpop.f32.mrf.mxu0
      %v914 = vadd.f32 %v319, %v913
      %v915 = vpop.f32.mrf.mxu0
      %v916 = vadd.f32 %v319, %v915
      %917 = vmatmul.bf16.gmra.mxu0 %v702
      %v918 = vpop.f32.mrf.mxu0
      %v919 = vadd.f32 %v319, %v918
      %v920 = vpop.f32.mrf.mxu0
      %v921 = vadd.f32 %v319, %v920
      %922 = vmatmul.bf16.gmra.mxu0 %v705
      %v923 = vpop.f32.mrf.mxu0
      %v924 = vadd.f32 %v319, %v923
      %v925 = vpop.f32.mrf.mxu0
      %v926 = vadd.f32 %v319, %v925
      %927 = vmatmul.bf16.gmra.mxu0 %v708
      %v928 = vpop.f32.mrf.mxu0
      %v929 = vadd.f32 %v319, %v928
      %v930 = vpop.f32.mrf.mxu0
      %v931 = vadd.f32 %v319, %v930
      %932 = vmatmul.bf16.gmra.mxu0 %v711
      %v933 = vpop.f32.mrf.mxu0
      %v934 = vadd.f32 %v319, %v933
      %v935 = vpop.f32.mrf.mxu0
      %v936 = vadd.f32 %v319, %v935
      %937 = vmatmul.bf16.gmra.mxu0 %v714
      %v938 = vpop.f32.mrf.mxu0
      %v939 = vadd.f32 %v319, %v938
      %v940 = vpop.f32.mrf.mxu0
      %v941 = vadd.f32 %v319, %v940
      %942 = vmatmul.bf16.gmra.mxu0 %v717
      %v943 = vpop.f32.mrf.mxu0
      %v944 = vadd.f32 %v319, %v943
      %v945 = vpop.f32.mrf.mxu0
      %v946 = vadd.f32 %v319, %v945
      %947 = vmatmul.bf16.gmra.mxu0 %v720
      %v948 = vpop.f32.mrf.mxu0
      %v949 = vadd.f32 %v319, %v948
      %v950 = vpop.f32.mrf.mxu0
      %v951 = vadd.f32 %v319, %v950
      %952 = vmatmul.bf16.gmra.mxu0 %v723
      %v953 = vpop.f32.mrf.mxu0
      %v954 = vadd.f32 %v319, %v953
      %v955 = vpop.f32.mrf.mxu0
      %v956 = vadd.f32 %v319, %v955
      %957 = vmatmul.bf16.gmra.mxu0 %v726
      %v958 = vpop.f32.mrf.mxu0
      %v959 = vadd.f32 %v319, %v958
      %v960 = vpop.f32.mrf.mxu0
      %v961 = vadd.f32 %v319, %v960
      %962 = vmatmul.bf16.gmra.mxu0 %v729
      %v963 = vpop.f32.mrf.mxu0
      %v964 = vadd.f32 %v319, %v963
      %v965 = vpop.f32.mrf.mxu0
      %v966 = vadd.f32 %v319, %v965
      %967 = vmatmul.bf16.gmra.mxu0 %v732
      %v968 = vpop.f32.mrf.mxu0
      %v969 = vadd.f32 %v319, %v968
      %v970 = vpop.f32.mrf.mxu0
      %v971 = vadd.f32 %v319, %v970
      %972 = vmatmul.bf16.gmra.mxu0 %v735
      %v973 = vpop.f32.mrf.mxu0
      %v974 = vadd.f32 %v319, %v973
      %v975 = vpop.f32.mrf.mxu0
      %v976 = vadd.f32 %v319, %v975
      %977 = vmatmul.bf16.gmra.mxu0 %v738
      %v978 = vpop.f32.mrf.mxu0
      %v979 = vadd.f32 %v319, %v978
      %v980 = vpop.f32.mrf.mxu0
      %v981 = vadd.f32 %v319, %v980
      %982 = vmatmul.bf16.gmra.mxu0 %v741
      %v983 = vpop.f32.mrf.mxu0
      %v984 = vadd.f32 %v319, %v983
      %v985 = vpop.f32.mrf.mxu0
      %v986 = vadd.f32 %v319, %v985
      %987 = vmatmul.bf16.gmra.mxu0 %v744
      %v988 = vpop.f32.mrf.mxu0
      %v989 = vadd.f32 %v319, %v988
      %v990 = vpop.f32.mrf.mxu0
      %v991 = vadd.f32 %v319, %v990
      %992 = vmatmul.bf16.gmra.mxu0 %v747
      %v993 = vpop.f32.mrf.mxu0
      %v994 = vadd.f32 %v319, %v993
      %v995 = vpop.f32.mrf.mxu0
      %v996 = vadd.f32 %v319, %v995
      %997 = vmatmul.bf16.gmra.mxu0 %v750
      %v998 = vpop.f32.mrf.mxu0
      %v999 = vadd.f32 %v319, %v998
      %v1000 = vpop.f32.mrf.mxu0
      %v1001 = vadd.f32 %v319, %v1000
      %1002 = vmatmul.bf16.gmra.mxu0 %v753
      %v1003 = vpop.f32.mrf.mxu0
      %v1004 = vadd.f32 %v319, %v1003
      %v1005 = vpop.f32.mrf.mxu0
      %v1006 = vadd.f32 %v319, %v1005
      %1007 = vmatmul.bf16.gmra.mxu0 %v756
      %v1008 = vpop.f32.mrf.mxu0
      %v1009 = vadd.f32 %v319, %v1008
      %v1010 = vpop.f32.mrf.mxu0
      %v1011 = vadd.f32 %v319, %v1010
      %1012 = vmatmul.bf16.gmra.mxu0 %v759
      %v1013 = vpop.f32.mrf.mxu0
      %v1014 = vadd.f32 %v319, %v1013
      %v1015 = vpop.f32.mrf.mxu0
      %v1016 = vadd.f32 %v319, %v1015
      %1017 = vmatmul.bf16.gmra.mxu0 %v762
      %v1018 = vpop.f32.mrf.mxu0
      %v1019 = vadd.f32 %v319, %v1018
      %v1020 = vpop.f32.mrf.mxu0
      %v1021 = vadd.f32 %v319, %v1020
      %1022 = vmatmul.bf16.gmra.mxu0 %v765
      %v1023 = vpop.f32.mrf.mxu0
      %v1024 = vadd.f32 %v319, %v1023
      %v1025 = vpop.f32.mrf.mxu0
      %v1026 = vadd.f32 %v319, %v1025
      %1027 = vmatmul.bf16.gmra.mxu0 %v768
      %v1028 = vpop.f32.mrf.mxu0
      %v1029 = vadd.f32 %v319, %v1028
      %v1030 = vpop.f32.mrf.mxu0
      %v1031 = vadd.f32 %v319, %v1030
      %1032 = vmatmul.bf16.gmra.mxu0 %v771
      %v1033 = vpop.f32.mrf.mxu0
      %v1034 = vadd.f32 %v319, %v1033
      %v1035 = vpop.f32.mrf.mxu0
      %v1036 = vadd.f32 %v319, %v1035
      %1037 = vmatmul.bf16.gmra.mxu0 %v774
      %v1038 = vpop.f32.mrf.mxu0
      %v1039 = vadd.f32 %v319, %v1038
      %v1040 = vpop.f32.mrf.mxu0
      %v1041 = vadd.f32 %v319, %v1040
      %1042 = vmatmul.bf16.gmra.mxu0 %v777
      %v1043 = vpop.f32.mrf.mxu0
      %v1044 = vadd.f32 %v319, %v1043
      %v1045 = vpop.f32.mrf.mxu0
      %v1046 = vadd.f32 %v319, %v1045
      %1047 = vmatmul.bf16.gmra.mxu0 %v780
      %v1048 = vpop.f32.mrf.mxu0
      %v1049 = vadd.f32 %v319, %v1048
      %v1050 = vpop.f32.mrf.mxu0
      %v1051 = vadd.f32 %v319, %v1050
      %1052 = vmatmul.bf16.gmra.mxu0 %v783
      %v1053 = vpop.f32.mrf.mxu0
      %v1054 = vadd.f32 %v319, %v1053
      %v1055 = vpop.f32.mrf.mxu0
      %v1056 = vadd.f32 %v319, %v1055
      %1057 = vmatmul.bf16.gmra.mxu0 %v786
      %v1058 = vpop.f32.mrf.mxu0
      %v1059 = vadd.f32 %v319, %v1058
      %v1060 = vpop.f32.mrf.mxu0
      %v1061 = vadd.f32 %v319, %v1060
      %1062 = vmatmul.bf16.gmra.mxu0 %v789
      %v1063 = vpop.f32.mrf.mxu0
      %v1064 = vadd.f32 %v319, %v1063
      %v1065 = vpop.f32.mrf.mxu0
      %v1066 = vadd.f32 %v319, %v1065
      %1067 = vmatmul.bf16.gmra.mxu0 %v792
      %v1068 = vpop.f32.mrf.mxu0
      %v1069 = vadd.f32 %v319, %v1068
      %v1070 = vpop.f32.mrf.mxu0
      %v1071 = vadd.f32 %v319, %v1070
      %1072 = vmatmul.bf16.gmra.mxu0 %v795
      %v1073 = vpop.f32.mrf.mxu0
      %v1074 = vadd.f32 %v319, %v1073
      %v1075 = vpop.f32.mrf.mxu0
      %v1076 = vadd.f32 %v319, %v1075
      %1077 = vmatmul.bf16.gmra.mxu0 %v798
      %v1078 = vpop.f32.mrf.mxu0
      %v1079 = vadd.f32 %v319, %v1078
      %v1080 = vpop.f32.mrf.mxu0
      %v1081 = vadd.f32 %v319, %v1080
      %1082 = vmatmul.bf16.gmra.mxu0 %v801
      %v1083 = vpop.f32.mrf.mxu0
      %v1084 = vadd.f32 %v319, %v1083
      %v1085 = vpop.f32.mrf.mxu0
      %v1086 = vadd.f32 %v319, %v1085
      %1087 = vmatmul.bf16.gmra.mxu0 %v804
      %v1088 = vpop.f32.mrf.mxu0
      %v1089 = vadd.f32 %v319, %v1088
      %v1090 = vpop.f32.mrf.mxu0
      %v1091 = vadd.f32 %v319, %v1090
      %1092 = vmatmul.bf16.gmra.mxu0 %v807
      %v1093 = vpop.f32.mrf.mxu0
      %v1094 = vadd.f32 %v319, %v1093
      %v1095 = vpop.f32.mrf.mxu0
      %v1096 = vadd.f32 %v319, %v1095
      %1097 = vmatmul.bf16.gmra.mxu0 %v810
      %v1098 = vpop.f32.mrf.mxu0
      %v1099 = vadd.f32 %v319, %v1098
      %v1100 = vpop.f32.mrf.mxu0
      %v1101 = vadd.f32 %v319, %v1100
      %1102 = vmatmul.bf16.gmra.mxu0 %v813
      %v1103 = vpop.f32.mrf.mxu0
      %v1104 = vadd.f32 %v319, %v1103
      %v1105 = vpop.f32.mrf.mxu0
      %v1106 = vadd.f32 %v319, %v1105
      %1107 = vmatmul.bf16.gmra.mxu0 %v816
      %v1108 = vpop.f32.mrf.mxu0
      %v1109 = vadd.f32 %v319, %v1108
      %v1110 = vpop.f32.mrf.mxu0
      %v1111 = vadd.f32 %v319, %v1110
      %1112 = vmatmul.bf16.gmra.mxu0 %v819
      %v1113 = vpop.f32.mrf.mxu0
      %v1114 = vadd.f32 %v319, %v1113
      %v1115 = vpop.f32.mrf.mxu0
      %v1116 = vadd.f32 %v319, %v1115
      %1117 = vmatmul.bf16.gmra.mxu0 %v822
      %v1118 = vpop.f32.mrf.mxu0
      %v1119 = vadd.f32 %v319, %v1118
      %v1120 = vpop.f32.mrf.mxu0
      %v1121 = vadd.f32 %v319, %v1120
      %1122 = vmatmul.bf16.gmra.mxu0 %v825
      %v1123 = vpop.f32.mrf.mxu0
      %v1124 = vadd.f32 %v319, %v1123
      %v1125 = vpop.f32.mrf.mxu0
      %v1126 = vadd.f32 %v319, %v1125
      %1127 = vmatmul.bf16.gmra.mxu0 %v828
      %v1128 = vpop.f32.mrf.mxu0
      %v1129 = vadd.f32 %v319, %v1128
      %v1130 = vpop.f32.mrf.mxu0
      %v1131 = vadd.f32 %v319, %v1130
      %1132 = vmatmul.bf16.gmra.mxu0 %v831
      %v1133 = vpop.f32.mrf.mxu0
      %v1134 = vadd.f32 %v319, %v1133
      %v1135 = vpop.f32.mrf.mxu0
      %v1136 = vadd.f32 %v319, %v1135
      %1137 = vmatmul.bf16.gmra.mxu0 %v834
      %v1138 = vpop.f32.mrf.mxu0
      %v1139 = vadd.f32 %v319, %v1138
      %v1140 = vpop.f32.mrf.mxu0
      %v1141 = vadd.f32 %v319, %v1140
      %1142 = vmatmul.bf16.gmra.mxu0 %v837
      %v1143 = vpop.f32.mrf.mxu0
      %v1144 = vadd.f32 %v319, %v1143
      %v1145 = vpop.f32.mrf.mxu0
      %v1146 = vadd.f32 %v319, %v1145
      %1147 = vmatmul.bf16.gmra.mxu0 %v840
      %v1148 = vpop.f32.mrf.mxu0
      %v1149 = vadd.f32 %v319, %v1148
      %v1150 = vpop.f32.mrf.mxu0
      %v1151 = vadd.f32 %v319, %v1150
      %1152 = vmatmul.bf16.gmra.mxu0 %v843
      %v1153 = vpop.f32.mrf.mxu0
      %v1154 = vadd.f32 %v319, %v1153
      %v1155 = vpop.f32.mrf.mxu0
      %v1156 = vadd.f32 %v319, %v1155
      %1157 = vmatmul.bf16.gmra.mxu0 %v846
      %v1158 = vpop.f32.mrf.mxu0
      %v1159 = vadd.f32 %v319, %v1158
      %v1160 = vpop.f32.mrf.mxu0
      %v1161 = vadd.f32 %v319, %v1160
      %1162 = vmatmul.bf16.gmra.mxu0 %v849
      %v1163 = vpop.f32.mrf.mxu0
      %v1164 = vadd.f32 %v319, %v1163
      %v1165 = vpop.f32.mrf.mxu0
      %v1166 = vadd.f32 %v319, %v1165
      %1167 = vmatmul.bf16.gmra.mxu0 %v852
      %v1168 = vpop.f32.mrf.mxu0
      %v1169 = vadd.f32 %v319, %v1168
      %v1170 = vpop.f32.mrf.mxu0
      %v1171 = vadd.f32 %v319, %v1170
      %1172 = vmatmul.bf16.gmra.mxu0 %v855
      %v1173 = vpop.f32.mrf.mxu0
      %v1174 = vadd.f32 %v319, %v1173
      %v1175 = vpop.f32.mrf.mxu0
      %v1176 = vadd.f32 %v319, %v1175
      %1177 = vmatmul.bf16.gmra.mxu0 %v858
      %v1178 = vpop.f32.mrf.mxu0
      %v1179 = vadd.f32 %v319, %v1178
      %v1180 = vpop.f32.mrf.mxu0
      %v1181 = vadd.f32 %v319, %v1180
      %1182 = vmatmul.bf16.gmra.mxu0 %v861
      %v1183 = vpop.f32.mrf.mxu0
      %v1184 = vadd.f32 %v319, %v1183
      %v1185 = vpop.f32.mrf.mxu0
      %v1186 = vadd.f32 %v319, %v1185
      %1187 = vmatmul.bf16.gmra.mxu0 %v864
      %v1188 = vpop.f32.mrf.mxu0
      %v1189 = vadd.f32 %v319, %v1188
      %v1190 = vpop.f32.mrf.mxu0
      %v1191 = vadd.f32 %v319, %v1190
      %1192 = vmatmul.bf16.gmra.mxu0 %v867
      %v1193 = vpop.f32.mrf.mxu0
      %v1194 = vadd.f32 %v319, %v1193
      %v1195 = vpop.f32.mrf.mxu0
      %v1196 = vadd.f32 %v319, %v1195
      %1197 = vmatmul.bf16.gmra.mxu0 %v870
      %v1198 = vpop.f32.mrf.mxu0
      %v1199 = vadd.f32 %v319, %v1198
      %v1200 = vpop.f32.mrf.mxu0
      %v1201 = vadd.f32 %v319, %v1200
      %1202 = vmatmul.bf16.gmra.mxu0 %v873
      %v1203 = vpop.f32.mrf.mxu0
      %v1204 = vadd.f32 %v319, %v1203
      %v1205 = vpop.f32.mrf.mxu0
      %v1206 = vadd.f32 %v319, %v1205
      %1207 = vdwg.mxu0
      %vm1208 = vcmask 195584
      %1209 = vst.msk [vmem:[%s172] sm:$0xff] %vm1208, %v889
      %1210 = vst.msk [vmem:[%s172 + $0x8] sm:$0xff] %vm1208, %v891
      %1211 = vst.msk [vmem:[%s172 + $0x10] sm:$0xff] %vm1208, %v894
      %1212 = vst.msk [vmem:[%s172 + $0x18] sm:$0xff] %vm1208, %v896
      %1213 = vst.msk [vmem:[%s172 + $0x20] sm:$0xff] %vm1208, %v899
      %1214 = vst.msk [vmem:[%s172 + $0x28] sm:$0xff] %vm1208, %v901
      %1215 = vst.msk [vmem:[%s172 + $0x30] sm:$0xff] %vm1208, %v904
      %1216 = vst.msk [vmem:[%s172 + $0x38] sm:$0xff] %vm1208, %v906
      %1217 = vst.msk [vmem:[%s172 + $0x40] sm:$0xff] %vm1208, %v909
      %1218 = vst.msk [vmem:[%s172 + $0x48] sm:$0xff] %vm1208, %v911
      %1219 = vst.msk [vmem:[%s172 + $0x50] sm:$0xff] %vm1208, %v914
      %1220 = vst.msk [vmem:[%s172 + $0x58] sm:$0xff] %vm1208, %v916
      %1221 = vst.msk [vmem:[%s172 + $0x60] sm:$0xff] %vm1208, %v919
      %1222 = vst.msk [vmem:[%s172 + $0x68] sm:$0xff] %vm1208, %v921
      %1223 = vst.msk [vmem:[%s172 + $0x70] sm:$0xff] %vm1208, %v924
      %1224 = vst.msk [vmem:[%s172 + $0x78] sm:$0xff] %vm1208, %v926
      %1225 = vst.msk [vmem:[%s172 + $0x80] sm:$0xff] %vm1208, %v929
      %1226 = vst.msk [vmem:[%s172 + $0x88] sm:$0xff] %vm1208, %v931
      %1227 = vst.msk [vmem:[%s172 + $0x90] sm:$0xff] %vm1208, %v934
      %1228 = vst.msk [vmem:[%s172 + $0x98] sm:$0xff] %vm1208, %v936
      %1229 = vst.msk [vmem:[%s172 + $0xa0] sm:$0xff] %vm1208, %v939
      %1230 = vst.msk [vmem:[%s172 + $0xa8] sm:$0xff] %vm1208, %v941
      %1231 = vst.msk [vmem:[%s172 + $0xb0] sm:$0xff] %vm1208, %v944
      %1232 = vst.msk [vmem:[%s172 + $0xb8] sm:$0xff] %vm1208, %v946
      %1233 = vst.msk [vmem:[%s172 + $0xc0] sm:$0xff] %vm1208, %v949
      %1234 = vst.msk [vmem:[%s172 + $0xc8] sm:$0xff] %vm1208, %v951
      %1235 = vst.msk [vmem:[%s172 + $0xd0] sm:$0xff] %vm1208, %v954
      %1236 = vst.msk [vmem:[%s172 + $0xd8] sm:$0xff] %vm1208, %v956
      %1237 = vst.msk [vmem:[%s172 + $0xe0] sm:$0xff] %vm1208, %v959
      %1238 = vst.msk [vmem:[%s172 + $0xe8] sm:$0xff] %vm1208, %v961
      %1239 = vst.msk [vmem:[%s172 + $0xf0] sm:$0xff] %vm1208, %v964
      %1240 = vst.msk [vmem:[%s172 + $0xf8] sm:$0xff] %vm1208, %v966
      %1241 = vst.msk [vmem:[%s172 + $0x100] sm:$0xff] %vm1208, %v969
      %1242 = vst.msk [vmem:[%s172 + $0x108] sm:$0xff] %vm1208, %v971
      %1243 = vst.msk [vmem:[%s172 + $0x110] sm:$0xff] %vm1208, %v974
      %1244 = vst.msk [vmem:[%s172 + $0x118] sm:$0xff] %vm1208, %v976
      %1245 = vst.msk [vmem:[%s172 + $0x120] sm:$0xff] %vm1208, %v979
      %1246 = vst.msk [vmem:[%s172 + $0x128] sm:$0xff] %vm1208, %v981
      %1247 = vst.msk [vmem:[%s172 + $0x130] sm:$0xff] %vm1208, %v984
      %1248 = vst.msk [vmem:[%s172 + $0x138] sm:$0xff] %vm1208, %v986
      %1249 = vst.msk [vmem:[%s172 + $0x140] sm:$0xff] %vm1208, %v989
      %1250 = vst.msk [vmem:[%s172 + $0x148] sm:$0xff] %vm1208, %v991
      %1251 = vst.msk [vmem:[%s172 + $0x150] sm:$0xff] %vm1208, %v994
      %1252 = vst.msk [vmem:[%s172 + $0x158] sm:$0xff] %vm1208, %v996
      %1253 = vst.msk [vmem:[%s172 + $0x160] sm:$0xff] %vm1208, %v999
      %1254 = vst.msk [vmem:[%s172 + $0x168] sm:$0xff] %vm1208, %v1001
      %1255 = vst.msk [vmem:[%s172 + $0x170] sm:$0xff] %vm1208, %v1004
      %1256 = vst.msk [vmem:[%s172 + $0x178] sm:$0xff] %vm1208, %v1006
      %1257 = vst.msk [vmem:[%s172 + $0x180] sm:$0xff] %vm1208, %v1009
      %1258 = vst.msk [vmem:[%s172 + $0x188] sm:$0xff] %vm1208, %v1011
      %1259 = vst.msk [vmem:[%s172 + $0x190] sm:$0xff] %vm1208, %v1014
      %1260 = vst.msk [vmem:[%s172 + $0x198] sm:$0xff] %vm1208, %v1016
      %1261 = vst.msk [vmem:[%s172 + $0x1a0] sm:$0xff] %vm1208, %v1019
      %1262 = vst.msk [vmem:[%s172 + $0x1a8] sm:$0xff] %vm1208, %v1021
      %1263 = vst.msk [vmem:[%s172 + $0x1b0] sm:$0xff] %vm1208, %v1024
      %1264 = vst.msk [vmem:[%s172 + $0x1b8] sm:$0xff] %vm1208, %v1026
      %1265 = vst.msk [vmem:[%s172 + $0x1c0] sm:$0xff] %vm1208, %v1029
      %1266 = vst.msk [vmem:[%s172 + $0x1c8] sm:$0xff] %vm1208, %v1031
      %1267 = vst.msk [vmem:[%s172 + $0x1d0] sm:$0xff] %vm1208, %v1034
      %1268 = vst.msk [vmem:[%s172 + $0x1d8] sm:$0xff] %vm1208, %v1036
      %1269 = vst.msk [vmem:[%s172 + $0x1e0] sm:$0xff] %vm1208, %v1039
      %1270 = vst.msk [vmem:[%s172 + $0x1e8] sm:$0xff] %vm1208, %v1041
      %1271 = vst.msk [vmem:[%s172 + $0x1f0] sm:$0xff] %vm1208, %v1044
      %1272 = vst.msk [vmem:[%s172 + $0x1f8] sm:$0xff] %vm1208, %v1046
      %1273 = vst.msk [vmem:[%s172 + $0x200] sm:$0xff] %vm1208, %v1049
      %1274 = vst.msk [vmem:[%s172 + $0x208] sm:$0xff] %vm1208, %v1051
      %1275 = vst.msk [vmem:[%s172 + $0x210] sm:$0xff] %vm1208, %v1054
      %1276 = vst.msk [vmem:[%s172 + $0x218] sm:$0xff] %vm1208, %v1056
      %1277 = vst.msk [vmem:[%s172 + $0x220] sm:$0xff] %vm1208, %v1059
      %1278 = vst.msk [vmem:[%s172 + $0x228] sm:$0xff] %vm1208, %v1061
      %1279 = vst.msk [vmem:[%s172 + $0x230] sm:$0xff] %vm1208, %v1064
      %1280 = vst.msk [vmem:[%s172 + $0x238] sm:$0xff] %vm1208, %v1066
      %1281 = vst.msk [vmem:[%s172 + $0x240] sm:$0xff] %vm1208, %v1069
      %1282 = vst.msk [vmem:[%s172 + $0x248] sm:$0xff] %vm1208, %v1071
      %1283 = vst.msk [vmem:[%s172 + $0x250] sm:$0xff] %vm1208, %v1074
      %1284 = vst.msk [vmem:[%s172 + $0x258] sm:$0xff] %vm1208, %v1076
      %1285 = vst.msk [vmem:[%s172 + $0x260] sm:$0xff] %vm1208, %v1079
      %1286 = vst.msk [vmem:[%s172 + $0x268] sm:$0xff] %vm1208, %v1081
      %1287 = vst.msk [vmem:[%s172 + $0x270] sm:$0xff] %vm1208, %v1084
      %1288 = vst.msk [vmem:[%s172 + $0x278] sm:$0xff] %vm1208, %v1086
      %1289 = vst.msk [vmem:[%s172 + $0x280] sm:$0xff] %vm1208, %v1089
      %1290 = vst.msk [vmem:[%s172 + $0x288] sm:$0xff] %vm1208, %v1091
      %1291 = vst.msk [vmem:[%s172 + $0x290] sm:$0xff] %vm1208, %v1094
      %1292 = vst.msk [vmem:[%s172 + $0x298] sm:$0xff] %vm1208, %v1096
      %1293 = vst.msk [vmem:[%s172 + $0x2a0] sm:$0xff] %vm1208, %v1099
      %1294 = vst.msk [vmem:[%s172 + $0x2a8] sm:$0xff] %vm1208, %v1101
      %1295 = vst.msk [vmem:[%s172 + $0x2b0] sm:$0xff] %vm1208, %v1104
      %1296 = vst.msk [vmem:[%s172 + $0x2b8] sm:$0xff] %vm1208, %v1106
      %1297 = vst.msk [vmem:[%s172 + $0x2c0] sm:$0xff] %vm1208, %v1109
      %1298 = vst.msk [vmem:[%s172 + $0x2c8] sm:$0xff] %vm1208, %v1111
      %1299 = vst.msk [vmem:[%s172 + $0x2d0] sm:$0xff] %vm1208, %v1114
      %1300 = vst.msk [vmem:[%s172 + $0x2d8] sm:$0xff] %vm1208, %v1116
      %1301 = vst.msk [vmem:[%s172 + $0x2e0] sm:$0xff] %vm1208, %v1119
      %1302 = vst.msk [vmem:[%s172 + $0x2e8] sm:$0xff] %vm1208, %v1121
      %1303 = vst.msk [vmem:[%s172 + $0x2f0] sm:$0xff] %vm1208, %v1124
      %1304 = vst.msk [vmem:[%s172 + $0x2f8] sm:$0xff] %vm1208, %v1126
      %1305 = vst.msk [vmem:[%s172 + $0x300] sm:$0xff] %vm1208, %v1129
      %1306 = vst.msk [vmem:[%s172 + $0x308] sm:$0xff] %vm1208, %v1131
      %1307 = vst.msk [vmem:[%s172 + $0x310] sm:$0xff] %vm1208, %v1134
      %1308 = vst.msk [vmem:[%s172 + $0x318] sm:$0xff] %vm1208, %v1136
      %1309 = vst.msk [vmem:[%s172 + $0x320] sm:$0xff] %vm1208, %v1139
      %1310 = vst.msk [vmem:[%s172 + $0x328] sm:$0xff] %vm1208, %v1141
      %1311 = vst.msk [vmem:[%s172 + $0x330] sm:$0xff] %vm1208, %v1144
      %1312 = vst.msk [vmem:[%s172 + $0x338] sm:$0xff] %vm1208, %v1146
      %1313 = vst.msk [vmem:[%s172 + $0x340] sm:$0xff] %vm1208, %v1149
      %1314 = vst.msk [vmem:[%s172 + $0x348] sm:$0xff] %vm1208, %v1151
      %1315 = vst.msk [vmem:[%s172 + $0x350] sm:$0xff] %vm1208, %v1154
      %1316 = vst.msk [vmem:[%s172 + $0x358] sm:$0xff] %vm1208, %v1156
      %1317 = vst.msk [vmem:[%s172 + $0x360] sm:$0xff] %vm1208, %v1159
      %1318 = vst.msk [vmem:[%s172 + $0x368] sm:$0xff] %vm1208, %v1161
      %1319 = vst.msk [vmem:[%s172 + $0x370] sm:$0xff] %vm1208, %v1164
      %1320 = vst.msk [vmem:[%s172 + $0x378] sm:$0xff] %vm1208, %v1166
      %1321 = vst.msk [vmem:[%s172 + $0x380] sm:$0xff] %vm1208, %v1169
      %1322 = vst.msk [vmem:[%s172 + $0x388] sm:$0xff] %vm1208, %v1171
      %1323 = vst.msk [vmem:[%s172 + $0x390] sm:$0xff] %vm1208, %v1174
      %1324 = vst.msk [vmem:[%s172 + $0x398] sm:$0xff] %vm1208, %v1176
      %1325 = vst.msk [vmem:[%s172 + $0x3a0] sm:$0xff] %vm1208, %v1179
      %1326 = vst.msk [vmem:[%s172 + $0x3a8] sm:$0xff] %vm1208, %v1181
      %1327 = vst.msk [vmem:[%s172 + $0x3b0] sm:$0xff] %vm1208, %v1184
      %1328 = vst.msk [vmem:[%s172 + $0x3b8] sm:$0xff] %vm1208, %v1186
      %1329 = vst.msk [vmem:[%s172 + $0x3c0] sm:$0xff] %vm1208, %v1189
      %1330 = vst.msk [vmem:[%s172 + $0x3c8] sm:$0xff] %vm1208, %v1191
      %1331 = vst.msk [vmem:[%s172 + $0x3d0] sm:$0xff] %vm1208, %v1194
      %1332 = vst.msk [vmem:[%s172 + $0x3d8] sm:$0xff] %vm1208, %v1196
      %1333 = vst.msk [vmem:[%s172 + $0x3e0] sm:$0xff] %vm1208, %v1199
      %1334 = vst.msk [vmem:[%s172 + $0x3e8] sm:$0xff] %vm1208, %v1201
      %1335 = vst.msk [vmem:[%s172 + $0x3f0] sm:$0xff] %vm1208, %v1204
      %1336 = vst.msk [vmem:[%s172 + $0x3f8] sm:$0xff] %vm1208, %v1206
      %s1337 = smul.u32 128, %s14
      %p1338 = scmp.lt.s32.totalorder %s1337, 511
      %s1339 = scalar_select %p1338, %s1337, 511
      %s1340 = smul.addr %s1339, 8
      %s1341 = scalar_lea.vmem %s3, %s1340
      // Predicated region
      $region33: #{inception_layer_plus.3} parent=31 // pred_check
        %p1342 = pneg %p100
      $region34: #{inception_layer_plus.3} parent=31 // pred_check_branch
        %1344 = sbr.rel (%p1342) target = $region36
      $region35: #{inception_layer_plus.3} parent=31 // pred_region
        %s1345 = smul.u32 128, %s14
      $region36: #{inception_layer_plus.3} parent=31 // pred_fallthru
        _
    $region32: #{inception_layer_plus.3} parent=5 // pred_fallthru
      _
    %p1346 = scmp.le.s32.totalorder 2, %s9
    // Predicated region
    $region37: #{inception_layer_plus.3} parent=5 // pred_check
      %p1347 = pneg %p1346
    $region38: #{inception_layer_plus.3} parent=5 // pred_check_branch
      %1349 = sbr.rel (%p1347) target = $region40
    $region39: #{inception_layer_plus.3} parent=5 // pred_region
      %s1350 = ssub.s32 %s9, 2
      // Predicated region
      $region41: #{inception_layer_plus.3} parent=39 // pred_check
        %p1351 = pneg %p106
      $region42: #{inception_layer_plus.3} parent=39 // pred_check_branch
        %1353 = sbr.rel (%p1351) target = $region44
      $region43: #{inception_layer_plus.3} parent=39 // pred_region
        %s1354 = smul.u32 128, %s15
        %p1355 = scmp.lt.s32.totalorder %s1354, 511
        %s1356 = scalar_select %p1355, %s1354, 511
        %s1357 = smul.addr %s1356, 8
        %s1358 = scalar_lea.vmem %s3, %s1357
      $region44: #{inception_layer_plus.3} parent=39 // pred_fallthru
        _
    $region40: #{inception_layer_plus.3} parent=5 // pred_fallthru
      _
  $region6: #{inception_layer_plus.3} parent=0 // loop_footer
    %s13 = sadd.s32 1, %s9
  $region7: #{inception_layer_plus.3} parent=0 // loop_footer_branch
    %8 = sbr.rel target = $region3
  $region8: #{inception_layer_plus.3} parent=0 // loop_exit
    _

// kernel: inception_layer_plus.4
$region0: #{inception_layer_plus.4}
  #allocation0 [shape = 'u32[]', space=smem, size = 0x4, offset = 0x4, fixed_abs, tag = 'smem constant byte address 0x4 - core index']
  #allocation1 [shape = 'u32[72,128]{1,0:T(1,128)}', space=vmem, size = 0x9000, scoped, tag = 'internal scratch']
  %s0 = inlined_call_operand.vmem [shape: bf16[4096,504], index: 0, kind: input, shape index: {}]
  %s1 = inlined_call_operand.vmem [shape: bf16[504,8], index: 1, kind: input, shape index: {}]
  %s2 = inlined_call_operand.vmem [shape: f32[1,8], index: 2, kind: input, shape index: {}]
  %s3 = inlined_call_operand.vmem [shape: f32[4096,8], index: 3, kind: input, shape index: {}, may-alias: {3,4}]
  %s4 = inlined_call_operand.vmem [shape: f32[4096,8], index: 4, kind: output, shape index: {}, may-alias: {3,4}]
  %s5 = sld [smem:[#allocation0]]
  $region49: #{inception_layer_plus.4} parent=0
    _
  %s7 = ssub.s32 1, %s5
  %s8 = scalar_select 0, %s7, %s5
  loop: start=0, step=1, limit=6
  $region2: #{inception_layer_plus.4} parent=0 // loop_pre_header
    _
  $region3: #{inception_layer_plus.4} parent=0 // loop_header
    %s10 = sphi 0, %s14
    %p11 = scmp.ge.s32.totalorder %s10, 6
    %s20 = sphi 0, %s22
    %s23 = sphi 0, %s20
    %s24 = sphi 0, %s23
    %s40 = sphi 0, %s24
    %s44 = sphi 0, %s44
    %s46 = sphi 0, %s44
    %s47 = sphi 0, %s46
    %s61 = sphi 0, %s47
    %s65 = sphi 0, %s65
    %s67 = sphi 0, %s65
    %s68 = sphi 0, %s67
    %s82 = sphi 0, %s68
    %s88 = sphi 0, %s90
    %s91 = sphi 0, %s88
    %s92 = sphi 0, %s91
    %s108 = sphi 0, %s92
    %s114 = sphi 0, %s116
    %s117 = sphi 0, %s114
    %s118 = sphi 0, %s117
    %s134 = sphi 0, %s118
  $region4: #{inception_layer_plus.4} parent=0 // loop_header_branch
    %13 = sbr.rel (%p11) target = $region8
  $region5: #{inception_layer_plus.4} parent=0 // loop_body
    %s15 = ssub.s32 %s10, 1
    %s16 = ssub.s32 %s10, 2
    %s17 = sadd.s32 %s10, 1
    %s18 = ssub.s32 %s10, %s17
    %p19 = scmp.eq.s32.totalorder %s18, 0
    %s21 = sadd.s32 %s20, 1
    %s22 = scalar_select %p19, %s20, %s21
    %p25 = pneg %p19
    %p26 = scmp.eq.s32.totalorder %s10, 3
    %p27 = por %p25, %p26
    %p28 = scmp.ne.s32.totalorder %s20, %s23
    %p29 = scmp.eq.s32.totalorder %s10, 0
    %p30 = por %p28, %p29
    %p31 = scmp.ne.s32.totalorder %s20, %s23
    %p32 = scmp.eq.s32.totalorder %s15, 3
    %p33 = por %p31, %p32
    %p34 = scmp.ne.s32.totalorder %s23, %s24
    %p35 = scmp.eq.s32.totalorder %s15, 0
    %p36 = por %p34, %p35
    %p37 = scmp.ne.s32.totalorder %s23, %s24
    %p38 = scmp.eq.s32.totalorder %s16, 3
    %p39 = por %p37, %p38
    %p41 = scmp.ne.s32.totalorder %s24, %s40
    %p42 = scmp.eq.s32.totalorder %s16, 0
    %p43 = por %p41, %p42
    %s45 = sadd.s32 %s44, 1
    %p48 = scmp.eq.s32.totalorder %s10, 3
    %p49 = scmp.ne.s32.totalorder %s44, %s46
    %p50 = scmp.eq.s32.totalorder %s10, 0
    %p51 = por %p49, %p50
    %p52 = scmp.ne.s32.totalorder %s44, %s46
    %p53 = scmp.eq.s32.totalorder %s15, 3
    %p54 = por %p52, %p53
    %p55 = scmp.ne.s32.totalorder %s46, %s47
    %p56 = scmp.eq.s32.totalorder %s15, 0
    %p57 = por %p55, %p56
    %p58 = scmp.ne.s32.totalorder %s46, %s47
    %p59 = scmp.eq.s32.totalorder %s16, 3
    %p60 = por %p58, %p59
    %p62 = scmp.ne.s32.totalorder %s47, %s61
    %p63 = scmp.eq.s32.totalorder %s16, 0
    %p64 = por %p62, %p63
    %s66 = sadd.s32 %s65, 1
    %p69 = scmp.eq.s32.totalorder %s10, 3
    %p70 = scmp.ne.s32.totalorder %s65, %s67
    %p71 = scmp.eq.s32.totalorder %s10, 0
    %p72 = por %p70, %p71
    %p73 = scmp.ne.s32.totalorder %s65, %s67
    %p74 = scmp.eq.s32.totalorder %s15, 3
    %p75 = por %p73, %p74
    %p76 = scmp.ne.s32.totalorder %s67, %s68
    %p77 = scmp.eq.s32.totalorder %s15, 0
    %p78 = por %p76, %p77
    %p79 = scmp.ne.s32.totalorder %s67, %s68
    %p80 = scmp.eq.s32.totalorder %s16, 3
    %p81 = por %p79, %p80
    %p83 = scmp.ne.s32.totalorder %s68, %s82
    %p84 = scmp.eq.s32.totalorder %s16, 0
    %p85 = por %p83, %p84
    %s86 = ssub.s32 %s10, %s17
    %p87 = scmp.eq.s32.totalorder %s86, 0
    %s89 = sadd.s32 %s88, 1
    %s90 = scalar_select %p87, %s88, %s89
    %p93 = pneg %p87
    %p94 = scmp.eq.s32.totalorder %s10, 3
    %p95 = por %p93, %p94
    %p96 = scmp.ne.s32.totalorder %s88, %s91
    %p97 = scmp.eq.s32.totalorder %s10, 0
    %p98 = por %p96, %p97
    %p99 = scmp.ne.s32.totalorder %s88, %s91
    %p100 = scmp.eq.s32.totalorder %s15, 3
    %p101 = por %p99, %p100
    %p102 = scmp.ne.s32.totalorder %s91, %s92
    %p103 = scmp.eq.s32.totalorder %s15, 0
    %p104 = por %p102, %p103
    %p105 = scmp.ne.s32.totalorder %s91, %s92
    %p106 = scmp.eq.s32.totalorder %s16, 3
    %p107 = por %p105, %p106
    %p109 = scmp.ne.s32.totalorder %s92, %s108
    %p110 = scmp.eq.s32.totalorder %s16, 0
    %p111 = por %p109, %p110
    %s112 = ssub.s32 %s10, %s17
    %p113 = scmp.eq.s32.totalorder %s112, 0
    %s115 = sadd.s32 %s114, 1
    %s116 = scalar_select %p113, %s114, %s115
    %p119 = pneg %p113
    %p120 = scmp.eq.s32.totalorder %s10, 3
    %p121 = por %p119, %p120
    %p122 = scmp.ne.s32.totalorder %s114, %s117
    %p123 = scmp.eq.s32.totalorder %s10, 0
    %p124 = por %p122, %p123
    %p125 = scmp.ne.s32.totalorder %s114, %s117
    %p126 = scmp.eq.s32.totalorder %s15, 3
    %p127 = por %p125, %p126
    %p128 = scmp.ne.s32.totalorder %s117, %s118
    %p129 = scmp.eq.s32.totalorder %s15, 0
    %p130 = por %p128, %p129
    %p131 = scmp.ne.s32.totalorder %s117, %s118
    %p132 = scmp.eq.s32.totalorder %s16, 3
    %p133 = por %p131, %p132
    %p135 = scmp.ne.s32.totalorder %s118, %s134
    %p136 = scmp.eq.s32.totalorder %s16, 0
    %p137 = por %p135, %p136
    %p138 = scmp.le.s32.totalorder 1, %s10
    %p139 = scmp.lt.s32.totalorder %s10, 5
    %p140 = pnand %p138, %p139
    %p141 = pneg %p140
    // Predicated region
    $region9: #{inception_layer_plus.4} parent=5 // pred_check
      _
    $region10: #{inception_layer_plus.4} parent=5 // pred_check_branch
      %143 = sbr.rel (%p140) target = $region12
    $region11: #{inception_layer_plus.4} parent=5 // pred_region
      %s144 = ssub.s32 %s10, 1
      // Predicated region
      $region13: #{inception_layer_plus.4} parent=11 // pred_check
        %p145 = pneg %p57
      $region14: #{inception_layer_plus.4} parent=11 // pred_check_branch
        %147 = sbr.rel (%p145) target = $region16
      $region15: #{inception_layer_plus.4} parent=11 // pred_region
        _
      $region16: #{inception_layer_plus.4} parent=11 // pred_fallthru
        _
      // Predicated region
      $region17: #{inception_layer_plus.4} parent=11 // pred_check
        %p148 = pneg %p78
      $region18: #{inception_layer_plus.4} parent=11 // pred_check_branch
        %150 = sbr.rel (%p148) target = $region20
      $region19: #{inception_layer_plus.4} parent=11 // pred_region
        _
      $region20: #{inception_layer_plus.4} parent=11 // pred_fallthru
        _
    $region12: #{inception_layer_plus.4} parent=5 // pred_fallthru
      _
    %p151 = scmp.lt.s32.totalorder %s10, 4
    // Predicated region
    $region21: #{inception_layer_plus.4} parent=5 // pred_check
      %p152 = pneg %p151
    $region22: #{inception_layer_plus.4} parent=5 // pred_check_branch
      %154 = sbr.rel (%p152) target = $region24
    $region23: #{inception_layer_plus.4} parent=5 // pred_region
      // Predicated region
      $region25: #{inception_layer_plus.4} parent=23 // pred_check
        %p155 = pneg %p30
      $region26: #{inception_layer_plus.4} parent=23 // pred_check_branch
        %157 = sbr.rel (%p155) target = $region28
      $region27: #{inception_layer_plus.4} parent=23 // pred_region
        %s158 = smul.u32 128, %s10
        %p159 = scmp.lt.s32.totalorder %s158, 511
        %s160 = scalar_select %p159, %s158, 511
        %s161 = smul.addr %s160, 4
        %s162 = smul.addr %s161, 4
        %s163 = scalar_lea.vmem %s0, %s162
        %s164 = smul.u32 128, %s10
      $region28: #{inception_layer_plus.4} parent=23 // pred_fallthru
        _
      // Predicated region
      $region29: #{inception_layer_plus.4} parent=23 // pred_check
        %p165 = pneg %p98
      $region30: #{inception_layer_plus.4} parent=23 // pred_check_branch
        %167 = sbr.rel (%p165) target = $region32
      $region31: #{inception_layer_plus.4} parent=23 // pred_region
        %s168 = smul.u32 128, %s10
        %p169 = scmp.lt.s32.totalorder %s168, 511
        %s170 = scalar_select %p169, %s168, 511
        %s171 = smul.addr %s170, 8
        %s172 = scalar_lea.vmem %s3, %s171
        %s173 = smul.u32 128, %s10
      $region32: #{inception_layer_plus.4} parent=23 // pred_fallthru
        _
    $region24: #{inception_layer_plus.4} parent=5 // pred_fallthru
      _
    %p174 = scmp.le.s32.totalorder 1, %s10
    %p175 = scmp.lt.s32.totalorder %s10, 5
    %p176 = pnand %p174, %p175
    %p177 = pneg %p176
    // Predicated region
    $region33: #{inception_layer_plus.4} parent=5 // pred_check
      _
    $region34: #{inception_layer_plus.4} parent=5 // pred_check_branch
      %179 = sbr.rel (%p176) target = $region36
    $region35: #{inception_layer_plus.4} parent=5 // pred_region
      %s180 = ssub.s32 %s10, 1
      %s181 = smul.u32 128, %s15
      %p182 = scmp.lt.s32.totalorder %s181, 511
      %s183 = scalar_select %p182, %s181, 511
      %s184 = smul.addr %s183, 4
      %s185 = smul.addr %s184, 4
      %s186 = scalar_lea.vmem %s0, %s185
      %p187 = pneg %p36
      %p188 = pneg %p33
      %p189 = pneg %p57
      %p190 = pneg %p54
      %p191 = pneg %p78
      %p192 = pneg %p75
      %s193 = smul.u32 128, %s15
      %p194 = scmp.lt.s32.totalorder %s193, 511
      %s195 = scalar_select %p194, %s193, 511
      %s196 = smul.addr %s195, 8
      %s197 = scalar_lea.vmem %s3, %s196
      %p198 = pneg %p104
      %p199 = pneg %p101
      %p200 = pneg %p130
      %p201 = pneg %p127
      %s202 = smul.u32 128, %s15
      %p203 = scmp.lt.s32.totalorder %s202, 511
      %s204 = scalar_select %p203, %s202, 511
      %s205 = smul.addr %s204, 8
      %s206 = scalar_lea.vmem %s4, %s205
      %s207 = smul.u32 128, %s15
      %p208 = scmp.lt.s32.totalorder %s207, 511
      %s209 = scalar_select %p208, %s207, 511
      %s210 = smul.addr %s209, 4
      %s211 = smul.addr %s210, 4
      %s212 = scalar_lea.vmem %s0, %s211
      %s213 = smul.u32 128, %s15
      %s214 = smul.u32 128, %s15
      %p215 = scmp.lt.s32.totalorder %s214, 511
      %s216 = scalar_select %p215, %s214, 511
      %s217 = smul.addr %s216, 8
      %s218 = scalar_lea.vmem %s3, %s217
      %s219 = smul.u32 128, %s15
      %s220 = smul.u32 128, %s15
      %p221 = scmp.lt.s32.totalorder %s220, 511
      %s222 = scalar_select %p221, %s220, 511
      %s223 = smul.addr %s222, 8
      %s224 = scalar_lea.vmem %s4, %s223
      %s225 = smul.u32 128, %s15
      %v226 = vld [vmem:[%s212] sm:$0xff]
      %v227 = vld [vmem:[%s212 + $0x8] sm:$0xff]
      %v228 = vld [vmem:[%s212 + $0x10] sm:$0xff]
      %v229 = vld [vmem:[%s212 + $0x18] sm:$0xff]
      %v230 = vld [vmem:[%s212 + $0x20] sm:$0xff]
      %v231 = vld [vmem:[%s212 + $0x28] sm:$0xff]
      %v232 = vld [vmem:[%s212 + $0x30] sm:$0xff]
      %v233 = vld [vmem:[%s212 + $0x38] sm:$0xff]
      %v234 = vld [vmem:[%s212 + $0x40] sm:$0xff]
      %v235 = vld [vmem:[%s212 + $0x48] sm:$0xff]
      %v236 = vld [vmem:[%s212 + $0x50] sm:$0xff]
      %v237 = vld [vmem:[%s212 + $0x58] sm:$0xff]
      %v238 = vld [vmem:[%s212 + $0x60] sm:$0xff]
      %v239 = vld [vmem:[%s212 + $0x68] sm:$0xff]
      %v240 = vld [vmem:[%s212 + $0x70] sm:$0xff]
      %v241 = vld [vmem:[%s212 + $0x78] sm:$0xff]
      %v242 = vld [vmem:[%s212 + $0x80] sm:$0xff]
      %v243 = vld [vmem:[%s212 + $0x88] sm:$0xff]
      %v244 = vld [vmem:[%s212 + $0x90] sm:$0xff]
      %v245 = vld [vmem:[%s212 + $0x98] sm:$0xff]
      %v246 = vld [vmem:[%s212 + $0xa0] sm:$0xff]
      %v247 = vld [vmem:[%s212 + $0xa8] sm:$0xff]
      %v248 = vld [vmem:[%s212 + $0xb0] sm:$0xff]
      %v249 = vld [vmem:[%s212 + $0xb8] sm:$0xff]
      %v250 = vld [vmem:[%s212 + $0xc0] sm:$0xff]
      %v251 = vld [vmem:[%s212 + $0xc8] sm:$0xff]
      %v252 = vld [vmem:[%s212 + $0xd0] sm:$0xff]
      %v253 = vld [vmem:[%s212 + $0xd8] sm:$0xff]
      %v254 = vld [vmem:[%s212 + $0xe0] sm:$0xff]
      %v255 = vld [vmem:[%s212 + $0xe8] sm:$0xff]
      %v256 = vld [vmem:[%s212 + $0xf0] sm:$0xff]
      %v257 = vld [vmem:[%s212 + $0xf8] sm:$0xff]
      %v258 = vld [vmem:[%s212 + $0x100] sm:$0xff]
      %v259 = vld [vmem:[%s212 + $0x108] sm:$0xff]
      %v260 = vld [vmem:[%s212 + $0x110] sm:$0xff]
      %v261 = vld [vmem:[%s212 + $0x118] sm:$0xff]
      %v262 = vld [vmem:[%s212 + $0x120] sm:$0xff]
      %v263 = vld [vmem:[%s212 + $0x128] sm:$0xff]
      %v264 = vld [vmem:[%s212 + $0x130] sm:$0xff]
      %v265 = vld [vmem:[%s212 + $0x138] sm:$0xff]
      %v266 = vld [vmem:[%s212 + $0x140] sm:$0xff]
      %v267 = vld [vmem:[%s212 + $0x148] sm:$0xff]
      %v268 = vld [vmem:[%s212 + $0x150] sm:$0xff]
      %v269 = vld [vmem:[%s212 + $0x158] sm:$0xff]
      %v270 = vld [vmem:[%s212 + $0x160] sm:$0xff]
      %v271 = vld [vmem:[%s212 + $0x168] sm:$0xff]
      %v272 = vld [vmem:[%s212 + $0x170] sm:$0xff]
      %v273 = vld [vmem:[%s212 + $0x178] sm:$0xff]
      %v274 = vld [vmem:[%s212 + $0x180] sm:$0xff]
      %v275 = vld [vmem:[%s212 + $0x188] sm:$0xff]
      %v276 = vld [vmem:[%s212 + $0x190] sm:$0xff]
      %v277 = vld [vmem:[%s212 + $0x198] sm:$0xff]
      %v278 = vld [vmem:[%s212 + $0x1a0] sm:$0xff]
      %v279 = vld [vmem:[%s212 + $0x1a8] sm:$0xff]
      %v280 = vld [vmem:[%s212 + $0x1b0] sm:$0xff]
      %v281 = vld [vmem:[%s212 + $0x1b8] sm:$0xff]
      %v282 = vld [vmem:[%s212 + $0x1c0] sm:$0xff]
      %v283 = vld [vmem:[%s212 + $0x1c8] sm:$0xff]
      %v284 = vld [vmem:[%s212 + $0x1d0] sm:$0xff]
      %v285 = vld [vmem:[%s212 + $0x1d8] sm:$0xff]
      %v286 = vld [vmem:[%s212 + $0x1e0] sm:$0xff]
      %v287 = vld [vmem:[%s212 + $0x1e8] sm:$0xff]
      %v288 = vld [vmem:[%s212 + $0x1f0] sm:$0xff]
      %v289 = vld [vmem:[%s212 + $0x1f8] sm:$0xff]
      %v290 = vld [vmem:[%s212 + $0x200] sm:$0xff]
      %v291 = vld [vmem:[%s212 + $0x208] sm:$0xff]
      %v292 = vld [vmem:[%s212 + $0x210] sm:$0xff]
      %v293 = vld [vmem:[%s212 + $0x218] sm:$0xff]
      %v294 = vld [vmem:[%s212 + $0x220] sm:$0xff]
      %v295 = vld [vmem:[%s212 + $0x228] sm:$0xff]
      %v296 = vld [vmem:[%s212 + $0x230] sm:$0xff]
      %v297 = vld [vmem:[%s212 + $0x238] sm:$0xff]
      %v298 = vld [vmem:[%s212 + $0x240] sm:$0xff]
      %v299 = vld [vmem:[%s212 + $0x248] sm:$0xff]
      %v300 = vld [vmem:[%s212 + $0x250] sm:$0xff]
      %v301 = vld [vmem:[%s212 + $0x258] sm:$0xff]
      %v302 = vld [vmem:[%s212 + $0x260] sm:$0xff]
      %v303 = vld [vmem:[%s212 + $0x268] sm:$0xff]
      %v304 = vld [vmem:[%s212 + $0x270] sm:$0xff]
      %v305 = vld [vmem:[%s212 + $0x278] sm:$0xff]
      %v306 = vld [vmem:[%s212 + $0x280] sm:$0xff]
      %v307 = vld [vmem:[%s212 + $0x288] sm:$0xff]
      %v308 = vld [vmem:[%s212 + $0x290] sm:$0xff]
      %v309 = vld [vmem:[%s212 + $0x298] sm:$0xff]
      %v310 = vld [vmem:[%s212 + $0x2a0] sm:$0xff]
      %v311 = vld [vmem:[%s212 + $0x2a8] sm:$0xff]
      %v312 = vld [vmem:[%s212 + $0x2b0] sm:$0xff]
      %v313 = vld [vmem:[%s212 + $0x2b8] sm:$0xff]
      %v314 = vld [vmem:[%s212 + $0x2c0] sm:$0xff]
      %v315 = vld [vmem:[%s212 + $0x2c8] sm:$0xff]
      %v316 = vld [vmem:[%s212 + $0x2d0] sm:$0xff]
      %v317 = vld [vmem:[%s212 + $0x2d8] sm:$0xff]
      %v318 = vld [vmem:[%s212 + $0x2e0] sm:$0xff]
      %v319 = vld [vmem:[%s212 + $0x2e8] sm:$0xff]
      %v320 = vld [vmem:[%s212 + $0x2f0] sm:$0xff]
      %v321 = vld [vmem:[%s212 + $0x2f8] sm:$0xff]
      %v322 = vld [vmem:[%s212 + $0x300] sm:$0xff]
      %v323 = vld [vmem:[%s212 + $0x308] sm:$0xff]
      %v324 = vld [vmem:[%s212 + $0x310] sm:$0xff]
      %v325 = vld [vmem:[%s212 + $0x318] sm:$0xff]
      %v326 = vld [vmem:[%s212 + $0x320] sm:$0xff]
      %v327 = vld [vmem:[%s212 + $0x328] sm:$0xff]
      %v328 = vld [vmem:[%s212 + $0x330] sm:$0xff]
      %v329 = vld [vmem:[%s212 + $0x338] sm:$0xff]
      %v330 = vld [vmem:[%s212 + $0x340] sm:$0xff]
      %v331 = vld [vmem:[%s212 + $0x348] sm:$0xff]
      %v332 = vld [vmem:[%s212 + $0x350] sm:$0xff]
      %v333 = vld [vmem:[%s212 + $0x358] sm:$0xff]
      %v334 = vld [vmem:[%s212 + $0x360] sm:$0xff]
      %v335 = vld [vmem:[%s212 + $0x368] sm:$0xff]
      %v336 = vld [vmem:[%s212 + $0x370] sm:$0xff]
      %v337 = vld [vmem:[%s212 + $0x378] sm:$0xff]
      %v338 = vld [vmem:[%s212 + $0x380] sm:$0xff]
      %v339 = vld [vmem:[%s212 + $0x388] sm:$0xff]
      %v340 = vld [vmem:[%s212 + $0x390] sm:$0xff]
      %v341 = vld [vmem:[%s212 + $0x398] sm:$0xff]
      %v342 = vld [vmem:[%s212 + $0x3a0] sm:$0xff]
      %v343 = vld [vmem:[%s212 + $0x3a8] sm:$0xff]
      %v344 = vld [vmem:[%s212 + $0x3b0] sm:$0xff]
      %v345 = vld [vmem:[%s212 + $0x3b8] sm:$0xff]
      %v346 = vld [vmem:[%s212 + $0x3c0] sm:$0xff]
      %v347 = vld [vmem:[%s212 + $0x3c8] sm:$0xff]
      %v348 = vld [vmem:[%s212 + $0x3d0] sm:$0xff]
      %v349 = vld [vmem:[%s212 + $0x3d8] sm:$0xff]
      %v350 = vld [vmem:[%s212 + $0x3e0] sm:$0xff]
      %v351 = vld [vmem:[%s212 + $0x3e8] sm:$0xff]
      %v352 = vld [vmem:[%s212 + $0x3f0] sm:$0xff]
      %v353 = vld [vmem:[%s212 + $0x3f8] sm:$0xff]
      %v354 = vld [vmem:[%s212 + $0x400] sm:$0xff]
      %v355 = vld [vmem:[%s212 + $0x408] sm:$0xff]
      %v356 = vld [vmem:[%s212 + $0x410] sm:$0xff]
      %v357 = vld [vmem:[%s212 + $0x418] sm:$0xff]
      %v358 = vld [vmem:[%s212 + $0x420] sm:$0xff]
      %v359 = vld [vmem:[%s212 + $0x428] sm:$0xff]
      %v360 = vld [vmem:[%s212 + $0x430] sm:$0xff]
      %v361 = vld [vmem:[%s212 + $0x438] sm:$0xff]
      %v362 = vld [vmem:[%s212 + $0x440] sm:$0xff]
      %v363 = vld [vmem:[%s212 + $0x448] sm:$0xff]
      %v364 = vld [vmem:[%s212 + $0x450] sm:$0xff]
      %v365 = vld [vmem:[%s212 + $0x458] sm:$0xff]
      %v366 = vld [vmem:[%s212 + $0x460] sm:$0xff]
      %v367 = vld [vmem:[%s212 + $0x468] sm:$0xff]
      %v368 = vld [vmem:[%s212 + $0x470] sm:$0xff]
      %v369 = vld [vmem:[%s212 + $0x478] sm:$0xff]
      %v370 = vld [vmem:[%s212 + $0x480] sm:$0xff]
      %v371 = vld [vmem:[%s212 + $0x488] sm:$0xff]
      %v372 = vld [vmem:[%s212 + $0x490] sm:$0xff]
      %v373 = vld [vmem:[%s212 + $0x498] sm:$0xff]
      %v374 = vld [vmem:[%s212 + $0x4a0] sm:$0xff]
      %v375 = vld [vmem:[%s212 + $0x4a8] sm:$0xff]
      %v376 = vld [vmem:[%s212 + $0x4b0] sm:$0xff]
      %v377 = vld [vmem:[%s212 + $0x4b8] sm:$0xff]
      %v378 = vld [vmem:[%s212 + $0x4c0] sm:$0xff]
      %v379 = vld [vmem:[%s212 + $0x4c8] sm:$0xff]
      %v380 = vld [vmem:[%s212 + $0x4d0] sm:$0xff]
      %v381 = vld [vmem:[%s212 + $0x4d8] sm:$0xff]
      %v382 = vld [vmem:[%s212 + $0x4e0] sm:$0xff]
      %v383 = vld [vmem:[%s212 + $0x4e8] sm:$0xff]
      %v384 = vld [vmem:[%s212 + $0x4f0] sm:$0xff]
      %v385 = vld [vmem:[%s212 + $0x4f8] sm:$0xff]
      %v386 = vld [vmem:[%s212 + $0x500] sm:$0xff]
      %v387 = vld [vmem:[%s212 + $0x508] sm:$0xff]
      %v388 = vld [vmem:[%s212 + $0x510] sm:$0xff]
      %v389 = vld [vmem:[%s212 + $0x518] sm:$0xff]
      %v390 = vld [vmem:[%s212 + $0x520] sm:$0xff]
      %v391 = vld [vmem:[%s212 + $0x528] sm:$0xff]
      %v392 = vld [vmem:[%s212 + $0x530] sm:$0xff]
      %v393 = vld [vmem:[%s212 + $0x538] sm:$0xff]
      %v394 = vld [vmem:[%s212 + $0x540] sm:$0xff]
      %v395 = vld [vmem:[%s212 + $0x548] sm:$0xff]
      %v396 = vld [vmem:[%s212 + $0x550] sm:$0xff]
      %v397 = vld [vmem:[%s212 + $0x558] sm:$0xff]
      %v398 = vld [vmem:[%s212 + $0x560] sm:$0xff]
      %v399 = vld [vmem:[%s212 + $0x568] sm:$0xff]
      %v400 = vld [vmem:[%s212 + $0x570] sm:$0xff]
      %v401 = vld [vmem:[%s212 + $0x578] sm:$0xff]
      %v402 = vld [vmem:[%s212 + $0x580] sm:$0xff]
      %v403 = vld [vmem:[%s212 + $0x588] sm:$0xff]
      %v404 = vld [vmem:[%s212 + $0x590] sm:$0xff]
      %v405 = vld [vmem:[%s212 + $0x598] sm:$0xff]
      %v406 = vld [vmem:[%s212 + $0x5a0] sm:$0xff]
      %v407 = vld [vmem:[%s212 + $0x5a8] sm:$0xff]
      %v408 = vld [vmem:[%s212 + $0x5b0] sm:$0xff]
      %v409 = vld [vmem:[%s212 + $0x5b8] sm:$0xff]
      %v410 = vld [vmem:[%s212 + $0x5c0] sm:$0xff]
      %v411 = vld [vmem:[%s212 + $0x5c8] sm:$0xff]
      %v412 = vld [vmem:[%s212 + $0x5d0] sm:$0xff]
      %v413 = vld [vmem:[%s212 + $0x5d8] sm:$0xff]
      %v414 = vld [vmem:[%s212 + $0x5e0] sm:$0xff]
      %v415 = vld [vmem:[%s212 + $0x5e8] sm:$0xff]
      %v416 = vld [vmem:[%s212 + $0x5f0] sm:$0xff]
      %v417 = vld [vmem:[%s212 + $0x5f8] sm:$0xff]
      %v418 = vld [vmem:[%s212 + $0x600] sm:$0xff]
      %v419 = vld [vmem:[%s212 + $0x608] sm:$0xff]
      %v420 = vld [vmem:[%s212 + $0x610] sm:$0xff]
      %v421 = vld [vmem:[%s212 + $0x618] sm:$0xff]
      %v422 = vld [vmem:[%s212 + $0x620] sm:$0xff]
      %v423 = vld [vmem:[%s212 + $0x628] sm:$0xff]
      %v424 = vld [vmem:[%s212 + $0x630] sm:$0xff]
      %v425 = vld [vmem:[%s212 + $0x638] sm:$0xff]
      %v426 = vld [vmem:[%s212 + $0x640] sm:$0xff]
      %v427 = vld [vmem:[%s212 + $0x648] sm:$0xff]
      %v428 = vld [vmem:[%s212 + $0x650] sm:$0xff]
      %v429 = vld [vmem:[%s212 + $0x658] sm:$0xff]
      %v430 = vld [vmem:[%s212 + $0x660] sm:$0xff]
      %v431 = vld [vmem:[%s212 + $0x668] sm:$0xff]
      %v432 = vld [vmem:[%s212 + $0x670] sm:$0xff]
      %v433 = vld [vmem:[%s212 + $0x678] sm:$0xff]
      %v434 = vld [vmem:[%s212 + $0x680] sm:$0xff]
      %v435 = vld [vmem:[%s212 + $0x688] sm:$0xff]
      %v436 = vld [vmem:[%s212 + $0x690] sm:$0xff]
      %v437 = vld [vmem:[%s212 + $0x698] sm:$0xff]
      %v438 = vld [vmem:[%s212 + $0x6a0] sm:$0xff]
      %v439 = vld [vmem:[%s212 + $0x6a8] sm:$0xff]
      %v440 = vld [vmem:[%s212 + $0x6b0] sm:$0xff]
      %v441 = vld [vmem:[%s212 + $0x6b8] sm:$0xff]
      %v442 = vld [vmem:[%s212 + $0x6c0] sm:$0xff]
      %v443 = vld [vmem:[%s212 + $0x6c8] sm:$0xff]
      %v444 = vld [vmem:[%s212 + $0x6d0] sm:$0xff]
      %v445 = vld [vmem:[%s212 + $0x6d8] sm:$0xff]
      %v446 = vld [vmem:[%s212 + $0x6e0] sm:$0xff]
      %v447 = vld [vmem:[%s212 + $0x6e8] sm:$0xff]
      %v448 = vld [vmem:[%s212 + $0x6f0] sm:$0xff]
      %v449 = vld [vmem:[%s212 + $0x6f8] sm:$0xff]
      %v450 = vld [vmem:[%s212 + $0x700] sm:$0xff]
      %v451 = vld [vmem:[%s212 + $0x708] sm:$0xff]
      %v452 = vld [vmem:[%s212 + $0x710] sm:$0xff]
      %v453 = vld [vmem:[%s212 + $0x718] sm:$0xff]
      %v454 = vld [vmem:[%s212 + $0x720] sm:$0xff]
      %v455 = vld [vmem:[%s212 + $0x728] sm:$0xff]
      %v456 = vld [vmem:[%s212 + $0x730] sm:$0xff]
      %v457 = vld [vmem:[%s212 + $0x738] sm:$0xff]
      %v458 = vld [vmem:[%s212 + $0x740] sm:$0xff]
      %v459 = vld [vmem:[%s212 + $0x748] sm:$0xff]
      %v460 = vld [vmem:[%s212 + $0x750] sm:$0xff]
      %v461 = vld [vmem:[%s212 + $0x758] sm:$0xff]
      %v462 = vld [vmem:[%s212 + $0x760] sm:$0xff]
      %v463 = vld [vmem:[%s212 + $0x768] sm:$0xff]
      %v464 = vld [vmem:[%s212 + $0x770] sm:$0xff]
      %v465 = vld [vmem:[%s212 + $0x778] sm:$0xff]
      %v466 = vld [vmem:[%s212 + $0x780] sm:$0xff]
      %v467 = vld [vmem:[%s212 + $0x788] sm:$0xff]
      %v468 = vld [vmem:[%s212 + $0x790] sm:$0xff]
      %v469 = vld [vmem:[%s212 + $0x798] sm:$0xff]
      %v470 = vld [vmem:[%s212 + $0x7a0] sm:$0xff]
      %v471 = vld [vmem:[%s212 + $0x7a8] sm:$0xff]
      %v472 = vld [vmem:[%s212 + $0x7b0] sm:$0xff]
      %v473 = vld [vmem:[%s212 + $0x7b8] sm:$0xff]
      %v474 = vld [vmem:[%s212 + $0x7c0] sm:$0xff]
      %v475 = vld [vmem:[%s212 + $0x7c8] sm:$0xff]
      %v476 = vld [vmem:[%s212 + $0x7d0] sm:$0xff]
      %v477 = vld [vmem:[%s212 + $0x7d8] sm:$0xff]
      %v478 = vld [vmem:[%s212 + $0x7e0] sm:$0xff]
      %v479 = vld [vmem:[%s212 + $0x7e8] sm:$0xff]
      %v480 = vld [vmem:[%s212 + $0x7f0] sm:$0xff]
      %v481 = vld [vmem:[%s212 + $0x7f8] sm:$0xff]
      %v482 = vld [vmem:[%s1] sm:$0xf]
      %v483 = vld [vmem:[%s1 + $0x4] sm:$0xf]
      %v484 = vld [vmem:[%s1 + $0x8] sm:$0xf]
      %v485 = vld [vmem:[%s1 + $0xc] sm:$0xf]
      %v486 = vld [vmem:[%s1 + $0x10] sm:$0xf]
      %v487 = vld [vmem:[%s1 + $0x14] sm:$0xf]
      %v488 = vld [vmem:[%s1 + $0x18] sm:$0xf]
      %v489 = vld [vmem:[%s1 + $0x1c] sm:$0xf]
      %v490 = vld [vmem:[%s1 + $0x20] sm:$0xf]
      %v491 = vld [vmem:[%s1 + $0x24] sm:$0xf]
      %v492 = vld [vmem:[%s1 + $0x28] sm:$0xf]
      %v493 = vld [vmem:[%s1 + $0x2c] sm:$0xf]
      %v494 = vld [vmem:[%s1 + $0x30] sm:$0xf]
      %v495 = vld [vmem:[%s1 + $0x34] sm:$0xf]
      %v496 = vld [vmem:[%s1 + $0x38] sm:$0xf]
      %v497 = vld [vmem:[%s1 + $0x3c] sm:$0xf]
      %v498 = vld [vmem:[%s1 + $0x40] sm:$0xf]
      %v499 = vld [vmem:[%s1 + $0x44] sm:$0xf]
      %v500 = vld [vmem:[%s1 + $0x48] sm:$0xf]
      %v501 = vld [vmem:[%s1 + $0x4c] sm:$0xf]
      %v502 = vld [vmem:[%s1 + $0x50] sm:$0xf]
      %v503 = vld [vmem:[%s1 + $0x54] sm:$0xf]
      %v504 = vld [vmem:[%s1 + $0x58] sm:$0xf]
      %v505 = vld [vmem:[%s1 + $0x5c] sm:$0xf]
      %v506 = vld [vmem:[%s1 + $0x60] sm:$0xf]
      %v507 = vld [vmem:[%s1 + $0x64] sm:$0xf]
      %v508 = vld [vmem:[%s1 + $0x68] sm:$0xf]
      %v509 = vld [vmem:[%s1 + $0x6c] sm:$0xf]
      %v510 = vld [vmem:[%s1 + $0x70] sm:$0xf]
      %v511 = vld [vmem:[%s1 + $0x74] sm:$0xf]
      %v512 = vld [vmem:[%s1 + $0x78] sm:$0xf]
      %v513 = vld [vmem:[%s1 + $0x7c] sm:$0xf]
      %v514 = vld [vmem:[%s1 + $0x80] sm:$0xf]
      %v515 = vld [vmem:[%s1 + $0x84] sm:$0xf]
      %v516 = vld [vmem:[%s1 + $0x88] sm:$0xf]
      %v517 = vld [vmem:[%s1 + $0x8c] sm:$0xf]
      %v518 = vld [vmem:[%s1 + $0x90] sm:$0xf]
      %v519 = vld [vmem:[%s1 + $0x94] sm:$0xf]
      %v520 = vld [vmem:[%s1 + $0x98] sm:$0xf]
      %v521 = vld [vmem:[%s1 + $0x9c] sm:$0xf]
      %v522 = vld [vmem:[%s1 + $0xa0] sm:$0xf]
      %v523 = vld [vmem:[%s1 + $0xa4] sm:$0xf]
      %v524 = vld [vmem:[%s1 + $0xa8] sm:$0xf]
      %v525 = vld [vmem:[%s1 + $0xac] sm:$0xf]
      %v526 = vld [vmem:[%s1 + $0xb0] sm:$0xf]
      %v527 = vld [vmem:[%s1 + $0xb4] sm:$0xf]
      %v528 = vld [vmem:[%s1 + $0xb8] sm:$0xf]
      %v529 = vld [vmem:[%s1 + $0xbc] sm:$0xf]
      %v530 = vld [vmem:[%s1 + $0xc0] sm:$0xf]
      %v531 = vld [vmem:[%s1 + $0xc4] sm:$0xf]
      %v532 = vld [vmem:[%s1 + $0xc8] sm:$0xf]
      %v533 = vld [vmem:[%s1 + $0xcc] sm:$0xf]
      %v534 = vld [vmem:[%s1 + $0xd0] sm:$0xf]
      %v535 = vld [vmem:[%s1 + $0xd4] sm:$0xf]
      %v536 = vld [vmem:[%s1 + $0xd8] sm:$0xf]
      %v537 = vld [vmem:[%s1 + $0xdc] sm:$0xf]
      %v538 = vld [vmem:[%s1 + $0xe0] sm:$0xf]
      %v539 = vld [vmem:[%s1 + $0xe4] sm:$0xf]
      %v540 = vld [vmem:[%s1 + $0xe8] sm:$0xf]
      %v541 = vld [vmem:[%s1 + $0xec] sm:$0xf]
      %v542 = vld [vmem:[%s1 + $0xf0] sm:$0xf]
      %v543 = vld [vmem:[%s1 + $0xf4] sm:$0xf]
      %v544 = vld [vmem:[%s1 + $0xf8] sm:$0xf]
      %v545 = vld [vmem:[%s2] sm:$0x1]
      %v547 = vperm.slane %v545, 0
      %v805 = vunpack.c.l.b16 %v226
      %v806 = vunpack.c.h.b16 %v226
      %v807 = vunpack.c.l.b16 %v227
      %v808 = vunpack.c.h.b16 %v227
      %v809 = vunpack.c.l.b16 %v228
      %v810 = vunpack.c.h.b16 %v228
      %v811 = vunpack.c.l.b16 %v229
      %v812 = vunpack.c.h.b16 %v229
      %v813 = vunpack.c.l.b16 %v230
      %v814 = vunpack.c.h.b16 %v230
      %v815 = vunpack.c.l.b16 %v231
      %v816 = vunpack.c.h.b16 %v231
      %v817 = vunpack.c.l.b16 %v232
      %v818 = vunpack.c.h.b16 %v232
      %v819 = vunpack.c.l.b16 %v233
      %v820 = vunpack.c.h.b16 %v233
      %v821 = vunpack.c.l.b16 %v234
      %v822 = vunpack.c.h.b16 %v234
      %v823 = vunpack.c.l.b16 %v235
      %v824 = vunpack.c.h.b16 %v235
      %v825 = vunpack.c.l.b16 %v236
      %v826 = vunpack.c.h.b16 %v236
      %v827 = vunpack.c.l.b16 %v237
      %v828 = vunpack.c.h.b16 %v237
      %v829 = vunpack.c.l.b16 %v238
      %v830 = vunpack.c.h.b16 %v238
      %v831 = vunpack.c.l.b16 %v239
      %v832 = vunpack.c.h.b16 %v239
      %v833 = vunpack.c.l.b16 %v240
      %v834 = vunpack.c.h.b16 %v240
      %v835 = vunpack.c.l.b16 %v241
      %v836 = vunpack.c.h.b16 %v241
      %v837 = vunpack.c.l.b16 %v242
      %v838 = vunpack.c.h.b16 %v242
      %v839 = vunpack.c.l.b16 %v243
      %v840 = vunpack.c.h.b16 %v243
      %v841 = vunpack.c.l.b16 %v244
      %v842 = vunpack.c.h.b16 %v244
      %v843 = vunpack.c.l.b16 %v245
      %v844 = vunpack.c.h.b16 %v245
      %v845 = vunpack.c.l.b16 %v246
      %v846 = vunpack.c.h.b16 %v246
      %v847 = vunpack.c.l.b16 %v247
      %v848 = vunpack.c.h.b16 %v247
      %v849 = vunpack.c.l.b16 %v248
      %v850 = vunpack.c.h.b16 %v248
      %v851 = vunpack.c.l.b16 %v249
      %v852 = vunpack.c.h.b16 %v249
      %v853 = vunpack.c.l.b16 %v250
      %v854 = vunpack.c.h.b16 %v250
      %v855 = vunpack.c.l.b16 %v251
      %v856 = vunpack.c.h.b16 %v251
      %v857 = vunpack.c.l.b16 %v252
      %v858 = vunpack.c.h.b16 %v252
      %v859 = vunpack.c.l.b16 %v253
      %v860 = vunpack.c.h.b16 %v253
      %v861 = vunpack.c.l.b16 %v254
      %v862 = vunpack.c.h.b16 %v254
      %v863 = vunpack.c.l.b16 %v255
      %v864 = vunpack.c.h.b16 %v255
      %v865 = vunpack.c.l.b16 %v256
      %v866 = vunpack.c.h.b16 %v256
      %v867 = vunpack.c.l.b16 %v257
      %v868 = vunpack.c.h.b16 %v257
      %v869 = vunpack.c.l.b16 %v258
      %v870 = vunpack.c.h.b16 %v258
      %v871 = vunpack.c.l.b16 %v259
      %v872 = vunpack.c.h.b16 %v259
      %v873 = vunpack.c.l.b16 %v260
      %v874 = vunpack.c.h.b16 %v260
      %v875 = vunpack.c.l.b16 %v261
      %v876 = vunpack.c.h.b16 %v261
      %v877 = vunpack.c.l.b16 %v262
      %v878 = vunpack.c.h.b16 %v262
      %v879 = vunpack.c.l.b16 %v263
      %v880 = vunpack.c.h.b16 %v263
      %v881 = vunpack.c.l.b16 %v264
      %v882 = vunpack.c.h.b16 %v264
      %v883 = vunpack.c.l.b16 %v265
      %v884 = vunpack.c.h.b16 %v265
      %v885 = vunpack.c.l.b16 %v266
      %v886 = vunpack.c.h.b16 %v266
      %v887 = vunpack.c.l.b16 %v267
      %v888 = vunpack.c.h.b16 %v267
      %v889 = vunpack.c.l.b16 %v268
      %v890 = vunpack.c.h.b16 %v268
      %v891 = vunpack.c.l.b16 %v269
      %v892 = vunpack.c.h.b16 %v269
      %v893 = vunpack.c.l.b16 %v270
      %v894 = vunpack.c.h.b16 %v270
      %v895 = vunpack.c.l.b16 %v271
      %v896 = vunpack.c.h.b16 %v271
      %v897 = vunpack.c.l.b16 %v272
      %v898 = vunpack.c.h.b16 %v272
      %v899 = vunpack.c.l.b16 %v273
      %v900 = vunpack.c.h.b16 %v273
      %v901 = vunpack.c.l.b16 %v274
      %v902 = vunpack.c.h.b16 %v274
      %v903 = vunpack.c.l.b16 %v275
      %v904 = vunpack.c.h.b16 %v275
      %v905 = vunpack.c.l.b16 %v276
      %v906 = vunpack.c.h.b16 %v276
      %v907 = vunpack.c.l.b16 %v277
      %v908 = vunpack.c.h.b16 %v277
      %v909 = vunpack.c.l.b16 %v278
      %v910 = vunpack.c.h.b16 %v278
      %v911 = vunpack.c.l.b16 %v279
      %v912 = vunpack.c.h.b16 %v279
      %v913 = vunpack.c.l.b16 %v280
      %v914 = vunpack.c.h.b16 %v280
      %v915 = vunpack.c.l.b16 %v281
      %v916 = vunpack.c.h.b16 %v281
      %v917 = vunpack.c.l.b16 %v282
      %v918 = vunpack.c.h.b16 %v282
      %v919 = vunpack.c.l.b16 %v283
      %v920 = vunpack.c.h.b16 %v283
      %v921 = vunpack.c.l.b16 %v284
      %v922 = vunpack.c.h.b16 %v284
      %v923 = vunpack.c.l.b16 %v285
      %v924 = vunpack.c.h.b16 %v285
      %v925 = vunpack.c.l.b16 %v286
      %v926 = vunpack.c.h.b16 %v286
      %v927 = vunpack.c.l.b16 %v287
      %v928 = vunpack.c.h.b16 %v287
      %v929 = vunpack.c.l.b16 %v288
      %v930 = vunpack.c.h.b16 %v288
      %v931 = vunpack.c.l.b16 %v289
      %v932 = vunpack.c.h.b16 %v289
      %v933 = vunpack.c.l.b16 %v290
      %v934 = vunpack.c.h.b16 %v290
      %v935 = vunpack.c.l.b16 %v291
      %v936 = vunpack.c.h.b16 %v291
      %v937 = vunpack.c.l.b16 %v292
      %v938 = vunpack.c.h.b16 %v292
      %v939 = vunpack.c.l.b16 %v293
      %v940 = vunpack.c.h.b16 %v293
      %v941 = vunpack.c.l.b16 %v294
      %v942 = vunpack.c.h.b16 %v294
      %v943 = vunpack.c.l.b16 %v295
      %v944 = vunpack.c.h.b16 %v295
      %v945 = vunpack.c.l.b16 %v296
      %v946 = vunpack.c.h.b16 %v296
      %v947 = vunpack.c.l.b16 %v297
      %v948 = vunpack.c.h.b16 %v297
      %v949 = vunpack.c.l.b16 %v298
      %v950 = vunpack.c.h.b16 %v298
      %v951 = vunpack.c.l.b16 %v299
      %v952 = vunpack.c.h.b16 %v299
      %v953 = vunpack.c.l.b16 %v300
      %v954 = vunpack.c.h.b16 %v300
      %v955 = vunpack.c.l.b16 %v301
      %v956 = vunpack.c.h.b16 %v301
      %v957 = vunpack.c.l.b16 %v302
      %v958 = vunpack.c.h.b16 %v302
      %v959 = vunpack.c.l.b16 %v303
      %v960 = vunpack.c.h.b16 %v303
      %v961 = vunpack.c.l.b16 %v304
      %v962 = vunpack.c.h.b16 %v304
      %v963 = vunpack.c.l.b16 %v305
      %v964 = vunpack.c.h.b16 %v305
      %v965 = vunpack.c.l.b16 %v306
      %v966 = vunpack.c.h.b16 %v306
      %v967 = vunpack.c.l.b16 %v307
      %v968 = vunpack.c.h.b16 %v307
      %v969 = vunpack.c.l.b16 %v308
      %v970 = vunpack.c.h.b16 %v308
      %v971 = vunpack.c.l.b16 %v309
      %v972 = vunpack.c.h.b16 %v309
      %v973 = vunpack.c.l.b16 %v310
      %v974 = vunpack.c.h.b16 %v310
      %v975 = vunpack.c.l.b16 %v311
      %v976 = vunpack.c.h.b16 %v311
      %v977 = vunpack.c.l.b16 %v312
      %v978 = vunpack.c.h.b16 %v312
      %v979 = vunpack.c.l.b16 %v313
      %v980 = vunpack.c.h.b16 %v313
      %v981 = vunpack.c.l.b16 %v314
      %v982 = vunpack.c.h.b16 %v314
      %v983 = vunpack.c.l.b16 %v315
      %v984 = vunpack.c.h.b16 %v315
      %v985 = vunpack.c.l.b16 %v316
      %v986 = vunpack.c.h.b16 %v316
      %v987 = vunpack.c.l.b16 %v317
      %v988 = vunpack.c.h.b16 %v317
      %v989 = vunpack.c.l.b16 %v318
      %v990 = vunpack.c.h.b16 %v318
      %v991 = vunpack.c.l.b16 %v319
      %v992 = vunpack.c.h.b16 %v319
      %v993 = vunpack.c.l.b16 %v320
      %v994 = vunpack.c.h.b16 %v320
      %v995 = vunpack.c.l.b16 %v321
      %v996 = vunpack.c.h.b16 %v321
      %v997 = vunpack.c.l.b16 %v322
      %v998 = vunpack.c.h.b16 %v322
      %v999 = vunpack.c.l.b16 %v323
      %v1000 = vunpack.c.h.b16 %v323
      %v1001 = vunpack.c.l.b16 %v324
      %v1002 = vunpack.c.h.b16 %v324
      %v1003 = vunpack.c.l.b16 %v325
      %v1004 = vunpack.c.h.b16 %v325
      %v1005 = vunpack.c.l.b16 %v326
      %v1006 = vunpack.c.h.b16 %v326
      %v1007 = vunpack.c.l.b16 %v327
      %v1008 = vunpack.c.h.b16 %v327
      %v1009 = vunpack.c.l.b16 %v328
      %v1010 = vunpack.c.h.b16 %v328
      %v1011 = vunpack.c.l.b16 %v329
      %v1012 = vunpack.c.h.b16 %v329
      %v1013 = vunpack.c.l.b16 %v330
      %v1014 = vunpack.c.h.b16 %v330
      %v1015 = vunpack.c.l.b16 %v331
      %v1016 = vunpack.c.h.b16 %v331
      %v1017 = vunpack.c.l.b16 %v332
      %v1018 = vunpack.c.h.b16 %v332
      %v1019 = vunpack.c.l.b16 %v333
      %v1020 = vunpack.c.h.b16 %v333
      %v1021 = vunpack.c.l.b16 %v334
      %v1022 = vunpack.c.h.b16 %v334
      %v1023 = vunpack.c.l.b16 %v335
      %v1024 = vunpack.c.h.b16 %v335
      %v1025 = vunpack.c.l.b16 %v336
      %v1026 = vunpack.c.h.b16 %v336
      %v1027 = vunpack.c.l.b16 %v337
      %v1028 = vunpack.c.h.b16 %v337
      %v1029 = vunpack.c.l.b16 %v338
      %v1030 = vunpack.c.h.b16 %v338
      %v1031 = vunpack.c.l.b16 %v339
      %v1032 = vunpack.c.h.b16 %v339
      %v1033 = vunpack.c.l.b16 %v340
      %v1034 = vunpack.c.h.b16 %v340
      %v1035 = vunpack.c.l.b16 %v341
      %v1036 = vunpack.c.h.b16 %v341
      %v1037 = vunpack.c.l.b16 %v342
      %v1038 = vunpack.c.h.b16 %v342
      %v1039 = vunpack.c.l.b16 %v343
      %v1040 = vunpack.c.h.b16 %v343
      %v1041 = vunpack.c.l.b16 %v344
      %v1042 = vunpack.c.h.b16 %v344
      %v1043 = vunpack.c.l.b16 %v345
      %v1044 = vunpack.c.h.b16 %v345
      %v1045 = vunpack.c.l.b16 %v346
      %v1046 = vunpack.c.h.b16 %v346
      %v1047 = vunpack.c.l.b16 %v347
      %v1048 = vunpack.c.h.b16 %v347
      %v1049 = vunpack.c.l.b16 %v348
      %v1050 = vunpack.c.h.b16 %v348
      %v1051 = vunpack.c.l.b16 %v349
      %v1052 = vunpack.c.h.b16 %v349
      %v1053 = vunpack.c.l.b16 %v350
      %v1054 = vunpack.c.h.b16 %v350
      %v1055 = vunpack.c.l.b16 %v351
      %v1056 = vunpack.c.h.b16 %v351
      %v1057 = vunpack.c.l.b16 %v352
      %v1058 = vunpack.c.h.b16 %v352
      %v1059 = vunpack.c.l.b16 %v353
      %v1060 = vunpack.c.h.b16 %v353
      %v1061 = vunpack.c.l.b16 %v354
      %v1062 = vunpack.c.h.b16 %v354
      %v1063 = vunpack.c.l.b16 %v355
      %v1064 = vunpack.c.h.b16 %v355
      %v1065 = vunpack.c.l.b16 %v356
      %v1066 = vunpack.c.h.b16 %v356
      %v1067 = vunpack.c.l.b16 %v357
      %v1068 = vunpack.c.h.b16 %v357
      %v1069 = vunpack.c.l.b16 %v358
      %v1070 = vunpack.c.h.b16 %v358
      %v1071 = vunpack.c.l.b16 %v359
      %v1072 = vunpack.c.h.b16 %v359
      %v1073 = vunpack.c.l.b16 %v360
      %v1074 = vunpack.c.h.b16 %v360
      %v1075 = vunpack.c.l.b16 %v361
      %v1076 = vunpack.c.h.b16 %v361
      %v1077 = vunpack.c.l.b16 %v362
      %v1078 = vunpack.c.h.b16 %v362
      %v1079 = vunpack.c.l.b16 %v363
      %v1080 = vunpack.c.h.b16 %v363
      %v1081 = vunpack.c.l.b16 %v364
      %v1082 = vunpack.c.h.b16 %v364
      %v1083 = vunpack.c.l.b16 %v365
      %v1084 = vunpack.c.h.b16 %v365
      %v1085 = vunpack.c.l.b16 %v366
      %v1086 = vunpack.c.h.b16 %v366
      %v1087 = vunpack.c.l.b16 %v367
      %v1088 = vunpack.c.h.b16 %v367
      %v1089 = vunpack.c.l.b16 %v368
      %v1090 = vunpack.c.h.b16 %v368
      %v1091 = vunpack.c.l.b16 %v369
      %v1092 = vunpack.c.h.b16 %v369
      %v1093 = vunpack.c.l.b16 %v370
      %v1094 = vunpack.c.h.b16 %v370
      %v1095 = vunpack.c.l.b16 %v371
      %v1096 = vunpack.c.h.b16 %v371
      %v1097 = vunpack.c.l.b16 %v372
      %v1098 = vunpack.c.h.b16 %v372
      %v1099 = vunpack.c.l.b16 %v373
      %v1100 = vunpack.c.h.b16 %v373
      %v1101 = vunpack.c.l.b16 %v374
      %v1102 = vunpack.c.h.b16 %v374
      %v1103 = vunpack.c.l.b16 %v375
      %v1104 = vunpack.c.h.b16 %v375
      %v1105 = vunpack.c.l.b16 %v376
      %v1106 = vunpack.c.h.b16 %v376
      %v1107 = vunpack.c.l.b16 %v377
      %v1108 = vunpack.c.h.b16 %v377
      %v1109 = vunpack.c.l.b16 %v378
      %v1110 = vunpack.c.h.b16 %v378
      %v1111 = vunpack.c.l.b16 %v379
      %v1112 = vunpack.c.h.b16 %v379
      %v1113 = vunpack.c.l.b16 %v380
      %v1114 = vunpack.c.h.b16 %v380
      %v1115 = vunpack.c.l.b16 %v381
      %v1116 = vunpack.c.h.b16 %v381
      %v1117 = vunpack.c.l.b16 %v382
      %v1118 = vunpack.c.h.b16 %v382
      %v1119 = vunpack.c.l.b16 %v383
      %v1120 = vunpack.c.h.b16 %v383
      %v1121 = vunpack.c.l.b16 %v384
      %v1122 = vunpack.c.h.b16 %v384
      %v1123 = vunpack.c.l.b16 %v385
      %v1124 = vunpack.c.h.b16 %v385
      %v1125 = vunpack.c.l.b16 %v386
      %v1126 = vunpack.c.h.b16 %v386
      %v1127 = vunpack.c.l.b16 %v387
      %v1128 = vunpack.c.h.b16 %v387
      %v1129 = vunpack.c.l.b16 %v388
      %v1130 = vunpack.c.h.b16 %v388
      %v1131 = vunpack.c.l.b16 %v389
      %v1132 = vunpack.c.h.b16 %v389
      %v1133 = vunpack.c.l.b16 %v390
      %v1134 = vunpack.c.h.b16 %v390
      %v1135 = vunpack.c.l.b16 %v391
      %v1136 = vunpack.c.h.b16 %v391
      %v1137 = vunpack.c.l.b16 %v392
      %v1138 = vunpack.c.h.b16 %v392
      %v1139 = vunpack.c.l.b16 %v393
      %v1140 = vunpack.c.h.b16 %v393
      %v1141 = vunpack.c.l.b16 %v394
      %v1142 = vunpack.c.h.b16 %v394
      %v1143 = vunpack.c.l.b16 %v395
      %v1144 = vunpack.c.h.b16 %v395
      %v1145 = vunpack.c.l.b16 %v396
      %v1146 = vunpack.c.h.b16 %v396
      %v1147 = vunpack.c.l.b16 %v397
      %v1148 = vunpack.c.h.b16 %v397
      %v1149 = vunpack.c.l.b16 %v398
      %v1150 = vunpack.c.h.b16 %v398
      %v1151 = vunpack.c.l.b16 %v399
      %v1152 = vunpack.c.h.b16 %v399
      %v1153 = vunpack.c.l.b16 %v400
      %v1154 = vunpack.c.h.b16 %v400
      %v1155 = vunpack.c.l.b16 %v401
      %v1156 = vunpack.c.h.b16 %v401
      %v1157 = vunpack.c.l.b16 %v402
      %v1158 = vunpack.c.h.b16 %v402
      %v1159 = vunpack.c.l.b16 %v403
      %v1160 = vunpack.c.h.b16 %v403
      %v1161 = vunpack.c.l.b16 %v404
      %v1162 = vunpack.c.h.b16 %v404
      %v1163 = vunpack.c.l.b16 %v405
      %v1164 = vunpack.c.h.b16 %v405
      %v1165 = vunpack.c.l.b16 %v406
      %v1166 = vunpack.c.h.b16 %v406
      %v1167 = vunpack.c.l.b16 %v407
      %v1168 = vunpack.c.h.b16 %v407
      %v1169 = vunpack.c.l.b16 %v408
      %v1170 = vunpack.c.h.b16 %v408
      %v1171 = vunpack.c.l.b16 %v409
      %v1172 = vunpack.c.h.b16 %v409
      %v1173 = vunpack.c.l.b16 %v410
      %v1174 = vunpack.c.h.b16 %v410
      %v1175 = vunpack.c.l.b16 %v411
      %v1176 = vunpack.c.h.b16 %v411
      %v1177 = vunpack.c.l.b16 %v412
      %v1178 = vunpack.c.h.b16 %v412
      %v1179 = vunpack.c.l.b16 %v413
      %v1180 = vunpack.c.h.b16 %v413
      %v1181 = vunpack.c.l.b16 %v414
      %v1182 = vunpack.c.h.b16 %v414
      %v1183 = vunpack.c.l.b16 %v415
      %v1184 = vunpack.c.h.b16 %v415
      %v1185 = vunpack.c.l.b16 %v416
      %v1186 = vunpack.c.h.b16 %v416
      %v1187 = vunpack.c.l.b16 %v417
      %v1188 = vunpack.c.h.b16 %v417
      %v1189 = vunpack.c.l.b16 %v418
      %v1190 = vunpack.c.h.b16 %v418
      %v1191 = vunpack.c.l.b16 %v419
      %v1192 = vunpack.c.h.b16 %v419
      %v1193 = vunpack.c.l.b16 %v420
      %v1194 = vunpack.c.h.b16 %v420
      %v1195 = vunpack.c.l.b16 %v421
      %v1196 = vunpack.c.h.b16 %v421
      %v1197 = vunpack.c.l.b16 %v422
      %v1198 = vunpack.c.h.b16 %v422
      %v1199 = vunpack.c.l.b16 %v423
      %v1200 = vunpack.c.h.b16 %v423
      %v1201 = vunpack.c.l.b16 %v424
      %v1202 = vunpack.c.h.b16 %v424
      %v1203 = vunpack.c.l.b16 %v425
      %v1204 = vunpack.c.h.b16 %v425
      %v1205 = vunpack.c.l.b16 %v426
      %v1206 = vunpack.c.h.b16 %v426
      %v1207 = vunpack.c.l.b16 %v427
      %v1208 = vunpack.c.h.b16 %v427
      %v1209 = vunpack.c.l.b16 %v428
      %v1210 = vunpack.c.h.b16 %v428
      %v1211 = vunpack.c.l.b16 %v429
      %v1212 = vunpack.c.h.b16 %v429
      %v1213 = vunpack.c.l.b16 %v430
      %v1214 = vunpack.c.h.b16 %v430
      %v1215 = vunpack.c.l.b16 %v431
      %v1216 = vunpack.c.h.b16 %v431
      %v1217 = vunpack.c.l.b16 %v432
      %v1218 = vunpack.c.h.b16 %v432
      %v1219 = vunpack.c.l.b16 %v433
      %v1220 = vunpack.c.h.b16 %v433
      %v1221 = vunpack.c.l.b16 %v434
      %v1222 = vunpack.c.h.b16 %v434
      %v1223 = vunpack.c.l.b16 %v435
      %v1224 = vunpack.c.h.b16 %v435
      %v1225 = vunpack.c.l.b16 %v436
      %v1226 = vunpack.c.h.b16 %v436
      %v1227 = vunpack.c.l.b16 %v437
      %v1228 = vunpack.c.h.b16 %v437
      %v1229 = vunpack.c.l.b16 %v438
      %v1230 = vunpack.c.h.b16 %v438
      %v1231 = vunpack.c.l.b16 %v439
      %v1232 = vunpack.c.h.b16 %v439
      %v1233 = vunpack.c.l.b16 %v440
      %v1234 = vunpack.c.h.b16 %v440
      %v1235 = vunpack.c.l.b16 %v441
      %v1236 = vunpack.c.h.b16 %v441
      %v1237 = vunpack.c.l.b16 %v442
      %v1238 = vunpack.c.h.b16 %v442
      %v1239 = vunpack.c.l.b16 %v443
      %v1240 = vunpack.c.h.b16 %v443
      %v1241 = vunpack.c.l.b16 %v444
      %v1242 = vunpack.c.h.b16 %v444
      %v1243 = vunpack.c.l.b16 %v445
      %v1244 = vunpack.c.h.b16 %v445
      %v1245 = vunpack.c.l.b16 %v446
      %v1246 = vunpack.c.h.b16 %v446
      %v1247 = vunpack.c.l.b16 %v447
      %v1248 = vunpack.c.h.b16 %v447
      %v1249 = vunpack.c.l.b16 %v448
      %v1250 = vunpack.c.h.b16 %v448
      %v1251 = vunpack.c.l.b16 %v449
      %v1252 = vunpack.c.h.b16 %v449
      %v1253 = vunpack.c.l.b16 %v450
      %v1254 = vunpack.c.h.b16 %v450
      %v1255 = vunpack.c.l.b16 %v451
      %v1256 = vunpack.c.h.b16 %v451
      %v1257 = vunpack.c.l.b16 %v452
      %v1258 = vunpack.c.h.b16 %v452
      %v1259 = vunpack.c.l.b16 %v453
      %v1260 = vunpack.c.h.b16 %v453
      %v1261 = vunpack.c.l.b16 %v454
      %v1262 = vunpack.c.h.b16 %v454
      %v1263 = vunpack.c.l.b16 %v455
      %v1264 = vunpack.c.h.b16 %v455
      %v1265 = vunpack.c.l.b16 %v456
      %v1266 = vunpack.c.h.b16 %v456
      %v1267 = vunpack.c.l.b16 %v457
      %v1268 = vunpack.c.h.b16 %v457
      %v1269 = vunpack.c.l.b16 %v458
      %v1270 = vunpack.c.h.b16 %v458
      %v1271 = vunpack.c.l.b16 %v459
      %v1272 = vunpack.c.h.b16 %v459
      %v1273 = vunpack.c.l.b16 %v460
      %v1274 = vunpack.c.h.b16 %v460
      %v1275 = vunpack.c.l.b16 %v461
      %v1276 = vunpack.c.h.b16 %v461
      %v1277 = vunpack.c.l.b16 %v462
      %v1278 = vunpack.c.h.b16 %v462
      %v1279 = vunpack.c.l.b16 %v463
      %v1280 = vunpack.c.h.b16 %v463
      %v1281 = vunpack.c.l.b16 %v464
      %v1282 = vunpack.c.h.b16 %v464
      %v1283 = vunpack.c.l.b16 %v465
      %v1284 = vunpack.c.h.b16 %v465
      %v1285 = vunpack.c.l.b16 %v466
      %v1286 = vunpack.c.h.b16 %v466
      %v1287 = vunpack.c.l.b16 %v467
      %v1288 = vunpack.c.h.b16 %v467
      %v1289 = vunpack.c.l.b16 %v468
      %v1290 = vunpack.c.h.b16 %v468
      %v1291 = vunpack.c.l.b16 %v469
      %v1292 = vunpack.c.h.b16 %v469
      %v1293 = vunpack.c.l.b16 %v470
      %v1294 = vunpack.c.h.b16 %v470
      %v1295 = vunpack.c.l.b16 %v471
      %v1296 = vunpack.c.h.b16 %v471
      %v1297 = vunpack.c.l.b16 %v472
      %v1298 = vunpack.c.h.b16 %v472
      %v1299 = vunpack.c.l.b16 %v473
      %v1300 = vunpack.c.h.b16 %v473
      %v1301 = vunpack.c.l.b16 %v474
      %v1302 = vunpack.c.h.b16 %v474
      %v1303 = vunpack.c.l.b16 %v475
      %v1304 = vunpack.c.h.b16 %v475
      %v1305 = vunpack.c.l.b16 %v476
      %v1306 = vunpack.c.h.b16 %v476
      %v1307 = vunpack.c.l.b16 %v477
      %v1308 = vunpack.c.h.b16 %v477
      %v1309 = vunpack.c.l.b16 %v478
      %v1310 = vunpack.c.h.b16 %v478
      %v1311 = vunpack.c.l.b16 %v479
      %v1312 = vunpack.c.h.b16 %v479
      %v1313 = vunpack.c.l.b16 %v480
      %v1314 = vunpack.c.h.b16 %v480
      %v1315 = vunpack.c.l.b16 %v481
      %v1316 = vunpack.c.h.b16 %v481
      %v1317 = vpack.c.b16 %v809, %v805
      %v1318 = vpack.c.b16 %v810, %v806
      %v1319 = vpack.c.b16 %v811, %v807
      %v1320 = vpack.c.b16 %v812, %v808
      %v1321 = vpack.c.b16 %v817, %v813
      %v1322 = vpack.c.b16 %v818, %v814
      %v1323 = vpack.c.b16 %v819, %v815
      %v1324 = vpack.c.b16 %v820, %v816
      %v1325 = vpack.c.b16 %v825, %v821
      %v1326 = vpack.c.b16 %v826, %v822
      %v1327 = vpack.c.b16 %v827, %v823
      %v1328 = vpack.c.b16 %v828, %v824
      %v1329 = vpack.c.b16 %v833, %v829
      %v1330 = vpack.c.b16 %v834, %v830
      %v1331 = vpack.c.b16 %v835, %v831
      %v1332 = vpack.c.b16 %v836, %v832
      %v1333 = vpack.c.b16 %v841, %v837
      %v1334 = vpack.c.b16 %v842, %v838
      %v1335 = vpack.c.b16 %v843, %v839
      %v1336 = vpack.c.b16 %v844, %v840
      %v1337 = vpack.c.b16 %v849, %v845
      %v1338 = vpack.c.b16 %v850, %v846
      %v1339 = vpack.c.b16 %v851, %v847
      %v1340 = vpack.c.b16 %v852, %v848
      %v1341 = vpack.c.b16 %v857, %v853
      %v1342 = vpack.c.b16 %v858, %v854
      %v1343 = vpack.c.b16 %v859, %v855
      %v1344 = vpack.c.b16 %v860, %v856
      %v1345 = vpack.c.b16 %v865, %v861
      %v1346 = vpack.c.b16 %v866, %v862
      %v1347 = vpack.c.b16 %v867, %v863
      %v1348 = vpack.c.b16 %v868, %v864
      %v1349 = vpack.c.b16 %v873, %v869
      %v1350 = vpack.c.b16 %v874, %v870
      %v1351 = vpack.c.b16 %v875, %v871
      %v1352 = vpack.c.b16 %v876, %v872
      %v1353 = vpack.c.b16 %v881, %v877
      %v1354 = vpack.c.b16 %v882, %v878
      %v1355 = vpack.c.b16 %v883, %v879
      %v1356 = vpack.c.b16 %v884, %v880
      %v1357 = vpack.c.b16 %v889, %v885
      %v1358 = vpack.c.b16 %v890, %v886
      %v1359 = vpack.c.b16 %v891, %v887
      %v1360 = vpack.c.b16 %v892, %v888
      %v1361 = vpack.c.b16 %v897, %v893
      %v1362 = vpack.c.b16 %v898, %v894
      %v1363 = vpack.c.b16 %v899, %v895
      %v1364 = vpack.c.b16 %v900, %v896
      %v1365 = vpack.c.b16 %v905, %v901
      %v1366 = vpack.c.b16 %v906, %v902
      %v1367 = vpack.c.b16 %v907, %v903
      %v1368 = vpack.c.b16 %v908, %v904
      %v1369 = vpack.c.b16 %v913, %v909
      %v1370 = vpack.c.b16 %v914, %v910
      %v1371 = vpack.c.b16 %v915, %v911
      %v1372 = vpack.c.b16 %v916, %v912
      %v1373 = vpack.c.b16 %v921, %v917
      %v1374 = vpack.c.b16 %v922, %v918
      %v1375 = vpack.c.b16 %v923, %v919
      %v1376 = vpack.c.b16 %v924, %v920
      %v1377 = vpack.c.b16 %v929, %v925
      %v1378 = vpack.c.b16 %v930, %v926
      %v1379 = vpack.c.b16 %v931, %v927
      %v1380 = vpack.c.b16 %v932, %v928
      %v1381 = vpack.c.b16 %v937, %v933
      %v1382 = vpack.c.b16 %v938, %v934
      %v1383 = vpack.c.b16 %v939, %v935
      %v1384 = vpack.c.b16 %v940, %v936
      %v1385 = vpack.c.b16 %v945, %v941
      %v1386 = vpack.c.b16 %v946, %v942
      %v1387 = vpack.c.b16 %v947, %v943
      %v1388 = vpack.c.b16 %v948, %v944
      %v1389 = vpack.c.b16 %v953, %v949
      %v1390 = vpack.c.b16 %v954, %v950
      %v1391 = vpack.c.b16 %v955, %v951
      %v1392 = vpack.c.b16 %v956, %v952
      %v1393 = vpack.c.b16 %v961, %v957
      %v1394 = vpack.c.b16 %v962, %v958
      %v1395 = vpack.c.b16 %v963, %v959
      %v1396 = vpack.c.b16 %v964, %v960
      %v1397 = vpack.c.b16 %v969, %v965
      %v1398 = vpack.c.b16 %v970, %v966
      %v1399 = vpack.c.b16 %v971, %v967
      %v1400 = vpack.c.b16 %v972, %v968
      %v1401 = vpack.c.b16 %v977, %v973
      %v1402 = vpack.c.b16 %v978, %v974
      %v1403 = vpack.c.b16 %v979, %v975
      %v1404 = vpack.c.b16 %v980, %v976
      %v1405 = vpack.c.b16 %v985, %v981
      %v1406 = vpack.c.b16 %v986, %v982
      %v1407 = vpack.c.b16 %v987, %v983
      %v1408 = vpack.c.b16 %v988, %v984
      %v1409 = vpack.c.b16 %v993, %v989
      %v1410 = vpack.c.b16 %v994, %v990
      %v1411 = vpack.c.b16 %v995, %v991
      %v1412 = vpack.c.b16 %v996, %v992
      %v1413 = vpack.c.b16 %v1001, %v997
      %v1414 = vpack.c.b16 %v1002, %v998
      %v1415 = vpack.c.b16 %v1003, %v999
      %v1416 = vpack.c.b16 %v1004, %v1000
      %v1417 = vpack.c.b16 %v1009, %v1005
      %v1418 = vpack.c.b16 %v1010, %v1006
      %v1419 = vpack.c.b16 %v1011, %v1007
      %v1420 = vpack.c.b16 %v1012, %v1008
      %v1421 = vpack.c.b16 %v1017, %v1013
      %v1422 = vpack.c.b16 %v1018, %v1014
      %v1423 = vpack.c.b16 %v1019, %v1015
      %v1424 = vpack.c.b16 %v1020, %v1016
      %v1425 = vpack.c.b16 %v1025, %v1021
      %v1426 = vpack.c.b16 %v1026, %v1022
      %v1427 = vpack.c.b16 %v1027, %v1023
      %v1428 = vpack.c.b16 %v1028, %v1024
      %v1429 = vpack.c.b16 %v1033, %v1029
      %v1430 = vpack.c.b16 %v1034, %v1030
      %v1431 = vpack.c.b16 %v1035, %v1031
      %v1432 = vpack.c.b16 %v1036, %v1032
      %v1433 = vpack.c.b16 %v1041, %v1037
      %v1434 = vpack.c.b16 %v1042, %v1038
      %v1435 = vpack.c.b16 %v1043, %v1039
      %v1436 = vpack.c.b16 %v1044, %v1040
      %v1437 = vpack.c.b16 %v1049, %v1045
      %v1438 = vpack.c.b16 %v1050, %v1046
      %v1439 = vpack.c.b16 %v1051, %v1047
      %v1440 = vpack.c.b16 %v1052, %v1048
      %v1441 = vpack.c.b16 %v1057, %v1053
      %v1442 = vpack.c.b16 %v1058, %v1054
      %v1443 = vpack.c.b16 %v1059, %v1055
      %v1444 = vpack.c.b16 %v1060, %v1056
      %v1445 = vpack.c.b16 %v1065, %v1061
      %v1446 = vpack.c.b16 %v1066, %v1062
      %v1447 = vpack.c.b16 %v1067, %v1063
      %v1448 = vpack.c.b16 %v1068, %v1064
      %v1449 = vpack.c.b16 %v1073, %v1069
      %v1450 = vpack.c.b16 %v1074, %v1070
      %v1451 = vpack.c.b16 %v1075, %v1071
      %v1452 = vpack.c.b16 %v1076, %v1072
      %v1453 = vpack.c.b16 %v1081, %v1077
      %v1454 = vpack.c.b16 %v1082, %v1078
      %v1455 = vpack.c.b16 %v1083, %v1079
      %v1456 = vpack.c.b16 %v1084, %v1080
      %v1457 = vpack.c.b16 %v1089, %v1085
      %v1458 = vpack.c.b16 %v1090, %v1086
      %v1459 = vpack.c.b16 %v1091, %v1087
      %v1460 = vpack.c.b16 %v1092, %v1088
      %v1461 = vpack.c.b16 %v1097, %v1093
      %v1462 = vpack.c.b16 %v1098, %v1094
      %v1463 = vpack.c.b16 %v1099, %v1095
      %v1464 = vpack.c.b16 %v1100, %v1096
      %v1465 = vpack.c.b16 %v1105, %v1101
      %v1466 = vpack.c.b16 %v1106, %v1102
      %v1467 = vpack.c.b16 %v1107, %v1103
      %v1468 = vpack.c.b16 %v1108, %v1104
      %v1469 = vpack.c.b16 %v1113, %v1109
      %v1470 = vpack.c.b16 %v1114, %v1110
      %v1471 = vpack.c.b16 %v1115, %v1111
      %v1472 = vpack.c.b16 %v1116, %v1112
      %v1473 = vpack.c.b16 %v1121, %v1117
      %v1474 = vpack.c.b16 %v1122, %v1118
      %v1475 = vpack.c.b16 %v1123, %v1119
      %v1476 = vpack.c.b16 %v1124, %v1120
      %v1477 = vpack.c.b16 %v1129, %v1125
      %v1478 = vpack.c.b16 %v1130, %v1126
      %v1479 = vpack.c.b16 %v1131, %v1127
      %v1480 = vpack.c.b16 %v1132, %v1128
      %v1481 = vpack.c.b16 %v1137, %v1133
      %v1482 = vpack.c.b16 %v1138, %v1134
      %v1483 = vpack.c.b16 %v1139, %v1135
      %v1484 = vpack.c.b16 %v1140, %v1136
      %v1485 = vpack.c.b16 %v1145, %v1141
      %v1486 = vpack.c.b16 %v1146, %v1142
      %v1487 = vpack.c.b16 %v1147, %v1143
      %v1488 = vpack.c.b16 %v1148, %v1144
      %v1489 = vpack.c.b16 %v1153, %v1149
      %v1490 = vpack.c.b16 %v1154, %v1150
      %v1491 = vpack.c.b16 %v1155, %v1151
      %v1492 = vpack.c.b16 %v1156, %v1152
      %v1493 = vpack.c.b16 %v1161, %v1157
      %v1494 = vpack.c.b16 %v1162, %v1158
      %v1495 = vpack.c.b16 %v1163, %v1159
      %v1496 = vpack.c.b16 %v1164, %v1160
      %v1497 = vpack.c.b16 %v1169, %v1165
      %v1498 = vpack.c.b16 %v1170, %v1166
      %v1499 = vpack.c.b16 %v1171, %v1167
      %v1500 = vpack.c.b16 %v1172, %v1168
      %v1501 = vpack.c.b16 %v1177, %v1173
      %v1502 = vpack.c.b16 %v1178, %v1174
      %v1503 = vpack.c.b16 %v1179, %v1175
      %v1504 = vpack.c.b16 %v1180, %v1176
      %v1505 = vpack.c.b16 %v1185, %v1181
      %v1506 = vpack.c.b16 %v1186, %v1182
      %v1507 = vpack.c.b16 %v1187, %v1183
      %v1508 = vpack.c.b16 %v1188, %v1184
      %v1509 = vpack.c.b16 %v1193, %v1189
      %v1510 = vpack.c.b16 %v1194, %v1190
      %v1511 = vpack.c.b16 %v1195, %v1191
      %v1512 = vpack.c.b16 %v1196, %v1192
      %v1513 = vpack.c.b16 %v1201, %v1197
      %v1514 = vpack.c.b16 %v1202, %v1198
      %v1515 = vpack.c.b16 %v1203, %v1199
      %v1516 = vpack.c.b16 %v1204, %v1200
      %v1517 = vpack.c.b16 %v1209, %v1205
      %v1518 = vpack.c.b16 %v1210, %v1206
      %v1519 = vpack.c.b16 %v1211, %v1207
      %v1520 = vpack.c.b16 %v1212, %v1208
      %v1521 = vpack.c.b16 %v1217, %v1213
      %v1522 = vpack.c.b16 %v1218, %v1214
      %v1523 = vpack.c.b16 %v1219, %v1215
      %v1524 = vpack.c.b16 %v1220, %v1216
      %v1525 = vpack.c.b16 %v1225, %v1221
      %v1526 = vpack.c.b16 %v1226, %v1222
      %v1527 = vpack.c.b16 %v1227, %v1223
      %v1528 = vpack.c.b16 %v1228, %v1224
      %v1529 = vpack.c.b16 %v1233, %v1229
      %v1530 = vpack.c.b16 %v1234, %v1230
      %v1531 = vpack.c.b16 %v1235, %v1231
      %v1532 = vpack.c.b16 %v1236, %v1232
      %v1533 = vpack.c.b16 %v1241, %v1237
      %v1534 = vpack.c.b16 %v1242, %v1238
      %v1535 = vpack.c.b16 %v1243, %v1239
      %v1536 = vpack.c.b16 %v1244, %v1240
      %v1537 = vpack.c.b16 %v1249, %v1245
      %v1538 = vpack.c.b16 %v1250, %v1246
      %v1539 = vpack.c.b16 %v1251, %v1247
      %v1540 = vpack.c.b16 %v1252, %v1248
      %v1541 = vpack.c.b16 %v1257, %v1253
      %v1542 = vpack.c.b16 %v1258, %v1254
      %v1543 = vpack.c.b16 %v1259, %v1255
      %v1544 = vpack.c.b16 %v1260, %v1256
      %v1545 = vpack.c.b16 %v1265, %v1261
      %v1546 = vpack.c.b16 %v1266, %v1262
      %v1547 = vpack.c.b16 %v1267, %v1263
      %v1548 = vpack.c.b16 %v1268, %v1264
      %v1549 = vpack.c.b16 %v1273, %v1269
      %v1550 = vpack.c.b16 %v1274, %v1270
      %v1551 = vpack.c.b16 %v1275, %v1271
      %v1552 = vpack.c.b16 %v1276, %v1272
      %v1553 = vpack.c.b16 %v1281, %v1277
      %v1554 = vpack.c.b16 %v1282, %v1278
      %v1555 = vpack.c.b16 %v1283, %v1279
      %v1556 = vpack.c.b16 %v1284, %v1280
      %v1557 = vpack.c.b16 %v1289, %v1285
      %v1558 = vpack.c.b16 %v1290, %v1286
      %v1559 = vpack.c.b16 %v1291, %v1287
      %v1560 = vpack.c.b16 %v1292, %v1288
      %v1561 = vpack.c.b16 %v1297, %v1293
      %v1562 = vpack.c.b16 %v1298, %v1294
      %v1563 = vpack.c.b16 %v1299, %v1295
      %v1564 = vpack.c.b16 %v1300, %v1296
      %v1565 = vpack.c.b16 %v1305, %v1301
      %v1566 = vpack.c.b16 %v1306, %v1302
      %v1567 = vpack.c.b16 %v1307, %v1303
      %v1568 = vpack.c.b16 %v1308, %v1304
      %v1569 = vpack.c.b16 %v1313, %v1309
      %v1570 = vpack.c.b16 %v1314, %v1310
      %v1571 = vpack.c.b16 %v1315, %v1311
      %v1572 = vpack.c.b16 %v1316, %v1312
      %v1828 = vunpack.c.l.b16 %v482
      %v1829 = vunpack.c.l.b16 %v483
      %v1830 = vunpack.c.l.b16 %v484
      %v1831 = vunpack.c.l.b16 %v485
      %v1832 = vunpack.c.l.b16 %v486
      %v1833 = vunpack.c.l.b16 %v487
      %v1834 = vunpack.c.l.b16 %v488
      %v1835 = vunpack.c.l.b16 %v489
      %v1836 = vunpack.c.l.b16 %v490
      %v1837 = vunpack.c.l.b16 %v491
      %v1838 = vunpack.c.l.b16 %v492
      %v1839 = vunpack.c.l.b16 %v493
      %v1840 = vunpack.c.l.b16 %v494
      %v1841 = vunpack.c.l.b16 %v495
      %v1842 = vunpack.c.l.b16 %v496
      %v1843 = vunpack.c.l.b16 %v497
      %v1844 = vunpack.c.l.b16 %v498
      %v1845 = vunpack.c.l.b16 %v499
      %v1846 = vunpack.c.l.b16 %v500
      %v1847 = vunpack.c.l.b16 %v501
      %v1848 = vunpack.c.l.b16 %v502
      %v1849 = vunpack.c.l.b16 %v503
      %v1850 = vunpack.c.l.b16 %v504
      %v1851 = vunpack.c.l.b16 %v505
      %v1852 = vunpack.c.l.b16 %v506
      %v1853 = vunpack.c.l.b16 %v507
      %v1854 = vunpack.c.l.b16 %v508
      %v1855 = vunpack.c.l.b16 %v509
      %v1856 = vunpack.c.l.b16 %v510
      %v1857 = vunpack.c.l.b16 %v511
      %v1858 = vunpack.c.l.b16 %v512
      %v1859 = vunpack.c.l.b16 %v513
      %v1860 = vunpack.c.l.b16 %v514
      %v1861 = vunpack.c.l.b16 %v515
      %v1862 = vunpack.c.l.b16 %v516
      %v1863 = vunpack.c.l.b16 %v517
      %v1864 = vunpack.c.l.b16 %v518
      %v1865 = vunpack.c.l.b16 %v519
      %v1866 = vunpack.c.l.b16 %v520
      %v1867 = vunpack.c.l.b16 %v521
      %v1868 = vunpack.c.l.b16 %v522
      %v1869 = vunpack.c.l.b16 %v523
      %v1870 = vunpack.c.l.b16 %v524
      %v1871 = vunpack.c.l.b16 %v525
      %v1872 = vunpack.c.l.b16 %v526
      %v1873 = vunpack.c.l.b16 %v527
      %v1874 = vunpack.c.l.b16 %v528
      %v1875 = vunpack.c.l.b16 %v529
      %v1876 = vunpack.c.l.b16 %v530
      %v1877 = vunpack.c.l.b16 %v531
      %v1878 = vunpack.c.l.b16 %v532
      %v1879 = vunpack.c.l.b16 %v533
      %v1880 = vunpack.c.l.b16 %v534
      %v1881 = vunpack.c.l.b16 %v535
      %v1882 = vunpack.c.l.b16 %v536
      %v1883 = vunpack.c.l.b16 %v537
      %v1884 = vunpack.c.l.b16 %v538
      %v1885 = vunpack.c.l.b16 %v539
      %v1886 = vunpack.c.l.b16 %v540
      %v1887 = vunpack.c.l.b16 %v541
      %v1888 = vunpack.c.l.b16 %v542
      %v1889 = vunpack.c.l.b16 %v543
      %v1890 = vunpack.c.l.b16 %v544
      %v1891 = vpack.c.b16 %v1829, %v1828
      %v1892 = vpack.c.b16 %v1831, %v1830
      %v1893 = vpack.c.b16 %v1833, %v1832
      %v1894 = vpack.c.b16 %v1835, %v1834
      %v1895 = vpack.c.b16 %v1837, %v1836
      %v1896 = vpack.c.b16 %v1839, %v1838
      %v1897 = vpack.c.b16 %v1841, %v1840
      %v1898 = vpack.c.b16 %v1843, %v1842
      %v1899 = vpack.c.b16 %v1845, %v1844
      %v1900 = vpack.c.b16 %v1847, %v1846
      %v1901 = vpack.c.b16 %v1849, %v1848
      %v1902 = vpack.c.b16 %v1851, %v1850
      %v1903 = vpack.c.b16 %v1853, %v1852
      %v1904 = vpack.c.b16 %v1855, %v1854
      %v1905 = vpack.c.b16 %v1857, %v1856
      %v1906 = vpack.c.b16 %v1859, %v1858
      %v1907 = vpack.c.b16 %v1861, %v1860
      %v1908 = vpack.c.b16 %v1863, %v1862
      %v1909 = vpack.c.b16 %v1865, %v1864
      %v1910 = vpack.c.b16 %v1867, %v1866
      %v1911 = vpack.c.b16 %v1869, %v1868
      %v1912 = vpack.c.b16 %v1871, %v1870
      %v1913 = vpack.c.b16 %v1873, %v1872
      %v1914 = vpack.c.b16 %v1875, %v1874
      %v1915 = vpack.c.b16 %v1877, %v1876
      %v1916 = vpack.c.b16 %v1879, %v1878
      %v1917 = vpack.c.b16 %v1881, %v1880
      %v1918 = vpack.c.b16 %v1883, %v1882
      %v1919 = vpack.c.b16 %v1885, %v1884
      %v1920 = vpack.c.b16 %v1887, %v1886
      %v1921 = vpack.c.b16 %v1889, %v1888
      %v1922 = vpack.c.b16 %v1890, %v1890
      %vm1954 = vcmask 982016
      %v1956 = vsel %vm1954, %v1320, 0
      %v1959 = vsel %vm1954, %v1324, 0
      %v1962 = vsel %vm1954, %v1328, 0
      %v1965 = vsel %vm1954, %v1332, 0
      %v1968 = vsel %vm1954, %v1336, 0
      %v1971 = vsel %vm1954, %v1340, 0
      %v1974 = vsel %vm1954, %v1344, 0
      %v1977 = vsel %vm1954, %v1348, 0
      %v1980 = vsel %vm1954, %v1352, 0
      %v1983 = vsel %vm1954, %v1356, 0
      %v1986 = vsel %vm1954, %v1360, 0
      %v1989 = vsel %vm1954, %v1364, 0
      %v1992 = vsel %vm1954, %v1368, 0
      %v1995 = vsel %vm1954, %v1372, 0
      %v1998 = vsel %vm1954, %v1376, 0
      %v2001 = vsel %vm1954, %v1380, 0
      %v2004 = vsel %vm1954, %v1384, 0
      %v2007 = vsel %vm1954, %v1388, 0
      %v2010 = vsel %vm1954, %v1392, 0
      %v2013 = vsel %vm1954, %v1396, 0
      %v2016 = vsel %vm1954, %v1400, 0
      %v2019 = vsel %vm1954, %v1404, 0
      %v2022 = vsel %vm1954, %v1408, 0
      %v2025 = vsel %vm1954, %v1412, 0
      %v2028 = vsel %vm1954, %v1416, 0
      %v2031 = vsel %vm1954, %v1420, 0
      %v2034 = vsel %vm1954, %v1424, 0
      %v2037 = vsel %vm1954, %v1428, 0
      %v2040 = vsel %vm1954, %v1432, 0
      %v2043 = vsel %vm1954, %v1436, 0
      %v2046 = vsel %vm1954, %v1440, 0
      %v2049 = vsel %vm1954, %v1444, 0
      %v2052 = vsel %vm1954, %v1448, 0
      %v2055 = vsel %vm1954, %v1452, 0
      %v2058 = vsel %vm1954, %v1456, 0
      %v2061 = vsel %vm1954, %v1460, 0
      %v2064 = vsel %vm1954, %v1464, 0
      %v2067 = vsel %vm1954, %v1468, 0
      %v2070 = vsel %vm1954, %v1472, 0
      %v2073 = vsel %vm1954, %v1476, 0
      %v2076 = vsel %vm1954, %v1480, 0
      %v2079 = vsel %vm1954, %v1484, 0
      %v2082 = vsel %vm1954, %v1488, 0
      %v2085 = vsel %vm1954, %v1492, 0
      %v2088 = vsel %vm1954, %v1496, 0
      %v2091 = vsel %vm1954, %v1500, 0
      %v2094 = vsel %vm1954, %v1504, 0
      %v2097 = vsel %vm1954, %v1508, 0
      %v2100 = vsel %vm1954, %v1512, 0
      %v2103 = vsel %vm1954, %v1516, 0
      %v2106 = vsel %vm1954, %v1520, 0
      %v2109 = vsel %vm1954, %v1524, 0
      %v2112 = vsel %vm1954, %v1528, 0
      %v2115 = vsel %vm1954, %v1532, 0
      %v2118 = vsel %vm1954, %v1536, 0
      %v2121 = vsel %vm1954, %v1540, 0
      %v2124 = vsel %vm1954, %v1544, 0
      %v2127 = vsel %vm1954, %v1548, 0
      %v2130 = vsel %vm1954, %v1552, 0
      %v2133 = vsel %vm1954, %v1556, 0
      %v2136 = vsel %vm1954, %v1560, 0
      %v2139 = vsel %vm1954, %v1564, 0
      %v2142 = vsel %vm1954, %v1568, 0
      %v2145 = vsel %vm1954, %v1572, 0
      %vm2147 = vcmask 1043456
      %v2149 = vsel %vm2147, %v1922, 0
      %2151 = vmatpush.bf16.msra.mxu0 %v1898
      %2152 = vmatpush.bf16.msra.mxu0 %v1897
      %2153 = vmatpush.bf16.msra.mxu0 %v1896
      %2154 = vmatpush.bf16.msra.mxu0 %v1895
      %2155 = vmatpush.bf16.msra.mxu0 %v1894
      %2156 = vmatpush.bf16.msra.mxu0 %v1893
      %2157 = vmatpush.bf16.msra.mxu0 %v1892
      %2158 = vmatpush.bf16.msra.mxu0 %v1891
      %2159 = vmatmul.bf16.gmra.mxu0 %v1317
      %v2160 = vpop.f32.mrf.mxu0
      %v2161 = vadd.f32 %v547, %v2160
      %v2162 = vpop.f32.mrf.mxu0
      %v2163 = vadd.f32 %v547, %v2162
      %2164 = vmatmul.bf16.gmra.mxu0 %v1321
      %v2165 = vpop.f32.mrf.mxu0
      %v2166 = vadd.f32 %v547, %v2165
      %v2167 = vpop.f32.mrf.mxu0
      %v2168 = vadd.f32 %v547, %v2167
      %2169 = vmatmul.bf16.gmra.mxu0 %v1325
      %v2170 = vpop.f32.mrf.mxu0
      %v2171 = vadd.f32 %v547, %v2170
      %v2172 = vpop.f32.mrf.mxu0
      %v2173 = vadd.f32 %v547, %v2172
      %2174 = vmatmul.bf16.gmra.mxu0 %v1329
      %v2175 = vpop.f32.mrf.mxu0
      %v2176 = vadd.f32 %v547, %v2175
      %v2177 = vpop.f32.mrf.mxu0
      %v2178 = vadd.f32 %v547, %v2177
      %2179 = vmatmul.bf16.gmra.mxu0 %v1333
      %v2180 = vpop.f32.mrf.mxu0
      %v2181 = vadd.f32 %v547, %v2180
      %v2182 = vpop.f32.mrf.mxu0
      %v2183 = vadd.f32 %v547, %v2182
      %2184 = vmatmul.bf16.gmra.mxu0 %v1337
      %v2185 = vpop.f32.mrf.mxu0
      %v2186 = vadd.f32 %v547, %v2185
      %v2187 = vpop.f32.mrf.mxu0
      %v2188 = vadd.f32 %v547, %v2187
      %2189 = vmatmul.bf16.gmra.mxu0 %v1341
      %v2190 = vpop.f32.mrf.mxu0
      %v2191 = vadd.f32 %v547, %v2190
      %v2192 = vpop.f32.mrf.mxu0
      %v2193 = vadd.f32 %v547, %v2192
      %2194 = vmatmul.bf16.gmra.mxu0 %v1345
      %v2195 = vpop.f32.mrf.mxu0
      %v2196 = vadd.f32 %v547, %v2195
      %v2197 = vpop.f32.mrf.mxu0
      %v2198 = vadd.f32 %v547, %v2197
      %2199 = vmatmul.bf16.gmra.mxu0 %v1349
      %v2200 = vpop.f32.mrf.mxu0
      %v2201 = vadd.f32 %v547, %v2200
      %v2202 = vpop.f32.mrf.mxu0
      %v2203 = vadd.f32 %v547, %v2202
      %2204 = vmatmul.bf16.gmra.mxu0 %v1353
      %v2205 = vpop.f32.mrf.mxu0
      %v2206 = vadd.f32 %v547, %v2205
      %v2207 = vpop.f32.mrf.mxu0
      %v2208 = vadd.f32 %v547, %v2207
      %2209 = vmatmul.bf16.gmra.mxu0 %v1357
      %v2210 = vpop.f32.mrf.mxu0
      %v2211 = vadd.f32 %v547, %v2210
      %v2212 = vpop.f32.mrf.mxu0
      %v2213 = vadd.f32 %v547, %v2212
      %2214 = vmatmul.bf16.gmra.mxu0 %v1361
      %v2215 = vpop.f32.mrf.mxu0
      %v2216 = vadd.f32 %v547, %v2215
      %v2217 = vpop.f32.mrf.mxu0
      %v2218 = vadd.f32 %v547, %v2217
      %2219 = vmatmul.bf16.gmra.mxu0 %v1365
      %v2220 = vpop.f32.mrf.mxu0
      %v2221 = vadd.f32 %v547, %v2220
      %v2222 = vpop.f32.mrf.mxu0
      %v2223 = vadd.f32 %v547, %v2222
      %2224 = vmatmul.bf16.gmra.mxu0 %v1369
      %v2225 = vpop.f32.mrf.mxu0
      %v2226 = vadd.f32 %v547, %v2225
      %v2227 = vpop.f32.mrf.mxu0
      %v2228 = vadd.f32 %v547, %v2227
      %2229 = vmatmul.bf16.gmra.mxu0 %v1373
      %v2230 = vpop.f32.mrf.mxu0
      %v2231 = vadd.f32 %v547, %v2230
      %v2232 = vpop.f32.mrf.mxu0
      %v2233 = vadd.f32 %v547, %v2232
      %2234 = vmatmul.bf16.gmra.mxu0 %v1377
      %v2235 = vpop.f32.mrf.mxu0
      %v2236 = vadd.f32 %v547, %v2235
      %v2237 = vpop.f32.mrf.mxu0
      %v2238 = vadd.f32 %v547, %v2237
      %2239 = vmatmul.bf16.gmra.mxu0 %v1381
      %v2240 = vpop.f32.mrf.mxu0
      %v2241 = vadd.f32 %v547, %v2240
      %v2242 = vpop.f32.mrf.mxu0
      %v2243 = vadd.f32 %v547, %v2242
      %2244 = vmatmul.bf16.gmra.mxu0 %v1385
      %v2245 = vpop.f32.mrf.mxu0
      %v2246 = vadd.f32 %v547, %v2245
      %v2247 = vpop.f32.mrf.mxu0
      %v2248 = vadd.f32 %v547, %v2247
      %2249 = vmatmul.bf16.gmra.mxu0 %v1389
      %v2250 = vpop.f32.mrf.mxu0
      %v2251 = vadd.f32 %v547, %v2250
      %v2252 = vpop.f32.mrf.mxu0
      %v2253 = vadd.f32 %v547, %v2252
      %2254 = vmatmul.bf16.gmra.mxu0 %v1393
      %v2255 = vpop.f32.mrf.mxu0
      %v2256 = vadd.f32 %v547, %v2255
      %v2257 = vpop.f32.mrf.mxu0
      %v2258 = vadd.f32 %v547, %v2257
      %2259 = vmatmul.bf16.gmra.mxu0 %v1397
      %v2260 = vpop.f32.mrf.mxu0
      %v2261 = vadd.f32 %v547, %v2260
      %v2262 = vpop.f32.mrf.mxu0
      %v2263 = vadd.f32 %v547, %v2262
      %2264 = vmatmul.bf16.gmra.mxu0 %v1401
      %v2265 = vpop.f32.mrf.mxu0
      %v2266 = vadd.f32 %v547, %v2265
      %v2267 = vpop.f32.mrf.mxu0
      %v2268 = vadd.f32 %v547, %v2267
      %2269 = vmatmul.bf16.gmra.mxu0 %v1405
      %v2270 = vpop.f32.mrf.mxu0
      %v2271 = vadd.f32 %v547, %v2270
      %v2272 = vpop.f32.mrf.mxu0
      %v2273 = vadd.f32 %v547, %v2272
      %2274 = vmatmul.bf16.gmra.mxu0 %v1409
      %v2275 = vpop.f32.mrf.mxu0
      %v2276 = vadd.f32 %v547, %v2275
      %v2277 = vpop.f32.mrf.mxu0
      %v2278 = vadd.f32 %v547, %v2277
      %2279 = vmatmul.bf16.gmra.mxu0 %v1413
      %v2280 = vpop.f32.mrf.mxu0
      %v2281 = vadd.f32 %v547, %v2280
      %v2282 = vpop.f32.mrf.mxu0
      %v2283 = vadd.f32 %v547, %v2282
      %2284 = vmatmul.bf16.gmra.mxu0 %v1417
      %v2285 = vpop.f32.mrf.mxu0
      %v2286 = vadd.f32 %v547, %v2285
      %v2287 = vpop.f32.mrf.mxu0
      %v2288 = vadd.f32 %v547, %v2287
      %2289 = vmatmul.bf16.gmra.mxu0 %v1421
      %v2290 = vpop.f32.mrf.mxu0
      %v2291 = vadd.f32 %v547, %v2290
      %v2292 = vpop.f32.mrf.mxu0
      %v2293 = vadd.f32 %v547, %v2292
      %2294 = vmatmul.bf16.gmra.mxu0 %v1425
      %v2295 = vpop.f32.mrf.mxu0
      %v2296 = vadd.f32 %v547, %v2295
      %v2297 = vpop.f32.mrf.mxu0
      %v2298 = vadd.f32 %v547, %v2297
      %2299 = vmatmul.bf16.gmra.mxu0 %v1429
      %v2300 = vpop.f32.mrf.mxu0
      %v2301 = vadd.f32 %v547, %v2300
      %v2302 = vpop.f32.mrf.mxu0
      %v2303 = vadd.f32 %v547, %v2302
      %2304 = vmatmul.bf16.gmra.mxu0 %v1433
      %v2305 = vpop.f32.mrf.mxu0
      %v2306 = vadd.f32 %v547, %v2305
      %v2307 = vpop.f32.mrf.mxu0
      %v2308 = vadd.f32 %v547, %v2307
      %2309 = vmatmul.bf16.gmra.mxu0 %v1437
      %v2310 = vpop.f32.mrf.mxu0
      %v2311 = vadd.f32 %v547, %v2310
      %v2312 = vpop.f32.mrf.mxu0
      %v2313 = vadd.f32 %v547, %v2312
      %2314 = vmatmul.bf16.gmra.mxu0 %v1441
      %v2315 = vpop.f32.mrf.mxu0
      %v2316 = vadd.f32 %v547, %v2315
      %v2317 = vpop.f32.mrf.mxu0
      %v2318 = vadd.f32 %v547, %v2317
      %2319 = vmatmul.bf16.gmra.mxu0 %v1445
      %v2320 = vpop.f32.mrf.mxu0
      %v2321 = vadd.f32 %v547, %v2320
      %v2322 = vpop.f32.mrf.mxu0
      %v2323 = vadd.f32 %v547, %v2322
      %2324 = vmatmul.bf16.gmra.mxu0 %v1449
      %v2325 = vpop.f32.mrf.mxu0
      %v2326 = vadd.f32 %v547, %v2325
      %v2327 = vpop.f32.mrf.mxu0
      %v2328 = vadd.f32 %v547, %v2327
      %2329 = vmatmul.bf16.gmra.mxu0 %v1453
      %v2330 = vpop.f32.mrf.mxu0
      %v2331 = vadd.f32 %v547, %v2330
      %v2332 = vpop.f32.mrf.mxu0
      %v2333 = vadd.f32 %v547, %v2332
      %2334 = vmatmul.bf16.gmra.mxu0 %v1457
      %v2335 = vpop.f32.mrf.mxu0
      %v2336 = vadd.f32 %v547, %v2335
      %v2337 = vpop.f32.mrf.mxu0
      %v2338 = vadd.f32 %v547, %v2337
      %2339 = vmatmul.bf16.gmra.mxu0 %v1461
      %v2340 = vpop.f32.mrf.mxu0
      %v2341 = vadd.f32 %v547, %v2340
      %v2342 = vpop.f32.mrf.mxu0
      %v2343 = vadd.f32 %v547, %v2342
      %2344 = vmatmul.bf16.gmra.mxu0 %v1465
      %v2345 = vpop.f32.mrf.mxu0
      %v2346 = vadd.f32 %v547, %v2345
      %v2347 = vpop.f32.mrf.mxu0
      %v2348 = vadd.f32 %v547, %v2347
      %2349 = vmatmul.bf16.gmra.mxu0 %v1469
      %v2350 = vpop.f32.mrf.mxu0
      %v2351 = vadd.f32 %v547, %v2350
      %v2352 = vpop.f32.mrf.mxu0
      %v2353 = vadd.f32 %v547, %v2352
      %2354 = vmatmul.bf16.gmra.mxu0 %v1473
      %v2355 = vpop.f32.mrf.mxu0
      %v2356 = vadd.f32 %v547, %v2355
      %v2357 = vpop.f32.mrf.mxu0
      %v2358 = vadd.f32 %v547, %v2357
      %2359 = vmatmul.bf16.gmra.mxu0 %v1477
      %v2360 = vpop.f32.mrf.mxu0
      %v2361 = vadd.f32 %v547, %v2360
      %v2362 = vpop.f32.mrf.mxu0
      %v2363 = vadd.f32 %v547, %v2362
      %2364 = vmatmul.bf16.gmra.mxu0 %v1481
      %v2365 = vpop.f32.mrf.mxu0
      %v2366 = vadd.f32 %v547, %v2365
      %v2367 = vpop.f32.mrf.mxu0
      %v2368 = vadd.f32 %v547, %v2367
      %2369 = vmatmul.bf16.gmra.mxu0 %v1485
      %v2370 = vpop.f32.mrf.mxu0
      %v2371 = vadd.f32 %v547, %v2370
      %v2372 = vpop.f32.mrf.mxu0
      %v2373 = vadd.f32 %v547, %v2372
      %2374 = vmatmul.bf16.gmra.mxu0 %v1489
      %v2375 = vpop.f32.mrf.mxu0
      %v2376 = vadd.f32 %v547, %v2375
      %v2377 = vpop.f32.mrf.mxu0
      %v2378 = vadd.f32 %v547, %v2377
      %2379 = vmatmul.bf16.gmra.mxu0 %v1493
      %v2380 = vpop.f32.mrf.mxu0
      %v2381 = vadd.f32 %v547, %v2380
      %v2382 = vpop.f32.mrf.mxu0
      %v2383 = vadd.f32 %v547, %v2382
      %2384 = vmatmul.bf16.gmra.mxu0 %v1497
      %v2385 = vpop.f32.mrf.mxu0
      %v2386 = vadd.f32 %v547, %v2385
      %v2387 = vpop.f32.mrf.mxu0
      %v2388 = vadd.f32 %v547, %v2387
      %2389 = vmatmul.bf16.gmra.mxu0 %v1501
      %v2390 = vpop.f32.mrf.mxu0
      %v2391 = vadd.f32 %v547, %v2390
      %v2392 = vpop.f32.mrf.mxu0
      %v2393 = vadd.f32 %v547, %v2392
      %2394 = vmatmul.bf16.gmra.mxu0 %v1505
      %v2395 = vpop.f32.mrf.mxu0
      %v2396 = vadd.f32 %v547, %v2395
      %v2397 = vpop.f32.mrf.mxu0
      %v2398 = vadd.f32 %v547, %v2397
      %2399 = vmatmul.bf16.gmra.mxu0 %v1509
      %v2400 = vpop.f32.mrf.mxu0
      %v2401 = vadd.f32 %v547, %v2400
      %v2402 = vpop.f32.mrf.mxu0
      %v2403 = vadd.f32 %v547, %v2402
      %2404 = vmatmul.bf16.gmra.mxu0 %v1513
      %v2405 = vpop.f32.mrf.mxu0
      %v2406 = vadd.f32 %v547, %v2405
      %v2407 = vpop.f32.mrf.mxu0
      %v2408 = vadd.f32 %v547, %v2407
      %2409 = vmatmul.bf16.gmra.mxu0 %v1517
      %v2410 = vpop.f32.mrf.mxu0
      %v2411 = vadd.f32 %v547, %v2410
      %v2412 = vpop.f32.mrf.mxu0
      %v2413 = vadd.f32 %v547, %v2412
      %2414 = vmatmul.bf16.gmra.mxu0 %v1521
      %v2415 = vpop.f32.mrf.mxu0
      %v2416 = vadd.f32 %v547, %v2415
      %v2417 = vpop.f32.mrf.mxu0
      %v2418 = vadd.f32 %v547, %v2417
      %2419 = vmatmul.bf16.gmra.mxu0 %v1525
      %v2420 = vpop.f32.mrf.mxu0
      %v2421 = vadd.f32 %v547, %v2420
      %v2422 = vpop.f32.mrf.mxu0
      %v2423 = vadd.f32 %v547, %v2422
      %2424 = vmatmul.bf16.gmra.mxu0 %v1529
      %v2425 = vpop.f32.mrf.mxu0
      %v2426 = vadd.f32 %v547, %v2425
      %v2427 = vpop.f32.mrf.mxu0
      %v2428 = vadd.f32 %v547, %v2427
      %2429 = vmatmul.bf16.gmra.mxu0 %v1533
      %v2430 = vpop.f32.mrf.mxu0
      %v2431 = vadd.f32 %v547, %v2430
      %v2432 = vpop.f32.mrf.mxu0
      %v2433 = vadd.f32 %v547, %v2432
      %2434 = vmatmul.bf16.gmra.mxu0 %v1537
      %v2435 = vpop.f32.mrf.mxu0
      %v2436 = vadd.f32 %v547, %v2435
      %v2437 = vpop.f32.mrf.mxu0
      %v2438 = vadd.f32 %v547, %v2437
      %2439 = vmatmul.bf16.gmra.mxu0 %v1541
      %v2440 = vpop.f32.mrf.mxu0
      %v2441 = vadd.f32 %v547, %v2440
      %v2442 = vpop.f32.mrf.mxu0
      %v2443 = vadd.f32 %v547, %v2442
      %2444 = vmatmul.bf16.gmra.mxu0 %v1545
      %v2445 = vpop.f32.mrf.mxu0
      %v2446 = vadd.f32 %v547, %v2445
      %v2447 = vpop.f32.mrf.mxu0
      %v2448 = vadd.f32 %v547, %v2447
      %2449 = vmatmul.bf16.gmra.mxu0 %v1549
      %v2450 = vpop.f32.mrf.mxu0
      %v2451 = vadd.f32 %v547, %v2450
      %v2452 = vpop.f32.mrf.mxu0
      %v2453 = vadd.f32 %v547, %v2452
      %2454 = vmatmul.bf16.gmra.mxu0 %v1553
      %v2455 = vpop.f32.mrf.mxu0
      %v2456 = vadd.f32 %v547, %v2455
      %v2457 = vpop.f32.mrf.mxu0
      %v2458 = vadd.f32 %v547, %v2457
      %2459 = vmatmul.bf16.gmra.mxu0 %v1557
      %v2460 = vpop.f32.mrf.mxu0
      %v2461 = vadd.f32 %v547, %v2460
      %v2462 = vpop.f32.mrf.mxu0
      %v2463 = vadd.f32 %v547, %v2462
      %2464 = vmatmul.bf16.gmra.mxu0 %v1561
      %v2465 = vpop.f32.mrf.mxu0
      %v2466 = vadd.f32 %v547, %v2465
      %v2467 = vpop.f32.mrf.mxu0
      %v2468 = vadd.f32 %v547, %v2467
      %2469 = vmatmul.bf16.gmra.mxu0 %v1565
      %v2470 = vpop.f32.mrf.mxu0
      %v2471 = vadd.f32 %v547, %v2470
      %v2472 = vpop.f32.mrf.mxu0
      %v2473 = vadd.f32 %v547, %v2472
      %2474 = vmatmul.bf16.gmra.mxu0 %v1569
      %v2475 = vpop.f32.mrf.mxu0
      %v2476 = vadd.f32 %v547, %v2475
      %v2477 = vpop.f32.mrf.mxu0
      %v2478 = vadd.f32 %v547, %v2477
      %2479 = vdwg.mxu0
      %2480 = vmatpush.bf16.msra.mxu0 %v1906
      %2481 = vmatpush.bf16.msra.mxu0 %v1905
      %2482 = vmatpush.bf16.msra.mxu0 %v1904
      %2483 = vmatpush.bf16.msra.mxu0 %v1903
      %2484 = vmatpush.bf16.msra.mxu0 %v1902
      %2485 = vmatpush.bf16.msra.mxu0 %v1901
      %2486 = vmatpush.bf16.msra.mxu0 %v1900
      %2487 = vmatpush.bf16.msra.mxu0 %v1899
      %2488 = vmatmul.bf16.gmra.mxu0 %v1318
      %v2489 = vpop.f32.mrf.mxu0
      %v2490 = vadd.f32 %v2161, %v2489
      %v2491 = vpop.f32.mrf.mxu0
      %v2492 = vadd.f32 %v2163, %v2491
      %2493 = vmatmul.bf16.gmra.mxu0 %v1322
      %v2494 = vpop.f32.mrf.mxu0
      %v2495 = vadd.f32 %v2166, %v2494
      %v2496 = vpop.f32.mrf.mxu0
      %v2497 = vadd.f32 %v2168, %v2496
      %2498 = vmatmul.bf16.gmra.mxu0 %v1326
      %v2499 = vpop.f32.mrf.mxu0
      %v2500 = vadd.f32 %v2171, %v2499
      %v2501 = vpop.f32.mrf.mxu0
      %v2502 = vadd.f32 %v2173, %v2501
      %2503 = vmatmul.bf16.gmra.mxu0 %v1330
      %v2504 = vpop.f32.mrf.mxu0
      %v2505 = vadd.f32 %v2176, %v2504
      %v2506 = vpop.f32.mrf.mxu0
      %v2507 = vadd.f32 %v2178, %v2506
      %2508 = vmatmul.bf16.gmra.mxu0 %v1334
      %v2509 = vpop.f32.mrf.mxu0
      %v2510 = vadd.f32 %v2181, %v2509
      %v2511 = vpop.f32.mrf.mxu0
      %v2512 = vadd.f32 %v2183, %v2511
      %2513 = vmatmul.bf16.gmra.mxu0 %v1338
      %v2514 = vpop.f32.mrf.mxu0
      %v2515 = vadd.f32 %v2186, %v2514
      %v2516 = vpop.f32.mrf.mxu0
      %v2517 = vadd.f32 %v2188, %v2516
      %2518 = vmatmul.bf16.gmra.mxu0 %v1342
      %v2519 = vpop.f32.mrf.mxu0
      %v2520 = vadd.f32 %v2191, %v2519
      %v2521 = vpop.f32.mrf.mxu0
      %v2522 = vadd.f32 %v2193, %v2521
      %2523 = vmatmul.bf16.gmra.mxu0 %v1346
      %v2524 = vpop.f32.mrf.mxu0
      %v2525 = vadd.f32 %v2196, %v2524
      %v2526 = vpop.f32.mrf.mxu0
      %v2527 = vadd.f32 %v2198, %v2526
      %2528 = vmatmul.bf16.gmra.mxu0 %v1350
      %v2529 = vpop.f32.mrf.mxu0
      %v2530 = vadd.f32 %v2201, %v2529
      %v2531 = vpop.f32.mrf.mxu0
      %v2532 = vadd.f32 %v2203, %v2531
      %2533 = vmatmul.bf16.gmra.mxu0 %v1354
      %v2534 = vpop.f32.mrf.mxu0
      %v2535 = vadd.f32 %v2206, %v2534
      %v2536 = vpop.f32.mrf.mxu0
      %v2537 = vadd.f32 %v2208, %v2536
      %2538 = vmatmul.bf16.gmra.mxu0 %v1358
      %v2539 = vpop.f32.mrf.mxu0
      %v2540 = vadd.f32 %v2211, %v2539
      %v2541 = vpop.f32.mrf.mxu0
      %v2542 = vadd.f32 %v2213, %v2541
      %2543 = vmatmul.bf16.gmra.mxu0 %v1362
      %v2544 = vpop.f32.mrf.mxu0
      %v2545 = vadd.f32 %v2216, %v2544
      %v2546 = vpop.f32.mrf.mxu0
      %v2547 = vadd.f32 %v2218, %v2546
      %2548 = vmatmul.bf16.gmra.mxu0 %v1366
      %v2549 = vpop.f32.mrf.mxu0
      %v2550 = vadd.f32 %v2221, %v2549
      %v2551 = vpop.f32.mrf.mxu0
      %v2552 = vadd.f32 %v2223, %v2551
      %2553 = vmatmul.bf16.gmra.mxu0 %v1370
      %v2554 = vpop.f32.mrf.mxu0
      %v2555 = vadd.f32 %v2226, %v2554
      %v2556 = vpop.f32.mrf.mxu0
      %v2557 = vadd.f32 %v2228, %v2556
      %2558 = vmatmul.bf16.gmra.mxu0 %v1374
      %v2559 = vpop.f32.mrf.mxu0
      %v2560 = vadd.f32 %v2231, %v2559
      %v2561 = vpop.f32.mrf.mxu0
      %v2562 = vadd.f32 %v2233, %v2561
      %2563 = vmatmul.bf16.gmra.mxu0 %v1378
      %v2564 = vpop.f32.mrf.mxu0
      %v2565 = vadd.f32 %v2236, %v2564
      %v2566 = vpop.f32.mrf.mxu0
      %v2567 = vadd.f32 %v2238, %v2566
      %2568 = vmatmul.bf16.gmra.mxu0 %v1382
      %v2569 = vpop.f32.mrf.mxu0
      %v2570 = vadd.f32 %v2241, %v2569
      %v2571 = vpop.f32.mrf.mxu0
      %v2572 = vadd.f32 %v2243, %v2571
      %2573 = vmatmul.bf16.gmra.mxu0 %v1386
      %v2574 = vpop.f32.mrf.mxu0
      %v2575 = vadd.f32 %v2246, %v2574
      %v2576 = vpop.f32.mrf.mxu0
      %v2577 = vadd.f32 %v2248, %v2576
      %2578 = vmatmul.bf16.gmra.mxu0 %v1390
      %v2579 = vpop.f32.mrf.mxu0
      %v2580 = vadd.f32 %v2251, %v2579
      %v2581 = vpop.f32.mrf.mxu0
      %v2582 = vadd.f32 %v2253, %v2581
      %2583 = vmatmul.bf16.gmra.mxu0 %v1394
      %v2584 = vpop.f32.mrf.mxu0
      %v2585 = vadd.f32 %v2256, %v2584
      %v2586 = vpop.f32.mrf.mxu0
      %v2587 = vadd.f32 %v2258, %v2586
      %2588 = vmatmul.bf16.gmra.mxu0 %v1398
      %v2589 = vpop.f32.mrf.mxu0
      %v2590 = vadd.f32 %v2261, %v2589
      %v2591 = vpop.f32.mrf.mxu0
      %v2592 = vadd.f32 %v2263, %v2591
      %2593 = vmatmul.bf16.gmra.mxu0 %v1402
      %v2594 = vpop.f32.mrf.mxu0
      %v2595 = vadd.f32 %v2266, %v2594
      %v2596 = vpop.f32.mrf.mxu0
      %v2597 = vadd.f32 %v2268, %v2596
      %2598 = vmatmul.bf16.gmra.mxu0 %v1406
      %v2599 = vpop.f32.mrf.mxu0
      %v2600 = vadd.f32 %v2271, %v2599
      %v2601 = vpop.f32.mrf.mxu0
      %v2602 = vadd.f32 %v2273, %v2601
      %2603 = vmatmul.bf16.gmra.mxu0 %v1410
      %v2604 = vpop.f32.mrf.mxu0
      %v2605 = vadd.f32 %v2276, %v2604
      %v2606 = vpop.f32.mrf.mxu0
      %v2607 = vadd.f32 %v2278, %v2606
      %2608 = vmatmul.bf16.gmra.mxu0 %v1414
      %v2609 = vpop.f32.mrf.mxu0
      %v2610 = vadd.f32 %v2281, %v2609
      %v2611 = vpop.f32.mrf.mxu0
      %v2612 = vadd.f32 %v2283, %v2611
      %2613 = vmatmul.bf16.gmra.mxu0 %v1418
      %v2614 = vpop.f32.mrf.mxu0
      %v2615 = vadd.f32 %v2286, %v2614
      %v2616 = vpop.f32.mrf.mxu0
      %v2617 = vadd.f32 %v2288, %v2616
      %2618 = vmatmul.bf16.gmra.mxu0 %v1422
      %v2619 = vpop.f32.mrf.mxu0
      %v2620 = vadd.f32 %v2291, %v2619
      %v2621 = vpop.f32.mrf.mxu0
      %v2622 = vadd.f32 %v2293, %v2621
      %2623 = vmatmul.bf16.gmra.mxu0 %v1426
      %v2624 = vpop.f32.mrf.mxu0
      %v2625 = vadd.f32 %v2296, %v2624
      %v2626 = vpop.f32.mrf.mxu0
      %v2627 = vadd.f32 %v2298, %v2626
      %2628 = vmatmul.bf16.gmra.mxu0 %v1430
      %v2629 = vpop.f32.mrf.mxu0
      %v2630 = vadd.f32 %v2301, %v2629
      %v2631 = vpop.f32.mrf.mxu0
      %v2632 = vadd.f32 %v2303, %v2631
      %2633 = vmatmul.bf16.gmra.mxu0 %v1434
      %v2634 = vpop.f32.mrf.mxu0
      %v2635 = vadd.f32 %v2306, %v2634
      %v2636 = vpop.f32.mrf.mxu0
      %v2637 = vadd.f32 %v2308, %v2636
      %2638 = vmatmul.bf16.gmra.mxu0 %v1438
      %v2639 = vpop.f32.mrf.mxu0
      %v2640 = vadd.f32 %v2311, %v2639
      %v2641 = vpop.f32.mrf.mxu0
      %v2642 = vadd.f32 %v2313, %v2641
      %2643 = vmatmul.bf16.gmra.mxu0 %v1442
      %v2644 = vpop.f32.mrf.mxu0
      %v2645 = vadd.f32 %v2316, %v2644
      %v2646 = vpop.f32.mrf.mxu0
      %v2647 = vadd.f32 %v2318, %v2646
      %2648 = vmatmul.bf16.gmra.mxu0 %v1446
      %v2649 = vpop.f32.mrf.mxu0
      %v2650 = vadd.f32 %v2321, %v2649
      %v2651 = vpop.f32.mrf.mxu0
      %v2652 = vadd.f32 %v2323, %v2651
      %2653 = vmatmul.bf16.gmra.mxu0 %v1450
      %v2654 = vpop.f32.mrf.mxu0
      %v2655 = vadd.f32 %v2326, %v2654
      %v2656 = vpop.f32.mrf.mxu0
      %v2657 = vadd.f32 %v2328, %v2656
      %2658 = vmatmul.bf16.gmra.mxu0 %v1454
      %v2659 = vpop.f32.mrf.mxu0
      %v2660 = vadd.f32 %v2331, %v2659
      %v2661 = vpop.f32.mrf.mxu0
      %v2662 = vadd.f32 %v2333, %v2661
      %2663 = vmatmul.bf16.gmra.mxu0 %v1458
      %v2664 = vpop.f32.mrf.mxu0
      %v2665 = vadd.f32 %v2336, %v2664
      %v2666 = vpop.f32.mrf.mxu0
      %v2667 = vadd.f32 %v2338, %v2666
      %2668 = vmatmul.bf16.gmra.mxu0 %v1462
      %v2669 = vpop.f32.mrf.mxu0
      %v2670 = vadd.f32 %v2341, %v2669
      %v2671 = vpop.f32.mrf.mxu0
      %v2672 = vadd.f32 %v2343, %v2671
      %2673 = vmatmul.bf16.gmra.mxu0 %v1466
      %v2674 = vpop.f32.mrf.mxu0
      %v2675 = vadd.f32 %v2346, %v2674
      %v2676 = vpop.f32.mrf.mxu0
      %v2677 = vadd.f32 %v2348, %v2676
      %2678 = vmatmul.bf16.gmra.mxu0 %v1470
      %v2679 = vpop.f32.mrf.mxu0
      %v2680 = vadd.f32 %v2351, %v2679
      %v2681 = vpop.f32.mrf.mxu0
      %v2682 = vadd.f32 %v2353, %v2681
      %2683 = vmatmul.bf16.gmra.mxu0 %v1474
      %v2684 = vpop.f32.mrf.mxu0
      %v2685 = vadd.f32 %v2356, %v2684
      %v2686 = vpop.f32.mrf.mxu0
      %v2687 = vadd.f32 %v2358, %v2686
      %2688 = vmatmul.bf16.gmra.mxu0 %v1478
      %v2689 = vpop.f32.mrf.mxu0
      %v2690 = vadd.f32 %v2361, %v2689
      %v2691 = vpop.f32.mrf.mxu0
      %v2692 = vadd.f32 %v2363, %v2691
      %2693 = vmatmul.bf16.gmra.mxu0 %v1482
      %v2694 = vpop.f32.mrf.mxu0
      %v2695 = vadd.f32 %v2366, %v2694
      %v2696 = vpop.f32.mrf.mxu0
      %v2697 = vadd.f32 %v2368, %v2696
      %2698 = vmatmul.bf16.gmra.mxu0 %v1486
      %v2699 = vpop.f32.mrf.mxu0
      %v2700 = vadd.f32 %v2371, %v2699
      %v2701 = vpop.f32.mrf.mxu0
      %v2702 = vadd.f32 %v2373, %v2701
      %2703 = vmatmul.bf16.gmra.mxu0 %v1490
      %v2704 = vpop.f32.mrf.mxu0
      %v2705 = vadd.f32 %v2376, %v2704
      %v2706 = vpop.f32.mrf.mxu0
      %v2707 = vadd.f32 %v2378, %v2706
      %2708 = vmatmul.bf16.gmra.mxu0 %v1494
      %v2709 = vpop.f32.mrf.mxu0
      %v2710 = vadd.f32 %v2381, %v2709
      %v2711 = vpop.f32.mrf.mxu0
      %v2712 = vadd.f32 %v2383, %v2711
      %2713 = vmatmul.bf16.gmra.mxu0 %v1498
      %v2714 = vpop.f32.mrf.mxu0
      %v2715 = vadd.f32 %v2386, %v2714
      %v2716 = vpop.f32.mrf.mxu0
      %v2717 = vadd.f32 %v2388, %v2716
      %2718 = vmatmul.bf16.gmra.mxu0 %v1502
      %v2719 = vpop.f32.mrf.mxu0
      %v2720 = vadd.f32 %v2391, %v2719
      %v2721 = vpop.f32.mrf.mxu0
      %v2722 = vadd.f32 %v2393, %v2721
      %2723 = vmatmul.bf16.gmra.mxu0 %v1506
      %v2724 = vpop.f32.mrf.mxu0
      %v2725 = vadd.f32 %v2396, %v2724
      %v2726 = vpop.f32.mrf.mxu0
      %v2727 = vadd.f32 %v2398, %v2726
      %2728 = vmatmul.bf16.gmra.mxu0 %v1510
      %v2729 = vpop.f32.mrf.mxu0
      %v2730 = vadd.f32 %v2401, %v2729
      %v2731 = vpop.f32.mrf.mxu0
      %v2732 = vadd.f32 %v2403, %v2731
      %2733 = vmatmul.bf16.gmra.mxu0 %v1514
      %v2734 = vpop.f32.mrf.mxu0
      %v2735 = vadd.f32 %v2406, %v2734
      %v2736 = vpop.f32.mrf.mxu0
      %v2737 = vadd.f32 %v2408, %v2736
      %2738 = vmatmul.bf16.gmra.mxu0 %v1518
      %v2739 = vpop.f32.mrf.mxu0
      %v2740 = vadd.f32 %v2411, %v2739
      %v2741 = vpop.f32.mrf.mxu0
      %v2742 = vadd.f32 %v2413, %v2741
      %2743 = vmatmul.bf16.gmra.mxu0 %v1522
      %v2744 = vpop.f32.mrf.mxu0
      %v2745 = vadd.f32 %v2416, %v2744
      %v2746 = vpop.f32.mrf.mxu0
      %v2747 = vadd.f32 %v2418, %v2746
      %2748 = vmatmul.bf16.gmra.mxu0 %v1526
      %v2749 = vpop.f32.mrf.mxu0
      %v2750 = vadd.f32 %v2421, %v2749
      %v2751 = vpop.f32.mrf.mxu0
      %v2752 = vadd.f32 %v2423, %v2751
      %2753 = vmatmul.bf16.gmra.mxu0 %v1530
      %v2754 = vpop.f32.mrf.mxu0
      %v2755 = vadd.f32 %v2426, %v2754
      %v2756 = vpop.f32.mrf.mxu0
      %v2757 = vadd.f32 %v2428, %v2756
      %2758 = vmatmul.bf16.gmra.mxu0 %v1534
      %v2759 = vpop.f32.mrf.mxu0
      %v2760 = vadd.f32 %v2431, %v2759
      %v2761 = vpop.f32.mrf.mxu0
      %v2762 = vadd.f32 %v2433, %v2761
      %2763 = vmatmul.bf16.gmra.mxu0 %v1538
      %v2764 = vpop.f32.mrf.mxu0
      %v2765 = vadd.f32 %v2436, %v2764
      %v2766 = vpop.f32.mrf.mxu0
      %v2767 = vadd.f32 %v2438, %v2766
      %2768 = vmatmul.bf16.gmra.mxu0 %v1542
      %v2769 = vpop.f32.mrf.mxu0
      %v2770 = vadd.f32 %v2441, %v2769
      %v2771 = vpop.f32.mrf.mxu0
      %v2772 = vadd.f32 %v2443, %v2771
      %2773 = vmatmul.bf16.gmra.mxu0 %v1546
      %v2774 = vpop.f32.mrf.mxu0
      %v2775 = vadd.f32 %v2446, %v2774
      %v2776 = vpop.f32.mrf.mxu0
      %v2777 = vadd.f32 %v2448, %v2776
      %2778 = vmatmul.bf16.gmra.mxu0 %v1550
      %v2779 = vpop.f32.mrf.mxu0
      %v2780 = vadd.f32 %v2451, %v2779
      %v2781 = vpop.f32.mrf.mxu0
      %v2782 = vadd.f32 %v2453, %v2781
      %2783 = vmatmul.bf16.gmra.mxu0 %v1554
      %v2784 = vpop.f32.mrf.mxu0
      %v2785 = vadd.f32 %v2456, %v2784
      %v2786 = vpop.f32.mrf.mxu0
      %v2787 = vadd.f32 %v2458, %v2786
      %2788 = vmatmul.bf16.gmra.mxu0 %v1558
      %v2789 = vpop.f32.mrf.mxu0
      %v2790 = vadd.f32 %v2461, %v2789
      %v2791 = vpop.f32.mrf.mxu0
      %v2792 = vadd.f32 %v2463, %v2791
      %2793 = vmatmul.bf16.gmra.mxu0 %v1562
      %v2794 = vpop.f32.mrf.mxu0
      %v2795 = vadd.f32 %v2466, %v2794
      %v2796 = vpop.f32.mrf.mxu0
      %v2797 = vadd.f32 %v2468, %v2796
      %2798 = vmatmul.bf16.gmra.mxu0 %v1566
      %v2799 = vpop.f32.mrf.mxu0
      %v2800 = vadd.f32 %v2471, %v2799
      %v2801 = vpop.f32.mrf.mxu0
      %v2802 = vadd.f32 %v2473, %v2801
      %2803 = vmatmul.bf16.gmra.mxu0 %v1570
      %v2804 = vpop.f32.mrf.mxu0
      %v2805 = vadd.f32 %v2476, %v2804
      %v2806 = vpop.f32.mrf.mxu0
      %v2807 = vadd.f32 %v2478, %v2806
      %2808 = vdwg.mxu0
      %2809 = vmatpush.bf16.msra.mxu0 %v1914
      %2810 = vmatpush.bf16.msra.mxu0 %v1913
      %2811 = vmatpush.bf16.msra.mxu0 %v1912
      %2812 = vmatpush.bf16.msra.mxu0 %v1911
      %2813 = vmatpush.bf16.msra.mxu0 %v1910
      %2814 = vmatpush.bf16.msra.mxu0 %v1909
      %2815 = vmatpush.bf16.msra.mxu0 %v1908
      %2816 = vmatpush.bf16.msra.mxu0 %v1907
      %2817 = vmatmul.bf16.gmra.mxu0 %v1319
      %v2818 = vpop.f32.mrf.mxu0
      %v2819 = vadd.f32 %v2490, %v2818
      %v2820 = vpop.f32.mrf.mxu0
      %v2821 = vadd.f32 %v2492, %v2820
      %2822 = vmatmul.bf16.gmra.mxu0 %v1323
      %v2823 = vpop.f32.mrf.mxu0
      %v2824 = vadd.f32 %v2495, %v2823
      %v2825 = vpop.f32.mrf.mxu0
      %v2826 = vadd.f32 %v2497, %v2825
      %2827 = vmatmul.bf16.gmra.mxu0 %v1327
      %v2828 = vpop.f32.mrf.mxu0
      %v2829 = vadd.f32 %v2500, %v2828
      %v2830 = vpop.f32.mrf.mxu0
      %v2831 = vadd.f32 %v2502, %v2830
      %2832 = vmatmul.bf16.gmra.mxu0 %v1331
      %v2833 = vpop.f32.mrf.mxu0
      %v2834 = vadd.f32 %v2505, %v2833
      %v2835 = vpop.f32.mrf.mxu0
      %v2836 = vadd.f32 %v2507, %v2835
      %2837 = vmatmul.bf16.gmra.mxu0 %v1335
      %v2838 = vpop.f32.mrf.mxu0
      %v2839 = vadd.f32 %v2510, %v2838
      %v2840 = vpop.f32.mrf.mxu0
      %v2841 = vadd.f32 %v2512, %v2840
      %2842 = vmatmul.bf16.gmra.mxu0 %v1339
      %v2843 = vpop.f32.mrf.mxu0
      %v2844 = vadd.f32 %v2515, %v2843
      %v2845 = vpop.f32.mrf.mxu0
      %v2846 = vadd.f32 %v2517, %v2845
      %2847 = vmatmul.bf16.gmra.mxu0 %v1343
      %v2848 = vpop.f32.mrf.mxu0
      %v2849 = vadd.f32 %v2520, %v2848
      %v2850 = vpop.f32.mrf.mxu0
      %v2851 = vadd.f32 %v2522, %v2850
      %2852 = vmatmul.bf16.gmra.mxu0 %v1347
      %v2853 = vpop.f32.mrf.mxu0
      %v2854 = vadd.f32 %v2525, %v2853
      %v2855 = vpop.f32.mrf.mxu0
      %v2856 = vadd.f32 %v2527, %v2855
      %2857 = vmatmul.bf16.gmra.mxu0 %v1351
      %v2858 = vpop.f32.mrf.mxu0
      %v2859 = vadd.f32 %v2530, %v2858
      %v2860 = vpop.f32.mrf.mxu0
      %v2861 = vadd.f32 %v2532, %v2860
      %2862 = vmatmul.bf16.gmra.mxu0 %v1355
      %v2863 = vpop.f32.mrf.mxu0
      %v2864 = vadd.f32 %v2535, %v2863
      %v2865 = vpop.f32.mrf.mxu0
      %v2866 = vadd.f32 %v2537, %v2865
      %2867 = vmatmul.bf16.gmra.mxu0 %v1359
      %v2868 = vpop.f32.mrf.mxu0
      %v2869 = vadd.f32 %v2540, %v2868
      %v2870 = vpop.f32.mrf.mxu0
      %v2871 = vadd.f32 %v2542, %v2870
      %2872 = vmatmul.bf16.gmra.mxu0 %v1363
      %v2873 = vpop.f32.mrf.mxu0
      %v2874 = vadd.f32 %v2545, %v2873
      %v2875 = vpop.f32.mrf.mxu0
      %v2876 = vadd.f32 %v2547, %v2875
      %2877 = vmatmul.bf16.gmra.mxu0 %v1367
      %v2878 = vpop.f32.mrf.mxu0
      %v2879 = vadd.f32 %v2550, %v2878
      %v2880 = vpop.f32.mrf.mxu0
      %v2881 = vadd.f32 %v2552, %v2880
      %2882 = vmatmul.bf16.gmra.mxu0 %v1371
      %v2883 = vpop.f32.mrf.mxu0
      %v2884 = vadd.f32 %v2555, %v2883
      %v2885 = vpop.f32.mrf.mxu0
      %v2886 = vadd.f32 %v2557, %v2885
      %2887 = vmatmul.bf16.gmra.mxu0 %v1375
      %v2888 = vpop.f32.mrf.mxu0
      %v2889 = vadd.f32 %v2560, %v2888
      %v2890 = vpop.f32.mrf.mxu0
      %v2891 = vadd.f32 %v2562, %v2890
      %2892 = vmatmul.bf16.gmra.mxu0 %v1379
      %v2893 = vpop.f32.mrf.mxu0
      %v2894 = vadd.f32 %v2565, %v2893
      %v2895 = vpop.f32.mrf.mxu0
      %v2896 = vadd.f32 %v2567, %v2895
      %2897 = vmatmul.bf16.gmra.mxu0 %v1383
      %v2898 = vpop.f32.mrf.mxu0
      %v2899 = vadd.f32 %v2570, %v2898
      %v2900 = vpop.f32.mrf.mxu0
      %v2901 = vadd.f32 %v2572, %v2900
      %2902 = vmatmul.bf16.gmra.mxu0 %v1387
      %v2903 = vpop.f32.mrf.mxu0
      %v2904 = vadd.f32 %v2575, %v2903
      %v2905 = vpop.f32.mrf.mxu0
      %v2906 = vadd.f32 %v2577, %v2905
      %2907 = vmatmul.bf16.gmra.mxu0 %v1391
      %v2908 = vpop.f32.mrf.mxu0
      %v2909 = vadd.f32 %v2580, %v2908
      %v2910 = vpop.f32.mrf.mxu0
      %v2911 = vadd.f32 %v2582, %v2910
      %2912 = vmatmul.bf16.gmra.mxu0 %v1395
      %v2913 = vpop.f32.mrf.mxu0
      %v2914 = vadd.f32 %v2585, %v2913
      %v2915 = vpop.f32.mrf.mxu0
      %v2916 = vadd.f32 %v2587, %v2915
      %2917 = vmatmul.bf16.gmra.mxu0 %v1399
      %v2918 = vpop.f32.mrf.mxu0
      %v2919 = vadd.f32 %v2590, %v2918
      %v2920 = vpop.f32.mrf.mxu0
      %v2921 = vadd.f32 %v2592, %v2920
      %2922 = vmatmul.bf16.gmra.mxu0 %v1403
      %v2923 = vpop.f32.mrf.mxu0
      %v2924 = vadd.f32 %v2595, %v2923
      %v2925 = vpop.f32.mrf.mxu0
      %v2926 = vadd.f32 %v2597, %v2925
      %2927 = vmatmul.bf16.gmra.mxu0 %v1407
      %v2928 = vpop.f32.mrf.mxu0
      %v2929 = vadd.f32 %v2600, %v2928
      %v2930 = vpop.f32.mrf.mxu0
      %v2931 = vadd.f32 %v2602, %v2930
      %2932 = vmatmul.bf16.gmra.mxu0 %v1411
      %v2933 = vpop.f32.mrf.mxu0
      %v2934 = vadd.f32 %v2605, %v2933
      %v2935 = vpop.f32.mrf.mxu0
      %v2936 = vadd.f32 %v2607, %v2935
      %2937 = vmatmul.bf16.gmra.mxu0 %v1415
      %v2938 = vpop.f32.mrf.mxu0
      %v2939 = vadd.f32 %v2610, %v2938
      %v2940 = vpop.f32.mrf.mxu0
      %v2941 = vadd.f32 %v2612, %v2940
      %2942 = vmatmul.bf16.gmra.mxu0 %v1419
      %v2943 = vpop.f32.mrf.mxu0
      %v2944 = vadd.f32 %v2615, %v2943
      %v2945 = vpop.f32.mrf.mxu0
      %v2946 = vadd.f32 %v2617, %v2945
      %2947 = vmatmul.bf16.gmra.mxu0 %v1423
      %v2948 = vpop.f32.mrf.mxu0
      %v2949 = vadd.f32 %v2620, %v2948
      %v2950 = vpop.f32.mrf.mxu0
      %v2951 = vadd.f32 %v2622, %v2950
      %2952 = vmatmul.bf16.gmra.mxu0 %v1427
      %v2953 = vpop.f32.mrf.mxu0
      %v2954 = vadd.f32 %v2625, %v2953
      %v2955 = vpop.f32.mrf.mxu0
      %v2956 = vadd.f32 %v2627, %v2955
      %2957 = vmatmul.bf16.gmra.mxu0 %v1431
      %v2958 = vpop.f32.mrf.mxu0
      %v2959 = vadd.f32 %v2630, %v2958
      %v2960 = vpop.f32.mrf.mxu0
      %v2961 = vadd.f32 %v2632, %v2960
      %2962 = vmatmul.bf16.gmra.mxu0 %v1435
      %v2963 = vpop.f32.mrf.mxu0
      %v2964 = vadd.f32 %v2635, %v2963
      %v2965 = vpop.f32.mrf.mxu0
      %v2966 = vadd.f32 %v2637, %v2965
      %2967 = vmatmul.bf16.gmra.mxu0 %v1439
      %v2968 = vpop.f32.mrf.mxu0
      %v2969 = vadd.f32 %v2640, %v2968
      %v2970 = vpop.f32.mrf.mxu0
      %v2971 = vadd.f32 %v2642, %v2970
      %2972 = vmatmul.bf16.gmra.mxu0 %v1443
      %v2973 = vpop.f32.mrf.mxu0
      %v2974 = vadd.f32 %v2645, %v2973
      %v2975 = vpop.f32.mrf.mxu0
      %v2976 = vadd.f32 %v2647, %v2975
      %2977 = vmatmul.bf16.gmra.mxu0 %v1447
      %v2978 = vpop.f32.mrf.mxu0
      %v2979 = vadd.f32 %v2650, %v2978
      %v2980 = vpop.f32.mrf.mxu0
      %v2981 = vadd.f32 %v2652, %v2980
      %2982 = vmatmul.bf16.gmra.mxu0 %v1451
      %v2983 = vpop.f32.mrf.mxu0
      %v2984 = vadd.f32 %v2655, %v2983
      %v2985 = vpop.f32.mrf.mxu0
      %v2986 = vadd.f32 %v2657, %v2985
      %2987 = vmatmul.bf16.gmra.mxu0 %v1455
      %v2988 = vpop.f32.mrf.mxu0
      %v2989 = vadd.f32 %v2660, %v2988
      %v2990 = vpop.f32.mrf.mxu0
      %v2991 = vadd.f32 %v2662, %v2990
      %2992 = vmatmul.bf16.gmra.mxu0 %v1459
      %v2993 = vpop.f32.mrf.mxu0
      %v2994 = vadd.f32 %v2665, %v2993
      %v2995 = vpop.f32.mrf.mxu0
      %v2996 = vadd.f32 %v2667, %v2995
      %2997 = vmatmul.bf16.gmra.mxu0 %v1463
      %v2998 = vpop.f32.mrf.mxu0
      %v2999 = vadd.f32 %v2670, %v2998
      %v3000 = vpop.f32.mrf.mxu0
      %v3001 = vadd.f32 %v2672, %v3000
      %3002 = vmatmul.bf16.gmra.mxu0 %v1467
      %v3003 = vpop.f32.mrf.mxu0
      %v3004 = vadd.f32 %v2675, %v3003
      %v3005 = vpop.f32.mrf.mxu0
      %v3006 = vadd.f32 %v2677, %v3005
      %3007 = vmatmul.bf16.gmra.mxu0 %v1471
      %v3008 = vpop.f32.mrf.mxu0
      %v3009 = vadd.f32 %v2680, %v3008
      %v3010 = vpop.f32.mrf.mxu0
      %v3011 = vadd.f32 %v2682, %v3010
      %3012 = vmatmul.bf16.gmra.mxu0 %v1475
      %v3013 = vpop.f32.mrf.mxu0
      %v3014 = vadd.f32 %v2685, %v3013
      %v3015 = vpop.f32.mrf.mxu0
      %v3016 = vadd.f32 %v2687, %v3015
      %3017 = vmatmul.bf16.gmra.mxu0 %v1479
      %v3018 = vpop.f32.mrf.mxu0
      %v3019 = vadd.f32 %v2690, %v3018
      %v3020 = vpop.f32.mrf.mxu0
      %v3021 = vadd.f32 %v2692, %v3020
      %3022 = vmatmul.bf16.gmra.mxu0 %v1483
      %v3023 = vpop.f32.mrf.mxu0
      %v3024 = vadd.f32 %v2695, %v3023
      %v3025 = vpop.f32.mrf.mxu0
      %v3026 = vadd.f32 %v2697, %v3025
      %3027 = vmatmul.bf16.gmra.mxu0 %v1487
      %v3028 = vpop.f32.mrf.mxu0
      %v3029 = vadd.f32 %v2700, %v3028
      %v3030 = vpop.f32.mrf.mxu0
      %v3031 = vadd.f32 %v2702, %v3030
      %3032 = vmatmul.bf16.gmra.mxu0 %v1491
      %v3033 = vpop.f32.mrf.mxu0
      %v3034 = vadd.f32 %v2705, %v3033
      %v3035 = vpop.f32.mrf.mxu0
      %v3036 = vadd.f32 %v2707, %v3035
      %3037 = vmatmul.bf16.gmra.mxu0 %v1495
      %v3038 = vpop.f32.mrf.mxu0
      %v3039 = vadd.f32 %v2710, %v3038
      %v3040 = vpop.f32.mrf.mxu0
      %v3041 = vadd.f32 %v2712, %v3040
      %3042 = vmatmul.bf16.gmra.mxu0 %v1499
      %v3043 = vpop.f32.mrf.mxu0
      %v3044 = vadd.f32 %v2715, %v3043
      %v3045 = vpop.f32.mrf.mxu0
      %v3046 = vadd.f32 %v2717, %v3045
      %3047 = vmatmul.bf16.gmra.mxu0 %v1503
      %v3048 = vpop.f32.mrf.mxu0
      %v3049 = vadd.f32 %v2720, %v3048
      %v3050 = vpop.f32.mrf.mxu0
      %v3051 = vadd.f32 %v2722, %v3050
      %3052 = vmatmul.bf16.gmra.mxu0 %v1507
      %v3053 = vpop.f32.mrf.mxu0
      %v3054 = vadd.f32 %v2725, %v3053
      %v3055 = vpop.f32.mrf.mxu0
      %v3056 = vadd.f32 %v2727, %v3055
      %3057 = vmatmul.bf16.gmra.mxu0 %v1511
      %v3058 = vpop.f32.mrf.mxu0
      %v3059 = vadd.f32 %v2730, %v3058
      %v3060 = vpop.f32.mrf.mxu0
      %v3061 = vadd.f32 %v2732, %v3060
      %3062 = vmatmul.bf16.gmra.mxu0 %v1515
      %v3063 = vpop.f32.mrf.mxu0
      %v3064 = vadd.f32 %v2735, %v3063
      %v3065 = vpop.f32.mrf.mxu0
      %v3066 = vadd.f32 %v2737, %v3065
      %3067 = vmatmul.bf16.gmra.mxu0 %v1519
      %v3068 = vpop.f32.mrf.mxu0
      %v3069 = vadd.f32 %v2740, %v3068
      %v3070 = vpop.f32.mrf.mxu0
      %v3071 = vadd.f32 %v2742, %v3070
      %3072 = vmatmul.bf16.gmra.mxu0 %v1523
      %v3073 = vpop.f32.mrf.mxu0
      %v3074 = vadd.f32 %v2745, %v3073
      %v3075 = vpop.f32.mrf.mxu0
      %v3076 = vadd.f32 %v2747, %v3075
      %3077 = vmatmul.bf16.gmra.mxu0 %v1527
      %v3078 = vpop.f32.mrf.mxu0
      %v3079 = vadd.f32 %v2750, %v3078
      %v3080 = vpop.f32.mrf.mxu0
      %v3081 = vadd.f32 %v2752, %v3080
      %3082 = vmatmul.bf16.gmra.mxu0 %v1531
      %v3083 = vpop.f32.mrf.mxu0
      %v3084 = vadd.f32 %v2755, %v3083
      %v3085 = vpop.f32.mrf.mxu0
      %v3086 = vadd.f32 %v2757, %v3085
      %3087 = vmatmul.bf16.gmra.mxu0 %v1535
      %v3088 = vpop.f32.mrf.mxu0
      %v3089 = vadd.f32 %v2760, %v3088
      %v3090 = vpop.f32.mrf.mxu0
      %v3091 = vadd.f32 %v2762, %v3090
      %3092 = vmatmul.bf16.gmra.mxu0 %v1539
      %v3093 = vpop.f32.mrf.mxu0
      %v3094 = vadd.f32 %v2765, %v3093
      %v3095 = vpop.f32.mrf.mxu0
      %v3096 = vadd.f32 %v2767, %v3095
      %3097 = vmatmul.bf16.gmra.mxu0 %v1543
      %v3098 = vpop.f32.mrf.mxu0
      %v3099 = vadd.f32 %v2770, %v3098
      %v3100 = vpop.f32.mrf.mxu0
      %v3101 = vadd.f32 %v2772, %v3100
      %3102 = vmatmul.bf16.gmra.mxu0 %v1547
      %v3103 = vpop.f32.mrf.mxu0
      %v3104 = vadd.f32 %v2775, %v3103
      %v3105 = vpop.f32.mrf.mxu0
      %v3106 = vadd.f32 %v2777, %v3105
      %3107 = vmatmul.bf16.gmra.mxu0 %v1551
      %v3108 = vpop.f32.mrf.mxu0
      %v3109 = vadd.f32 %v2780, %v3108
      %v3110 = vpop.f32.mrf.mxu0
      %v3111 = vadd.f32 %v2782, %v3110
      %3112 = vmatmul.bf16.gmra.mxu0 %v1555
      %v3113 = vpop.f32.mrf.mxu0
      %v3114 = vadd.f32 %v2785, %v3113
      %v3115 = vpop.f32.mrf.mxu0
      %v3116 = vadd.f32 %v2787, %v3115
      %3117 = vmatmul.bf16.gmra.mxu0 %v1559
      %v3118 = vpop.f32.mrf.mxu0
      %v3119 = vadd.f32 %v2790, %v3118
      %v3120 = vpop.f32.mrf.mxu0
      %v3121 = vadd.f32 %v2792, %v3120
      %3122 = vmatmul.bf16.gmra.mxu0 %v1563
      %v3123 = vpop.f32.mrf.mxu0
      %v3124 = vadd.f32 %v2795, %v3123
      %v3125 = vpop.f32.mrf.mxu0
      %v3126 = vadd.f32 %v2797, %v3125
      %3127 = vmatmul.bf16.gmra.mxu0 %v1567
      %v3128 = vpop.f32.mrf.mxu0
      %v3129 = vadd.f32 %v2800, %v3128
      %v3130 = vpop.f32.mrf.mxu0
      %v3131 = vadd.f32 %v2802, %v3130
      %3132 = vmatmul.bf16.gmra.mxu0 %v1571
      %v3133 = vpop.f32.mrf.mxu0
      %v3134 = vadd.f32 %v2805, %v3133
      %v3135 = vpop.f32.mrf.mxu0
      %v3136 = vadd.f32 %v2807, %v3135
      %3137 = vdwg.mxu0
      %3138 = vmatpush.bf16.msra.mxu0 %v2149
      %3139 = vmatpush.bf16.msra.mxu0 %v1921
      %3140 = vmatpush.bf16.msra.mxu0 %v1920
      %3141 = vmatpush.bf16.msra.mxu0 %v1919
      %3142 = vmatpush.bf16.msra.mxu0 %v1918
      %3143 = vmatpush.bf16.msra.mxu0 %v1917
      %3144 = vmatpush.bf16.msra.mxu0 %v1916
      %3145 = vmatpush.bf16.msra.mxu0 %v1915
      %3146 = vmatmul.bf16.gmra.mxu0 %v1956
      %v3147 = vpop.f32.mrf.mxu0
      %v3148 = vadd.f32 %v2819, %v3147
      %v3149 = vpop.f32.mrf.mxu0
      %v3150 = vadd.f32 %v2821, %v3149
      %3151 = vmatmul.bf16.gmra.mxu0 %v1959
      %v3152 = vpop.f32.mrf.mxu0
      %v3153 = vadd.f32 %v2824, %v3152
      %v3154 = vpop.f32.mrf.mxu0
      %v3155 = vadd.f32 %v2826, %v3154
      %3156 = vmatmul.bf16.gmra.mxu0 %v1962
      %v3157 = vpop.f32.mrf.mxu0
      %v3158 = vadd.f32 %v2829, %v3157
      %v3159 = vpop.f32.mrf.mxu0
      %v3160 = vadd.f32 %v2831, %v3159
      %3161 = vmatmul.bf16.gmra.mxu0 %v1965
      %v3162 = vpop.f32.mrf.mxu0
      %v3163 = vadd.f32 %v2834, %v3162
      %v3164 = vpop.f32.mrf.mxu0
      %v3165 = vadd.f32 %v2836, %v3164
      %3166 = vmatmul.bf16.gmra.mxu0 %v1968
      %v3167 = vpop.f32.mrf.mxu0
      %v3168 = vadd.f32 %v2839, %v3167
      %v3169 = vpop.f32.mrf.mxu0
      %v3170 = vadd.f32 %v2841, %v3169
      %3171 = vmatmul.bf16.gmra.mxu0 %v1971
      %v3172 = vpop.f32.mrf.mxu0
      %v3173 = vadd.f32 %v2844, %v3172
      %v3174 = vpop.f32.mrf.mxu0
      %v3175 = vadd.f32 %v2846, %v3174
      %3176 = vmatmul.bf16.gmra.mxu0 %v1974
      %v3177 = vpop.f32.mrf.mxu0
      %v3178 = vadd.f32 %v2849, %v3177
      %v3179 = vpop.f32.mrf.mxu0
      %v3180 = vadd.f32 %v2851, %v3179
      %3181 = vmatmul.bf16.gmra.mxu0 %v1977
      %v3182 = vpop.f32.mrf.mxu0
      %v3183 = vadd.f32 %v2854, %v3182
      %v3184 = vpop.f32.mrf.mxu0
      %v3185 = vadd.f32 %v2856, %v3184
      %3186 = vmatmul.bf16.gmra.mxu0 %v1980
      %v3187 = vpop.f32.mrf.mxu0
      %v3188 = vadd.f32 %v2859, %v3187
      %v3189 = vpop.f32.mrf.mxu0
      %v3190 = vadd.f32 %v2861, %v3189
      %3191 = vmatmul.bf16.gmra.mxu0 %v1983
      %v3192 = vpop.f32.mrf.mxu0
      %v3193 = vadd.f32 %v2864, %v3192
      %v3194 = vpop.f32.mrf.mxu0
      %v3195 = vadd.f32 %v2866, %v3194
      %3196 = vmatmul.bf16.gmra.mxu0 %v1986
      %v3197 = vpop.f32.mrf.mxu0
      %v3198 = vadd.f32 %v2869, %v3197
      %v3199 = vpop.f32.mrf.mxu0
      %v3200 = vadd.f32 %v2871, %v3199
      %3201 = vmatmul.bf16.gmra.mxu0 %v1989
      %v3202 = vpop.f32.mrf.mxu0
      %v3203 = vadd.f32 %v2874, %v3202
      %v3204 = vpop.f32.mrf.mxu0
      %v3205 = vadd.f32 %v2876, %v3204
      %3206 = vmatmul.bf16.gmra.mxu0 %v1992
      %v3207 = vpop.f32.mrf.mxu0
      %v3208 = vadd.f32 %v2879, %v3207
      %v3209 = vpop.f32.mrf.mxu0
      %v3210 = vadd.f32 %v2881, %v3209
      %3211 = vmatmul.bf16.gmra.mxu0 %v1995
      %v3212 = vpop.f32.mrf.mxu0
      %v3213 = vadd.f32 %v2884, %v3212
      %v3214 = vpop.f32.mrf.mxu0
      %v3215 = vadd.f32 %v2886, %v3214
      %3216 = vmatmul.bf16.gmra.mxu0 %v1998
      %v3217 = vpop.f32.mrf.mxu0
      %v3218 = vadd.f32 %v2889, %v3217
      %v3219 = vpop.f32.mrf.mxu0
      %v3220 = vadd.f32 %v2891, %v3219
      %3221 = vmatmul.bf16.gmra.mxu0 %v2001
      %v3222 = vpop.f32.mrf.mxu0
      %v3223 = vadd.f32 %v2894, %v3222
      %v3224 = vpop.f32.mrf.mxu0
      %v3225 = vadd.f32 %v2896, %v3224
      %3226 = vmatmul.bf16.gmra.mxu0 %v2004
      %v3227 = vpop.f32.mrf.mxu0
      %v3228 = vadd.f32 %v2899, %v3227
      %v3229 = vpop.f32.mrf.mxu0
      %v3230 = vadd.f32 %v2901, %v3229
      %3231 = vmatmul.bf16.gmra.mxu0 %v2007
      %v3232 = vpop.f32.mrf.mxu0
      %v3233 = vadd.f32 %v2904, %v3232
      %v3234 = vpop.f32.mrf.mxu0
      %v3235 = vadd.f32 %v2906, %v3234
      %3236 = vmatmul.bf16.gmra.mxu0 %v2010
      %v3237 = vpop.f32.mrf.mxu0
      %v3238 = vadd.f32 %v2909, %v3237
      %v3239 = vpop.f32.mrf.mxu0
      %v3240 = vadd.f32 %v2911, %v3239
      %3241 = vmatmul.bf16.gmra.mxu0 %v2013
      %v3242 = vpop.f32.mrf.mxu0
      %v3243 = vadd.f32 %v2914, %v3242
      %v3244 = vpop.f32.mrf.mxu0
      %v3245 = vadd.f32 %v2916, %v3244
      %3246 = vmatmul.bf16.gmra.mxu0 %v2016
      %v3247 = vpop.f32.mrf.mxu0
      %v3248 = vadd.f32 %v2919, %v3247
      %v3249 = vpop.f32.mrf.mxu0
      %v3250 = vadd.f32 %v2921, %v3249
      %3251 = vmatmul.bf16.gmra.mxu0 %v2019
      %v3252 = vpop.f32.mrf.mxu0
      %v3253 = vadd.f32 %v2924, %v3252
      %v3254 = vpop.f32.mrf.mxu0
      %v3255 = vadd.f32 %v2926, %v3254
      %3256 = vmatmul.bf16.gmra.mxu0 %v2022
      %v3257 = vpop.f32.mrf.mxu0
      %v3258 = vadd.f32 %v2929, %v3257
      %v3259 = vpop.f32.mrf.mxu0
      %v3260 = vadd.f32 %v2931, %v3259
      %3261 = vmatmul.bf16.gmra.mxu0 %v2025
      %v3262 = vpop.f32.mrf.mxu0
      %v3263 = vadd.f32 %v2934, %v3262
      %v3264 = vpop.f32.mrf.mxu0
      %v3265 = vadd.f32 %v2936, %v3264
      %3266 = vmatmul.bf16.gmra.mxu0 %v2028
      %v3267 = vpop.f32.mrf.mxu0
      %v3268 = vadd.f32 %v2939, %v3267
      %v3269 = vpop.f32.mrf.mxu0
      %v3270 = vadd.f32 %v2941, %v3269
      %3271 = vmatmul.bf16.gmra.mxu0 %v2031
      %v3272 = vpop.f32.mrf.mxu0
      %v3273 = vadd.f32 %v2944, %v3272
      %v3274 = vpop.f32.mrf.mxu0
      %v3275 = vadd.f32 %v2946, %v3274
      %3276 = vmatmul.bf16.gmra.mxu0 %v2034
      %v3277 = vpop.f32.mrf.mxu0
      %v3278 = vadd.f32 %v2949, %v3277
      %v3279 = vpop.f32.mrf.mxu0
      %v3280 = vadd.f32 %v2951, %v3279
      %3281 = vmatmul.bf16.gmra.mxu0 %v2037
      %v3282 = vpop.f32.mrf.mxu0
      %v3283 = vadd.f32 %v2954, %v3282
      %v3284 = vpop.f32.mrf.mxu0
      %v3285 = vadd.f32 %v2956, %v3284
      %3286 = vmatmul.bf16.gmra.mxu0 %v2040
      %v3287 = vpop.f32.mrf.mxu0
      %v3288 = vadd.f32 %v2959, %v3287
      %v3289 = vpop.f32.mrf.mxu0
      %v3290 = vadd.f32 %v2961, %v3289
      %3291 = vmatmul.bf16.gmra.mxu0 %v2043
      %v3292 = vpop.f32.mrf.mxu0
      %v3293 = vadd.f32 %v2964, %v3292
      %v3294 = vpop.f32.mrf.mxu0
      %v3295 = vadd.f32 %v2966, %v3294
      %3296 = vmatmul.bf16.gmra.mxu0 %v2046
      %v3297 = vpop.f32.mrf.mxu0
      %v3298 = vadd.f32 %v2969, %v3297
      %v3299 = vpop.f32.mrf.mxu0
      %v3300 = vadd.f32 %v2971, %v3299
      %3301 = vmatmul.bf16.gmra.mxu0 %v2049
      %v3302 = vpop.f32.mrf.mxu0
      %v3303 = vadd.f32 %v2974, %v3302
      %v3304 = vpop.f32.mrf.mxu0
      %v3305 = vadd.f32 %v2976, %v3304
      %3306 = vmatmul.bf16.gmra.mxu0 %v2052
      %v3307 = vpop.f32.mrf.mxu0
      %v3308 = vadd.f32 %v2979, %v3307
      %v3309 = vpop.f32.mrf.mxu0
      %v3310 = vadd.f32 %v2981, %v3309
      %3311 = vmatmul.bf16.gmra.mxu0 %v2055
      %v3312 = vpop.f32.mrf.mxu0
      %v3313 = vadd.f32 %v2984, %v3312
      %v3314 = vpop.f32.mrf.mxu0
      %v3315 = vadd.f32 %v2986, %v3314
      %3316 = vmatmul.bf16.gmra.mxu0 %v2058
      %v3317 = vpop.f32.mrf.mxu0
      %v3318 = vadd.f32 %v2989, %v3317
      %v3319 = vpop.f32.mrf.mxu0
      %v3320 = vadd.f32 %v2991, %v3319
      %3321 = vmatmul.bf16.gmra.mxu0 %v2061
      %v3322 = vpop.f32.mrf.mxu0
      %v3323 = vadd.f32 %v2994, %v3322
      %v3324 = vpop.f32.mrf.mxu0
      %v3325 = vadd.f32 %v2996, %v3324
      %3326 = vmatmul.bf16.gmra.mxu0 %v2064
      %v3327 = vpop.f32.mrf.mxu0
      %v3328 = vadd.f32 %v2999, %v3327
      %v3329 = vpop.f32.mrf.mxu0
      %v3330 = vadd.f32 %v3001, %v3329
      %3331 = vmatmul.bf16.gmra.mxu0 %v2067
      %v3332 = vpop.f32.mrf.mxu0
      %v3333 = vadd.f32 %v3004, %v3332
      %v3334 = vpop.f32.mrf.mxu0
      %v3335 = vadd.f32 %v3006, %v3334
      %3336 = vmatmul.bf16.gmra.mxu0 %v2070
      %v3337 = vpop.f32.mrf.mxu0
      %v3338 = vadd.f32 %v3009, %v3337
      %v3339 = vpop.f32.mrf.mxu0
      %v3340 = vadd.f32 %v3011, %v3339
      %3341 = vmatmul.bf16.gmra.mxu0 %v2073
      %v3342 = vpop.f32.mrf.mxu0
      %v3343 = vadd.f32 %v3014, %v3342
      %v3344 = vpop.f32.mrf.mxu0
      %v3345 = vadd.f32 %v3016, %v3344
      %3346 = vmatmul.bf16.gmra.mxu0 %v2076
      %v3347 = vpop.f32.mrf.mxu0
      %v3348 = vadd.f32 %v3019, %v3347
      %v3349 = vpop.f32.mrf.mxu0
      %v3350 = vadd.f32 %v3021, %v3349
      %3351 = vmatmul.bf16.gmra.mxu0 %v2079
      %v3352 = vpop.f32.mrf.mxu0
      %v3353 = vadd.f32 %v3024, %v3352
      %v3354 = vpop.f32.mrf.mxu0
      %v3355 = vadd.f32 %v3026, %v3354
      %3356 = vmatmul.bf16.gmra.mxu0 %v2082
      %v3357 = vpop.f32.mrf.mxu0
      %v3358 = vadd.f32 %v3029, %v3357
      %v3359 = vpop.f32.mrf.mxu0
      %v3360 = vadd.f32 %v3031, %v3359
      %3361 = vmatmul.bf16.gmra.mxu0 %v2085
      %v3362 = vpop.f32.mrf.mxu0
      %v3363 = vadd.f32 %v3034, %v3362
      %v3364 = vpop.f32.mrf.mxu0
      %v3365 = vadd.f32 %v3036, %v3364
      %3366 = vmatmul.bf16.gmra.mxu0 %v2088
      %v3367 = vpop.f32.mrf.mxu0
      %v3368 = vadd.f32 %v3039, %v3367
      %v3369 = vpop.f32.mrf.mxu0
      %v3370 = vadd.f32 %v3041, %v3369
      %3371 = vmatmul.bf16.gmra.mxu0 %v2091
      %v3372 = vpop.f32.mrf.mxu0
      %v3373 = vadd.f32 %v3044, %v3372
      %v3374 = vpop.f32.mrf.mxu0
      %v3375 = vadd.f32 %v3046, %v3374
      %3376 = vmatmul.bf16.gmra.mxu0 %v2094
      %v3377 = vpop.f32.mrf.mxu0
      %v3378 = vadd.f32 %v3049, %v3377
      %v3379 = vpop.f32.mrf.mxu0
      %v3380 = vadd.f32 %v3051, %v3379
      %3381 = vmatmul.bf16.gmra.mxu0 %v2097
      %v3382 = vpop.f32.mrf.mxu0
      %v3383 = vadd.f32 %v3054, %v3382
      %v3384 = vpop.f32.mrf.mxu0
      %v3385 = vadd.f32 %v3056, %v3384
      %3386 = vmatmul.bf16.gmra.mxu0 %v2100
      %v3387 = vpop.f32.mrf.mxu0
      %v3388 = vadd.f32 %v3059, %v3387
      %v3389 = vpop.f32.mrf.mxu0
      %v3390 = vadd.f32 %v3061, %v3389
      %3391 = vmatmul.bf16.gmra.mxu0 %v2103
      %v3392 = vpop.f32.mrf.mxu0
      %v3393 = vadd.f32 %v3064, %v3392
      %v3394 = vpop.f32.mrf.mxu0
      %v3395 = vadd.f32 %v3066, %v3394
      %3396 = vmatmul.bf16.gmra.mxu0 %v2106
      %v3397 = vpop.f32.mrf.mxu0
      %v3398 = vadd.f32 %v3069, %v3397
      %v3399 = vpop.f32.mrf.mxu0
      %v3400 = vadd.f32 %v3071, %v3399
      %3401 = vmatmul.bf16.gmra.mxu0 %v2109
      %v3402 = vpop.f32.mrf.mxu0
      %v3403 = vadd.f32 %v3074, %v3402
      %v3404 = vpop.f32.mrf.mxu0
      %v3405 = vadd.f32 %v3076, %v3404
      %3406 = vmatmul.bf16.gmra.mxu0 %v2112
      %v3407 = vpop.f32.mrf.mxu0
      %v3408 = vadd.f32 %v3079, %v3407
      %v3409 = vpop.f32.mrf.mxu0
      %v3410 = vadd.f32 %v3081, %v3409
      %3411 = vmatmul.bf16.gmra.mxu0 %v2115
      %v3412 = vpop.f32.mrf.mxu0
      %v3413 = vadd.f32 %v3084, %v3412
      %v3414 = vpop.f32.mrf.mxu0
      %v3415 = vadd.f32 %v3086, %v3414
      %3416 = vmatmul.bf16.gmra.mxu0 %v2118
      %v3417 = vpop.f32.mrf.mxu0
      %v3418 = vadd.f32 %v3089, %v3417
      %v3419 = vpop.f32.mrf.mxu0
      %v3420 = vadd.f32 %v3091, %v3419
      %3421 = vmatmul.bf16.gmra.mxu0 %v2121
      %v3422 = vpop.f32.mrf.mxu0
      %v3423 = vadd.f32 %v3094, %v3422
      %v3424 = vpop.f32.mrf.mxu0
      %v3425 = vadd.f32 %v3096, %v3424
      %3426 = vmatmul.bf16.gmra.mxu0 %v2124
      %v3427 = vpop.f32.mrf.mxu0
      %v3428 = vadd.f32 %v3099, %v3427
      %v3429 = vpop.f32.mrf.mxu0
      %v3430 = vadd.f32 %v3101, %v3429
      %3431 = vmatmul.bf16.gmra.mxu0 %v2127
      %v3432 = vpop.f32.mrf.mxu0
      %v3433 = vadd.f32 %v3104, %v3432
      %v3434 = vpop.f32.mrf.mxu0
      %v3435 = vadd.f32 %v3106, %v3434
      %3436 = vmatmul.bf16.gmra.mxu0 %v2130
      %v3437 = vpop.f32.mrf.mxu0
      %v3438 = vadd.f32 %v3109, %v3437
      %v3439 = vpop.f32.mrf.mxu0
      %v3440 = vadd.f32 %v3111, %v3439
      %3441 = vmatmul.bf16.gmra.mxu0 %v2133
      %v3442 = vpop.f32.mrf.mxu0
      %v3443 = vadd.f32 %v3114, %v3442
      %v3444 = vpop.f32.mrf.mxu0
      %v3445 = vadd.f32 %v3116, %v3444
      %3446 = vmatmul.bf16.gmra.mxu0 %v2136
      %v3447 = vpop.f32.mrf.mxu0
      %v3448 = vadd.f32 %v3119, %v3447
      %v3449 = vpop.f32.mrf.mxu0
      %v3450 = vadd.f32 %v3121, %v3449
      %3451 = vmatmul.bf16.gmra.mxu0 %v2139
      %v3452 = vpop.f32.mrf.mxu0
      %v3453 = vadd.f32 %v3124, %v3452
      %v3454 = vpop.f32.mrf.mxu0
      %v3455 = vadd.f32 %v3126, %v3454
      %3456 = vmatmul.bf16.gmra.mxu0 %v2142
      %v3457 = vpop.f32.mrf.mxu0
      %v3458 = vadd.f32 %v3129, %v3457
      %v3459 = vpop.f32.mrf.mxu0
      %v3460 = vadd.f32 %v3131, %v3459
      %3461 = vmatmul.bf16.gmra.mxu0 %v2145
      %v3462 = vpop.f32.mrf.mxu0
      %v3463 = vadd.f32 %v3134, %v3462
      %v3464 = vpop.f32.mrf.mxu0
      %v3465 = vadd.f32 %v3136, %v3464
      %3466 = vdwg.mxu0
      %v3467 = vld [vmem:[%s218] sm:$0xff]
      %v3468 = vld [vmem:[%s218 + $0x8] sm:$0xff]
      %v3469 = vld [vmem:[%s218 + $0x10] sm:$0xff]
      %v3470 = vld [vmem:[%s218 + $0x18] sm:$0xff]
      %v3471 = vld [vmem:[%s218 + $0x20] sm:$0xff]
      %v3472 = vld [vmem:[%s218 + $0x28] sm:$0xff]
      %v3473 = vld [vmem:[%s218 + $0x30] sm:$0xff]
      %v3474 = vld [vmem:[%s218 + $0x38] sm:$0xff]
      %v3475 = vld [vmem:[%s218 + $0x40] sm:$0xff]
      %v3476 = vld [vmem:[%s218 + $0x48] sm:$0xff]
      %v3477 = vld [vmem:[%s218 + $0x50] sm:$0xff]
      %v3478 = vld [vmem:[%s218 + $0x58] sm:$0xff]
      %v3479 = vld [vmem:[%s218 + $0x60] sm:$0xff]
      %v3480 = vld [vmem:[%s218 + $0x68] sm:$0xff]
      %v3481 = vld [vmem:[%s218 + $0x70] sm:$0xff]
      %v3482 = vld [vmem:[%s218 + $0x78] sm:$0xff]
      %v3483 = vld [vmem:[%s218 + $0x80] sm:$0xff]
      %v3484 = vld [vmem:[%s218 + $0x88] sm:$0xff]
      %v3485 = vld [vmem:[%s218 + $0x90] sm:$0xff]
      %v3486 = vld [vmem:[%s218 + $0x98] sm:$0xff]
      %v3487 = vld [vmem:[%s218 + $0xa0] sm:$0xff]
      %v3488 = vld [vmem:[%s218 + $0xa8] sm:$0xff]
      %v3489 = vld [vmem:[%s218 + $0xb0] sm:$0xff]
      %v3490 = vld [vmem:[%s218 + $0xb8] sm:$0xff]
      %v3491 = vld [vmem:[%s218 + $0xc0] sm:$0xff]
      %v3492 = vld [vmem:[%s218 + $0xc8] sm:$0xff]
      %v3493 = vld [vmem:[%s218 + $0xd0] sm:$0xff]
      %v3494 = vld [vmem:[%s218 + $0xd8] sm:$0xff]
      %v3495 = vld [vmem:[%s218 + $0xe0] sm:$0xff]
      %v3496 = vld [vmem:[%s218 + $0xe8] sm:$0xff]
      %v3497 = vld [vmem:[%s218 + $0xf0] sm:$0xff]
      %v3498 = vld [vmem:[%s218 + $0xf8] sm:$0xff]
      %v3499 = vld [vmem:[%s218 + $0x100] sm:$0xff]
      %v3500 = vld [vmem:[%s218 + $0x108] sm:$0xff]
      %v3501 = vld [vmem:[%s218 + $0x110] sm:$0xff]
      %v3502 = vld [vmem:[%s218 + $0x118] sm:$0xff]
      %v3503 = vld [vmem:[%s218 + $0x120] sm:$0xff]
      %v3504 = vld [vmem:[%s218 + $0x128] sm:$0xff]
      %v3505 = vld [vmem:[%s218 + $0x130] sm:$0xff]
      %v3506 = vld [vmem:[%s218 + $0x138] sm:$0xff]
      %v3507 = vld [vmem:[%s218 + $0x140] sm:$0xff]
      %v3508 = vld [vmem:[%s218 + $0x148] sm:$0xff]
      %v3509 = vld [vmem:[%s218 + $0x150] sm:$0xff]
      %v3510 = vld [vmem:[%s218 + $0x158] sm:$0xff]
      %v3511 = vld [vmem:[%s218 + $0x160] sm:$0xff]
      %v3512 = vld [vmem:[%s218 + $0x168] sm:$0xff]
      %v3513 = vld [vmem:[%s218 + $0x170] sm:$0xff]
      %v3514 = vld [vmem:[%s218 + $0x178] sm:$0xff]
      %v3515 = vld [vmem:[%s218 + $0x180] sm:$0xff]
      %v3516 = vld [vmem:[%s218 + $0x188] sm:$0xff]
      %v3517 = vld [vmem:[%s218 + $0x190] sm:$0xff]
      %v3518 = vld [vmem:[%s218 + $0x198] sm:$0xff]
      %v3519 = vld [vmem:[%s218 + $0x1a0] sm:$0xff]
      %v3520 = vld [vmem:[%s218 + $0x1a8] sm:$0xff]
      %v3521 = vld [vmem:[%s218 + $0x1b0] sm:$0xff]
      %v3522 = vld [vmem:[%s218 + $0x1b8] sm:$0xff]
      %v3523 = vld [vmem:[%s218 + $0x1c0] sm:$0xff]
      %v3524 = vld [vmem:[%s218 + $0x1c8] sm:$0xff]
      %v3525 = vld [vmem:[%s218 + $0x1d0] sm:$0xff]
      %v3526 = vld [vmem:[%s218 + $0x1d8] sm:$0xff]
      %v3527 = vld [vmem:[%s218 + $0x1e0] sm:$0xff]
      %v3528 = vld [vmem:[%s218 + $0x1e8] sm:$0xff]
      %v3529 = vld [vmem:[%s218 + $0x1f0] sm:$0xff]
      %v3530 = vld [vmem:[%s218 + $0x1f8] sm:$0xff]
      %v3531 = vld [vmem:[%s218 + $0x200] sm:$0xff]
      %v3532 = vld [vmem:[%s218 + $0x208] sm:$0xff]
      %v3533 = vld [vmem:[%s218 + $0x210] sm:$0xff]
      %v3534 = vld [vmem:[%s218 + $0x218] sm:$0xff]
      %v3535 = vld [vmem:[%s218 + $0x220] sm:$0xff]
      %v3536 = vld [vmem:[%s218 + $0x228] sm:$0xff]
      %v3537 = vld [vmem:[%s218 + $0x230] sm:$0xff]
      %v3538 = vld [vmem:[%s218 + $0x238] sm:$0xff]
      %v3539 = vld [vmem:[%s218 + $0x240] sm:$0xff]
      %v3540 = vld [vmem:[%s218 + $0x248] sm:$0xff]
      %v3541 = vld [vmem:[%s218 + $0x250] sm:$0xff]
      %v3542 = vld [vmem:[%s218 + $0x258] sm:$0xff]
      %v3543 = vld [vmem:[%s218 + $0x260] sm:$0xff]
      %v3544 = vld [vmem:[%s218 + $0x268] sm:$0xff]
      %v3545 = vld [vmem:[%s218 + $0x270] sm:$0xff]
      %v3546 = vld [vmem:[%s218 + $0x278] sm:$0xff]
      %v3547 = vld [vmem:[%s218 + $0x280] sm:$0xff]
      %v3548 = vld [vmem:[%s218 + $0x288] sm:$0xff]
      %v3549 = vld [vmem:[%s218 + $0x290] sm:$0xff]
      %v3550 = vld [vmem:[%s218 + $0x298] sm:$0xff]
      %v3551 = vld [vmem:[%s218 + $0x2a0] sm:$0xff]
      %v3552 = vld [vmem:[%s218 + $0x2a8] sm:$0xff]
      %v3553 = vld [vmem:[%s218 + $0x2b0] sm:$0xff]
      %v3554 = vld [vmem:[%s218 + $0x2b8] sm:$0xff]
      %v3555 = vld [vmem:[%s218 + $0x2c0] sm:$0xff]
      %v3556 = vld [vmem:[%s218 + $0x2c8] sm:$0xff]
      %v3557 = vld [vmem:[%s218 + $0x2d0] sm:$0xff]
      %v3558 = vld [vmem:[%s218 + $0x2d8] sm:$0xff]
      %v3559 = vld [vmem:[%s218 + $0x2e0] sm:$0xff]
      %v3560 = vld [vmem:[%s218 + $0x2e8] sm:$0xff]
      %v3561 = vld [vmem:[%s218 + $0x2f0] sm:$0xff]
      %v3562 = vld [vmem:[%s218 + $0x2f8] sm:$0xff]
      %v3563 = vld [vmem:[%s218 + $0x300] sm:$0xff]
      %v3564 = vld [vmem:[%s218 + $0x308] sm:$0xff]
      %v3565 = vld [vmem:[%s218 + $0x310] sm:$0xff]
      %v3566 = vld [vmem:[%s218 + $0x318] sm:$0xff]
      %v3567 = vld [vmem:[%s218 + $0x320] sm:$0xff]
      %v3568 = vld [vmem:[%s218 + $0x328] sm:$0xff]
      %v3569 = vld [vmem:[%s218 + $0x330] sm:$0xff]
      %v3570 = vld [vmem:[%s218 + $0x338] sm:$0xff]
      %v3571 = vld [vmem:[%s218 + $0x340] sm:$0xff]
      %v3572 = vld [vmem:[%s218 + $0x348] sm:$0xff]
      %v3573 = vld [vmem:[%s218 + $0x350] sm:$0xff]
      %v3574 = vld [vmem:[%s218 + $0x358] sm:$0xff]
      %v3575 = vld [vmem:[%s218 + $0x360] sm:$0xff]
      %v3576 = vld [vmem:[%s218 + $0x368] sm:$0xff]
      %v3577 = vld [vmem:[%s218 + $0x370] sm:$0xff]
      %v3578 = vld [vmem:[%s218 + $0x378] sm:$0xff]
      %v3579 = vld [vmem:[%s218 + $0x380] sm:$0xff]
      %v3580 = vld [vmem:[%s218 + $0x388] sm:$0xff]
      %v3581 = vld [vmem:[%s218 + $0x390] sm:$0xff]
      %v3582 = vld [vmem:[%s218 + $0x398] sm:$0xff]
      %v3583 = vld [vmem:[%s218 + $0x3a0] sm:$0xff]
      %v3584 = vld [vmem:[%s218 + $0x3a8] sm:$0xff]
      %v3585 = vld [vmem:[%s218 + $0x3b0] sm:$0xff]
      %v3586 = vld [vmem:[%s218 + $0x3b8] sm:$0xff]
      %v3587 = vld [vmem:[%s218 + $0x3c0] sm:$0xff]
      %v3588 = vld [vmem:[%s218 + $0x3c8] sm:$0xff]
      %v3589 = vld [vmem:[%s218 + $0x3d0] sm:$0xff]
      %v3590 = vld [vmem:[%s218 + $0x3d8] sm:$0xff]
      %v3591 = vld [vmem:[%s218 + $0x3e0] sm:$0xff]
      %v3592 = vld [vmem:[%s218 + $0x3e8] sm:$0xff]
      %v3593 = vld [vmem:[%s218 + $0x3f0] sm:$0xff]
      %v3594 = vld [vmem:[%s218 + $0x3f8] sm:$0xff]
      %v3595 = vadd.f32 %v3148, %v3467
      %v3596 = vadd.f32 %v3150, %v3468
      %v3597 = vadd.f32 %v3153, %v3469
      %v3598 = vadd.f32 %v3155, %v3470
      %v3599 = vadd.f32 %v3158, %v3471
      %v3600 = vadd.f32 %v3160, %v3472
      %v3601 = vadd.f32 %v3163, %v3473
      %v3602 = vadd.f32 %v3165, %v3474
      %v3603 = vadd.f32 %v3168, %v3475
      %v3604 = vadd.f32 %v3170, %v3476
      %v3605 = vadd.f32 %v3173, %v3477
      %v3606 = vadd.f32 %v3175, %v3478
      %v3607 = vadd.f32 %v3178, %v3479
      %v3608 = vadd.f32 %v3180, %v3480
      %v3609 = vadd.f32 %v3183, %v3481
      %v3610 = vadd.f32 %v3185, %v3482
      %v3611 = vadd.f32 %v3188, %v3483
      %v3612 = vadd.f32 %v3190, %v3484
      %v3613 = vadd.f32 %v3193, %v3485
      %v3614 = vadd.f32 %v3195, %v3486
      %v3615 = vadd.f32 %v3198, %v3487
      %v3616 = vadd.f32 %v3200, %v3488
      %v3617 = vadd.f32 %v3203, %v3489
      %v3618 = vadd.f32 %v3205, %v3490
      %v3619 = vadd.f32 %v3208, %v3491
      %v3620 = vadd.f32 %v3210, %v3492
      %v3621 = vadd.f32 %v3213, %v3493
      %v3622 = vadd.f32 %v3215, %v3494
      %v3623 = vadd.f32 %v3218, %v3495
      %v3624 = vadd.f32 %v3220, %v3496
      %v3625 = vadd.f32 %v3223, %v3497
      %v3626 = vadd.f32 %v3225, %v3498
      %v3627 = vadd.f32 %v3228, %v3499
      %v3628 = vadd.f32 %v3230, %v3500
      %v3629 = vadd.f32 %v3233, %v3501
      %v3630 = vadd.f32 %v3235, %v3502
      %v3631 = vadd.f32 %v3238, %v3503
      %v3632 = vadd.f32 %v3240, %v3504
      %v3633 = vadd.f32 %v3243, %v3505
      %v3634 = vadd.f32 %v3245, %v3506
      %v3635 = vadd.f32 %v3248, %v3507
      %v3636 = vadd.f32 %v3250, %v3508
      %v3637 = vadd.f32 %v3253, %v3509
      %v3638 = vadd.f32 %v3255, %v3510
      %v3639 = vadd.f32 %v3258, %v3511
      %v3640 = vadd.f32 %v3260, %v3512
      %v3641 = vadd.f32 %v3263, %v3513
      %v3642 = vadd.f32 %v3265, %v3514
      %v3643 = vadd.f32 %v3268, %v3515
      %v3644 = vadd.f32 %v3270, %v3516
      %v3645 = vadd.f32 %v3273, %v3517
      %v3646 = vadd.f32 %v3275, %v3518
      %v3647 = vadd.f32 %v3278, %v3519
      %v3648 = vadd.f32 %v3280, %v3520
      %v3649 = vadd.f32 %v3283, %v3521
      %v3650 = vadd.f32 %v3285, %v3522
      %v3651 = vadd.f32 %v3288, %v3523
      %v3652 = vadd.f32 %v3290, %v3524
      %v3653 = vadd.f32 %v3293, %v3525
      %v3654 = vadd.f32 %v3295, %v3526
      %v3655 = vadd.f32 %v3298, %v3527
      %v3656 = vadd.f32 %v3300, %v3528
      %v3657 = vadd.f32 %v3303, %v3529
      %v3658 = vadd.f32 %v3305, %v3530
      %v3659 = vadd.f32 %v3308, %v3531
      %v3660 = vadd.f32 %v3310, %v3532
      %v3661 = vadd.f32 %v3313, %v3533
      %v3662 = vadd.f32 %v3315, %v3534
      %v3663 = vadd.f32 %v3318, %v3535
      %v3664 = vadd.f32 %v3320, %v3536
      %v3665 = vadd.f32 %v3323, %v3537
      %v3666 = vadd.f32 %v3325, %v3538
      %v3667 = vadd.f32 %v3328, %v3539
      %v3668 = vadd.f32 %v3330, %v3540
      %v3669 = vadd.f32 %v3333, %v3541
      %v3670 = vadd.f32 %v3335, %v3542
      %v3671 = vadd.f32 %v3338, %v3543
      %v3672 = vadd.f32 %v3340, %v3544
      %v3673 = vadd.f32 %v3343, %v3545
      %v3674 = vadd.f32 %v3345, %v3546
      %v3675 = vadd.f32 %v3348, %v3547
      %v3676 = vadd.f32 %v3350, %v3548
      %v3677 = vadd.f32 %v3353, %v3549
      %v3678 = vadd.f32 %v3355, %v3550
      %v3679 = vadd.f32 %v3358, %v3551
      %v3680 = vadd.f32 %v3360, %v3552
      %v3681 = vadd.f32 %v3363, %v3553
      %v3682 = vadd.f32 %v3365, %v3554
      %v3683 = vadd.f32 %v3368, %v3555
      %v3684 = vadd.f32 %v3370, %v3556
      %v3685 = vadd.f32 %v3373, %v3557
      %v3686 = vadd.f32 %v3375, %v3558
      %v3687 = vadd.f32 %v3378, %v3559
      %v3688 = vadd.f32 %v3380, %v3560
      %v3689 = vadd.f32 %v3383, %v3561
      %v3690 = vadd.f32 %v3385, %v3562
      %v3691 = vadd.f32 %v3388, %v3563
      %v3692 = vadd.f32 %v3390, %v3564
      %v3693 = vadd.f32 %v3393, %v3565
      %v3694 = vadd.f32 %v3395, %v3566
      %v3695 = vadd.f32 %v3398, %v3567
      %v3696 = vadd.f32 %v3400, %v3568
      %v3697 = vadd.f32 %v3403, %v3569
      %v3698 = vadd.f32 %v3405, %v3570
      %v3699 = vadd.f32 %v3408, %v3571
      %v3700 = vadd.f32 %v3410, %v3572
      %v3701 = vadd.f32 %v3413, %v3573
      %v3702 = vadd.f32 %v3415, %v3574
      %v3703 = vadd.f32 %v3418, %v3575
      %v3704 = vadd.f32 %v3420, %v3576
      %v3705 = vadd.f32 %v3423, %v3577
      %v3706 = vadd.f32 %v3425, %v3578
      %v3707 = vadd.f32 %v3428, %v3579
      %v3708 = vadd.f32 %v3430, %v3580
      %v3709 = vadd.f32 %v3433, %v3581
      %v3710 = vadd.f32 %v3435, %v3582
      %v3711 = vadd.f32 %v3438, %v3583
      %v3712 = vadd.f32 %v3440, %v3584
      %v3713 = vadd.f32 %v3443, %v3585
      %v3714 = vadd.f32 %v3445, %v3586
      %v3715 = vadd.f32 %v3448, %v3587
      %v3716 = vadd.f32 %v3450, %v3588
      %v3717 = vadd.f32 %v3453, %v3589
      %v3718 = vadd.f32 %v3455, %v3590
      %v3719 = vadd.f32 %v3458, %v3591
      %v3720 = vadd.f32 %v3460, %v3592
      %v3721 = vadd.f32 %v3463, %v3593
      %v3722 = vadd.f32 %v3465, %v3594
      %vm3723 = vcmask 64512
      %3724 = vst.msk [vmem:[%s224] sm:$0xff] %vm3723, %v3595
      %3725 = vst.msk [vmem:[%s224 + $0x8] sm:$0xff] %vm3723, %v3596
      %3726 = vst.msk [vmem:[%s224 + $0x10] sm:$0xff] %vm3723, %v3597
      %3727 = vst.msk [vmem:[%s224 + $0x18] sm:$0xff] %vm3723, %v3598
      %3728 = vst.msk [vmem:[%s224 + $0x20] sm:$0xff] %vm3723, %v3599
      %3729 = vst.msk [vmem:[%s224 + $0x28] sm:$0xff] %vm3723, %v3600
      %3730 = vst.msk [vmem:[%s224 + $0x30] sm:$0xff] %vm3723, %v3601
      %3731 = vst.msk [vmem:[%s224 + $0x38] sm:$0xff] %vm3723, %v3602
      %3732 = vst.msk [vmem:[%s224 + $0x40] sm:$0xff] %vm3723, %v3603
      %3733 = vst.msk [vmem:[%s224 + $0x48] sm:$0xff] %vm3723, %v3604
      %3734 = vst.msk [vmem:[%s224 + $0x50] sm:$0xff] %vm3723, %v3605
      %3735 = vst.msk [vmem:[%s224 + $0x58] sm:$0xff] %vm3723, %v3606
      %3736 = vst.msk [vmem:[%s224 + $0x60] sm:$0xff] %vm3723, %v3607
      %3737 = vst.msk [vmem:[%s224 + $0x68] sm:$0xff] %vm3723, %v3608
      %3738 = vst.msk [vmem:[%s224 + $0x70] sm:$0xff] %vm3723, %v3609
      %3739 = vst.msk [vmem:[%s224 + $0x78] sm:$0xff] %vm3723, %v3610
      %3740 = vst.msk [vmem:[%s224 + $0x80] sm:$0xff] %vm3723, %v3611
      %3741 = vst.msk [vmem:[%s224 + $0x88] sm:$0xff] %vm3723, %v3612
      %3742 = vst.msk [vmem:[%s224 + $0x90] sm:$0xff] %vm3723, %v3613
      %3743 = vst.msk [vmem:[%s224 + $0x98] sm:$0xff] %vm3723, %v3614
      %3744 = vst.msk [vmem:[%s224 + $0xa0] sm:$0xff] %vm3723, %v3615
      %3745 = vst.msk [vmem:[%s224 + $0xa8] sm:$0xff] %vm3723, %v3616
      %3746 = vst.msk [vmem:[%s224 + $0xb0] sm:$0xff] %vm3723, %v3617
      %3747 = vst.msk [vmem:[%s224 + $0xb8] sm:$0xff] %vm3723, %v3618
      %3748 = vst.msk [vmem:[%s224 + $0xc0] sm:$0xff] %vm3723, %v3619
      %3749 = vst.msk [vmem:[%s224 + $0xc8] sm:$0xff] %vm3723, %v3620
      %3750 = vst.msk [vmem:[%s224 + $0xd0] sm:$0xff] %vm3723, %v3621
      %3751 = vst.msk [vmem:[%s224 + $0xd8] sm:$0xff] %vm3723, %v3622
      %3752 = vst.msk [vmem:[%s224 + $0xe0] sm:$0xff] %vm3723, %v3623
      %3753 = vst.msk [vmem:[%s224 + $0xe8] sm:$0xff] %vm3723, %v3624
      %3754 = vst.msk [vmem:[%s224 + $0xf0] sm:$0xff] %vm3723, %v3625
      %3755 = vst.msk [vmem:[%s224 + $0xf8] sm:$0xff] %vm3723, %v3626
      %3756 = vst.msk [vmem:[%s224 + $0x100] sm:$0xff] %vm3723, %v3627
      %3757 = vst.msk [vmem:[%s224 + $0x108] sm:$0xff] %vm3723, %v3628
      %3758 = vst.msk [vmem:[%s224 + $0x110] sm:$0xff] %vm3723, %v3629
      %3759 = vst.msk [vmem:[%s224 + $0x118] sm:$0xff] %vm3723, %v3630
      %3760 = vst.msk [vmem:[%s224 + $0x120] sm:$0xff] %vm3723, %v3631
      %3761 = vst.msk [vmem:[%s224 + $0x128] sm:$0xff] %vm3723, %v3632
      %3762 = vst.msk [vmem:[%s224 + $0x130] sm:$0xff] %vm3723, %v3633
      %3763 = vst.msk [vmem:[%s224 + $0x138] sm:$0xff] %vm3723, %v3634
      %3764 = vst.msk [vmem:[%s224 + $0x140] sm:$0xff] %vm3723, %v3635
      %3765 = vst.msk [vmem:[%s224 + $0x148] sm:$0xff] %vm3723, %v3636
      %3766 = vst.msk [vmem:[%s224 + $0x150] sm:$0xff] %vm3723, %v3637
      %3767 = vst.msk [vmem:[%s224 + $0x158] sm:$0xff] %vm3723, %v3638
      %3768 = vst.msk [vmem:[%s224 + $0x160] sm:$0xff] %vm3723, %v3639
      %3769 = vst.msk [vmem:[%s224 + $0x168] sm:$0xff] %vm3723, %v3640
      %3770 = vst.msk [vmem:[%s224 + $0x170] sm:$0xff] %vm3723, %v3641
      %3771 = vst.msk [vmem:[%s224 + $0x178] sm:$0xff] %vm3723, %v3642
      %3772 = vst.msk [vmem:[%s224 + $0x180] sm:$0xff] %vm3723, %v3643
      %3773 = vst.msk [vmem:[%s224 + $0x188] sm:$0xff] %vm3723, %v3644
      %3774 = vst.msk [vmem:[%s224 + $0x190] sm:$0xff] %vm3723, %v3645
      %3775 = vst.msk [vmem:[%s224 + $0x198] sm:$0xff] %vm3723, %v3646
      %3776 = vst.msk [vmem:[%s224 + $0x1a0] sm:$0xff] %vm3723, %v3647
      %3777 = vst.msk [vmem:[%s224 + $0x1a8] sm:$0xff] %vm3723, %v3648
      %3778 = vst.msk [vmem:[%s224 + $0x1b0] sm:$0xff] %vm3723, %v3649
      %3779 = vst.msk [vmem:[%s224 + $0x1b8] sm:$0xff] %vm3723, %v3650
      %3780 = vst.msk [vmem:[%s224 + $0x1c0] sm:$0xff] %vm3723, %v3651
      %3781 = vst.msk [vmem:[%s224 + $0x1c8] sm:$0xff] %vm3723, %v3652
      %3782 = vst.msk [vmem:[%s224 + $0x1d0] sm:$0xff] %vm3723, %v3653
      %3783 = vst.msk [vmem:[%s224 + $0x1d8] sm:$0xff] %vm3723, %v3654
      %3784 = vst.msk [vmem:[%s224 + $0x1e0] sm:$0xff] %vm3723, %v3655
      %3785 = vst.msk [vmem:[%s224 + $0x1e8] sm:$0xff] %vm3723, %v3656
      %3786 = vst.msk [vmem:[%s224 + $0x1f0] sm:$0xff] %vm3723, %v3657
      %3787 = vst.msk [vmem:[%s224 + $0x1f8] sm:$0xff] %vm3723, %v3658
      %3788 = vst.msk [vmem:[%s224 + $0x200] sm:$0xff] %vm3723, %v3659
      %3789 = vst.msk [vmem:[%s224 + $0x208] sm:$0xff] %vm3723, %v3660
      %3790 = vst.msk [vmem:[%s224 + $0x210] sm:$0xff] %vm3723, %v3661
      %3791 = vst.msk [vmem:[%s224 + $0x218] sm:$0xff] %vm3723, %v3662
      %3792 = vst.msk [vmem:[%s224 + $0x220] sm:$0xff] %vm3723, %v3663
      %3793 = vst.msk [vmem:[%s224 + $0x228] sm:$0xff] %vm3723, %v3664
      %3794 = vst.msk [vmem:[%s224 + $0x230] sm:$0xff] %vm3723, %v3665
      %3795 = vst.msk [vmem:[%s224 + $0x238] sm:$0xff] %vm3723, %v3666
      %3796 = vst.msk [vmem:[%s224 + $0x240] sm:$0xff] %vm3723, %v3667
      %3797 = vst.msk [vmem:[%s224 + $0x248] sm:$0xff] %vm3723, %v3668
      %3798 = vst.msk [vmem:[%s224 + $0x250] sm:$0xff] %vm3723, %v3669
      %3799 = vst.msk [vmem:[%s224 + $0x258] sm:$0xff] %vm3723, %v3670
      %3800 = vst.msk [vmem:[%s224 + $0x260] sm:$0xff] %vm3723, %v3671
      %3801 = vst.msk [vmem:[%s224 + $0x268] sm:$0xff] %vm3723, %v3672
      %3802 = vst.msk [vmem:[%s224 + $0x270] sm:$0xff] %vm3723, %v3673
      %3803 = vst.msk [vmem:[%s224 + $0x278] sm:$0xff] %vm3723, %v3674
      %3804 = vst.msk [vmem:[%s224 + $0x280] sm:$0xff] %vm3723, %v3675
      %3805 = vst.msk [vmem:[%s224 + $0x288] sm:$0xff] %vm3723, %v3676
      %3806 = vst.msk [vmem:[%s224 + $0x290] sm:$0xff] %vm3723, %v3677
      %3807 = vst.msk [vmem:[%s224 + $0x298] sm:$0xff] %vm3723, %v3678
      %3808 = vst.msk [vmem:[%s224 + $0x2a0] sm:$0xff] %vm3723, %v3679
      %3809 = vst.msk [vmem:[%s224 + $0x2a8] sm:$0xff] %vm3723, %v3680
      %3810 = vst.msk [vmem:[%s224 + $0x2b0] sm:$0xff] %vm3723, %v3681
      %3811 = vst.msk [vmem:[%s224 + $0x2b8] sm:$0xff] %vm3723, %v3682
      %3812 = vst.msk [vmem:[%s224 + $0x2c0] sm:$0xff] %vm3723, %v3683
      %3813 = vst.msk [vmem:[%s224 + $0x2c8] sm:$0xff] %vm3723, %v3684
      %3814 = vst.msk [vmem:[%s224 + $0x2d0] sm:$0xff] %vm3723, %v3685
      %3815 = vst.msk [vmem:[%s224 + $0x2d8] sm:$0xff] %vm3723, %v3686
      %3816 = vst.msk [vmem:[%s224 + $0x2e0] sm:$0xff] %vm3723, %v3687
      %3817 = vst.msk [vmem:[%s224 + $0x2e8] sm:$0xff] %vm3723, %v3688
      %3818 = vst.msk [vmem:[%s224 + $0x2f0] sm:$0xff] %vm3723, %v3689
      %3819 = vst.msk [vmem:[%s224 + $0x2f8] sm:$0xff] %vm3723, %v3690
      %3820 = vst.msk [vmem:[%s224 + $0x300] sm:$0xff] %vm3723, %v3691
      %3821 = vst.msk [vmem:[%s224 + $0x308] sm:$0xff] %vm3723, %v3692
      %3822 = vst.msk [vmem:[%s224 + $0x310] sm:$0xff] %vm3723, %v3693
      %3823 = vst.msk [vmem:[%s224 + $0x318] sm:$0xff] %vm3723, %v3694
      %3824 = vst.msk [vmem:[%s224 + $0x320] sm:$0xff] %vm3723, %v3695
      %3825 = vst.msk [vmem:[%s224 + $0x328] sm:$0xff] %vm3723, %v3696
      %3826 = vst.msk [vmem:[%s224 + $0x330] sm:$0xff] %vm3723, %v3697
      %3827 = vst.msk [vmem:[%s224 + $0x338] sm:$0xff] %vm3723, %v3698
      %3828 = vst.msk [vmem:[%s224 + $0x340] sm:$0xff] %vm3723, %v3699
      %3829 = vst.msk [vmem:[%s224 + $0x348] sm:$0xff] %vm3723, %v3700
      %3830 = vst.msk [vmem:[%s224 + $0x350] sm:$0xff] %vm3723, %v3701
      %3831 = vst.msk [vmem:[%s224 + $0x358] sm:$0xff] %vm3723, %v3702
      %3832 = vst.msk [vmem:[%s224 + $0x360] sm:$0xff] %vm3723, %v3703
      %3833 = vst.msk [vmem:[%s224 + $0x368] sm:$0xff] %vm3723, %v3704
      %3834 = vst.msk [vmem:[%s224 + $0x370] sm:$0xff] %vm3723, %v3705
      %3835 = vst.msk [vmem:[%s224 + $0x378] sm:$0xff] %vm3723, %v3706
      %3836 = vst.msk [vmem:[%s224 + $0x380] sm:$0xff] %vm3723, %v3707
      %3837 = vst.msk [vmem:[%s224 + $0x388] sm:$0xff] %vm3723, %v3708
      %3838 = vst.msk [vmem:[%s224 + $0x390] sm:$0xff] %vm3723, %v3709
      %3839 = vst.msk [vmem:[%s224 + $0x398] sm:$0xff] %vm3723, %v3710
      %3840 = vst.msk [vmem:[%s224 + $0x3a0] sm:$0xff] %vm3723, %v3711
      %3841 = vst.msk [vmem:[%s224 + $0x3a8] sm:$0xff] %vm3723, %v3712
      %3842 = vst.msk [vmem:[%s224 + $0x3b0] sm:$0xff] %vm3723, %v3713
      %3843 = vst.msk [vmem:[%s224 + $0x3b8] sm:$0xff] %vm3723, %v3714
      %3844 = vst.msk [vmem:[%s224 + $0x3c0] sm:$0xff] %vm3723, %v3715
      %3845 = vst.msk [vmem:[%s224 + $0x3c8] sm:$0xff] %vm3723, %v3716
      %3846 = vst.msk [vmem:[%s224 + $0x3d0] sm:$0xff] %vm3723, %v3717
      %3847 = vst.msk [vmem:[%s224 + $0x3d8] sm:$0xff] %vm3723, %v3718
      %3848 = vst.msk [vmem:[%s224 + $0x3e0] sm:$0xff] %vm3723, %v3719
      %3849 = vst.msk [vmem:[%s224 + $0x3e8] sm:$0xff] %vm3723, %v3720
      %3850 = vst.msk [vmem:[%s224 + $0x3f0] sm:$0xff] %vm3723, %v3721
      %3851 = vst.msk [vmem:[%s224 + $0x3f8] sm:$0xff] %vm3723, %v3722
      %s3852 = smul.u32 128, %s15
      %p3853 = scmp.lt.s32.totalorder %s3852, 511
      %s3854 = scalar_select %p3853, %s3852, 511
      %s3855 = smul.addr %s3854, 8
      %s3856 = scalar_lea.vmem %s4, %s3855
      // Predicated region
      $region37: #{inception_layer_plus.4} parent=35 // pred_check
        %p3857 = pneg %p127
      $region38: #{inception_layer_plus.4} parent=35 // pred_check_branch
        %3859 = sbr.rel (%p3857) target = $region40
      $region39: #{inception_layer_plus.4} parent=35 // pred_region
        %s3860 = smul.u32 128, %s15
      $region40: #{inception_layer_plus.4} parent=35 // pred_fallthru
        _
    $region36: #{inception_layer_plus.4} parent=5 // pred_fallthru
      _
    %p3861 = scmp.le.s32.totalorder 2, %s10
    // Predicated region
    $region41: #{inception_layer_plus.4} parent=5 // pred_check
      %p3862 = pneg %p3861
    $region42: #{inception_layer_plus.4} parent=5 // pred_check_branch
      %3864 = sbr.rel (%p3862) target = $region44
    $region43: #{inception_layer_plus.4} parent=5 // pred_region
      %s3865 = ssub.s32 %s10, 2
      // Predicated region
      $region45: #{inception_layer_plus.4} parent=43 // pred_check
        %p3866 = pneg %p133
      $region46: #{inception_layer_plus.4} parent=43 // pred_check_branch
        %3868 = sbr.rel (%p3866) target = $region48
      $region47: #{inception_layer_plus.4} parent=43 // pred_region
        %s3869 = smul.u32 128, %s16
        %p3870 = scmp.lt.s32.totalorder %s3869, 511
        %s3871 = scalar_select %p3870, %s3869, 511
        %s3872 = smul.addr %s3871, 8
        %s3873 = scalar_lea.vmem %s4, %s3872
      $region48: #{inception_layer_plus.4} parent=43 // pred_fallthru
        _
    $region44: #{inception_layer_plus.4} parent=5 // pred_fallthru
      _
  $region6: #{inception_layer_plus.4} parent=0 // loop_footer
    %s14 = sadd.s32 1, %s10
  $region7: #{inception_layer_plus.4} parent=0 // loop_footer_branch
    %9 = sbr.rel target = $region3
  $region8: #{inception_layer_plus.4} parent=0 // loop_exit
    _

// kernel: inception_layer_plus.5
$region0: #{inception_layer_plus.5}
  #allocation0 [shape = 'u32[]', space=smem, size = 0x4, offset = 0x4, fixed_abs, tag = 'smem constant byte address 0x4 - core index']
  #allocation1 [shape = 'u32[72,128]{1,0:T(1,128)}', space=vmem, size = 0x9000, scoped, tag = 'internal scratch']
  %s0 = inlined_call_operand.vmem [shape: bf16[4096,648], index: 0, kind: input, shape index: {}]
  %s1 = inlined_call_operand.vmem [shape: bf16[648,8], index: 1, kind: input, shape index: {}]
  %s2 = inlined_call_operand.vmem [shape: f32[1,8], index: 2, kind: input, shape index: {}]
  %s3 = inlined_call_operand.vmem [shape: f32[4096,8], index: 3, kind: input, shape index: {}, may-alias: {3,4}]
  %s4 = inlined_call_operand.vmem [shape: f32[4096,8], index: 4, kind: output, shape index: {}, may-alias: {3,4}]
  %s5 = sld [smem:[#allocation0]]
  $region49: #{inception_layer_plus.5} parent=0
    _
  %s7 = ssub.s32 1, %s5
  %s8 = scalar_select 0, %s7, %s5
  loop: start=0, step=1, limit=6
  $region2: #{inception_layer_plus.5} parent=0 // loop_pre_header
    _
  $region3: #{inception_layer_plus.5} parent=0 // loop_header
    %s10 = sphi 0, %s14
    %p11 = scmp.ge.s32.totalorder %s10, 6
    %s20 = sphi 0, %s22
    %s23 = sphi 0, %s20
    %s24 = sphi 0, %s23
    %s40 = sphi 0, %s24
    %s44 = sphi 0, %s44
    %s46 = sphi 0, %s44
    %s47 = sphi 0, %s46
    %s61 = sphi 0, %s47
    %s65 = sphi 0, %s65
    %s67 = sphi 0, %s65
    %s68 = sphi 0, %s67
    %s82 = sphi 0, %s68
    %s88 = sphi 0, %s90
    %s91 = sphi 0, %s88
    %s92 = sphi 0, %s91
    %s108 = sphi 0, %s92
    %s114 = sphi 0, %s116
    %s117 = sphi 0, %s114
    %s118 = sphi 0, %s117
    %s134 = sphi 0, %s118
  $region4: #{inception_layer_plus.5} parent=0 // loop_header_branch
    %13 = sbr.rel (%p11) target = $region8
  $region5: #{inception_layer_plus.5} parent=0 // loop_body
    %s15 = ssub.s32 %s10, 1
    %s16 = ssub.s32 %s10, 2
    %s17 = sadd.s32 %s10, 1
    %s18 = ssub.s32 %s10, %s17
    %p19 = scmp.eq.s32.totalorder %s18, 0
    %s21 = sadd.s32 %s20, 1
    %s22 = scalar_select %p19, %s20, %s21
    %p25 = pneg %p19
    %p26 = scmp.eq.s32.totalorder %s10, 3
    %p27 = por %p25, %p26
    %p28 = scmp.ne.s32.totalorder %s20, %s23
    %p29 = scmp.eq.s32.totalorder %s10, 0
    %p30 = por %p28, %p29
    %p31 = scmp.ne.s32.totalorder %s20, %s23
    %p32 = scmp.eq.s32.totalorder %s15, 3
    %p33 = por %p31, %p32
    %p34 = scmp.ne.s32.totalorder %s23, %s24
    %p35 = scmp.eq.s32.totalorder %s15, 0
    %p36 = por %p34, %p35
    %p37 = scmp.ne.s32.totalorder %s23, %s24
    %p38 = scmp.eq.s32.totalorder %s16, 3
    %p39 = por %p37, %p38
    %p41 = scmp.ne.s32.totalorder %s24, %s40
    %p42 = scmp.eq.s32.totalorder %s16, 0
    %p43 = por %p41, %p42
    %s45 = sadd.s32 %s44, 1
    %p48 = scmp.eq.s32.totalorder %s10, 3
    %p49 = scmp.ne.s32.totalorder %s44, %s46
    %p50 = scmp.eq.s32.totalorder %s10, 0
    %p51 = por %p49, %p50
    %p52 = scmp.ne.s32.totalorder %s44, %s46
    %p53 = scmp.eq.s32.totalorder %s15, 3
    %p54 = por %p52, %p53
    %p55 = scmp.ne.s32.totalorder %s46, %s47
    %p56 = scmp.eq.s32.totalorder %s15, 0
    %p57 = por %p55, %p56
    %p58 = scmp.ne.s32.totalorder %s46, %s47
    %p59 = scmp.eq.s32.totalorder %s16, 3
    %p60 = por %p58, %p59
    %p62 = scmp.ne.s32.totalorder %s47, %s61
    %p63 = scmp.eq.s32.totalorder %s16, 0
    %p64 = por %p62, %p63
    %s66 = sadd.s32 %s65, 1
    %p69 = scmp.eq.s32.totalorder %s10, 3
    %p70 = scmp.ne.s32.totalorder %s65, %s67
    %p71 = scmp.eq.s32.totalorder %s10, 0
    %p72 = por %p70, %p71
    %p73 = scmp.ne.s32.totalorder %s65, %s67
    %p74 = scmp.eq.s32.totalorder %s15, 3
    %p75 = por %p73, %p74
    %p76 = scmp.ne.s32.totalorder %s67, %s68
    %p77 = scmp.eq.s32.totalorder %s15, 0
    %p78 = por %p76, %p77
    %p79 = scmp.ne.s32.totalorder %s67, %s68
    %p80 = scmp.eq.s32.totalorder %s16, 3
    %p81 = por %p79, %p80
    %p83 = scmp.ne.s32.totalorder %s68, %s82
    %p84 = scmp.eq.s32.totalorder %s16, 0
    %p85 = por %p83, %p84
    %s86 = ssub.s32 %s10, %s17
    %p87 = scmp.eq.s32.totalorder %s86, 0
    %s89 = sadd.s32 %s88, 1
    %s90 = scalar_select %p87, %s88, %s89
    %p93 = pneg %p87
    %p94 = scmp.eq.s32.totalorder %s10, 3
    %p95 = por %p93, %p94
    %p96 = scmp.ne.s32.totalorder %s88, %s91
    %p97 = scmp.eq.s32.totalorder %s10, 0
    %p98 = por %p96, %p97
    %p99 = scmp.ne.s32.totalorder %s88, %s91
    %p100 = scmp.eq.s32.totalorder %s15, 3
    %p101 = por %p99, %p100
    %p102 = scmp.ne.s32.totalorder %s91, %s92
    %p103 = scmp.eq.s32.totalorder %s15, 0
    %p104 = por %p102, %p103
    %p105 = scmp.ne.s32.totalorder %s91, %s92
    %p106 = scmp.eq.s32.totalorder %s16, 3
    %p107 = por %p105, %p106
    %p109 = scmp.ne.s32.totalorder %s92, %s108
    %p110 = scmp.eq.s32.totalorder %s16, 0
    %p111 = por %p109, %p110
    %s112 = ssub.s32 %s10, %s17
    %p113 = scmp.eq.s32.totalorder %s112, 0
    %s115 = sadd.s32 %s114, 1
    %s116 = scalar_select %p113, %s114, %s115
    %p119 = pneg %p113
    %p120 = scmp.eq.s32.totalorder %s10, 3
    %p121 = por %p119, %p120
    %p122 = scmp.ne.s32.totalorder %s114, %s117
    %p123 = scmp.eq.s32.totalorder %s10, 0
    %p124 = por %p122, %p123
    %p125 = scmp.ne.s32.totalorder %s114, %s117
    %p126 = scmp.eq.s32.totalorder %s15, 3
    %p127 = por %p125, %p126
    %p128 = scmp.ne.s32.totalorder %s117, %s118
    %p129 = scmp.eq.s32.totalorder %s15, 0
    %p130 = por %p128, %p129
    %p131 = scmp.ne.s32.totalorder %s117, %s118
    %p132 = scmp.eq.s32.totalorder %s16, 3
    %p133 = por %p131, %p132
    %p135 = scmp.ne.s32.totalorder %s118, %s134
    %p136 = scmp.eq.s32.totalorder %s16, 0
    %p137 = por %p135, %p136
    %p138 = scmp.le.s32.totalorder 1, %s10
    %p139 = scmp.lt.s32.totalorder %s10, 5
    %p140 = pnand %p138, %p139
    %p141 = pneg %p140
    // Predicated region
    $region9: #{inception_layer_plus.5} parent=5 // pred_check
      _
    $region10: #{inception_layer_plus.5} parent=5 // pred_check_branch
      %143 = sbr.rel (%p140) target = $region12
    $region11: #{inception_layer_plus.5} parent=5 // pred_region
      %s144 = ssub.s32 %s10, 1
      // Predicated region
      $region13: #{inception_layer_plus.5} parent=11 // pred_check
        %p145 = pneg %p57
      $region14: #{inception_layer_plus.5} parent=11 // pred_check_branch
        %147 = sbr.rel (%p145) target = $region16
      $region15: #{inception_layer_plus.5} parent=11 // pred_region
        _
      $region16: #{inception_layer_plus.5} parent=11 // pred_fallthru
        _
      // Predicated region
      $region17: #{inception_layer_plus.5} parent=11 // pred_check
        %p148 = pneg %p78
      $region18: #{inception_layer_plus.5} parent=11 // pred_check_branch
        %150 = sbr.rel (%p148) target = $region20
      $region19: #{inception_layer_plus.5} parent=11 // pred_region
        _
      $region20: #{inception_layer_plus.5} parent=11 // pred_fallthru
        _
    $region12: #{inception_layer_plus.5} parent=5 // pred_fallthru
      _
    %p151 = scmp.lt.s32.totalorder %s10, 4
    // Predicated region
    $region21: #{inception_layer_plus.5} parent=5 // pred_check
      %p152 = pneg %p151
    $region22: #{inception_layer_plus.5} parent=5 // pred_check_branch
      %154 = sbr.rel (%p152) target = $region24
    $region23: #{inception_layer_plus.5} parent=5 // pred_region
      // Predicated region
      $region25: #{inception_layer_plus.5} parent=23 // pred_check
        %p155 = pneg %p30
      $region26: #{inception_layer_plus.5} parent=23 // pred_check_branch
        %157 = sbr.rel (%p155) target = $region28
      $region27: #{inception_layer_plus.5} parent=23 // pred_region
        %s158 = smul.u32 128, %s10
        %p159 = scmp.lt.s32.totalorder %s158, 511
        %s160 = scalar_select %p159, %s158, 511
        %s161 = smul.addr %s160, 6
        %s162 = smul.addr %s161, 4
        %s163 = scalar_lea.vmem %s0, %s162
        %s164 = smul.u32 128, %s10
      $region28: #{inception_layer_plus.5} parent=23 // pred_fallthru
        _
      // Predicated region
      $region29: #{inception_layer_plus.5} parent=23 // pred_check
        %p165 = pneg %p98
      $region30: #{inception_layer_plus.5} parent=23 // pred_check_branch
        %167 = sbr.rel (%p165) target = $region32
      $region31: #{inception_layer_plus.5} parent=23 // pred_region
        %s168 = smul.u32 128, %s10
        %p169 = scmp.lt.s32.totalorder %s168, 511
        %s170 = scalar_select %p169, %s168, 511
        %s171 = smul.addr %s170, 8
        %s172 = scalar_lea.vmem %s3, %s171
        %s173 = smul.u32 128, %s10
      $region32: #{inception_layer_plus.5} parent=23 // pred_fallthru
        _
    $region24: #{inception_layer_plus.5} parent=5 // pred_fallthru
      _
    %p174 = scmp.le.s32.totalorder 1, %s10
    %p175 = scmp.lt.s32.totalorder %s10, 5
    %p176 = pnand %p174, %p175
    %p177 = pneg %p176
    // Predicated region
    $region33: #{inception_layer_plus.5} parent=5 // pred_check
      _
    $region34: #{inception_layer_plus.5} parent=5 // pred_check_branch
      %179 = sbr.rel (%p176) target = $region36
    $region35: #{inception_layer_plus.5} parent=5 // pred_region
      %s180 = ssub.s32 %s10, 1
      %s181 = smul.u32 128, %s15
      %p182 = scmp.lt.s32.totalorder %s181, 511
      %s183 = scalar_select %p182, %s181, 511
      %s184 = smul.addr %s183, 6
      %s185 = smul.addr %s184, 4
      %s186 = scalar_lea.vmem %s0, %s185
      %p187 = pneg %p36
      %p188 = pneg %p33
      %p189 = pneg %p57
      %p190 = pneg %p54
      %p191 = pneg %p78
      %p192 = pneg %p75
      %s193 = smul.u32 128, %s15
      %p194 = scmp.lt.s32.totalorder %s193, 511
      %s195 = scalar_select %p194, %s193, 511
      %s196 = smul.addr %s195, 8
      %s197 = scalar_lea.vmem %s3, %s196
      %p198 = pneg %p104
      %p199 = pneg %p101
      %p200 = pneg %p130
      %p201 = pneg %p127
      %s202 = smul.u32 128, %s15
      %p203 = scmp.lt.s32.totalorder %s202, 511
      %s204 = scalar_select %p203, %s202, 511
      %s205 = smul.addr %s204, 8
      %s206 = scalar_lea.vmem %s4, %s205
      %s207 = smul.u32 128, %s15
      %p208 = scmp.lt.s32.totalorder %s207, 511
      %s209 = scalar_select %p208, %s207, 511
      %s210 = smul.addr %s209, 6
      %s211 = smul.addr %s210, 4
      %s212 = scalar_lea.vmem %s0, %s211
      %s213 = smul.u32 128, %s15
      %s214 = smul.u32 128, %s15
      %p215 = scmp.lt.s32.totalorder %s214, 511
      %s216 = scalar_select %p215, %s214, 511
      %s217 = smul.addr %s216, 8
      %s218 = scalar_lea.vmem %s3, %s217
      %s219 = smul.u32 128, %s15
      %s220 = smul.u32 128, %s15
      %p221 = scmp.lt.s32.totalorder %s220, 511
      %s222 = scalar_select %p221, %s220, 511
      %s223 = smul.addr %s222, 8
      %s224 = scalar_lea.vmem %s4, %s223
      %s225 = smul.u32 128, %s15
      %v227 = vld [vmem:[%s212] sm:$0xff]
      %v228 = vld [vmem:[%s212 + $0x8] sm:$0xff]
      %v229 = vld [vmem:[%s212 + $0x10] sm:$0xff]
      %v230 = vld [vmem:[%s212 + $0x18] sm:$0xff]
      %v231 = vld [vmem:[%s212 + $0x20] sm:$0xff]
      %v232 = vld [vmem:[%s212 + $0x28] sm:$0xff]
      %v233 = vld [vmem:[%s212 + $0x30] sm:$0xff]
      %v234 = vld [vmem:[%s212 + $0x38] sm:$0xff]
      %v235 = vld [vmem:[%s212 + $0x40] sm:$0xff]
      %v236 = vld [vmem:[%s212 + $0x48] sm:$0xff]
      %v237 = vld [vmem:[%s212 + $0x50] sm:$0xff]
      %v238 = vld [vmem:[%s212 + $0x58] sm:$0xff]
      %v239 = vld [vmem:[%s212 + $0x60] sm:$0xff]
      %v240 = vld [vmem:[%s212 + $0x68] sm:$0xff]
      %v241 = vld [vmem:[%s212 + $0x70] sm:$0xff]
      %v242 = vld [vmem:[%s212 + $0x78] sm:$0xff]
      %v243 = vld [vmem:[%s212 + $0x80] sm:$0xff]
      %v244 = vld [vmem:[%s212 + $0x88] sm:$0xff]
      %v245 = vld [vmem:[%s212 + $0x90] sm:$0xff]
      %v246 = vld [vmem:[%s212 + $0x98] sm:$0xff]
      %v247 = vld [vmem:[%s212 + $0xa0] sm:$0xff]
      %v248 = vld [vmem:[%s212 + $0xa8] sm:$0xff]
      %v249 = vld [vmem:[%s212 + $0xb0] sm:$0xff]
      %v250 = vld [vmem:[%s212 + $0xb8] sm:$0xff]
      %v251 = vld [vmem:[%s212 + $0xc0] sm:$0xff]
      %v252 = vld [vmem:[%s212 + $0xc8] sm:$0xff]
      %v253 = vld [vmem:[%s212 + $0xd0] sm:$0xff]
      %v254 = vld [vmem:[%s212 + $0xd8] sm:$0xff]
      %v255 = vld [vmem:[%s212 + $0xe0] sm:$0xff]
      %v256 = vld [vmem:[%s212 + $0xe8] sm:$0xff]
      %v257 = vld [vmem:[%s212 + $0xf0] sm:$0xff]
      %v258 = vld [vmem:[%s212 + $0xf8] sm:$0xff]
      %v259 = vld [vmem:[%s212 + $0x100] sm:$0xff]
      %v260 = vld [vmem:[%s212 + $0x108] sm:$0xff]
      %v261 = vld [vmem:[%s212 + $0x110] sm:$0xff]
      %v262 = vld [vmem:[%s212 + $0x118] sm:$0xff]
      %v263 = vld [vmem:[%s212 + $0x120] sm:$0xff]
      %v264 = vld [vmem:[%s212 + $0x128] sm:$0xff]
      %v265 = vld [vmem:[%s212 + $0x130] sm:$0xff]
      %v266 = vld [vmem:[%s212 + $0x138] sm:$0xff]
      %v267 = vld [vmem:[%s212 + $0x140] sm:$0xff]
      %v268 = vld [vmem:[%s212 + $0x148] sm:$0xff]
      %v269 = vld [vmem:[%s212 + $0x150] sm:$0xff]
      %v270 = vld [vmem:[%s212 + $0x158] sm:$0xff]
      %v271 = vld [vmem:[%s212 + $0x160] sm:$0xff]
      %v272 = vld [vmem:[%s212 + $0x168] sm:$0xff]
      %v273 = vld [vmem:[%s212 + $0x170] sm:$0xff]
      %v274 = vld [vmem:[%s212 + $0x178] sm:$0xff]
      %v275 = vld [vmem:[%s212 + $0x180] sm:$0xff]
      %v276 = vld [vmem:[%s212 + $0x188] sm:$0xff]
      %v277 = vld [vmem:[%s212 + $0x190] sm:$0xff]
      %v278 = vld [vmem:[%s212 + $0x198] sm:$0xff]
      %v279 = vld [vmem:[%s212 + $0x1a0] sm:$0xff]
      %v280 = vld [vmem:[%s212 + $0x1a8] sm:$0xff]
      %v281 = vld [vmem:[%s212 + $0x1b0] sm:$0xff]
      %v282 = vld [vmem:[%s212 + $0x1b8] sm:$0xff]
      %v283 = vld [vmem:[%s212 + $0x1c0] sm:$0xff]
      %v284 = vld [vmem:[%s212 + $0x1c8] sm:$0xff]
      %v285 = vld [vmem:[%s212 + $0x1d0] sm:$0xff]
      %v286 = vld [vmem:[%s212 + $0x1d8] sm:$0xff]
      %v287 = vld [vmem:[%s212 + $0x1e0] sm:$0xff]
      %v288 = vld [vmem:[%s212 + $0x1e8] sm:$0xff]
      %v289 = vld [vmem:[%s212 + $0x1f0] sm:$0xff]
      %v290 = vld [vmem:[%s212 + $0x1f8] sm:$0xff]
      %v291 = vld [vmem:[%s212 + $0x200] sm:$0xff]
      %v292 = vld [vmem:[%s212 + $0x208] sm:$0xff]
      %v293 = vld [vmem:[%s212 + $0x210] sm:$0xff]
      %v294 = vld [vmem:[%s212 + $0x218] sm:$0xff]
      %v295 = vld [vmem:[%s212 + $0x220] sm:$0xff]
      %v296 = vld [vmem:[%s212 + $0x228] sm:$0xff]
      %v297 = vld [vmem:[%s212 + $0x230] sm:$0xff]
      %v298 = vld [vmem:[%s212 + $0x238] sm:$0xff]
      %v299 = vld [vmem:[%s212 + $0x240] sm:$0xff]
      %v300 = vld [vmem:[%s212 + $0x248] sm:$0xff]
      %v301 = vld [vmem:[%s212 + $0x250] sm:$0xff]
      %v302 = vld [vmem:[%s212 + $0x258] sm:$0xff]
      %v303 = vld [vmem:[%s212 + $0x260] sm:$0xff]
      %v304 = vld [vmem:[%s212 + $0x268] sm:$0xff]
      %v305 = vld [vmem:[%s212 + $0x270] sm:$0xff]
      %v306 = vld [vmem:[%s212 + $0x278] sm:$0xff]
      %v307 = vld [vmem:[%s212 + $0x280] sm:$0xff]
      %v308 = vld [vmem:[%s212 + $0x288] sm:$0xff]
      %v309 = vld [vmem:[%s212 + $0x290] sm:$0xff]
      %v310 = vld [vmem:[%s212 + $0x298] sm:$0xff]
      %v311 = vld [vmem:[%s212 + $0x2a0] sm:$0xff]
      %v312 = vld [vmem:[%s212 + $0x2a8] sm:$0xff]
      %v313 = vld [vmem:[%s212 + $0x2b0] sm:$0xff]
      %v314 = vld [vmem:[%s212 + $0x2b8] sm:$0xff]
      %v315 = vld [vmem:[%s212 + $0x2c0] sm:$0xff]
      %v316 = vld [vmem:[%s212 + $0x2c8] sm:$0xff]
      %v317 = vld [vmem:[%s212 + $0x2d0] sm:$0xff]
      %v318 = vld [vmem:[%s212 + $0x2d8] sm:$0xff]
      %v319 = vld [vmem:[%s212 + $0x2e0] sm:$0xff]
      %v320 = vld [vmem:[%s212 + $0x2e8] sm:$0xff]
      %v321 = vld [vmem:[%s212 + $0x2f0] sm:$0xff]
      %v322 = vld [vmem:[%s212 + $0x2f8] sm:$0xff]
      %v323 = vld [vmem:[%s212 + $0x300] sm:$0xff]
      %v324 = vld [vmem:[%s212 + $0x308] sm:$0xff]
      %v325 = vld [vmem:[%s212 + $0x310] sm:$0xff]
      %v326 = vld [vmem:[%s212 + $0x318] sm:$0xff]
      %v327 = vld [vmem:[%s212 + $0x320] sm:$0xff]
      %v328 = vld [vmem:[%s212 + $0x328] sm:$0xff]
      %v329 = vld [vmem:[%s212 + $0x330] sm:$0xff]
      %v330 = vld [vmem:[%s212 + $0x338] sm:$0xff]
      %v331 = vld [vmem:[%s212 + $0x340] sm:$0xff]
      %v332 = vld [vmem:[%s212 + $0x348] sm:$0xff]
      %v333 = vld [vmem:[%s212 + $0x350] sm:$0xff]
      %v334 = vld [vmem:[%s212 + $0x358] sm:$0xff]
      %v335 = vld [vmem:[%s212 + $0x360] sm:$0xff]
      %v336 = vld [vmem:[%s212 + $0x368] sm:$0xff]
      %v337 = vld [vmem:[%s212 + $0x370] sm:$0xff]
      %v338 = vld [vmem:[%s212 + $0x378] sm:$0xff]
      %v339 = vld [vmem:[%s212 + $0x380] sm:$0xff]
      %v340 = vld [vmem:[%s212 + $0x388] sm:$0xff]
      %v341 = vld [vmem:[%s212 + $0x390] sm:$0xff]
      %v342 = vld [vmem:[%s212 + $0x398] sm:$0xff]
      %v343 = vld [vmem:[%s212 + $0x3a0] sm:$0xff]
      %v344 = vld [vmem:[%s212 + $0x3a8] sm:$0xff]
      %v345 = vld [vmem:[%s212 + $0x3b0] sm:$0xff]
      %v346 = vld [vmem:[%s212 + $0x3b8] sm:$0xff]
      %v347 = vld [vmem:[%s212 + $0x3c0] sm:$0xff]
      %v348 = vld [vmem:[%s212 + $0x3c8] sm:$0xff]
      %v349 = vld [vmem:[%s212 + $0x3d0] sm:$0xff]
      %v350 = vld [vmem:[%s212 + $0x3d8] sm:$0xff]
      %v351 = vld [vmem:[%s212 + $0x3e0] sm:$0xff]
      %v352 = vld [vmem:[%s212 + $0x3e8] sm:$0xff]
      %v353 = vld [vmem:[%s212 + $0x3f0] sm:$0xff]
      %v354 = vld [vmem:[%s212 + $0x3f8] sm:$0xff]
      %v355 = vld [vmem:[%s212 + $0x400] sm:$0xff]
      %v356 = vld [vmem:[%s212 + $0x408] sm:$0xff]
      %v357 = vld [vmem:[%s212 + $0x410] sm:$0xff]
      %v358 = vld [vmem:[%s212 + $0x418] sm:$0xff]
      %v359 = vld [vmem:[%s212 + $0x420] sm:$0xff]
      %v360 = vld [vmem:[%s212 + $0x428] sm:$0xff]
      %v361 = vld [vmem:[%s212 + $0x430] sm:$0xff]
      %v362 = vld [vmem:[%s212 + $0x438] sm:$0xff]
      %v363 = vld [vmem:[%s212 + $0x440] sm:$0xff]
      %v364 = vld [vmem:[%s212 + $0x448] sm:$0xff]
      %v365 = vld [vmem:[%s212 + $0x450] sm:$0xff]
      %v366 = vld [vmem:[%s212 + $0x458] sm:$0xff]
      %v367 = vld [vmem:[%s212 + $0x460] sm:$0xff]
      %v368 = vld [vmem:[%s212 + $0x468] sm:$0xff]
      %v369 = vld [vmem:[%s212 + $0x470] sm:$0xff]
      %v370 = vld [vmem:[%s212 + $0x478] sm:$0xff]
      %v371 = vld [vmem:[%s212 + $0x480] sm:$0xff]
      %v372 = vld [vmem:[%s212 + $0x488] sm:$0xff]
      %v373 = vld [vmem:[%s212 + $0x490] sm:$0xff]
      %v374 = vld [vmem:[%s212 + $0x498] sm:$0xff]
      %v375 = vld [vmem:[%s212 + $0x4a0] sm:$0xff]
      %v376 = vld [vmem:[%s212 + $0x4a8] sm:$0xff]
      %v377 = vld [vmem:[%s212 + $0x4b0] sm:$0xff]
      %v378 = vld [vmem:[%s212 + $0x4b8] sm:$0xff]
      %v379 = vld [vmem:[%s212 + $0x4c0] sm:$0xff]
      %v380 = vld [vmem:[%s212 + $0x4c8] sm:$0xff]
      %v381 = vld [vmem:[%s212 + $0x4d0] sm:$0xff]
      %v382 = vld [vmem:[%s212 + $0x4d8] sm:$0xff]
      %v383 = vld [vmem:[%s212 + $0x4e0] sm:$0xff]
      %v384 = vld [vmem:[%s212 + $0x4e8] sm:$0xff]
      %v385 = vld [vmem:[%s212 + $0x4f0] sm:$0xff]
      %v386 = vld [vmem:[%s212 + $0x4f8] sm:$0xff]
      %v387 = vld [vmem:[%s212 + $0x500] sm:$0xff]
      %v388 = vld [vmem:[%s212 + $0x508] sm:$0xff]
      %v389 = vld [vmem:[%s212 + $0x510] sm:$0xff]
      %v390 = vld [vmem:[%s212 + $0x518] sm:$0xff]
      %v391 = vld [vmem:[%s212 + $0x520] sm:$0xff]
      %v392 = vld [vmem:[%s212 + $0x528] sm:$0xff]
      %v393 = vld [vmem:[%s212 + $0x530] sm:$0xff]
      %v394 = vld [vmem:[%s212 + $0x538] sm:$0xff]
      %v395 = vld [vmem:[%s212 + $0x540] sm:$0xff]
      %v396 = vld [vmem:[%s212 + $0x548] sm:$0xff]
      %v397 = vld [vmem:[%s212 + $0x550] sm:$0xff]
      %v398 = vld [vmem:[%s212 + $0x558] sm:$0xff]
      %v399 = vld [vmem:[%s212 + $0x560] sm:$0xff]
      %v400 = vld [vmem:[%s212 + $0x568] sm:$0xff]
      %v401 = vld [vmem:[%s212 + $0x570] sm:$0xff]
      %v402 = vld [vmem:[%s212 + $0x578] sm:$0xff]
      %v403 = vld [vmem:[%s212 + $0x580] sm:$0xff]
      %v404 = vld [vmem:[%s212 + $0x588] sm:$0xff]
      %v405 = vld [vmem:[%s212 + $0x590] sm:$0xff]
      %v406 = vld [vmem:[%s212 + $0x598] sm:$0xff]
      %v407 = vld [vmem:[%s212 + $0x5a0] sm:$0xff]
      %v408 = vld [vmem:[%s212 + $0x5a8] sm:$0xff]
      %v409 = vld [vmem:[%s212 + $0x5b0] sm:$0xff]
      %v410 = vld [vmem:[%s212 + $0x5b8] sm:$0xff]
      %v411 = vld [vmem:[%s212 + $0x5c0] sm:$0xff]
      %v412 = vld [vmem:[%s212 + $0x5c8] sm:$0xff]
      %v413 = vld [vmem:[%s212 + $0x5d0] sm:$0xff]
      %v414 = vld [vmem:[%s212 + $0x5d8] sm:$0xff]
      %v415 = vld [vmem:[%s212 + $0x5e0] sm:$0xff]
      %v416 = vld [vmem:[%s212 + $0x5e8] sm:$0xff]
      %v417 = vld [vmem:[%s212 + $0x5f0] sm:$0xff]
      %v418 = vld [vmem:[%s212 + $0x5f8] sm:$0xff]
      %v419 = vld [vmem:[%s212 + $0x600] sm:$0xff]
      %v420 = vld [vmem:[%s212 + $0x608] sm:$0xff]
      %v421 = vld [vmem:[%s212 + $0x610] sm:$0xff]
      %v422 = vld [vmem:[%s212 + $0x618] sm:$0xff]
      %v423 = vld [vmem:[%s212 + $0x620] sm:$0xff]
      %v424 = vld [vmem:[%s212 + $0x628] sm:$0xff]
      %v425 = vld [vmem:[%s212 + $0x630] sm:$0xff]
      %v426 = vld [vmem:[%s212 + $0x638] sm:$0xff]
      %v427 = vld [vmem:[%s212 + $0x640] sm:$0xff]
      %v428 = vld [vmem:[%s212 + $0x648] sm:$0xff]
      %v429 = vld [vmem:[%s212 + $0x650] sm:$0xff]
      %v430 = vld [vmem:[%s212 + $0x658] sm:$0xff]
      %v431 = vld [vmem:[%s212 + $0x660] sm:$0xff]
      %v432 = vld [vmem:[%s212 + $0x668] sm:$0xff]
      %v433 = vld [vmem:[%s212 + $0x670] sm:$0xff]
      %v434 = vld [vmem:[%s212 + $0x678] sm:$0xff]
      %v435 = vld [vmem:[%s212 + $0x680] sm:$0xff]
      %v436 = vld [vmem:[%s212 + $0x688] sm:$0xff]
      %v437 = vld [vmem:[%s212 + $0x690] sm:$0xff]
      %v438 = vld [vmem:[%s212 + $0x698] sm:$0xff]
      %v439 = vld [vmem:[%s212 + $0x6a0] sm:$0xff]
      %v440 = vld [vmem:[%s212 + $0x6a8] sm:$0xff]
      %v441 = vld [vmem:[%s212 + $0x6b0] sm:$0xff]
      %v442 = vld [vmem:[%s212 + $0x6b8] sm:$0xff]
      %v443 = vld [vmem:[%s212 + $0x6c0] sm:$0xff]
      %v444 = vld [vmem:[%s212 + $0x6c8] sm:$0xff]
      %v445 = vld [vmem:[%s212 + $0x6d0] sm:$0xff]
      %v446 = vld [vmem:[%s212 + $0x6d8] sm:$0xff]
      %v447 = vld [vmem:[%s212 + $0x6e0] sm:$0xff]
      %v448 = vld [vmem:[%s212 + $0x6e8] sm:$0xff]
      %v449 = vld [vmem:[%s212 + $0x6f0] sm:$0xff]
      %v450 = vld [vmem:[%s212 + $0x6f8] sm:$0xff]
      %v451 = vld [vmem:[%s212 + $0x700] sm:$0xff]
      %v452 = vld [vmem:[%s212 + $0x708] sm:$0xff]
      %v453 = vld [vmem:[%s212 + $0x710] sm:$0xff]
      %v454 = vld [vmem:[%s212 + $0x718] sm:$0xff]
      %v455 = vld [vmem:[%s212 + $0x720] sm:$0xff]
      %v456 = vld [vmem:[%s212 + $0x728] sm:$0xff]
      %v457 = vld [vmem:[%s212 + $0x730] sm:$0xff]
      %v458 = vld [vmem:[%s212 + $0x738] sm:$0xff]
      %v459 = vld [vmem:[%s212 + $0x740] sm:$0xff]
      %v460 = vld [vmem:[%s212 + $0x748] sm:$0xff]
      %v461 = vld [vmem:[%s212 + $0x750] sm:$0xff]
      %v462 = vld [vmem:[%s212 + $0x758] sm:$0xff]
      %v463 = vld [vmem:[%s212 + $0x760] sm:$0xff]
      %v464 = vld [vmem:[%s212 + $0x768] sm:$0xff]
      %v465 = vld [vmem:[%s212 + $0x770] sm:$0xff]
      %v466 = vld [vmem:[%s212 + $0x778] sm:$0xff]
      %v467 = vld [vmem:[%s212 + $0x780] sm:$0xff]
      %v468 = vld [vmem:[%s212 + $0x788] sm:$0xff]
      %v469 = vld [vmem:[%s212 + $0x790] sm:$0xff]
      %v470 = vld [vmem:[%s212 + $0x798] sm:$0xff]
      %v471 = vld [vmem:[%s212 + $0x7a0] sm:$0xff]
      %v472 = vld [vmem:[%s212 + $0x7a8] sm:$0xff]
      %v473 = vld [vmem:[%s212 + $0x7b0] sm:$0xff]
      %v474 = vld [vmem:[%s212 + $0x7b8] sm:$0xff]
      %v475 = vld [vmem:[%s212 + $0x7c0] sm:$0xff]
      %v476 = vld [vmem:[%s212 + $0x7c8] sm:$0xff]
      %v477 = vld [vmem:[%s212 + $0x7d0] sm:$0xff]
      %v478 = vld [vmem:[%s212 + $0x7d8] sm:$0xff]
      %v479 = vld [vmem:[%s212 + $0x7e0] sm:$0xff]
      %v480 = vld [vmem:[%s212 + $0x7e8] sm:$0xff]
      %v481 = vld [vmem:[%s212 + $0x7f0] sm:$0xff]
      %v482 = vld [vmem:[%s212 + $0x7f8] sm:$0xff]
      %v483 = vld [vmem:[%s212 + $0x800] sm:$0xff]
      %v484 = vld [vmem:[%s212 + $0x808] sm:$0xff]
      %v485 = vld [vmem:[%s212 + $0x810] sm:$0xff]
      %v486 = vld [vmem:[%s212 + $0x818] sm:$0xff]
      %v487 = vld [vmem:[%s212 + $0x820] sm:$0xff]
      %v488 = vld [vmem:[%s212 + $0x828] sm:$0xff]
      %v489 = vld [vmem:[%s212 + $0x830] sm:$0xff]
      %v490 = vld [vmem:[%s212 + $0x838] sm:$0xff]
      %v491 = vld [vmem:[%s212 + $0x840] sm:$0xff]
      %v492 = vld [vmem:[%s212 + $0x848] sm:$0xff]
      %v493 = vld [vmem:[%s212 + $0x850] sm:$0xff]
      %v494 = vld [vmem:[%s212 + $0x858] sm:$0xff]
      %v495 = vld [vmem:[%s212 + $0x860] sm:$0xff]
      %v496 = vld [vmem:[%s212 + $0x868] sm:$0xff]
      %v497 = vld [vmem:[%s212 + $0x870] sm:$0xff]
      %v498 = vld [vmem:[%s212 + $0x878] sm:$0xff]
      %v499 = vld [vmem:[%s212 + $0x880] sm:$0xff]
      %v500 = vld [vmem:[%s212 + $0x888] sm:$0xff]
      %v501 = vld [vmem:[%s212 + $0x890] sm:$0xff]
      %v502 = vld [vmem:[%s212 + $0x898] sm:$0xff]
      %v503 = vld [vmem:[%s212 + $0x8a0] sm:$0xff]
      %v504 = vld [vmem:[%s212 + $0x8a8] sm:$0xff]
      %v505 = vld [vmem:[%s212 + $0x8b0] sm:$0xff]
      %v506 = vld [vmem:[%s212 + $0x8b8] sm:$0xff]
      %v507 = vld [vmem:[%s212 + $0x8c0] sm:$0xff]
      %v508 = vld [vmem:[%s212 + $0x8c8] sm:$0xff]
      %v509 = vld [vmem:[%s212 + $0x8d0] sm:$0xff]
      %v510 = vld [vmem:[%s212 + $0x8d8] sm:$0xff]
      %v511 = vld [vmem:[%s212 + $0x8e0] sm:$0xff]
      %v512 = vld [vmem:[%s212 + $0x8e8] sm:$0xff]
      %v513 = vld [vmem:[%s212 + $0x8f0] sm:$0xff]
      %v514 = vld [vmem:[%s212 + $0x8f8] sm:$0xff]
      %v515 = vld [vmem:[%s212 + $0x900] sm:$0xff]
      %v516 = vld [vmem:[%s212 + $0x908] sm:$0xff]
      %v517 = vld [vmem:[%s212 + $0x910] sm:$0xff]
      %v518 = vld [vmem:[%s212 + $0x918] sm:$0xff]
      %v519 = vld [vmem:[%s212 + $0x920] sm:$0xff]
      %v520 = vld [vmem:[%s212 + $0x928] sm:$0xff]
      %v521 = vld [vmem:[%s212 + $0x930] sm:$0xff]
      %v522 = vld [vmem:[%s212 + $0x938] sm:$0xff]
      %v523 = vld [vmem:[%s212 + $0x940] sm:$0xff]
      %v524 = vld [vmem:[%s212 + $0x948] sm:$0xff]
      %v525 = vld [vmem:[%s212 + $0x950] sm:$0xff]
      %v526 = vld [vmem:[%s212 + $0x958] sm:$0xff]
      %v527 = vld [vmem:[%s212 + $0x960] sm:$0xff]
      %v528 = vld [vmem:[%s212 + $0x968] sm:$0xff]
      %v529 = vld [vmem:[%s212 + $0x970] sm:$0xff]
      %v530 = vld [vmem:[%s212 + $0x978] sm:$0xff]
      %v531 = vld [vmem:[%s212 + $0x980] sm:$0xff]
      %v532 = vld [vmem:[%s212 + $0x988] sm:$0xff]
      %v533 = vld [vmem:[%s212 + $0x990] sm:$0xff]
      %v534 = vld [vmem:[%s212 + $0x998] sm:$0xff]
      %v535 = vld [vmem:[%s212 + $0x9a0] sm:$0xff]
      %v536 = vld [vmem:[%s212 + $0x9a8] sm:$0xff]
      %v537 = vld [vmem:[%s212 + $0x9b0] sm:$0xff]
      %v538 = vld [vmem:[%s212 + $0x9b8] sm:$0xff]
      %v539 = vld [vmem:[%s212 + $0x9c0] sm:$0xff]
      %v540 = vld [vmem:[%s212 + $0x9c8] sm:$0xff]
      %v541 = vld [vmem:[%s212 + $0x9d0] sm:$0xff]
      %v542 = vld [vmem:[%s212 + $0x9d8] sm:$0xff]
      %v543 = vld [vmem:[%s212 + $0x9e0] sm:$0xff]
      %v544 = vld [vmem:[%s212 + $0x9e8] sm:$0xff]
      %v545 = vld [vmem:[%s212 + $0x9f0] sm:$0xff]
      %v546 = vld [vmem:[%s212 + $0x9f8] sm:$0xff]
      %v547 = vld [vmem:[%s212 + $0xa00] sm:$0xff]
      %v548 = vld [vmem:[%s212 + $0xa08] sm:$0xff]
      %v549 = vld [vmem:[%s212 + $0xa10] sm:$0xff]
      %v550 = vld [vmem:[%s212 + $0xa18] sm:$0xff]
      %v551 = vld [vmem:[%s212 + $0xa20] sm:$0xff]
      %v552 = vld [vmem:[%s212 + $0xa28] sm:$0xff]
      %v553 = vld [vmem:[%s212 + $0xa30] sm:$0xff]
      %v554 = vld [vmem:[%s212 + $0xa38] sm:$0xff]
      %v555 = vld [vmem:[%s212 + $0xa40] sm:$0xff]
      %v556 = vld [vmem:[%s212 + $0xa48] sm:$0xff]
      %v557 = vld [vmem:[%s212 + $0xa50] sm:$0xff]
      %v558 = vld [vmem:[%s212 + $0xa58] sm:$0xff]
      %v559 = vld [vmem:[%s212 + $0xa60] sm:$0xff]
      %v560 = vld [vmem:[%s212 + $0xa68] sm:$0xff]
      %v561 = vld [vmem:[%s212 + $0xa70] sm:$0xff]
      %v562 = vld [vmem:[%s212 + $0xa78] sm:$0xff]
      %v563 = vld [vmem:[%s212 + $0xa80] sm:$0xff]
      %v564 = vld [vmem:[%s212 + $0xa88] sm:$0xff]
      %v565 = vld [vmem:[%s212 + $0xa90] sm:$0xff]
      %v566 = vld [vmem:[%s212 + $0xa98] sm:$0xff]
      %v567 = vld [vmem:[%s212 + $0xaa0] sm:$0xff]
      %v568 = vld [vmem:[%s212 + $0xaa8] sm:$0xff]
      %v569 = vld [vmem:[%s212 + $0xab0] sm:$0xff]
      %v570 = vld [vmem:[%s212 + $0xab8] sm:$0xff]
      %v571 = vld [vmem:[%s212 + $0xac0] sm:$0xff]
      %v572 = vld [vmem:[%s212 + $0xac8] sm:$0xff]
      %v573 = vld [vmem:[%s212 + $0xad0] sm:$0xff]
      %v574 = vld [vmem:[%s212 + $0xad8] sm:$0xff]
      %v575 = vld [vmem:[%s212 + $0xae0] sm:$0xff]
      %v576 = vld [vmem:[%s212 + $0xae8] sm:$0xff]
      %v577 = vld [vmem:[%s212 + $0xaf0] sm:$0xff]
      %v578 = vld [vmem:[%s212 + $0xaf8] sm:$0xff]
      %v579 = vld [vmem:[%s212 + $0xb00] sm:$0xff]
      %v580 = vld [vmem:[%s212 + $0xb08] sm:$0xff]
      %v581 = vld [vmem:[%s212 + $0xb10] sm:$0xff]
      %v582 = vld [vmem:[%s212 + $0xb18] sm:$0xff]
      %v583 = vld [vmem:[%s212 + $0xb20] sm:$0xff]
      %v584 = vld [vmem:[%s212 + $0xb28] sm:$0xff]
      %v585 = vld [vmem:[%s212 + $0xb30] sm:$0xff]
      %v586 = vld [vmem:[%s212 + $0xb38] sm:$0xff]
      %v587 = vld [vmem:[%s212 + $0xb40] sm:$0xff]
      %v588 = vld [vmem:[%s212 + $0xb48] sm:$0xff]
      %v589 = vld [vmem:[%s212 + $0xb50] sm:$0xff]
      %v590 = vld [vmem:[%s212 + $0xb58] sm:$0xff]
      %v591 = vld [vmem:[%s212 + $0xb60] sm:$0xff]
      %v592 = vld [vmem:[%s212 + $0xb68] sm:$0xff]
      %v593 = vld [vmem:[%s212 + $0xb70] sm:$0xff]
      %v594 = vld [vmem:[%s212 + $0xb78] sm:$0xff]
      %v595 = vld [vmem:[%s212 + $0xb80] sm:$0xff]
      %v596 = vld [vmem:[%s212 + $0xb88] sm:$0xff]
      %v597 = vld [vmem:[%s212 + $0xb90] sm:$0xff]
      %v598 = vld [vmem:[%s212 + $0xb98] sm:$0xff]
      %v599 = vld [vmem:[%s212 + $0xba0] sm:$0xff]
      %v600 = vld [vmem:[%s212 + $0xba8] sm:$0xff]
      %v601 = vld [vmem:[%s212 + $0xbb0] sm:$0xff]
      %v602 = vld [vmem:[%s212 + $0xbb8] sm:$0xff]
      %v603 = vld [vmem:[%s212 + $0xbc0] sm:$0xff]
      %v604 = vld [vmem:[%s212 + $0xbc8] sm:$0xff]
      %v605 = vld [vmem:[%s212 + $0xbd0] sm:$0xff]
      %v606 = vld [vmem:[%s212 + $0xbd8] sm:$0xff]
      %v607 = vld [vmem:[%s212 + $0xbe0] sm:$0xff]
      %v608 = vld [vmem:[%s212 + $0xbe8] sm:$0xff]
      %v609 = vld [vmem:[%s212 + $0xbf0] sm:$0xff]
      %v610 = vld [vmem:[%s212 + $0xbf8] sm:$0xff]
      %v611 = vld [vmem:[%s1] sm:$0xf]
      %v612 = vld [vmem:[%s1 + $0x4] sm:$0xf]
      %v613 = vld [vmem:[%s1 + $0x8] sm:$0xf]
      %v614 = vld [vmem:[%s1 + $0xc] sm:$0xf]
      %v615 = vld [vmem:[%s1 + $0x10] sm:$0xf]
      %v616 = vld [vmem:[%s1 + $0x14] sm:$0xf]
      %v617 = vld [vmem:[%s1 + $0x18] sm:$0xf]
      %v618 = vld [vmem:[%s1 + $0x1c] sm:$0xf]
      %v619 = vld [vmem:[%s1 + $0x20] sm:$0xf]
      %v620 = vld [vmem:[%s1 + $0x24] sm:$0xf]
      %v621 = vld [vmem:[%s1 + $0x28] sm:$0xf]
      %v622 = vld [vmem:[%s1 + $0x2c] sm:$0xf]
      %v623 = vld [vmem:[%s1 + $0x30] sm:$0xf]
      %v624 = vld [vmem:[%s1 + $0x34] sm:$0xf]
      %v625 = vld [vmem:[%s1 + $0x38] sm:$0xf]
      %v626 = vld [vmem:[%s1 + $0x3c] sm:$0xf]
      %v627 = vld [vmem:[%s1 + $0x40] sm:$0xf]
      %v628 = vld [vmem:[%s1 + $0x44] sm:$0xf]
      %v629 = vld [vmem:[%s1 + $0x48] sm:$0xf]
      %v630 = vld [vmem:[%s1 + $0x4c] sm:$0xf]
      %v631 = vld [vmem:[%s1 + $0x50] sm:$0xf]
      %v632 = vld [vmem:[%s1 + $0x54] sm:$0xf]
      %v633 = vld [vmem:[%s1 + $0x58] sm:$0xf]
      %v634 = vld [vmem:[%s1 + $0x5c] sm:$0xf]
      %v635 = vld [vmem:[%s1 + $0x60] sm:$0xf]
      %v636 = vld [vmem:[%s1 + $0x64] sm:$0xf]
      %v637 = vld [vmem:[%s1 + $0x68] sm:$0xf]
      %v638 = vld [vmem:[%s1 + $0x6c] sm:$0xf]
      %v639 = vld [vmem:[%s1 + $0x70] sm:$0xf]
      %v640 = vld [vmem:[%s1 + $0x74] sm:$0xf]
      %v641 = vld [vmem:[%s1 + $0x78] sm:$0xf]
      %v642 = vld [vmem:[%s1 + $0x7c] sm:$0xf]
      %v643 = vld [vmem:[%s1 + $0x80] sm:$0xf]
      %v644 = vld [vmem:[%s1 + $0x84] sm:$0xf]
      %v645 = vld [vmem:[%s1 + $0x88] sm:$0xf]
      %v646 = vld [vmem:[%s1 + $0x8c] sm:$0xf]
      %v647 = vld [vmem:[%s1 + $0x90] sm:$0xf]
      %v648 = vld [vmem:[%s1 + $0x94] sm:$0xf]
      %v649 = vld [vmem:[%s1 + $0x98] sm:$0xf]
      %v650 = vld [vmem:[%s1 + $0x9c] sm:$0xf]
      %v651 = vld [vmem:[%s1 + $0xa0] sm:$0xf]
      %v652 = vld [vmem:[%s1 + $0xa4] sm:$0xf]
      %v653 = vld [vmem:[%s1 + $0xa8] sm:$0xf]
      %v654 = vld [vmem:[%s1 + $0xac] sm:$0xf]
      %v655 = vld [vmem:[%s1 + $0xb0] sm:$0xf]
      %v656 = vld [vmem:[%s1 + $0xb4] sm:$0xf]
      %v657 = vld [vmem:[%s1 + $0xb8] sm:$0xf]
      %v658 = vld [vmem:[%s1 + $0xbc] sm:$0xf]
      %v659 = vld [vmem:[%s1 + $0xc0] sm:$0xf]
      %v660 = vld [vmem:[%s1 + $0xc4] sm:$0xf]
      %v661 = vld [vmem:[%s1 + $0xc8] sm:$0xf]
      %v662 = vld [vmem:[%s1 + $0xcc] sm:$0xf]
      %v663 = vld [vmem:[%s1 + $0xd0] sm:$0xf]
      %v664 = vld [vmem:[%s1 + $0xd4] sm:$0xf]
      %v665 = vld [vmem:[%s1 + $0xd8] sm:$0xf]
      %v666 = vld [vmem:[%s1 + $0xdc] sm:$0xf]
      %v667 = vld [vmem:[%s1 + $0xe0] sm:$0xf]
      %v668 = vld [vmem:[%s1 + $0xe4] sm:$0xf]
      %v669 = vld [vmem:[%s1 + $0xe8] sm:$0xf]
      %v670 = vld [vmem:[%s1 + $0xec] sm:$0xf]
      %v671 = vld [vmem:[%s1 + $0xf0] sm:$0xf]
      %v672 = vld [vmem:[%s1 + $0xf4] sm:$0xf]
      %v673 = vld [vmem:[%s1 + $0xf8] sm:$0xf]
      %v674 = vld [vmem:[%s1 + $0xfc] sm:$0xf]
      %v675 = vld [vmem:[%s1 + $0x100] sm:$0xf]
      %v676 = vld [vmem:[%s1 + $0x104] sm:$0xf]
      %v677 = vld [vmem:[%s1 + $0x108] sm:$0xf]
      %v678 = vld [vmem:[%s1 + $0x10c] sm:$0xf]
      %v679 = vld [vmem:[%s1 + $0x110] sm:$0xf]
      %v680 = vld [vmem:[%s1 + $0x114] sm:$0xf]
      %v681 = vld [vmem:[%s1 + $0x118] sm:$0xf]
      %v682 = vld [vmem:[%s1 + $0x11c] sm:$0xf]
      %v683 = vld [vmem:[%s1 + $0x120] sm:$0xf]
      %v684 = vld [vmem:[%s1 + $0x124] sm:$0xf]
      %v685 = vld [vmem:[%s1 + $0x128] sm:$0xf]
      %v686 = vld [vmem:[%s1 + $0x12c] sm:$0xf]
      %v687 = vld [vmem:[%s1 + $0x130] sm:$0xf]
      %v688 = vld [vmem:[%s1 + $0x134] sm:$0xf]
      %v689 = vld [vmem:[%s1 + $0x138] sm:$0xf]
      %v690 = vld [vmem:[%s1 + $0x13c] sm:$0xf]
      %v691 = vld [vmem:[%s1 + $0x140] sm:$0xf]
      %v692 = vld [vmem:[%s2] sm:$0x1]
      %v694 = vperm.slane %v692, 0
      %v1080 = vunpack.c.l.b16 %v227
      %v1081 = vunpack.c.h.b16 %v227
      %v1082 = vunpack.c.l.b16 %v228
      %v1083 = vunpack.c.h.b16 %v228
      %v1084 = vunpack.c.l.b16 %v229
      %v1085 = vunpack.c.h.b16 %v229
      %v1086 = vunpack.c.l.b16 %v230
      %v1087 = vunpack.c.h.b16 %v230
      %v1088 = vunpack.c.l.b16 %v231
      %v1089 = vunpack.c.h.b16 %v231
      %v1090 = vunpack.c.l.b16 %v232
      %v1091 = vunpack.c.h.b16 %v232
      %v1092 = vunpack.c.l.b16 %v233
      %v1093 = vunpack.c.h.b16 %v233
      %v1094 = vunpack.c.l.b16 %v234
      %v1095 = vunpack.c.h.b16 %v234
      %v1096 = vunpack.c.l.b16 %v235
      %v1097 = vunpack.c.h.b16 %v235
      %v1098 = vunpack.c.l.b16 %v236
      %v1099 = vunpack.c.h.b16 %v236
      %v1100 = vunpack.c.l.b16 %v237
      %v1101 = vunpack.c.h.b16 %v237
      %v1102 = vunpack.c.l.b16 %v238
      %v1103 = vunpack.c.h.b16 %v238
      %v1104 = vunpack.c.l.b16 %v239
      %v1105 = vunpack.c.h.b16 %v239
      %v1106 = vunpack.c.l.b16 %v240
      %v1107 = vunpack.c.h.b16 %v240
      %v1108 = vunpack.c.l.b16 %v241
      %v1109 = vunpack.c.h.b16 %v241
      %v1110 = vunpack.c.l.b16 %v242
      %v1111 = vunpack.c.h.b16 %v242
      %v1112 = vunpack.c.l.b16 %v243
      %v1113 = vunpack.c.h.b16 %v243
      %v1114 = vunpack.c.l.b16 %v244
      %v1115 = vunpack.c.h.b16 %v244
      %v1116 = vunpack.c.l.b16 %v245
      %v1117 = vunpack.c.h.b16 %v245
      %v1118 = vunpack.c.l.b16 %v246
      %v1119 = vunpack.c.h.b16 %v246
      %v1120 = vunpack.c.l.b16 %v247
      %v1121 = vunpack.c.h.b16 %v247
      %v1122 = vunpack.c.l.b16 %v248
      %v1123 = vunpack.c.h.b16 %v248
      %v1124 = vunpack.c.l.b16 %v249
      %v1125 = vunpack.c.h.b16 %v249
      %v1126 = vunpack.c.l.b16 %v250
      %v1127 = vunpack.c.h.b16 %v250
      %v1128 = vunpack.c.l.b16 %v251
      %v1129 = vunpack.c.h.b16 %v251
      %v1130 = vunpack.c.l.b16 %v252
      %v1131 = vunpack.c.h.b16 %v252
      %v1132 = vunpack.c.l.b16 %v253
      %v1133 = vunpack.c.h.b16 %v253
      %v1134 = vunpack.c.l.b16 %v254
      %v1135 = vunpack.c.h.b16 %v254
      %v1136 = vunpack.c.l.b16 %v255
      %v1137 = vunpack.c.h.b16 %v255
      %v1138 = vunpack.c.l.b16 %v256
      %v1139 = vunpack.c.h.b16 %v256
      %v1140 = vunpack.c.l.b16 %v257
      %v1141 = vunpack.c.h.b16 %v257
      %v1142 = vunpack.c.l.b16 %v258
      %v1143 = vunpack.c.h.b16 %v258
      %v1144 = vunpack.c.l.b16 %v259
      %v1145 = vunpack.c.h.b16 %v259
      %v1146 = vunpack.c.l.b16 %v260
      %v1147 = vunpack.c.h.b16 %v260
      %v1148 = vunpack.c.l.b16 %v261
      %v1149 = vunpack.c.h.b16 %v261
      %v1150 = vunpack.c.l.b16 %v262
      %v1151 = vunpack.c.h.b16 %v262
      %v1152 = vunpack.c.l.b16 %v263
      %v1153 = vunpack.c.h.b16 %v263
      %v1154 = vunpack.c.l.b16 %v264
      %v1155 = vunpack.c.h.b16 %v264
      %v1156 = vunpack.c.l.b16 %v265
      %v1157 = vunpack.c.h.b16 %v265
      %v1158 = vunpack.c.l.b16 %v266
      %v1159 = vunpack.c.h.b16 %v266
      %v1160 = vunpack.c.l.b16 %v267
      %v1161 = vunpack.c.h.b16 %v267
      %v1162 = vunpack.c.l.b16 %v268
      %v1163 = vunpack.c.h.b16 %v268
      %v1164 = vunpack.c.l.b16 %v269
      %v1165 = vunpack.c.h.b16 %v269
      %v1166 = vunpack.c.l.b16 %v270
      %v1167 = vunpack.c.h.b16 %v270
      %v1168 = vunpack.c.l.b16 %v271
      %v1169 = vunpack.c.h.b16 %v271
      %v1170 = vunpack.c.l.b16 %v272
      %v1171 = vunpack.c.h.b16 %v272
      %v1172 = vunpack.c.l.b16 %v273
      %v1173 = vunpack.c.h.b16 %v273
      %v1174 = vunpack.c.l.b16 %v274
      %v1175 = vunpack.c.h.b16 %v274
      %v1176 = vunpack.c.l.b16 %v275
      %v1177 = vunpack.c.h.b16 %v275
      %v1178 = vunpack.c.l.b16 %v276
      %v1179 = vunpack.c.h.b16 %v276
      %v1180 = vunpack.c.l.b16 %v277
      %v1181 = vunpack.c.h.b16 %v277
      %v1182 = vunpack.c.l.b16 %v278
      %v1183 = vunpack.c.h.b16 %v278
      %v1184 = vunpack.c.l.b16 %v279
      %v1185 = vunpack.c.h.b16 %v279
      %v1186 = vunpack.c.l.b16 %v280
      %v1187 = vunpack.c.h.b16 %v280
      %v1188 = vunpack.c.l.b16 %v281
      %v1189 = vunpack.c.h.b16 %v281
      %v1190 = vunpack.c.l.b16 %v282
      %v1191 = vunpack.c.h.b16 %v282
      %v1192 = vunpack.c.l.b16 %v283
      %v1193 = vunpack.c.h.b16 %v283
      %v1194 = vunpack.c.l.b16 %v284
      %v1195 = vunpack.c.h.b16 %v284
      %v1196 = vunpack.c.l.b16 %v285
      %v1197 = vunpack.c.h.b16 %v285
      %v1198 = vunpack.c.l.b16 %v286
      %v1199 = vunpack.c.h.b16 %v286
      %v1200 = vunpack.c.l.b16 %v287
      %v1201 = vunpack.c.h.b16 %v287
      %v1202 = vunpack.c.l.b16 %v288
      %v1203 = vunpack.c.h.b16 %v288
      %v1204 = vunpack.c.l.b16 %v289
      %v1205 = vunpack.c.h.b16 %v289
      %v1206 = vunpack.c.l.b16 %v290
      %v1207 = vunpack.c.h.b16 %v290
      %v1208 = vunpack.c.l.b16 %v291
      %v1209 = vunpack.c.h.b16 %v291
      %v1210 = vunpack.c.l.b16 %v292
      %v1211 = vunpack.c.h.b16 %v292
      %v1212 = vunpack.c.l.b16 %v293
      %v1213 = vunpack.c.h.b16 %v293
      %v1214 = vunpack.c.l.b16 %v294
      %v1215 = vunpack.c.h.b16 %v294
      %v1216 = vunpack.c.l.b16 %v295
      %v1217 = vunpack.c.h.b16 %v295
      %v1218 = vunpack.c.l.b16 %v296
      %v1219 = vunpack.c.h.b16 %v296
      %v1220 = vunpack.c.l.b16 %v297
      %v1221 = vunpack.c.h.b16 %v297
      %v1222 = vunpack.c.l.b16 %v298
      %v1223 = vunpack.c.h.b16 %v298
      %v1224 = vunpack.c.l.b16 %v299
      %v1225 = vunpack.c.h.b16 %v299
      %v1226 = vunpack.c.l.b16 %v300
      %v1227 = vunpack.c.h.b16 %v300
      %v1228 = vunpack.c.l.b16 %v301
      %v1229 = vunpack.c.h.b16 %v301
      %v1230 = vunpack.c.l.b16 %v302
      %v1231 = vunpack.c.h.b16 %v302
      %v1232 = vunpack.c.l.b16 %v303
      %v1233 = vunpack.c.h.b16 %v303
      %v1234 = vunpack.c.l.b16 %v304
      %v1235 = vunpack.c.h.b16 %v304
      %v1236 = vunpack.c.l.b16 %v305
      %v1237 = vunpack.c.h.b16 %v305
      %v1238 = vunpack.c.l.b16 %v306
      %v1239 = vunpack.c.h.b16 %v306
      %v1240 = vunpack.c.l.b16 %v307
      %v1241 = vunpack.c.h.b16 %v307
      %v1242 = vunpack.c.l.b16 %v308
      %v1243 = vunpack.c.h.b16 %v308
      %v1244 = vunpack.c.l.b16 %v309
      %v1245 = vunpack.c.h.b16 %v309
      %v1246 = vunpack.c.l.b16 %v310
      %v1247 = vunpack.c.h.b16 %v310
      %v1248 = vunpack.c.l.b16 %v311
      %v1249 = vunpack.c.h.b16 %v311
      %v1250 = vunpack.c.l.b16 %v312
      %v1251 = vunpack.c.h.b16 %v312
      %v1252 = vunpack.c.l.b16 %v313
      %v1253 = vunpack.c.h.b16 %v313
      %v1254 = vunpack.c.l.b16 %v314
      %v1255 = vunpack.c.h.b16 %v314
      %v1256 = vunpack.c.l.b16 %v315
      %v1257 = vunpack.c.h.b16 %v315
      %v1258 = vunpack.c.l.b16 %v316
      %v1259 = vunpack.c.h.b16 %v316
      %v1260 = vunpack.c.l.b16 %v317
      %v1261 = vunpack.c.h.b16 %v317
      %v1262 = vunpack.c.l.b16 %v318
      %v1263 = vunpack.c.h.b16 %v318
      %v1264 = vunpack.c.l.b16 %v319
      %v1265 = vunpack.c.h.b16 %v319
      %v1266 = vunpack.c.l.b16 %v320
      %v1267 = vunpack.c.h.b16 %v320
      %v1268 = vunpack.c.l.b16 %v321
      %v1269 = vunpack.c.h.b16 %v321
      %v1270 = vunpack.c.l.b16 %v322
      %v1271 = vunpack.c.h.b16 %v322
      %v1272 = vunpack.c.l.b16 %v323
      %v1273 = vunpack.c.h.b16 %v323
      %v1274 = vunpack.c.l.b16 %v324
      %v1275 = vunpack.c.h.b16 %v324
      %v1276 = vunpack.c.l.b16 %v325
      %v1277 = vunpack.c.h.b16 %v325
      %v1278 = vunpack.c.l.b16 %v326
      %v1279 = vunpack.c.h.b16 %v326
      %v1280 = vunpack.c.l.b16 %v327
      %v1281 = vunpack.c.h.b16 %v327
      %v1282 = vunpack.c.l.b16 %v328
      %v1283 = vunpack.c.h.b16 %v328
      %v1284 = vunpack.c.l.b16 %v329
      %v1285 = vunpack.c.h.b16 %v329
      %v1286 = vunpack.c.l.b16 %v330
      %v1287 = vunpack.c.h.b16 %v330
      %v1288 = vunpack.c.l.b16 %v331
      %v1289 = vunpack.c.h.b16 %v331
      %v1290 = vunpack.c.l.b16 %v332
      %v1291 = vunpack.c.h.b16 %v332
      %v1292 = vunpack.c.l.b16 %v333
      %v1293 = vunpack.c.h.b16 %v333
      %v1294 = vunpack.c.l.b16 %v334
      %v1295 = vunpack.c.h.b16 %v334
      %v1296 = vunpack.c.l.b16 %v335
      %v1297 = vunpack.c.h.b16 %v335
      %v1298 = vunpack.c.l.b16 %v336
      %v1299 = vunpack.c.h.b16 %v336
      %v1300 = vunpack.c.l.b16 %v337
      %v1301 = vunpack.c.h.b16 %v337
      %v1302 = vunpack.c.l.b16 %v338
      %v1303 = vunpack.c.h.b16 %v338
      %v1304 = vunpack.c.l.b16 %v339
      %v1305 = vunpack.c.h.b16 %v339
      %v1306 = vunpack.c.l.b16 %v340
      %v1307 = vunpack.c.h.b16 %v340
      %v1308 = vunpack.c.l.b16 %v341
      %v1309 = vunpack.c.h.b16 %v341
      %v1310 = vunpack.c.l.b16 %v342
      %v1311 = vunpack.c.h.b16 %v342
      %v1312 = vunpack.c.l.b16 %v343
      %v1313 = vunpack.c.h.b16 %v343
      %v1314 = vunpack.c.l.b16 %v344
      %v1315 = vunpack.c.h.b16 %v344
      %v1316 = vunpack.c.l.b16 %v345
      %v1317 = vunpack.c.h.b16 %v345
      %v1318 = vunpack.c.l.b16 %v346
      %v1319 = vunpack.c.h.b16 %v346
      %v1320 = vunpack.c.l.b16 %v347
      %v1321 = vunpack.c.h.b16 %v347
      %v1322 = vunpack.c.l.b16 %v348
      %v1323 = vunpack.c.h.b16 %v348
      %v1324 = vunpack.c.l.b16 %v349
      %v1325 = vunpack.c.h.b16 %v349
      %v1326 = vunpack.c.l.b16 %v350
      %v1327 = vunpack.c.h.b16 %v350
      %v1328 = vunpack.c.l.b16 %v351
      %v1329 = vunpack.c.h.b16 %v351
      %v1330 = vunpack.c.l.b16 %v352
      %v1331 = vunpack.c.h.b16 %v352
      %v1332 = vunpack.c.l.b16 %v353
      %v1333 = vunpack.c.h.b16 %v353
      %v1334 = vunpack.c.l.b16 %v354
      %v1335 = vunpack.c.h.b16 %v354
      %v1336 = vunpack.c.l.b16 %v355
      %v1337 = vunpack.c.h.b16 %v355
      %v1338 = vunpack.c.l.b16 %v356
      %v1339 = vunpack.c.h.b16 %v356
      %v1340 = vunpack.c.l.b16 %v357
      %v1341 = vunpack.c.h.b16 %v357
      %v1342 = vunpack.c.l.b16 %v358
      %v1343 = vunpack.c.h.b16 %v358
      %v1344 = vunpack.c.l.b16 %v359
      %v1345 = vunpack.c.h.b16 %v359
      %v1346 = vunpack.c.l.b16 %v360
      %v1347 = vunpack.c.h.b16 %v360
      %v1348 = vunpack.c.l.b16 %v361
      %v1349 = vunpack.c.h.b16 %v361
      %v1350 = vunpack.c.l.b16 %v362
      %v1351 = vunpack.c.h.b16 %v362
      %v1352 = vunpack.c.l.b16 %v363
      %v1353 = vunpack.c.h.b16 %v363
      %v1354 = vunpack.c.l.b16 %v364
      %v1355 = vunpack.c.h.b16 %v364
      %v1356 = vunpack.c.l.b16 %v365
      %v1357 = vunpack.c.h.b16 %v365
      %v1358 = vunpack.c.l.b16 %v366
      %v1359 = vunpack.c.h.b16 %v366
      %v1360 = vunpack.c.l.b16 %v367
      %v1361 = vunpack.c.h.b16 %v367
      %v1362 = vunpack.c.l.b16 %v368
      %v1363 = vunpack.c.h.b16 %v368
      %v1364 = vunpack.c.l.b16 %v369
      %v1365 = vunpack.c.h.b16 %v369
      %v1366 = vunpack.c.l.b16 %v370
      %v1367 = vunpack.c.h.b16 %v370
      %v1368 = vunpack.c.l.b16 %v371
      %v1369 = vunpack.c.h.b16 %v371
      %v1370 = vunpack.c.l.b16 %v372
      %v1371 = vunpack.c.h.b16 %v372
      %v1372 = vunpack.c.l.b16 %v373
      %v1373 = vunpack.c.h.b16 %v373
      %v1374 = vunpack.c.l.b16 %v374
      %v1375 = vunpack.c.h.b16 %v374
      %v1376 = vunpack.c.l.b16 %v375
      %v1377 = vunpack.c.h.b16 %v375
      %v1378 = vunpack.c.l.b16 %v376
      %v1379 = vunpack.c.h.b16 %v376
      %v1380 = vunpack.c.l.b16 %v377
      %v1381 = vunpack.c.h.b16 %v377
      %v1382 = vunpack.c.l.b16 %v378
      %v1383 = vunpack.c.h.b16 %v378
      %v1384 = vunpack.c.l.b16 %v379
      %v1385 = vunpack.c.h.b16 %v379
      %v1386 = vunpack.c.l.b16 %v380
      %v1387 = vunpack.c.h.b16 %v380
      %v1388 = vunpack.c.l.b16 %v381
      %v1389 = vunpack.c.h.b16 %v381
      %v1390 = vunpack.c.l.b16 %v382
      %v1391 = vunpack.c.h.b16 %v382
      %v1392 = vunpack.c.l.b16 %v383
      %v1393 = vunpack.c.h.b16 %v383
      %v1394 = vunpack.c.l.b16 %v384
      %v1395 = vunpack.c.h.b16 %v384
      %v1396 = vunpack.c.l.b16 %v385
      %v1397 = vunpack.c.h.b16 %v385
      %v1398 = vunpack.c.l.b16 %v386
      %v1399 = vunpack.c.h.b16 %v386
      %v1400 = vunpack.c.l.b16 %v387
      %v1401 = vunpack.c.h.b16 %v387
      %v1402 = vunpack.c.l.b16 %v388
      %v1403 = vunpack.c.h.b16 %v388
      %v1404 = vunpack.c.l.b16 %v389
      %v1405 = vunpack.c.h.b16 %v389
      %v1406 = vunpack.c.l.b16 %v390
      %v1407 = vunpack.c.h.b16 %v390
      %v1408 = vunpack.c.l.b16 %v391
      %v1409 = vunpack.c.h.b16 %v391
      %v1410 = vunpack.c.l.b16 %v392
      %v1411 = vunpack.c.h.b16 %v392
      %v1412 = vunpack.c.l.b16 %v393
      %v1413 = vunpack.c.h.b16 %v393
      %v1414 = vunpack.c.l.b16 %v394
      %v1415 = vunpack.c.h.b16 %v394
      %v1416 = vunpack.c.l.b16 %v395
      %v1417 = vunpack.c.h.b16 %v395
      %v1418 = vunpack.c.l.b16 %v396
      %v1419 = vunpack.c.h.b16 %v396
      %v1420 = vunpack.c.l.b16 %v397
      %v1421 = vunpack.c.h.b16 %v397
      %v1422 = vunpack.c.l.b16 %v398
      %v1423 = vunpack.c.h.b16 %v398
      %v1424 = vunpack.c.l.b16 %v399
      %v1425 = vunpack.c.h.b16 %v399
      %v1426 = vunpack.c.l.b16 %v400
      %v1427 = vunpack.c.h.b16 %v400
      %v1428 = vunpack.c.l.b16 %v401
      %v1429 = vunpack.c.h.b16 %v401
      %v1430 = vunpack.c.l.b16 %v402
      %v1431 = vunpack.c.h.b16 %v402
      %v1432 = vunpack.c.l.b16 %v403
      %v1433 = vunpack.c.h.b16 %v403
      %v1434 = vunpack.c.l.b16 %v404
      %v1435 = vunpack.c.h.b16 %v404
      %v1436 = vunpack.c.l.b16 %v405
      %v1437 = vunpack.c.h.b16 %v405
      %v1438 = vunpack.c.l.b16 %v406
      %v1439 = vunpack.c.h.b16 %v406
      %v1440 = vunpack.c.l.b16 %v407
      %v1441 = vunpack.c.h.b16 %v407
      %v1442 = vunpack.c.l.b16 %v408
      %v1443 = vunpack.c.h.b16 %v408
      %v1444 = vunpack.c.l.b16 %v409
      %v1445 = vunpack.c.h.b16 %v409
      %v1446 = vunpack.c.l.b16 %v410
      %v1447 = vunpack.c.h.b16 %v410
      %v1448 = vunpack.c.l.b16 %v411
      %v1449 = vunpack.c.h.b16 %v411
      %v1450 = vunpack.c.l.b16 %v412
      %v1451 = vunpack.c.h.b16 %v412
      %v1452 = vunpack.c.l.b16 %v413
      %v1453 = vunpack.c.h.b16 %v413
      %v1454 = vunpack.c.l.b16 %v414
      %v1455 = vunpack.c.h.b16 %v414
      %v1456 = vunpack.c.l.b16 %v415
      %v1457 = vunpack.c.h.b16 %v415
      %v1458 = vunpack.c.l.b16 %v416
      %v1459 = vunpack.c.h.b16 %v416
      %v1460 = vunpack.c.l.b16 %v417
      %v1461 = vunpack.c.h.b16 %v417
      %v1462 = vunpack.c.l.b16 %v418
      %v1463 = vunpack.c.h.b16 %v418
      %v1464 = vunpack.c.l.b16 %v419
      %v1465 = vunpack.c.h.b16 %v419
      %v1466 = vunpack.c.l.b16 %v420
      %v1467 = vunpack.c.h.b16 %v420
      %v1468 = vunpack.c.l.b16 %v421
      %v1469 = vunpack.c.h.b16 %v421
      %v1470 = vunpack.c.l.b16 %v422
      %v1471 = vunpack.c.h.b16 %v422
      %v1472 = vunpack.c.l.b16 %v423
      %v1473 = vunpack.c.h.b16 %v423
      %v1474 = vunpack.c.l.b16 %v424
      %v1475 = vunpack.c.h.b16 %v424
      %v1476 = vunpack.c.l.b16 %v425
      %v1477 = vunpack.c.h.b16 %v425
      %v1478 = vunpack.c.l.b16 %v426
      %v1479 = vunpack.c.h.b16 %v426
      %v1480 = vunpack.c.l.b16 %v427
      %v1481 = vunpack.c.h.b16 %v427
      %v1482 = vunpack.c.l.b16 %v428
      %v1483 = vunpack.c.h.b16 %v428
      %v1484 = vunpack.c.l.b16 %v429
      %v1485 = vunpack.c.h.b16 %v429
      %v1486 = vunpack.c.l.b16 %v430
      %v1487 = vunpack.c.h.b16 %v430
      %v1488 = vunpack.c.l.b16 %v431
      %v1489 = vunpack.c.h.b16 %v431
      %v1490 = vunpack.c.l.b16 %v432
      %v1491 = vunpack.c.h.b16 %v432
      %v1492 = vunpack.c.l.b16 %v433
      %v1493 = vunpack.c.h.b16 %v433
      %v1494 = vunpack.c.l.b16 %v434
      %v1495 = vunpack.c.h.b16 %v434
      %v1496 = vunpack.c.l.b16 %v435
      %v1497 = vunpack.c.h.b16 %v435
      %v1498 = vunpack.c.l.b16 %v436
      %v1499 = vunpack.c.h.b16 %v436
      %v1500 = vunpack.c.l.b16 %v437
      %v1501 = vunpack.c.h.b16 %v437
      %v1502 = vunpack.c.l.b16 %v438
      %v1503 = vunpack.c.h.b16 %v438
      %v1504 = vunpack.c.l.b16 %v439
      %v1505 = vunpack.c.h.b16 %v439
      %v1506 = vunpack.c.l.b16 %v440
      %v1507 = vunpack.c.h.b16 %v440
      %v1508 = vunpack.c.l.b16 %v441
      %v1509 = vunpack.c.h.b16 %v441
      %v1510 = vunpack.c.l.b16 %v442
      %v1511 = vunpack.c.h.b16 %v442
      %v1512 = vunpack.c.l.b16 %v443
      %v1513 = vunpack.c.h.b16 %v443
      %v1514 = vunpack.c.l.b16 %v444
      %v1515 = vunpack.c.h.b16 %v444
      %v1516 = vunpack.c.l.b16 %v445
      %v1517 = vunpack.c.h.b16 %v445
      %v1518 = vunpack.c.l.b16 %v446
      %v1519 = vunpack.c.h.b16 %v446
      %v1520 = vunpack.c.l.b16 %v447
      %v1521 = vunpack.c.h.b16 %v447
      %v1522 = vunpack.c.l.b16 %v448
      %v1523 = vunpack.c.h.b16 %v448
      %v1524 = vunpack.c.l.b16 %v449
      %v1525 = vunpack.c.h.b16 %v449
      %v1526 = vunpack.c.l.b16 %v450
      %v1527 = vunpack.c.h.b16 %v450
      %v1528 = vunpack.c.l.b16 %v451
      %v1529 = vunpack.c.h.b16 %v451
      %v1530 = vunpack.c.l.b16 %v452
      %v1531 = vunpack.c.h.b16 %v452
      %v1532 = vunpack.c.l.b16 %v453
      %v1533 = vunpack.c.h.b16 %v453
      %v1534 = vunpack.c.l.b16 %v454
      %v1535 = vunpack.c.h.b16 %v454
      %v1536 = vunpack.c.l.b16 %v455
      %v1537 = vunpack.c.h.b16 %v455
      %v1538 = vunpack.c.l.b16 %v456
      %v1539 = vunpack.c.h.b16 %v456
      %v1540 = vunpack.c.l.b16 %v457
      %v1541 = vunpack.c.h.b16 %v457
      %v1542 = vunpack.c.l.b16 %v458
      %v1543 = vunpack.c.h.b16 %v458
      %v1544 = vunpack.c.l.b16 %v459
      %v1545 = vunpack.c.h.b16 %v459
      %v1546 = vunpack.c.l.b16 %v460
      %v1547 = vunpack.c.h.b16 %v460
      %v1548 = vunpack.c.l.b16 %v461
      %v1549 = vunpack.c.h.b16 %v461
      %v1550 = vunpack.c.l.b16 %v462
      %v1551 = vunpack.c.h.b16 %v462
      %v1552 = vunpack.c.l.b16 %v463
      %v1553 = vunpack.c.h.b16 %v463
      %v1554 = vunpack.c.l.b16 %v464
      %v1555 = vunpack.c.h.b16 %v464
      %v1556 = vunpack.c.l.b16 %v465
      %v1557 = vunpack.c.h.b16 %v465
      %v1558 = vunpack.c.l.b16 %v466
      %v1559 = vunpack.c.h.b16 %v466
      %v1560 = vunpack.c.l.b16 %v467
      %v1561 = vunpack.c.h.b16 %v467
      %v1562 = vunpack.c.l.b16 %v468
      %v1563 = vunpack.c.h.b16 %v468
      %v1564 = vunpack.c.l.b16 %v469
      %v1565 = vunpack.c.h.b16 %v469
      %v1566 = vunpack.c.l.b16 %v470
      %v1567 = vunpack.c.h.b16 %v470
      %v1568 = vunpack.c.l.b16 %v471
      %v1569 = vunpack.c.h.b16 %v471
      %v1570 = vunpack.c.l.b16 %v472
      %v1571 = vunpack.c.h.b16 %v472
      %v1572 = vunpack.c.l.b16 %v473
      %v1573 = vunpack.c.h.b16 %v473
      %v1574 = vunpack.c.l.b16 %v474
      %v1575 = vunpack.c.h.b16 %v474
      %v1576 = vunpack.c.l.b16 %v475
      %v1577 = vunpack.c.h.b16 %v475
      %v1578 = vunpack.c.l.b16 %v476
      %v1579 = vunpack.c.h.b16 %v476
      %v1580 = vunpack.c.l.b16 %v477
      %v1581 = vunpack.c.h.b16 %v477
      %v1582 = vunpack.c.l.b16 %v478
      %v1583 = vunpack.c.h.b16 %v478
      %v1584 = vunpack.c.l.b16 %v479
      %v1585 = vunpack.c.h.b16 %v479
      %v1586 = vunpack.c.l.b16 %v480
      %v1587 = vunpack.c.h.b16 %v480
      %v1588 = vunpack.c.l.b16 %v481
      %v1589 = vunpack.c.h.b16 %v481
      %v1590 = vunpack.c.l.b16 %v482
      %v1591 = vunpack.c.h.b16 %v482
      %v1592 = vunpack.c.l.b16 %v483
      %v1593 = vunpack.c.h.b16 %v483
      %v1594 = vunpack.c.l.b16 %v484
      %v1595 = vunpack.c.h.b16 %v484
      %v1596 = vunpack.c.l.b16 %v485
      %v1597 = vunpack.c.h.b16 %v485
      %v1598 = vunpack.c.l.b16 %v486
      %v1599 = vunpack.c.h.b16 %v486
      %v1600 = vunpack.c.l.b16 %v487
      %v1601 = vunpack.c.h.b16 %v487
      %v1602 = vunpack.c.l.b16 %v488
      %v1603 = vunpack.c.h.b16 %v488
      %v1604 = vunpack.c.l.b16 %v489
      %v1605 = vunpack.c.h.b16 %v489
      %v1606 = vunpack.c.l.b16 %v490
      %v1607 = vunpack.c.h.b16 %v490
      %v1608 = vunpack.c.l.b16 %v491
      %v1609 = vunpack.c.h.b16 %v491
      %v1610 = vunpack.c.l.b16 %v492
      %v1611 = vunpack.c.h.b16 %v492
      %v1612 = vunpack.c.l.b16 %v493
      %v1613 = vunpack.c.h.b16 %v493
      %v1614 = vunpack.c.l.b16 %v494
      %v1615 = vunpack.c.h.b16 %v494
      %v1616 = vunpack.c.l.b16 %v495
      %v1617 = vunpack.c.h.b16 %v495
      %v1618 = vunpack.c.l.b16 %v496
      %v1619 = vunpack.c.h.b16 %v496
      %v1620 = vunpack.c.l.b16 %v497
      %v1621 = vunpack.c.h.b16 %v497
      %v1622 = vunpack.c.l.b16 %v498
      %v1623 = vunpack.c.h.b16 %v498
      %v1624 = vunpack.c.l.b16 %v499
      %v1625 = vunpack.c.h.b16 %v499
      %v1626 = vunpack.c.l.b16 %v500
      %v1627 = vunpack.c.h.b16 %v500
      %v1628 = vunpack.c.l.b16 %v501
      %v1629 = vunpack.c.h.b16 %v501
      %v1630 = vunpack.c.l.b16 %v502
      %v1631 = vunpack.c.h.b16 %v502
      %v1632 = vunpack.c.l.b16 %v503
      %v1633 = vunpack.c.h.b16 %v503
      %v1634 = vunpack.c.l.b16 %v504
      %v1635 = vunpack.c.h.b16 %v504
      %v1636 = vunpack.c.l.b16 %v505
      %v1637 = vunpack.c.h.b16 %v505
      %v1638 = vunpack.c.l.b16 %v506
      %v1639 = vunpack.c.h.b16 %v506
      %v1640 = vunpack.c.l.b16 %v507
      %v1641 = vunpack.c.h.b16 %v507
      %v1642 = vunpack.c.l.b16 %v508
      %v1643 = vunpack.c.h.b16 %v508
      %v1644 = vunpack.c.l.b16 %v509
      %v1645 = vunpack.c.h.b16 %v509
      %v1646 = vunpack.c.l.b16 %v510
      %v1647 = vunpack.c.h.b16 %v510
      %v1648 = vunpack.c.l.b16 %v511
      %v1649 = vunpack.c.h.b16 %v511
      %v1650 = vunpack.c.l.b16 %v512
      %v1651 = vunpack.c.h.b16 %v512
      %v1652 = vunpack.c.l.b16 %v513
      %v1653 = vunpack.c.h.b16 %v513
      %v1654 = vunpack.c.l.b16 %v514
      %v1655 = vunpack.c.h.b16 %v514
      %v1656 = vunpack.c.l.b16 %v515
      %v1657 = vunpack.c.h.b16 %v515
      %v1658 = vunpack.c.l.b16 %v516
      %v1659 = vunpack.c.h.b16 %v516
      %v1660 = vunpack.c.l.b16 %v517
      %v1661 = vunpack.c.h.b16 %v517
      %v1662 = vunpack.c.l.b16 %v518
      %v1663 = vunpack.c.h.b16 %v518
      %v1664 = vunpack.c.l.b16 %v519
      %v1665 = vunpack.c.h.b16 %v519
      %v1666 = vunpack.c.l.b16 %v520
      %v1667 = vunpack.c.h.b16 %v520
      %v1668 = vunpack.c.l.b16 %v521
      %v1669 = vunpack.c.h.b16 %v521
      %v1670 = vunpack.c.l.b16 %v522
      %v1671 = vunpack.c.h.b16 %v522
      %v1672 = vunpack.c.l.b16 %v523
      %v1673 = vunpack.c.h.b16 %v523
      %v1674 = vunpack.c.l.b16 %v524
      %v1675 = vunpack.c.h.b16 %v524
      %v1676 = vunpack.c.l.b16 %v525
      %v1677 = vunpack.c.h.b16 %v525
      %v1678 = vunpack.c.l.b16 %v526
      %v1679 = vunpack.c.h.b16 %v526
      %v1680 = vunpack.c.l.b16 %v527
      %v1681 = vunpack.c.h.b16 %v527
      %v1682 = vunpack.c.l.b16 %v528
      %v1683 = vunpack.c.h.b16 %v528
      %v1684 = vunpack.c.l.b16 %v529
      %v1685 = vunpack.c.h.b16 %v529
      %v1686 = vunpack.c.l.b16 %v530
      %v1687 = vunpack.c.h.b16 %v530
      %v1688 = vunpack.c.l.b16 %v531
      %v1689 = vunpack.c.h.b16 %v531
      %v1690 = vunpack.c.l.b16 %v532
      %v1691 = vunpack.c.h.b16 %v532
      %v1692 = vunpack.c.l.b16 %v533
      %v1693 = vunpack.c.h.b16 %v533
      %v1694 = vunpack.c.l.b16 %v534
      %v1695 = vunpack.c.h.b16 %v534
      %v1696 = vunpack.c.l.b16 %v535
      %v1697 = vunpack.c.h.b16 %v535
      %v1698 = vunpack.c.l.b16 %v536
      %v1699 = vunpack.c.h.b16 %v536
      %v1700 = vunpack.c.l.b16 %v537
      %v1701 = vunpack.c.h.b16 %v537
      %v1702 = vunpack.c.l.b16 %v538
      %v1703 = vunpack.c.h.b16 %v538
      %v1704 = vunpack.c.l.b16 %v539
      %v1705 = vunpack.c.h.b16 %v539
      %v1706 = vunpack.c.l.b16 %v540
      %v1707 = vunpack.c.h.b16 %v540
      %v1708 = vunpack.c.l.b16 %v541
      %v1709 = vunpack.c.h.b16 %v541
      %v1710 = vunpack.c.l.b16 %v542
      %v1711 = vunpack.c.h.b16 %v542
      %v1712 = vunpack.c.l.b16 %v543
      %v1713 = vunpack.c.h.b16 %v543
      %v1714 = vunpack.c.l.b16 %v544
      %v1715 = vunpack.c.h.b16 %v544
      %v1716 = vunpack.c.l.b16 %v545
      %v1717 = vunpack.c.h.b16 %v545
      %v1718 = vunpack.c.l.b16 %v546
      %v1719 = vunpack.c.h.b16 %v546
      %v1720 = vunpack.c.l.b16 %v547
      %v1721 = vunpack.c.h.b16 %v547
      %v1722 = vunpack.c.l.b16 %v548
      %v1723 = vunpack.c.h.b16 %v548
      %v1724 = vunpack.c.l.b16 %v549
      %v1725 = vunpack.c.h.b16 %v549
      %v1726 = vunpack.c.l.b16 %v550
      %v1727 = vunpack.c.h.b16 %v550
      %v1728 = vunpack.c.l.b16 %v551
      %v1729 = vunpack.c.h.b16 %v551
      %v1730 = vunpack.c.l.b16 %v552
      %v1731 = vunpack.c.h.b16 %v552
      %v1732 = vunpack.c.l.b16 %v553
      %v1733 = vunpack.c.h.b16 %v553
      %v1734 = vunpack.c.l.b16 %v554
      %v1735 = vunpack.c.h.b16 %v554
      %v1736 = vunpack.c.l.b16 %v555
      %v1737 = vunpack.c.h.b16 %v555
      %v1738 = vunpack.c.l.b16 %v556
      %v1739 = vunpack.c.h.b16 %v556
      %v1740 = vunpack.c.l.b16 %v557
      %v1741 = vunpack.c.h.b16 %v557
      %v1742 = vunpack.c.l.b16 %v558
      %v1743 = vunpack.c.h.b16 %v558
      %v1744 = vunpack.c.l.b16 %v559
      %v1745 = vunpack.c.h.b16 %v559
      %v1746 = vunpack.c.l.b16 %v560
      %v1747 = vunpack.c.h.b16 %v560
      %v1748 = vunpack.c.l.b16 %v561
      %v1749 = vunpack.c.h.b16 %v561
      %v1750 = vunpack.c.l.b16 %v562
      %v1751 = vunpack.c.h.b16 %v562
      %v1752 = vunpack.c.l.b16 %v563
      %v1753 = vunpack.c.h.b16 %v563
      %v1754 = vunpack.c.l.b16 %v564
      %v1755 = vunpack.c.h.b16 %v564
      %v1756 = vunpack.c.l.b16 %v565
      %v1757 = vunpack.c.h.b16 %v565
      %v1758 = vunpack.c.l.b16 %v566
      %v1759 = vunpack.c.h.b16 %v566
      %v1760 = vunpack.c.l.b16 %v567
      %v1761 = vunpack.c.h.b16 %v567
      %v1762 = vunpack.c.l.b16 %v568
      %v1763 = vunpack.c.h.b16 %v568
      %v1764 = vunpack.c.l.b16 %v569
      %v1765 = vunpack.c.h.b16 %v569
      %v1766 = vunpack.c.l.b16 %v570
      %v1767 = vunpack.c.h.b16 %v570
      %v1768 = vunpack.c.l.b16 %v571
      %v1769 = vunpack.c.h.b16 %v571
      %v1770 = vunpack.c.l.b16 %v572
      %v1771 = vunpack.c.h.b16 %v572
      %v1772 = vunpack.c.l.b16 %v573
      %v1773 = vunpack.c.h.b16 %v573
      %v1774 = vunpack.c.l.b16 %v574
      %v1775 = vunpack.c.h.b16 %v574
      %v1776 = vunpack.c.l.b16 %v575
      %v1777 = vunpack.c.h.b16 %v575
      %v1778 = vunpack.c.l.b16 %v576
      %v1779 = vunpack.c.h.b16 %v576
      %v1780 = vunpack.c.l.b16 %v577
      %v1781 = vunpack.c.h.b16 %v577
      %v1782 = vunpack.c.l.b16 %v578
      %v1783 = vunpack.c.h.b16 %v578
      %v1784 = vunpack.c.l.b16 %v579
      %v1785 = vunpack.c.h.b16 %v579
      %v1786 = vunpack.c.l.b16 %v580
      %v1787 = vunpack.c.h.b16 %v580
      %v1788 = vunpack.c.l.b16 %v581
      %v1789 = vunpack.c.h.b16 %v581
      %v1790 = vunpack.c.l.b16 %v582
      %v1791 = vunpack.c.h.b16 %v582
      %v1792 = vunpack.c.l.b16 %v583
      %v1793 = vunpack.c.h.b16 %v583
      %v1794 = vunpack.c.l.b16 %v584
      %v1795 = vunpack.c.h.b16 %v584
      %v1796 = vunpack.c.l.b16 %v585
      %v1797 = vunpack.c.h.b16 %v585
      %v1798 = vunpack.c.l.b16 %v586
      %v1799 = vunpack.c.h.b16 %v586
      %v1800 = vunpack.c.l.b16 %v587
      %v1801 = vunpack.c.h.b16 %v587
      %v1802 = vunpack.c.l.b16 %v588
      %v1803 = vunpack.c.h.b16 %v588
      %v1804 = vunpack.c.l.b16 %v589
      %v1805 = vunpack.c.h.b16 %v589
      %v1806 = vunpack.c.l.b16 %v590
      %v1807 = vunpack.c.h.b16 %v590
      %v1808 = vunpack.c.l.b16 %v591
      %v1809 = vunpack.c.h.b16 %v591
      %v1810 = vunpack.c.l.b16 %v592
      %v1811 = vunpack.c.h.b16 %v592
      %v1812 = vunpack.c.l.b16 %v593
      %v1813 = vunpack.c.h.b16 %v593
      %v1814 = vunpack.c.l.b16 %v594
      %v1815 = vunpack.c.h.b16 %v594
      %v1816 = vunpack.c.l.b16 %v595
      %v1817 = vunpack.c.h.b16 %v595
      %v1818 = vunpack.c.l.b16 %v596
      %v1819 = vunpack.c.h.b16 %v596
      %v1820 = vunpack.c.l.b16 %v597
      %v1821 = vunpack.c.h.b16 %v597
      %v1822 = vunpack.c.l.b16 %v598
      %v1823 = vunpack.c.h.b16 %v598
      %v1824 = vunpack.c.l.b16 %v599
      %v1825 = vunpack.c.h.b16 %v599
      %v1826 = vunpack.c.l.b16 %v600
      %v1827 = vunpack.c.h.b16 %v600
      %v1828 = vunpack.c.l.b16 %v601
      %v1829 = vunpack.c.h.b16 %v601
      %v1830 = vunpack.c.l.b16 %v602
      %v1831 = vunpack.c.h.b16 %v602
      %v1832 = vunpack.c.l.b16 %v603
      %v1833 = vunpack.c.h.b16 %v603
      %v1834 = vunpack.c.l.b16 %v604
      %v1835 = vunpack.c.h.b16 %v604
      %v1836 = vunpack.c.l.b16 %v605
      %v1837 = vunpack.c.h.b16 %v605
      %v1838 = vunpack.c.l.b16 %v606
      %v1839 = vunpack.c.h.b16 %v606
      %v1840 = vunpack.c.l.b16 %v607
      %v1841 = vunpack.c.h.b16 %v607
      %v1842 = vunpack.c.l.b16 %v608
      %v1843 = vunpack.c.h.b16 %v608
      %v1844 = vunpack.c.l.b16 %v609
      %v1845 = vunpack.c.h.b16 %v609
      %v1846 = vunpack.c.l.b16 %v610
      %v1847 = vunpack.c.h.b16 %v610
      %v1848 = vpack.c.b16 %v1086, %v1080
      %v1849 = vpack.c.b16 %v1087, %v1081
      %v1850 = vpack.c.b16 %v1088, %v1082
      %v1851 = vpack.c.b16 %v1089, %v1083
      %v1852 = vpack.c.b16 %v1090, %v1084
      %v1853 = vpack.c.b16 %v1091, %v1085
      %v1854 = vpack.c.b16 %v1098, %v1092
      %v1855 = vpack.c.b16 %v1099, %v1093
      %v1856 = vpack.c.b16 %v1100, %v1094
      %v1857 = vpack.c.b16 %v1101, %v1095
      %v1858 = vpack.c.b16 %v1102, %v1096
      %v1859 = vpack.c.b16 %v1103, %v1097
      %v1860 = vpack.c.b16 %v1110, %v1104
      %v1861 = vpack.c.b16 %v1111, %v1105
      %v1862 = vpack.c.b16 %v1112, %v1106
      %v1863 = vpack.c.b16 %v1113, %v1107
      %v1864 = vpack.c.b16 %v1114, %v1108
      %v1865 = vpack.c.b16 %v1115, %v1109
      %v1866 = vpack.c.b16 %v1122, %v1116
      %v1867 = vpack.c.b16 %v1123, %v1117
      %v1868 = vpack.c.b16 %v1124, %v1118
      %v1869 = vpack.c.b16 %v1125, %v1119
      %v1870 = vpack.c.b16 %v1126, %v1120
      %v1871 = vpack.c.b16 %v1127, %v1121
      %v1872 = vpack.c.b16 %v1134, %v1128
      %v1873 = vpack.c.b16 %v1135, %v1129
      %v1874 = vpack.c.b16 %v1136, %v1130
      %v1875 = vpack.c.b16 %v1137, %v1131
      %v1876 = vpack.c.b16 %v1138, %v1132
      %v1877 = vpack.c.b16 %v1139, %v1133
      %v1878 = vpack.c.b16 %v1146, %v1140
      %v1879 = vpack.c.b16 %v1147, %v1141
      %v1880 = vpack.c.b16 %v1148, %v1142
      %v1881 = vpack.c.b16 %v1149, %v1143
      %v1882 = vpack.c.b16 %v1150, %v1144
      %v1883 = vpack.c.b16 %v1151, %v1145
      %v1884 = vpack.c.b16 %v1158, %v1152
      %v1885 = vpack.c.b16 %v1159, %v1153
      %v1886 = vpack.c.b16 %v1160, %v1154
      %v1887 = vpack.c.b16 %v1161, %v1155
      %v1888 = vpack.c.b16 %v1162, %v1156
      %v1889 = vpack.c.b16 %v1163, %v1157
      %v1890 = vpack.c.b16 %v1170, %v1164
      %v1891 = vpack.c.b16 %v1171, %v1165
      %v1892 = vpack.c.b16 %v1172, %v1166
      %v1893 = vpack.c.b16 %v1173, %v1167
      %v1894 = vpack.c.b16 %v1174, %v1168
      %v1895 = vpack.c.b16 %v1175, %v1169
      %v1896 = vpack.c.b16 %v1182, %v1176
      %v1897 = vpack.c.b16 %v1183, %v1177
      %v1898 = vpack.c.b16 %v1184, %v1178
      %v1899 = vpack.c.b16 %v1185, %v1179
      %v1900 = vpack.c.b16 %v1186, %v1180
      %v1901 = vpack.c.b16 %v1187, %v1181
      %v1902 = vpack.c.b16 %v1194, %v1188
      %v1903 = vpack.c.b16 %v1195, %v1189
      %v1904 = vpack.c.b16 %v1196, %v1190
      %v1905 = vpack.c.b16 %v1197, %v1191
      %v1906 = vpack.c.b16 %v1198, %v1192
      %v1907 = vpack.c.b16 %v1199, %v1193
      %v1908 = vpack.c.b16 %v1206, %v1200
      %v1909 = vpack.c.b16 %v1207, %v1201
      %v1910 = vpack.c.b16 %v1208, %v1202
      %v1911 = vpack.c.b16 %v1209, %v1203
      %v1912 = vpack.c.b16 %v1210, %v1204
      %v1913 = vpack.c.b16 %v1211, %v1205
      %v1914 = vpack.c.b16 %v1218, %v1212
      %v1915 = vpack.c.b16 %v1219, %v1213
      %v1916 = vpack.c.b16 %v1220, %v1214
      %v1917 = vpack.c.b16 %v1221, %v1215
      %v1918 = vpack.c.b16 %v1222, %v1216
      %v1919 = vpack.c.b16 %v1223, %v1217
      %v1920 = vpack.c.b16 %v1230, %v1224
      %v1921 = vpack.c.b16 %v1231, %v1225
      %v1922 = vpack.c.b16 %v1232, %v1226
      %v1923 = vpack.c.b16 %v1233, %v1227
      %v1924 = vpack.c.b16 %v1234, %v1228
      %v1925 = vpack.c.b16 %v1235, %v1229
      %v1926 = vpack.c.b16 %v1242, %v1236
      %v1927 = vpack.c.b16 %v1243, %v1237
      %v1928 = vpack.c.b16 %v1244, %v1238
      %v1929 = vpack.c.b16 %v1245, %v1239
      %v1930 = vpack.c.b16 %v1246, %v1240
      %v1931 = vpack.c.b16 %v1247, %v1241
      %v1932 = vpack.c.b16 %v1254, %v1248
      %v1933 = vpack.c.b16 %v1255, %v1249
      %v1934 = vpack.c.b16 %v1256, %v1250
      %v1935 = vpack.c.b16 %v1257, %v1251
      %v1936 = vpack.c.b16 %v1258, %v1252
      %v1937 = vpack.c.b16 %v1259, %v1253
      %v1938 = vpack.c.b16 %v1266, %v1260
      %v1939 = vpack.c.b16 %v1267, %v1261
      %v1940 = vpack.c.b16 %v1268, %v1262
      %v1941 = vpack.c.b16 %v1269, %v1263
      %v1942 = vpack.c.b16 %v1270, %v1264
      %v1943 = vpack.c.b16 %v1271, %v1265
      %v1944 = vpack.c.b16 %v1278, %v1272
      %v1945 = vpack.c.b16 %v1279, %v1273
      %v1946 = vpack.c.b16 %v1280, %v1274
      %v1947 = vpack.c.b16 %v1281, %v1275
      %v1948 = vpack.c.b16 %v1282, %v1276
      %v1949 = vpack.c.b16 %v1283, %v1277
      %v1950 = vpack.c.b16 %v1290, %v1284
      %v1951 = vpack.c.b16 %v1291, %v1285
      %v1952 = vpack.c.b16 %v1292, %v1286
      %v1953 = vpack.c.b16 %v1293, %v1287
      %v1954 = vpack.c.b16 %v1294, %v1288
      %v1955 = vpack.c.b16 %v1295, %v1289
      %v1956 = vpack.c.b16 %v1302, %v1296
      %v1957 = vpack.c.b16 %v1303, %v1297
      %v1958 = vpack.c.b16 %v1304, %v1298
      %v1959 = vpack.c.b16 %v1305, %v1299
      %v1960 = vpack.c.b16 %v1306, %v1300
      %v1961 = vpack.c.b16 %v1307, %v1301
      %v1962 = vpack.c.b16 %v1314, %v1308
      %v1963 = vpack.c.b16 %v1315, %v1309
      %v1964 = vpack.c.b16 %v1316, %v1310
      %v1965 = vpack.c.b16 %v1317, %v1311
      %v1966 = vpack.c.b16 %v1318, %v1312
      %v1967 = vpack.c.b16 %v1319, %v1313
      %v1968 = vpack.c.b16 %v1326, %v1320
      %v1969 = vpack.c.b16 %v1327, %v1321
      %v1970 = vpack.c.b16 %v1328, %v1322
      %v1971 = vpack.c.b16 %v1329, %v1323
      %v1972 = vpack.c.b16 %v1330, %v1324
      %v1973 = vpack.c.b16 %v1331, %v1325
      %v1974 = vpack.c.b16 %v1338, %v1332
      %v1975 = vpack.c.b16 %v1339, %v1333
      %v1976 = vpack.c.b16 %v1340, %v1334
      %v1977 = vpack.c.b16 %v1341, %v1335
      %v1978 = vpack.c.b16 %v1342, %v1336
      %v1979 = vpack.c.b16 %v1343, %v1337
      %v1980 = vpack.c.b16 %v1350, %v1344
      %v1981 = vpack.c.b16 %v1351, %v1345
      %v1982 = vpack.c.b16 %v1352, %v1346
      %v1983 = vpack.c.b16 %v1353, %v1347
      %v1984 = vpack.c.b16 %v1354, %v1348
      %v1985 = vpack.c.b16 %v1355, %v1349
      %v1986 = vpack.c.b16 %v1362, %v1356
      %v1987 = vpack.c.b16 %v1363, %v1357
      %v1988 = vpack.c.b16 %v1364, %v1358
      %v1989 = vpack.c.b16 %v1365, %v1359
      %v1990 = vpack.c.b16 %v1366, %v1360
      %v1991 = vpack.c.b16 %v1367, %v1361
      %v1992 = vpack.c.b16 %v1374, %v1368
      %v1993 = vpack.c.b16 %v1375, %v1369
      %v1994 = vpack.c.b16 %v1376, %v1370
      %v1995 = vpack.c.b16 %v1377, %v1371
      %v1996 = vpack.c.b16 %v1378, %v1372
      %v1997 = vpack.c.b16 %v1379, %v1373
      %v1998 = vpack.c.b16 %v1386, %v1380
      %v1999 = vpack.c.b16 %v1387, %v1381
      %v2000 = vpack.c.b16 %v1388, %v1382
      %v2001 = vpack.c.b16 %v1389, %v1383
      %v2002 = vpack.c.b16 %v1390, %v1384
      %v2003 = vpack.c.b16 %v1391, %v1385
      %v2004 = vpack.c.b16 %v1398, %v1392
      %v2005 = vpack.c.b16 %v1399, %v1393
      %v2006 = vpack.c.b16 %v1400, %v1394
      %v2007 = vpack.c.b16 %v1401, %v1395
      %v2008 = vpack.c.b16 %v1402, %v1396
      %v2009 = vpack.c.b16 %v1403, %v1397
      %v2010 = vpack.c.b16 %v1410, %v1404
      %v2011 = vpack.c.b16 %v1411, %v1405
      %v2012 = vpack.c.b16 %v1412, %v1406
      %v2013 = vpack.c.b16 %v1413, %v1407
      %v2014 = vpack.c.b16 %v1414, %v1408
      %v2015 = vpack.c.b16 %v1415, %v1409
      %v2016 = vpack.c.b16 %v1422, %v1416
      %v2017 = vpack.c.b16 %v1423, %v1417
      %v2018 = vpack.c.b16 %v1424, %v1418
      %v2019 = vpack.c.b16 %v1425, %v1419
      %v2020 = vpack.c.b16 %v1426, %v1420
      %v2021 = vpack.c.b16 %v1427, %v1421
      %v2022 = vpack.c.b16 %v1434, %v1428
      %v2023 = vpack.c.b16 %v1435, %v1429
      %v2024 = vpack.c.b16 %v1436, %v1430
      %v2025 = vpack.c.b16 %v1437, %v1431
      %v2026 = vpack.c.b16 %v1438, %v1432
      %v2027 = vpack.c.b16 %v1439, %v1433
      %v2028 = vpack.c.b16 %v1446, %v1440
      %v2029 = vpack.c.b16 %v1447, %v1441
      %v2030 = vpack.c.b16 %v1448, %v1442
      %v2031 = vpack.c.b16 %v1449, %v1443
      %v2032 = vpack.c.b16 %v1450, %v1444
      %v2033 = vpack.c.b16 %v1451, %v1445
      %v2034 = vpack.c.b16 %v1458, %v1452
      %v2035 = vpack.c.b16 %v1459, %v1453
      %v2036 = vpack.c.b16 %v1460, %v1454
      %v2037 = vpack.c.b16 %v1461, %v1455
      %v2038 = vpack.c.b16 %v1462, %v1456
      %v2039 = vpack.c.b16 %v1463, %v1457
      %v2040 = vpack.c.b16 %v1470, %v1464
      %v2041 = vpack.c.b16 %v1471, %v1465
      %v2042 = vpack.c.b16 %v1472, %v1466
      %v2043 = vpack.c.b16 %v1473, %v1467
      %v2044 = vpack.c.b16 %v1474, %v1468
      %v2045 = vpack.c.b16 %v1475, %v1469
      %v2046 = vpack.c.b16 %v1482, %v1476
      %v2047 = vpack.c.b16 %v1483, %v1477
      %v2048 = vpack.c.b16 %v1484, %v1478
      %v2049 = vpack.c.b16 %v1485, %v1479
      %v2050 = vpack.c.b16 %v1486, %v1480
      %v2051 = vpack.c.b16 %v1487, %v1481
      %v2052 = vpack.c.b16 %v1494, %v1488
      %v2053 = vpack.c.b16 %v1495, %v1489
      %v2054 = vpack.c.b16 %v1496, %v1490
      %v2055 = vpack.c.b16 %v1497, %v1491
      %v2056 = vpack.c.b16 %v1498, %v1492
      %v2057 = vpack.c.b16 %v1499, %v1493
      %v2058 = vpack.c.b16 %v1506, %v1500
      %v2059 = vpack.c.b16 %v1507, %v1501
      %v2060 = vpack.c.b16 %v1508, %v1502
      %v2061 = vpack.c.b16 %v1509, %v1503
      %v2062 = vpack.c.b16 %v1510, %v1504
      %v2063 = vpack.c.b16 %v1511, %v1505
      %v2064 = vpack.c.b16 %v1518, %v1512
      %v2065 = vpack.c.b16 %v1519, %v1513
      %v2066 = vpack.c.b16 %v1520, %v1514
      %v2067 = vpack.c.b16 %v1521, %v1515
      %v2068 = vpack.c.b16 %v1522, %v1516
      %v2069 = vpack.c.b16 %v1523, %v1517
      %v2070 = vpack.c.b16 %v1530, %v1524
      %v2071 = vpack.c.b16 %v1531, %v1525
      %v2072 = vpack.c.b16 %v1532, %v1526
      %v2073 = vpack.c.b16 %v1533, %v1527
      %v2074 = vpack.c.b16 %v1534, %v1528
      %v2075 = vpack.c.b16 %v1535, %v1529
      %v2076 = vpack.c.b16 %v1542, %v1536
      %v2077 = vpack.c.b16 %v1543, %v1537
      %v2078 = vpack.c.b16 %v1544, %v1538
      %v2079 = vpack.c.b16 %v1545, %v1539
      %v2080 = vpack.c.b16 %v1546, %v1540
      %v2081 = vpack.c.b16 %v1547, %v1541
      %v2082 = vpack.c.b16 %v1554, %v1548
      %v2083 = vpack.c.b16 %v1555, %v1549
      %v2084 = vpack.c.b16 %v1556, %v1550
      %v2085 = vpack.c.b16 %v1557, %v1551
      %v2086 = vpack.c.b16 %v1558, %v1552
      %v2087 = vpack.c.b16 %v1559, %v1553
      %v2088 = vpack.c.b16 %v1566, %v1560
      %v2089 = vpack.c.b16 %v1567, %v1561
      %v2090 = vpack.c.b16 %v1568, %v1562
      %v2091 = vpack.c.b16 %v1569, %v1563
      %v2092 = vpack.c.b16 %v1570, %v1564
      %v2093 = vpack.c.b16 %v1571, %v1565
      %v2094 = vpack.c.b16 %v1578, %v1572
      %v2095 = vpack.c.b16 %v1579, %v1573
      %v2096 = vpack.c.b16 %v1580, %v1574
      %v2097 = vpack.c.b16 %v1581, %v1575
      %v2098 = vpack.c.b16 %v1582, %v1576
      %v2099 = vpack.c.b16 %v1583, %v1577
      %v2100 = vpack.c.b16 %v1590, %v1584
      %v2101 = vpack.c.b16 %v1591, %v1585
      %v2102 = vpack.c.b16 %v1592, %v1586
      %v2103 = vpack.c.b16 %v1593, %v1587
      %v2104 = vpack.c.b16 %v1594, %v1588
      %v2105 = vpack.c.b16 %v1595, %v1589
      %v2106 = vpack.c.b16 %v1602, %v1596
      %v2107 = vpack.c.b16 %v1603, %v1597
      %v2108 = vpack.c.b16 %v1604, %v1598
      %v2109 = vpack.c.b16 %v1605, %v1599
      %v2110 = vpack.c.b16 %v1606, %v1600
      %v2111 = vpack.c.b16 %v1607, %v1601
      %v2112 = vpack.c.b16 %v1614, %v1608
      %v2113 = vpack.c.b16 %v1615, %v1609
      %v2114 = vpack.c.b16 %v1616, %v1610
      %v2115 = vpack.c.b16 %v1617, %v1611
      %v2116 = vpack.c.b16 %v1618, %v1612
      %v2117 = vpack.c.b16 %v1619, %v1613
      %v2118 = vpack.c.b16 %v1626, %v1620
      %v2119 = vpack.c.b16 %v1627, %v1621
      %v2120 = vpack.c.b16 %v1628, %v1622
      %v2121 = vpack.c.b16 %v1629, %v1623
      %v2122 = vpack.c.b16 %v1630, %v1624
      %v2123 = vpack.c.b16 %v1631, %v1625
      %v2124 = vpack.c.b16 %v1638, %v1632
      %v2125 = vpack.c.b16 %v1639, %v1633
      %v2126 = vpack.c.b16 %v1640, %v1634
      %v2127 = vpack.c.b16 %v1641, %v1635
      %v2128 = vpack.c.b16 %v1642, %v1636
      %v2129 = vpack.c.b16 %v1643, %v1637
      %v2130 = vpack.c.b16 %v1650, %v1644
      %v2131 = vpack.c.b16 %v1651, %v1645
      %v2132 = vpack.c.b16 %v1652, %v1646
      %v2133 = vpack.c.b16 %v1653, %v1647
      %v2134 = vpack.c.b16 %v1654, %v1648
      %v2135 = vpack.c.b16 %v1655, %v1649
      %v2136 = vpack.c.b16 %v1662, %v1656
      %v2137 = vpack.c.b16 %v1663, %v1657
      %v2138 = vpack.c.b16 %v1664, %v1658
      %v2139 = vpack.c.b16 %v1665, %v1659
      %v2140 = vpack.c.b16 %v1666, %v1660
      %v2141 = vpack.c.b16 %v1667, %v1661
      %v2142 = vpack.c.b16 %v1674, %v1668
      %v2143 = vpack.c.b16 %v1675, %v1669
      %v2144 = vpack.c.b16 %v1676, %v1670
      %v2145 = vpack.c.b16 %v1677, %v1671
      %v2146 = vpack.c.b16 %v1678, %v1672
      %v2147 = vpack.c.b16 %v1679, %v1673
      %v2148 = vpack.c.b16 %v1686, %v1680
      %v2149 = vpack.c.b16 %v1687, %v1681
      %v2150 = vpack.c.b16 %v1688, %v1682
      %v2151 = vpack.c.b16 %v1689, %v1683
      %v2152 = vpack.c.b16 %v1690, %v1684
      %v2153 = vpack.c.b16 %v1691, %v1685
      %v2154 = vpack.c.b16 %v1698, %v1692
      %v2155 = vpack.c.b16 %v1699, %v1693
      %v2156 = vpack.c.b16 %v1700, %v1694
      %v2157 = vpack.c.b16 %v1701, %v1695
      %v2158 = vpack.c.b16 %v1702, %v1696
      %v2159 = vpack.c.b16 %v1703, %v1697
      %v2160 = vpack.c.b16 %v1710, %v1704
      %v2161 = vpack.c.b16 %v1711, %v1705
      %v2162 = vpack.c.b16 %v1712, %v1706
      %v2163 = vpack.c.b16 %v1713, %v1707
      %v2164 = vpack.c.b16 %v1714, %v1708
      %v2165 = vpack.c.b16 %v1715, %v1709
      %v2166 = vpack.c.b16 %v1722, %v1716
      %v2167 = vpack.c.b16 %v1723, %v1717
      %v2168 = vpack.c.b16 %v1724, %v1718
      %v2169 = vpack.c.b16 %v1725, %v1719
      %v2170 = vpack.c.b16 %v1726, %v1720
      %v2171 = vpack.c.b16 %v1727, %v1721
      %v2172 = vpack.c.b16 %v1734, %v1728
      %v2173 = vpack.c.b16 %v1735, %v1729
      %v2174 = vpack.c.b16 %v1736, %v1730
      %v2175 = vpack.c.b16 %v1737, %v1731
      %v2176 = vpack.c.b16 %v1738, %v1732
      %v2177 = vpack.c.b16 %v1739, %v1733
      %v2178 = vpack.c.b16 %v1746, %v1740
      %v2179 = vpack.c.b16 %v1747, %v1741
      %v2180 = vpack.c.b16 %v1748, %v1742
      %v2181 = vpack.c.b16 %v1749, %v1743
      %v2182 = vpack.c.b16 %v1750, %v1744
      %v2183 = vpack.c.b16 %v1751, %v1745
      %v2184 = vpack.c.b16 %v1758, %v1752
      %v2185 = vpack.c.b16 %v1759, %v1753
      %v2186 = vpack.c.b16 %v1760, %v1754
      %v2187 = vpack.c.b16 %v1761, %v1755
      %v2188 = vpack.c.b16 %v1762, %v1756
      %v2189 = vpack.c.b16 %v1763, %v1757
      %v2190 = vpack.c.b16 %v1770, %v1764
      %v2191 = vpack.c.b16 %v1771, %v1765
      %v2192 = vpack.c.b16 %v1772, %v1766
      %v2193 = vpack.c.b16 %v1773, %v1767
      %v2194 = vpack.c.b16 %v1774, %v1768
      %v2195 = vpack.c.b16 %v1775, %v1769
      %v2196 = vpack.c.b16 %v1782, %v1776
      %v2197 = vpack.c.b16 %v1783, %v1777
      %v2198 = vpack.c.b16 %v1784, %v1778
      %v2199 = vpack.c.b16 %v1785, %v1779
      %v2200 = vpack.c.b16 %v1786, %v1780
      %v2201 = vpack.c.b16 %v1787, %v1781
      %v2202 = vpack.c.b16 %v1794, %v1788
      %v2203 = vpack.c.b16 %v1795, %v1789
      %v2204 = vpack.c.b16 %v1796, %v1790
      %v2205 = vpack.c.b16 %v1797, %v1791
      %v2206 = vpack.c.b16 %v1798, %v1792
      %v2207 = vpack.c.b16 %v1799, %v1793
      %v2208 = vpack.c.b16 %v1806, %v1800
      %v2209 = vpack.c.b16 %v1807, %v1801
      %v2210 = vpack.c.b16 %v1808, %v1802
      %v2211 = vpack.c.b16 %v1809, %v1803
      %v2212 = vpack.c.b16 %v1810, %v1804
      %v2213 = vpack.c.b16 %v1811, %v1805
      %v2214 = vpack.c.b16 %v1818, %v1812
      %v2215 = vpack.c.b16 %v1819, %v1813
      %v2216 = vpack.c.b16 %v1820, %v1814
      %v2217 = vpack.c.b16 %v1821, %v1815
      %v2218 = vpack.c.b16 %v1822, %v1816
      %v2219 = vpack.c.b16 %v1823, %v1817
      %v2220 = vpack.c.b16 %v1830, %v1824
      %v2221 = vpack.c.b16 %v1831, %v1825
      %v2222 = vpack.c.b16 %v1832, %v1826
      %v2223 = vpack.c.b16 %v1833, %v1827
      %v2224 = vpack.c.b16 %v1834, %v1828
      %v2225 = vpack.c.b16 %v1835, %v1829
      %v2226 = vpack.c.b16 %v1842, %v1836
      %v2227 = vpack.c.b16 %v1843, %v1837
      %v2228 = vpack.c.b16 %v1844, %v1838
      %v2229 = vpack.c.b16 %v1845, %v1839
      %v2230 = vpack.c.b16 %v1846, %v1840
      %v2231 = vpack.c.b16 %v1847, %v1841
      %v2633 = vunpack.c.l.b16 %v611
      %v2634 = vunpack.c.l.b16 %v612
      %v2635 = vunpack.c.l.b16 %v613
      %v2636 = vunpack.c.l.b16 %v614
      %v2637 = vunpack.c.l.b16 %v615
      %v2638 = vunpack.c.l.b16 %v616
      %v2639 = vunpack.c.l.b16 %v617
      %v2640 = vunpack.c.l.b16 %v618
      %v2641 = vunpack.c.l.b16 %v619
      %v2642 = vunpack.c.l.b16 %v620
      %v2643 = vunpack.c.l.b16 %v621
      %v2644 = vunpack.c.l.b16 %v622
      %v2645 = vunpack.c.l.b16 %v623
      %v2646 = vunpack.c.l.b16 %v624
      %v2647 = vunpack.c.l.b16 %v625
      %v2648 = vunpack.c.l.b16 %v626
      %v2649 = vunpack.c.l.b16 %v627
      %v2650 = vunpack.c.l.b16 %v628
      %v2651 = vunpack.c.l.b16 %v629
      %v2652 = vunpack.c.l.b16 %v630
      %v2653 = vunpack.c.l.b16 %v631
      %v2654 = vunpack.c.l.b16 %v632
      %v2655 = vunpack.c.l.b16 %v633
      %v2656 = vunpack.c.l.b16 %v634
      %v2657 = vunpack.c.l.b16 %v635
      %v2658 = vunpack.c.l.b16 %v636
      %v2659 = vunpack.c.l.b16 %v637
      %v2660 = vunpack.c.l.b16 %v638
      %v2661 = vunpack.c.l.b16 %v639
      %v2662 = vunpack.c.l.b16 %v640
      %v2663 = vunpack.c.l.b16 %v641
      %v2664 = vunpack.c.l.b16 %v642
      %v2665 = vunpack.c.l.b16 %v643
      %v2666 = vunpack.c.l.b16 %v644
      %v2667 = vunpack.c.l.b16 %v645
      %v2668 = vunpack.c.l.b16 %v646
      %v2669 = vunpack.c.l.b16 %v647
      %v2670 = vunpack.c.l.b16 %v648
      %v2671 = vunpack.c.l.b16 %v649
      %v2672 = vunpack.c.l.b16 %v650
      %v2673 = vunpack.c.l.b16 %v651
      %v2674 = vunpack.c.l.b16 %v652
      %v2675 = vunpack.c.l.b16 %v653
      %v2676 = vunpack.c.l.b16 %v654
      %v2677 = vunpack.c.l.b16 %v655
      %v2678 = vunpack.c.l.b16 %v656
      %v2679 = vunpack.c.l.b16 %v657
      %v2680 = vunpack.c.l.b16 %v658
      %v2681 = vunpack.c.l.b16 %v659
      %v2682 = vunpack.c.l.b16 %v660
      %v2683 = vunpack.c.l.b16 %v661
      %v2684 = vunpack.c.l.b16 %v662
      %v2685 = vunpack.c.l.b16 %v663
      %v2686 = vunpack.c.l.b16 %v664
      %v2687 = vunpack.c.l.b16 %v665
      %v2688 = vunpack.c.l.b16 %v666
      %v2689 = vunpack.c.l.b16 %v667
      %v2690 = vunpack.c.l.b16 %v668
      %v2691 = vunpack.c.l.b16 %v669
      %v2692 = vunpack.c.l.b16 %v670
      %v2693 = vunpack.c.l.b16 %v671
      %v2694 = vunpack.c.l.b16 %v672
      %v2695 = vunpack.c.l.b16 %v673
      %v2696 = vunpack.c.l.b16 %v674
      %v2697 = vunpack.c.l.b16 %v675
      %v2698 = vunpack.c.l.b16 %v676
      %v2699 = vunpack.c.l.b16 %v677
      %v2700 = vunpack.c.l.b16 %v678
      %v2701 = vunpack.c.l.b16 %v679
      %v2702 = vunpack.c.l.b16 %v680
      %v2703 = vunpack.c.l.b16 %v681
      %v2704 = vunpack.c.l.b16 %v682
      %v2705 = vunpack.c.l.b16 %v683
      %v2706 = vunpack.c.l.b16 %v684
      %v2707 = vunpack.c.l.b16 %v685
      %v2708 = vunpack.c.l.b16 %v686
      %v2709 = vunpack.c.l.b16 %v687
      %v2710 = vunpack.c.l.b16 %v688
      %v2711 = vunpack.c.l.b16 %v689
      %v2712 = vunpack.c.l.b16 %v690
      %v2713 = vunpack.c.l.b16 %v691
      %v2714 = vpack.c.b16 %v2634, %v2633
      %v2715 = vpack.c.b16 %v2636, %v2635
      %v2716 = vpack.c.b16 %v2638, %v2637
      %v2717 = vpack.c.b16 %v2640, %v2639
      %v2718 = vpack.c.b16 %v2642, %v2641
      %v2719 = vpack.c.b16 %v2644, %v2643
      %v2720 = vpack.c.b16 %v2646, %v2645
      %v2721 = vpack.c.b16 %v2648, %v2647
      %v2722 = vpack.c.b16 %v2650, %v2649
      %v2723 = vpack.c.b16 %v2652, %v2651
      %v2724 = vpack.c.b16 %v2654, %v2653
      %v2725 = vpack.c.b16 %v2656, %v2655
      %v2726 = vpack.c.b16 %v2658, %v2657
      %v2727 = vpack.c.b16 %v2660, %v2659
      %v2728 = vpack.c.b16 %v2662, %v2661
      %v2729 = vpack.c.b16 %v2664, %v2663
      %v2730 = vpack.c.b16 %v2666, %v2665
      %v2731 = vpack.c.b16 %v2668, %v2667
      %v2732 = vpack.c.b16 %v2670, %v2669
      %v2733 = vpack.c.b16 %v2672, %v2671
      %v2734 = vpack.c.b16 %v2674, %v2673
      %v2735 = vpack.c.b16 %v2676, %v2675
      %v2736 = vpack.c.b16 %v2678, %v2677
      %v2737 = vpack.c.b16 %v2680, %v2679
      %v2738 = vpack.c.b16 %v2682, %v2681
      %v2739 = vpack.c.b16 %v2684, %v2683
      %v2740 = vpack.c.b16 %v2686, %v2685
      %v2741 = vpack.c.b16 %v2688, %v2687
      %v2742 = vpack.c.b16 %v2690, %v2689
      %v2743 = vpack.c.b16 %v2692, %v2691
      %v2744 = vpack.c.b16 %v2694, %v2693
      %v2745 = vpack.c.b16 %v2696, %v2695
      %v2746 = vpack.c.b16 %v2698, %v2697
      %v2747 = vpack.c.b16 %v2700, %v2699
      %v2748 = vpack.c.b16 %v2702, %v2701
      %v2749 = vpack.c.b16 %v2704, %v2703
      %v2750 = vpack.c.b16 %v2706, %v2705
      %v2751 = vpack.c.b16 %v2708, %v2707
      %v2752 = vpack.c.b16 %v2710, %v2709
      %v2753 = vpack.c.b16 %v2712, %v2711
      %v2754 = vpack.c.b16 %v2713, %v2713
      %vm2795 = vcmask 64512
      %v2797 = vsel %vm2795, %v1853, 0
      %v2800 = vsel %vm2795, %v1859, 0
      %v2803 = vsel %vm2795, %v1865, 0
      %v2806 = vsel %vm2795, %v1871, 0
      %v2809 = vsel %vm2795, %v1877, 0
      %v2812 = vsel %vm2795, %v1883, 0
      %v2815 = vsel %vm2795, %v1889, 0
      %v2818 = vsel %vm2795, %v1895, 0
      %v2821 = vsel %vm2795, %v1901, 0
      %v2824 = vsel %vm2795, %v1907, 0
      %v2827 = vsel %vm2795, %v1913, 0
      %v2830 = vsel %vm2795, %v1919, 0
      %v2833 = vsel %vm2795, %v1925, 0
      %v2836 = vsel %vm2795, %v1931, 0
      %v2839 = vsel %vm2795, %v1937, 0
      %v2842 = vsel %vm2795, %v1943, 0
      %v2845 = vsel %vm2795, %v1949, 0
      %v2848 = vsel %vm2795, %v1955, 0
      %v2851 = vsel %vm2795, %v1961, 0
      %v2854 = vsel %vm2795, %v1967, 0
      %v2857 = vsel %vm2795, %v1973, 0
      %v2860 = vsel %vm2795, %v1979, 0
      %v2863 = vsel %vm2795, %v1985, 0
      %v2866 = vsel %vm2795, %v1991, 0
      %v2869 = vsel %vm2795, %v1997, 0
      %v2872 = vsel %vm2795, %v2003, 0
      %v2875 = vsel %vm2795, %v2009, 0
      %v2878 = vsel %vm2795, %v2015, 0
      %v2881 = vsel %vm2795, %v2021, 0
      %v2884 = vsel %vm2795, %v2027, 0
      %v2887 = vsel %vm2795, %v2033, 0
      %v2890 = vsel %vm2795, %v2039, 0
      %v2893 = vsel %vm2795, %v2045, 0
      %v2896 = vsel %vm2795, %v2051, 0
      %v2899 = vsel %vm2795, %v2057, 0
      %v2902 = vsel %vm2795, %v2063, 0
      %v2905 = vsel %vm2795, %v2069, 0
      %v2908 = vsel %vm2795, %v2075, 0
      %v2911 = vsel %vm2795, %v2081, 0
      %v2914 = vsel %vm2795, %v2087, 0
      %v2917 = vsel %vm2795, %v2093, 0
      %v2920 = vsel %vm2795, %v2099, 0
      %v2923 = vsel %vm2795, %v2105, 0
      %v2926 = vsel %vm2795, %v2111, 0
      %v2929 = vsel %vm2795, %v2117, 0
      %v2932 = vsel %vm2795, %v2123, 0
      %v2935 = vsel %vm2795, %v2129, 0
      %v2938 = vsel %vm2795, %v2135, 0
      %v2941 = vsel %vm2795, %v2141, 0
      %v2944 = vsel %vm2795, %v2147, 0
      %v2947 = vsel %vm2795, %v2153, 0
      %v2950 = vsel %vm2795, %v2159, 0
      %v2953 = vsel %vm2795, %v2165, 0
      %v2956 = vsel %vm2795, %v2171, 0
      %v2959 = vsel %vm2795, %v2177, 0
      %v2962 = vsel %vm2795, %v2183, 0
      %v2965 = vsel %vm2795, %v2189, 0
      %v2968 = vsel %vm2795, %v2195, 0
      %v2971 = vsel %vm2795, %v2201, 0
      %v2974 = vsel %vm2795, %v2207, 0
      %v2977 = vsel %vm2795, %v2213, 0
      %v2980 = vsel %vm2795, %v2219, 0
      %v2983 = vsel %vm2795, %v2225, 0
      %v2986 = vsel %vm2795, %v2231, 0
      %vm2988 = vcmask 1043456
      %v2990 = vsel %vm2988, %v2754, 0
      %2992 = vmatpush.bf16.msra.mxu0 %v2721
      %2993 = vmatpush.bf16.msra.mxu0 %v2720
      %2994 = vmatpush.bf16.msra.mxu0 %v2719
      %2995 = vmatpush.bf16.msra.mxu0 %v2718
      %2996 = vmatpush.bf16.msra.mxu0 %v2717
      %2997 = vmatpush.bf16.msra.mxu0 %v2716
      %2998 = vmatpush.bf16.msra.mxu0 %v2715
      %2999 = vmatpush.bf16.msra.mxu0 %v2714
      %3000 = vmatmul.bf16.gmra.mxu0 %v1848
      %v3001 = vpop.f32.mrf.mxu0
      %v3002 = vadd.f32 %v694, %v3001
      %v3003 = vpop.f32.mrf.mxu0
      %v3004 = vadd.f32 %v694, %v3003
      %3005 = vmatmul.bf16.gmra.mxu0 %v1854
      %v3006 = vpop.f32.mrf.mxu0
      %v3007 = vadd.f32 %v694, %v3006
      %v3008 = vpop.f32.mrf.mxu0
      %v3009 = vadd.f32 %v694, %v3008
      %3010 = vmatmul.bf16.gmra.mxu0 %v1860
      %v3011 = vpop.f32.mrf.mxu0
      %v3012 = vadd.f32 %v694, %v3011
      %v3013 = vpop.f32.mrf.mxu0
      %v3014 = vadd.f32 %v694, %v3013
      %3015 = vmatmul.bf16.gmra.mxu0 %v1866
      %v3016 = vpop.f32.mrf.mxu0
      %v3017 = vadd.f32 %v694, %v3016
      %v3018 = vpop.f32.mrf.mxu0
      %v3019 = vadd.f32 %v694, %v3018
      %3020 = vmatmul.bf16.gmra.mxu0 %v1872
      %v3021 = vpop.f32.mrf.mxu0
      %v3022 = vadd.f32 %v694, %v3021
      %v3023 = vpop.f32.mrf.mxu0
      %v3024 = vadd.f32 %v694, %v3023
      %3025 = vmatmul.bf16.gmra.mxu0 %v1878
      %v3026 = vpop.f32.mrf.mxu0
      %v3027 = vadd.f32 %v694, %v3026
      %v3028 = vpop.f32.mrf.mxu0
      %v3029 = vadd.f32 %v694, %v3028
      %3030 = vmatmul.bf16.gmra.mxu0 %v1884
      %v3031 = vpop.f32.mrf.mxu0
      %v3032 = vadd.f32 %v694, %v3031
      %v3033 = vpop.f32.mrf.mxu0
      %v3034 = vadd.f32 %v694, %v3033
      %3035 = vmatmul.bf16.gmra.mxu0 %v1890
      %v3036 = vpop.f32.mrf.mxu0
      %v3037 = vadd.f32 %v694, %v3036
      %v3038 = vpop.f32.mrf.mxu0
      %v3039 = vadd.f32 %v694, %v3038
      %3040 = vmatmul.bf16.gmra.mxu0 %v1896
      %v3041 = vpop.f32.mrf.mxu0
      %v3042 = vadd.f32 %v694, %v3041
      %v3043 = vpop.f32.mrf.mxu0
      %v3044 = vadd.f32 %v694, %v3043
      %3045 = vmatmul.bf16.gmra.mxu0 %v1902
      %v3046 = vpop.f32.mrf.mxu0
      %v3047 = vadd.f32 %v694, %v3046
      %v3048 = vpop.f32.mrf.mxu0
      %v3049 = vadd.f32 %v694, %v3048
      %3050 = vmatmul.bf16.gmra.mxu0 %v1908
      %v3051 = vpop.f32.mrf.mxu0
      %v3052 = vadd.f32 %v694, %v3051
      %v3053 = vpop.f32.mrf.mxu0
      %v3054 = vadd.f32 %v694, %v3053
      %3055 = vmatmul.bf16.gmra.mxu0 %v1914
      %v3056 = vpop.f32.mrf.mxu0
      %v3057 = vadd.f32 %v694, %v3056
      %v3058 = vpop.f32.mrf.mxu0
      %v3059 = vadd.f32 %v694, %v3058
      %3060 = vmatmul.bf16.gmra.mxu0 %v1920
      %v3061 = vpop.f32.mrf.mxu0
      %v3062 = vadd.f32 %v694, %v3061
      %v3063 = vpop.f32.mrf.mxu0
      %v3064 = vadd.f32 %v694, %v3063
      %3065 = vmatmul.bf16.gmra.mxu0 %v1926
      %v3066 = vpop.f32.mrf.mxu0
      %v3067 = vadd.f32 %v694, %v3066
      %v3068 = vpop.f32.mrf.mxu0
      %v3069 = vadd.f32 %v694, %v3068
      %3070 = vmatmul.bf16.gmra.mxu0 %v1932
      %v3071 = vpop.f32.mrf.mxu0
      %v3072 = vadd.f32 %v694, %v3071
      %v3073 = vpop.f32.mrf.mxu0
      %v3074 = vadd.f32 %v694, %v3073
      %3075 = vmatmul.bf16.gmra.mxu0 %v1938
      %v3076 = vpop.f32.mrf.mxu0
      %v3077 = vadd.f32 %v694, %v3076
      %v3078 = vpop.f32.mrf.mxu0
      %v3079 = vadd.f32 %v694, %v3078
      %3080 = vmatmul.bf16.gmra.mxu0 %v1944
      %v3081 = vpop.f32.mrf.mxu0
      %v3082 = vadd.f32 %v694, %v3081
      %v3083 = vpop.f32.mrf.mxu0
      %v3084 = vadd.f32 %v694, %v3083
      %3085 = vmatmul.bf16.gmra.mxu0 %v1950
      %v3086 = vpop.f32.mrf.mxu0
      %v3087 = vadd.f32 %v694, %v3086
      %v3088 = vpop.f32.mrf.mxu0
      %v3089 = vadd.f32 %v694, %v3088
      %3090 = vmatmul.bf16.gmra.mxu0 %v1956
      %v3091 = vpop.f32.mrf.mxu0
      %v3092 = vadd.f32 %v694, %v3091
      %v3093 = vpop.f32.mrf.mxu0
      %v3094 = vadd.f32 %v694, %v3093
      %3095 = vmatmul.bf16.gmra.mxu0 %v1962
      %v3096 = vpop.f32.mrf.mxu0
      %v3097 = vadd.f32 %v694, %v3096
      %v3098 = vpop.f32.mrf.mxu0
      %v3099 = vadd.f32 %v694, %v3098
      %3100 = vmatmul.bf16.gmra.mxu0 %v1968
      %v3101 = vpop.f32.mrf.mxu0
      %v3102 = vadd.f32 %v694, %v3101
      %v3103 = vpop.f32.mrf.mxu0
      %v3104 = vadd.f32 %v694, %v3103
      %3105 = vmatmul.bf16.gmra.mxu0 %v1974
      %v3106 = vpop.f32.mrf.mxu0
      %v3107 = vadd.f32 %v694, %v3106
      %v3108 = vpop.f32.mrf.mxu0
      %v3109 = vadd.f32 %v694, %v3108
      %3110 = vmatmul.bf16.gmra.mxu0 %v1980
      %v3111 = vpop.f32.mrf.mxu0
      %v3112 = vadd.f32 %v694, %v3111
      %v3113 = vpop.f32.mrf.mxu0
      %v3114 = vadd.f32 %v694, %v3113
      %3115 = vmatmul.bf16.gmra.mxu0 %v1986
      %v3116 = vpop.f32.mrf.mxu0
      %v3117 = vadd.f32 %v694, %v3116
      %v3118 = vpop.f32.mrf.mxu0
      %v3119 = vadd.f32 %v694, %v3118
      %3120 = vmatmul.bf16.gmra.mxu0 %v1992
      %v3121 = vpop.f32.mrf.mxu0
      %v3122 = vadd.f32 %v694, %v3121
      %v3123 = vpop.f32.mrf.mxu0
      %v3124 = vadd.f32 %v694, %v3123
      %3125 = vmatmul.bf16.gmra.mxu0 %v1998
      %v3126 = vpop.f32.mrf.mxu0
      %v3127 = vadd.f32 %v694, %v3126
      %v3128 = vpop.f32.mrf.mxu0
      %v3129 = vadd.f32 %v694, %v3128
      %3130 = vmatmul.bf16.gmra.mxu0 %v2004
      %v3131 = vpop.f32.mrf.mxu0
      %v3132 = vadd.f32 %v694, %v3131
      %v3133 = vpop.f32.mrf.mxu0
      %v3134 = vadd.f32 %v694, %v3133
      %3135 = vmatmul.bf16.gmra.mxu0 %v2010
      %v3136 = vpop.f32.mrf.mxu0
      %v3137 = vadd.f32 %v694, %v3136
      %v3138 = vpop.f32.mrf.mxu0
      %v3139 = vadd.f32 %v694, %v3138
      %3140 = vmatmul.bf16.gmra.mxu0 %v2016
      %v3141 = vpop.f32.mrf.mxu0
      %v3142 = vadd.f32 %v694, %v3141
      %v3143 = vpop.f32.mrf.mxu0
      %v3144 = vadd.f32 %v694, %v3143
      %3145 = vmatmul.bf16.gmra.mxu0 %v2022
      %v3146 = vpop.f32.mrf.mxu0
      %v3147 = vadd.f32 %v694, %v3146
      %v3148 = vpop.f32.mrf.mxu0
      %v3149 = vadd.f32 %v694, %v3148
      %3150 = vmatmul.bf16.gmra.mxu0 %v2028
      %v3151 = vpop.f32.mrf.mxu0
      %v3152 = vadd.f32 %v694, %v3151
      %v3153 = vpop.f32.mrf.mxu0
      %v3154 = vadd.f32 %v694, %v3153
      %3155 = vmatmul.bf16.gmra.mxu0 %v2034
      %v3156 = vpop.f32.mrf.mxu0
      %v3157 = vadd.f32 %v694, %v3156
      %v3158 = vpop.f32.mrf.mxu0
      %v3159 = vadd.f32 %v694, %v3158
      %3160 = vmatmul.bf16.gmra.mxu0 %v2040
      %v3161 = vpop.f32.mrf.mxu0
      %v3162 = vadd.f32 %v694, %v3161
      %v3163 = vpop.f32.mrf.mxu0
      %v3164 = vadd.f32 %v694, %v3163
      %3165 = vmatmul.bf16.gmra.mxu0 %v2046
      %v3166 = vpop.f32.mrf.mxu0
      %v3167 = vadd.f32 %v694, %v3166
      %v3168 = vpop.f32.mrf.mxu0
      %v3169 = vadd.f32 %v694, %v3168
      %3170 = vmatmul.bf16.gmra.mxu0 %v2052
      %v3171 = vpop.f32.mrf.mxu0
      %v3172 = vadd.f32 %v694, %v3171
      %v3173 = vpop.f32.mrf.mxu0
      %v3174 = vadd.f32 %v694, %v3173
      %3175 = vmatmul.bf16.gmra.mxu0 %v2058
      %v3176 = vpop.f32.mrf.mxu0
      %v3177 = vadd.f32 %v694, %v3176
      %v3178 = vpop.f32.mrf.mxu0
      %v3179 = vadd.f32 %v694, %v3178
      %3180 = vmatmul.bf16.gmra.mxu0 %v2064
      %v3181 = vpop.f32.mrf.mxu0
      %v3182 = vadd.f32 %v694, %v3181
      %v3183 = vpop.f32.mrf.mxu0
      %v3184 = vadd.f32 %v694, %v3183
      %3185 = vmatmul.bf16.gmra.mxu0 %v2070
      %v3186 = vpop.f32.mrf.mxu0
      %v3187 = vadd.f32 %v694, %v3186
      %v3188 = vpop.f32.mrf.mxu0
      %v3189 = vadd.f32 %v694, %v3188
      %3190 = vmatmul.bf16.gmra.mxu0 %v2076
      %v3191 = vpop.f32.mrf.mxu0
      %v3192 = vadd.f32 %v694, %v3191
      %v3193 = vpop.f32.mrf.mxu0
      %v3194 = vadd.f32 %v694, %v3193
      %3195 = vmatmul.bf16.gmra.mxu0 %v2082
      %v3196 = vpop.f32.mrf.mxu0
      %v3197 = vadd.f32 %v694, %v3196
      %v3198 = vpop.f32.mrf.mxu0
      %v3199 = vadd.f32 %v694, %v3198
      %3200 = vmatmul.bf16.gmra.mxu0 %v2088
      %v3201 = vpop.f32.mrf.mxu0
      %v3202 = vadd.f32 %v694, %v3201
      %v3203 = vpop.f32.mrf.mxu0
      %v3204 = vadd.f32 %v694, %v3203
      %3205 = vmatmul.bf16.gmra.mxu0 %v2094
      %v3206 = vpop.f32.mrf.mxu0
      %v3207 = vadd.f32 %v694, %v3206
      %v3208 = vpop.f32.mrf.mxu0
      %v3209 = vadd.f32 %v694, %v3208
      %3210 = vmatmul.bf16.gmra.mxu0 %v2100
      %v3211 = vpop.f32.mrf.mxu0
      %v3212 = vadd.f32 %v694, %v3211
      %v3213 = vpop.f32.mrf.mxu0
      %v3214 = vadd.f32 %v694, %v3213
      %3215 = vmatmul.bf16.gmra.mxu0 %v2106
      %v3216 = vpop.f32.mrf.mxu0
      %v3217 = vadd.f32 %v694, %v3216
      %v3218 = vpop.f32.mrf.mxu0
      %v3219 = vadd.f32 %v694, %v3218
      %3220 = vmatmul.bf16.gmra.mxu0 %v2112
      %v3221 = vpop.f32.mrf.mxu0
      %v3222 = vadd.f32 %v694, %v3221
      %v3223 = vpop.f32.mrf.mxu0
      %v3224 = vadd.f32 %v694, %v3223
      %3225 = vmatmul.bf16.gmra.mxu0 %v2118
      %v3226 = vpop.f32.mrf.mxu0
      %v3227 = vadd.f32 %v694, %v3226
      %v3228 = vpop.f32.mrf.mxu0
      %v3229 = vadd.f32 %v694, %v3228
      %3230 = vmatmul.bf16.gmra.mxu0 %v2124
      %v3231 = vpop.f32.mrf.mxu0
      %v3232 = vadd.f32 %v694, %v3231
      %v3233 = vpop.f32.mrf.mxu0
      %v3234 = vadd.f32 %v694, %v3233
      %3235 = vmatmul.bf16.gmra.mxu0 %v2130
      %v3236 = vpop.f32.mrf.mxu0
      %v3237 = vadd.f32 %v694, %v3236
      %v3238 = vpop.f32.mrf.mxu0
      %v3239 = vadd.f32 %v694, %v3238
      %3240 = vmatmul.bf16.gmra.mxu0 %v2136
      %v3241 = vpop.f32.mrf.mxu0
      %v3242 = vadd.f32 %v694, %v3241
      %v3243 = vpop.f32.mrf.mxu0
      %v3244 = vadd.f32 %v694, %v3243
      %3245 = vmatmul.bf16.gmra.mxu0 %v2142
      %v3246 = vpop.f32.mrf.mxu0
      %v3247 = vadd.f32 %v694, %v3246
      %v3248 = vpop.f32.mrf.mxu0
      %v3249 = vadd.f32 %v694, %v3248
      %3250 = vmatmul.bf16.gmra.mxu0 %v2148
      %v3251 = vpop.f32.mrf.mxu0
      %v3252 = vadd.f32 %v694, %v3251
      %v3253 = vpop.f32.mrf.mxu0
      %v3254 = vadd.f32 %v694, %v3253
      %3255 = vmatmul.bf16.gmra.mxu0 %v2154
      %v3256 = vpop.f32.mrf.mxu0
      %v3257 = vadd.f32 %v694, %v3256
      %v3258 = vpop.f32.mrf.mxu0
      %v3259 = vadd.f32 %v694, %v3258
      %3260 = vmatmul.bf16.gmra.mxu0 %v2160
      %v3261 = vpop.f32.mrf.mxu0
      %v3262 = vadd.f32 %v694, %v3261
      %v3263 = vpop.f32.mrf.mxu0
      %v3264 = vadd.f32 %v694, %v3263
      %3265 = vmatmul.bf16.gmra.mxu0 %v2166
      %v3266 = vpop.f32.mrf.mxu0
      %v3267 = vadd.f32 %v694, %v3266
      %v3268 = vpop.f32.mrf.mxu0
      %v3269 = vadd.f32 %v694, %v3268
      %3270 = vmatmul.bf16.gmra.mxu0 %v2172
      %v3271 = vpop.f32.mrf.mxu0
      %v3272 = vadd.f32 %v694, %v3271
      %v3273 = vpop.f32.mrf.mxu0
      %v3274 = vadd.f32 %v694, %v3273
      %3275 = vmatmul.bf16.gmra.mxu0 %v2178
      %v3276 = vpop.f32.mrf.mxu0
      %v3277 = vadd.f32 %v694, %v3276
      %v3278 = vpop.f32.mrf.mxu0
      %v3279 = vadd.f32 %v694, %v3278
      %3280 = vmatmul.bf16.gmra.mxu0 %v2184
      %v3281 = vpop.f32.mrf.mxu0
      %v3282 = vadd.f32 %v694, %v3281
      %v3283 = vpop.f32.mrf.mxu0
      %v3284 = vadd.f32 %v694, %v3283
      %3285 = vmatmul.bf16.gmra.mxu0 %v2190
      %v3286 = vpop.f32.mrf.mxu0
      %v3287 = vadd.f32 %v694, %v3286
      %v3288 = vpop.f32.mrf.mxu0
      %v3289 = vadd.f32 %v694, %v3288
      %3290 = vmatmul.bf16.gmra.mxu0 %v2196
      %v3291 = vpop.f32.mrf.mxu0
      %v3292 = vadd.f32 %v694, %v3291
      %v3293 = vpop.f32.mrf.mxu0
      %v3294 = vadd.f32 %v694, %v3293
      %3295 = vmatmul.bf16.gmra.mxu0 %v2202
      %v3296 = vpop.f32.mrf.mxu0
      %v3297 = vadd.f32 %v694, %v3296
      %v3298 = vpop.f32.mrf.mxu0
      %v3299 = vadd.f32 %v694, %v3298
      %3300 = vmatmul.bf16.gmra.mxu0 %v2208
      %v3301 = vpop.f32.mrf.mxu0
      %v3302 = vadd.f32 %v694, %v3301
      %v3303 = vpop.f32.mrf.mxu0
      %v3304 = vadd.f32 %v694, %v3303
      %3305 = vmatmul.bf16.gmra.mxu0 %v2214
      %v3306 = vpop.f32.mrf.mxu0
      %v3307 = vadd.f32 %v694, %v3306
      %v3308 = vpop.f32.mrf.mxu0
      %v3309 = vadd.f32 %v694, %v3308
      %3310 = vmatmul.bf16.gmra.mxu0 %v2220
      %v3311 = vpop.f32.mrf.mxu0
      %v3312 = vadd.f32 %v694, %v3311
      %v3313 = vpop.f32.mrf.mxu0
      %v3314 = vadd.f32 %v694, %v3313
      %3315 = vmatmul.bf16.gmra.mxu0 %v2226
      %v3316 = vpop.f32.mrf.mxu0
      %v3317 = vadd.f32 %v694, %v3316
      %v3318 = vpop.f32.mrf.mxu0
      %v3319 = vadd.f32 %v694, %v3318
      %3320 = vdwg.mxu0
      %3321 = vmatpush.bf16.msra.mxu0 %v2729
      %3322 = vmatpush.bf16.msra.mxu0 %v2728
      %3323 = vmatpush.bf16.msra.mxu0 %v2727
      %3324 = vmatpush.bf16.msra.mxu0 %v2726
      %3325 = vmatpush.bf16.msra.mxu0 %v2725
      %3326 = vmatpush.bf16.msra.mxu0 %v2724
      %3327 = vmatpush.bf16.msra.mxu0 %v2723
      %3328 = vmatpush.bf16.msra.mxu0 %v2722
      %3329 = vmatmul.bf16.gmra.mxu0 %v1849
      %v3330 = vpop.f32.mrf.mxu0
      %v3331 = vadd.f32 %v3002, %v3330
      %v3332 = vpop.f32.mrf.mxu0
      %v3333 = vadd.f32 %v3004, %v3332
      %3334 = vmatmul.bf16.gmra.mxu0 %v1855
      %v3335 = vpop.f32.mrf.mxu0
      %v3336 = vadd.f32 %v3007, %v3335
      %v3337 = vpop.f32.mrf.mxu0
      %v3338 = vadd.f32 %v3009, %v3337
      %3339 = vmatmul.bf16.gmra.mxu0 %v1861
      %v3340 = vpop.f32.mrf.mxu0
      %v3341 = vadd.f32 %v3012, %v3340
      %v3342 = vpop.f32.mrf.mxu0
      %v3343 = vadd.f32 %v3014, %v3342
      %3344 = vmatmul.bf16.gmra.mxu0 %v1867
      %v3345 = vpop.f32.mrf.mxu0
      %v3346 = vadd.f32 %v3017, %v3345
      %v3347 = vpop.f32.mrf.mxu0
      %v3348 = vadd.f32 %v3019, %v3347
      %3349 = vmatmul.bf16.gmra.mxu0 %v1873
      %v3350 = vpop.f32.mrf.mxu0
      %v3351 = vadd.f32 %v3022, %v3350
      %v3352 = vpop.f32.mrf.mxu0
      %v3353 = vadd.f32 %v3024, %v3352
      %3354 = vmatmul.bf16.gmra.mxu0 %v1879
      %v3355 = vpop.f32.mrf.mxu0
      %v3356 = vadd.f32 %v3027, %v3355
      %v3357 = vpop.f32.mrf.mxu0
      %v3358 = vadd.f32 %v3029, %v3357
      %3359 = vmatmul.bf16.gmra.mxu0 %v1885
      %v3360 = vpop.f32.mrf.mxu0
      %v3361 = vadd.f32 %v3032, %v3360
      %v3362 = vpop.f32.mrf.mxu0
      %v3363 = vadd.f32 %v3034, %v3362
      %3364 = vmatmul.bf16.gmra.mxu0 %v1891
      %v3365 = vpop.f32.mrf.mxu0
      %v3366 = vadd.f32 %v3037, %v3365
      %v3367 = vpop.f32.mrf.mxu0
      %v3368 = vadd.f32 %v3039, %v3367
      %3369 = vmatmul.bf16.gmra.mxu0 %v1897
      %v3370 = vpop.f32.mrf.mxu0
      %v3371 = vadd.f32 %v3042, %v3370
      %v3372 = vpop.f32.mrf.mxu0
      %v3373 = vadd.f32 %v3044, %v3372
      %3374 = vmatmul.bf16.gmra.mxu0 %v1903
      %v3375 = vpop.f32.mrf.mxu0
      %v3376 = vadd.f32 %v3047, %v3375
      %v3377 = vpop.f32.mrf.mxu0
      %v3378 = vadd.f32 %v3049, %v3377
      %3379 = vmatmul.bf16.gmra.mxu0 %v1909
      %v3380 = vpop.f32.mrf.mxu0
      %v3381 = vadd.f32 %v3052, %v3380
      %v3382 = vpop.f32.mrf.mxu0
      %v3383 = vadd.f32 %v3054, %v3382
      %3384 = vmatmul.bf16.gmra.mxu0 %v1915
      %v3385 = vpop.f32.mrf.mxu0
      %v3386 = vadd.f32 %v3057, %v3385
      %v3387 = vpop.f32.mrf.mxu0
      %v3388 = vadd.f32 %v3059, %v3387
      %3389 = vmatmul.bf16.gmra.mxu0 %v1921
      %v3390 = vpop.f32.mrf.mxu0
      %v3391 = vadd.f32 %v3062, %v3390
      %v3392 = vpop.f32.mrf.mxu0
      %v3393 = vadd.f32 %v3064, %v3392
      %3394 = vmatmul.bf16.gmra.mxu0 %v1927
      %v3395 = vpop.f32.mrf.mxu0
      %v3396 = vadd.f32 %v3067, %v3395
      %v3397 = vpop.f32.mrf.mxu0
      %v3398 = vadd.f32 %v3069, %v3397
      %3399 = vmatmul.bf16.gmra.mxu0 %v1933
      %v3400 = vpop.f32.mrf.mxu0
      %v3401 = vadd.f32 %v3072, %v3400
      %v3402 = vpop.f32.mrf.mxu0
      %v3403 = vadd.f32 %v3074, %v3402
      %3404 = vmatmul.bf16.gmra.mxu0 %v1939
      %v3405 = vpop.f32.mrf.mxu0
      %v3406 = vadd.f32 %v3077, %v3405
      %v3407 = vpop.f32.mrf.mxu0
      %v3408 = vadd.f32 %v3079, %v3407
      %3409 = vmatmul.bf16.gmra.mxu0 %v1945
      %v3410 = vpop.f32.mrf.mxu0
      %v3411 = vadd.f32 %v3082, %v3410
      %v3412 = vpop.f32.mrf.mxu0
      %v3413 = vadd.f32 %v3084, %v3412
      %3414 = vmatmul.bf16.gmra.mxu0 %v1951
      %v3415 = vpop.f32.mrf.mxu0
      %v3416 = vadd.f32 %v3087, %v3415
      %v3417 = vpop.f32.mrf.mxu0
      %v3418 = vadd.f32 %v3089, %v3417
      %3419 = vmatmul.bf16.gmra.mxu0 %v1957
      %v3420 = vpop.f32.mrf.mxu0
      %v3421 = vadd.f32 %v3092, %v3420
      %v3422 = vpop.f32.mrf.mxu0
      %v3423 = vadd.f32 %v3094, %v3422
      %3424 = vmatmul.bf16.gmra.mxu0 %v1963
      %v3425 = vpop.f32.mrf.mxu0
      %v3426 = vadd.f32 %v3097, %v3425
      %v3427 = vpop.f32.mrf.mxu0
      %v3428 = vadd.f32 %v3099, %v3427
      %3429 = vmatmul.bf16.gmra.mxu0 %v1969
      %v3430 = vpop.f32.mrf.mxu0
      %v3431 = vadd.f32 %v3102, %v3430
      %v3432 = vpop.f32.mrf.mxu0
      %v3433 = vadd.f32 %v3104, %v3432
      %3434 = vmatmul.bf16.gmra.mxu0 %v1975
      %v3435 = vpop.f32.mrf.mxu0
      %v3436 = vadd.f32 %v3107, %v3435
      %v3437 = vpop.f32.mrf.mxu0
      %v3438 = vadd.f32 %v3109, %v3437
      %3439 = vmatmul.bf16.gmra.mxu0 %v1981
      %v3440 = vpop.f32.mrf.mxu0
      %v3441 = vadd.f32 %v3112, %v3440
      %v3442 = vpop.f32.mrf.mxu0
      %v3443 = vadd.f32 %v3114, %v3442
      %3444 = vmatmul.bf16.gmra.mxu0 %v1987
      %v3445 = vpop.f32.mrf.mxu0
      %v3446 = vadd.f32 %v3117, %v3445
      %v3447 = vpop.f32.mrf.mxu0
      %v3448 = vadd.f32 %v3119, %v3447
      %3449 = vmatmul.bf16.gmra.mxu0 %v1993
      %v3450 = vpop.f32.mrf.mxu0
      %v3451 = vadd.f32 %v3122, %v3450
      %v3452 = vpop.f32.mrf.mxu0
      %v3453 = vadd.f32 %v3124, %v3452
      %3454 = vmatmul.bf16.gmra.mxu0 %v1999
      %v3455 = vpop.f32.mrf.mxu0
      %v3456 = vadd.f32 %v3127, %v3455
      %v3457 = vpop.f32.mrf.mxu0
      %v3458 = vadd.f32 %v3129, %v3457
      %3459 = vmatmul.bf16.gmra.mxu0 %v2005
      %v3460 = vpop.f32.mrf.mxu0
      %v3461 = vadd.f32 %v3132, %v3460
      %v3462 = vpop.f32.mrf.mxu0
      %v3463 = vadd.f32 %v3134, %v3462
      %3464 = vmatmul.bf16.gmra.mxu0 %v2011
      %v3465 = vpop.f32.mrf.mxu0
      %v3466 = vadd.f32 %v3137, %v3465
      %v3467 = vpop.f32.mrf.mxu0
      %v3468 = vadd.f32 %v3139, %v3467
      %3469 = vmatmul.bf16.gmra.mxu0 %v2017
      %v3470 = vpop.f32.mrf.mxu0
      %v3471 = vadd.f32 %v3142, %v3470
      %v3472 = vpop.f32.mrf.mxu0
      %v3473 = vadd.f32 %v3144, %v3472
      %3474 = vmatmul.bf16.gmra.mxu0 %v2023
      %v3475 = vpop.f32.mrf.mxu0
      %v3476 = vadd.f32 %v3147, %v3475
      %v3477 = vpop.f32.mrf.mxu0
      %v3478 = vadd.f32 %v3149, %v3477
      %3479 = vmatmul.bf16.gmra.mxu0 %v2029
      %v3480 = vpop.f32.mrf.mxu0
      %v3481 = vadd.f32 %v3152, %v3480
      %v3482 = vpop.f32.mrf.mxu0
      %v3483 = vadd.f32 %v3154, %v3482
      %3484 = vmatmul.bf16.gmra.mxu0 %v2035
      %v3485 = vpop.f32.mrf.mxu0
      %v3486 = vadd.f32 %v3157, %v3485
      %v3487 = vpop.f32.mrf.mxu0
      %v3488 = vadd.f32 %v3159, %v3487
      %3489 = vmatmul.bf16.gmra.mxu0 %v2041
      %v3490 = vpop.f32.mrf.mxu0
      %v3491 = vadd.f32 %v3162, %v3490
      %v3492 = vpop.f32.mrf.mxu0
      %v3493 = vadd.f32 %v3164, %v3492
      %3494 = vmatmul.bf16.gmra.mxu0 %v2047
      %v3495 = vpop.f32.mrf.mxu0
      %v3496 = vadd.f32 %v3167, %v3495
      %v3497 = vpop.f32.mrf.mxu0
      %v3498 = vadd.f32 %v3169, %v3497
      %3499 = vmatmul.bf16.gmra.mxu0 %v2053
      %v3500 = vpop.f32.mrf.mxu0
      %v3501 = vadd.f32 %v3172, %v3500
      %v3502 = vpop.f32.mrf.mxu0
      %v3503 = vadd.f32 %v3174, %v3502
      %3504 = vmatmul.bf16.gmra.mxu0 %v2059
      %v3505 = vpop.f32.mrf.mxu0
      %v3506 = vadd.f32 %v3177, %v3505
      %v3507 = vpop.f32.mrf.mxu0
      %v3508 = vadd.f32 %v3179, %v3507
      %3509 = vmatmul.bf16.gmra.mxu0 %v2065
      %v3510 = vpop.f32.mrf.mxu0
      %v3511 = vadd.f32 %v3182, %v3510
      %v3512 = vpop.f32.mrf.mxu0
      %v3513 = vadd.f32 %v3184, %v3512
      %3514 = vmatmul.bf16.gmra.mxu0 %v2071
      %v3515 = vpop.f32.mrf.mxu0
      %v3516 = vadd.f32 %v3187, %v3515
      %v3517 = vpop.f32.mrf.mxu0
      %v3518 = vadd.f32 %v3189, %v3517
      %3519 = vmatmul.bf16.gmra.mxu0 %v2077
      %v3520 = vpop.f32.mrf.mxu0
      %v3521 = vadd.f32 %v3192, %v3520
      %v3522 = vpop.f32.mrf.mxu0
      %v3523 = vadd.f32 %v3194, %v3522
      %3524 = vmatmul.bf16.gmra.mxu0 %v2083
      %v3525 = vpop.f32.mrf.mxu0
      %v3526 = vadd.f32 %v3197, %v3525
      %v3527 = vpop.f32.mrf.mxu0
      %v3528 = vadd.f32 %v3199, %v3527
      %3529 = vmatmul.bf16.gmra.mxu0 %v2089
      %v3530 = vpop.f32.mrf.mxu0
      %v3531 = vadd.f32 %v3202, %v3530
      %v3532 = vpop.f32.mrf.mxu0
      %v3533 = vadd.f32 %v3204, %v3532
      %3534 = vmatmul.bf16.gmra.mxu0 %v2095
      %v3535 = vpop.f32.mrf.mxu0
      %v3536 = vadd.f32 %v3207, %v3535
      %v3537 = vpop.f32.mrf.mxu0
      %v3538 = vadd.f32 %v3209, %v3537
      %3539 = vmatmul.bf16.gmra.mxu0 %v2101
      %v3540 = vpop.f32.mrf.mxu0
      %v3541 = vadd.f32 %v3212, %v3540
      %v3542 = vpop.f32.mrf.mxu0
      %v3543 = vadd.f32 %v3214, %v3542
      %3544 = vmatmul.bf16.gmra.mxu0 %v2107
      %v3545 = vpop.f32.mrf.mxu0
      %v3546 = vadd.f32 %v3217, %v3545
      %v3547 = vpop.f32.mrf.mxu0
      %v3548 = vadd.f32 %v3219, %v3547
      %3549 = vmatmul.bf16.gmra.mxu0 %v2113
      %v3550 = vpop.f32.mrf.mxu0
      %v3551 = vadd.f32 %v3222, %v3550
      %v3552 = vpop.f32.mrf.mxu0
      %v3553 = vadd.f32 %v3224, %v3552
      %3554 = vmatmul.bf16.gmra.mxu0 %v2119
      %v3555 = vpop.f32.mrf.mxu0
      %v3556 = vadd.f32 %v3227, %v3555
      %v3557 = vpop.f32.mrf.mxu0
      %v3558 = vadd.f32 %v3229, %v3557
      %3559 = vmatmul.bf16.gmra.mxu0 %v2125
      %v3560 = vpop.f32.mrf.mxu0
      %v3561 = vadd.f32 %v3232, %v3560
      %v3562 = vpop.f32.mrf.mxu0
      %v3563 = vadd.f32 %v3234, %v3562
      %3564 = vmatmul.bf16.gmra.mxu0 %v2131
      %v3565 = vpop.f32.mrf.mxu0
      %v3566 = vadd.f32 %v3237, %v3565
      %v3567 = vpop.f32.mrf.mxu0
      %v3568 = vadd.f32 %v3239, %v3567
      %3569 = vmatmul.bf16.gmra.mxu0 %v2137
      %v3570 = vpop.f32.mrf.mxu0
      %v3571 = vadd.f32 %v3242, %v3570
      %v3572 = vpop.f32.mrf.mxu0
      %v3573 = vadd.f32 %v3244, %v3572
      %3574 = vmatmul.bf16.gmra.mxu0 %v2143
      %v3575 = vpop.f32.mrf.mxu0
      %v3576 = vadd.f32 %v3247, %v3575
      %v3577 = vpop.f32.mrf.mxu0
      %v3578 = vadd.f32 %v3249, %v3577
      %3579 = vmatmul.bf16.gmra.mxu0 %v2149
      %v3580 = vpop.f32.mrf.mxu0
      %v3581 = vadd.f32 %v3252, %v3580
      %v3582 = vpop.f32.mrf.mxu0
      %v3583 = vadd.f32 %v3254, %v3582
      %3584 = vmatmul.bf16.gmra.mxu0 %v2155
      %v3585 = vpop.f32.mrf.mxu0
      %v3586 = vadd.f32 %v3257, %v3585
      %v3587 = vpop.f32.mrf.mxu0
      %v3588 = vadd.f32 %v3259, %v3587
      %3589 = vmatmul.bf16.gmra.mxu0 %v2161
      %v3590 = vpop.f32.mrf.mxu0
      %v3591 = vadd.f32 %v3262, %v3590
      %v3592 = vpop.f32.mrf.mxu0
      %v3593 = vadd.f32 %v3264, %v3592
      %3594 = vmatmul.bf16.gmra.mxu0 %v2167
      %v3595 = vpop.f32.mrf.mxu0
      %v3596 = vadd.f32 %v3267, %v3595
      %v3597 = vpop.f32.mrf.mxu0
      %v3598 = vadd.f32 %v3269, %v3597
      %3599 = vmatmul.bf16.gmra.mxu0 %v2173
      %v3600 = vpop.f32.mrf.mxu0
      %v3601 = vadd.f32 %v3272, %v3600
      %v3602 = vpop.f32.mrf.mxu0
      %v3603 = vadd.f32 %v3274, %v3602
      %3604 = vmatmul.bf16.gmra.mxu0 %v2179
      %v3605 = vpop.f32.mrf.mxu0
      %v3606 = vadd.f32 %v3277, %v3605
      %v3607 = vpop.f32.mrf.mxu0
      %v3608 = vadd.f32 %v3279, %v3607
      %3609 = vmatmul.bf16.gmra.mxu0 %v2185
      %v3610 = vpop.f32.mrf.mxu0
      %v3611 = vadd.f32 %v3282, %v3610
      %v3612 = vpop.f32.mrf.mxu0
      %v3613 = vadd.f32 %v3284, %v3612
      %3614 = vmatmul.bf16.gmra.mxu0 %v2191
      %v3615 = vpop.f32.mrf.mxu0
      %v3616 = vadd.f32 %v3287, %v3615
      %v3617 = vpop.f32.mrf.mxu0
      %v3618 = vadd.f32 %v3289, %v3617
      %3619 = vmatmul.bf16.gmra.mxu0 %v2197
      %v3620 = vpop.f32.mrf.mxu0
      %v3621 = vadd.f32 %v3292, %v3620
      %v3622 = vpop.f32.mrf.mxu0
      %v3623 = vadd.f32 %v3294, %v3622
      %3624 = vmatmul.bf16.gmra.mxu0 %v2203
      %v3625 = vpop.f32.mrf.mxu0
      %v3626 = vadd.f32 %v3297, %v3625
      %v3627 = vpop.f32.mrf.mxu0
      %v3628 = vadd.f32 %v3299, %v3627
      %3629 = vmatmul.bf16.gmra.mxu0 %v2209
      %v3630 = vpop.f32.mrf.mxu0
      %v3631 = vadd.f32 %v3302, %v3630
      %v3632 = vpop.f32.mrf.mxu0
      %v3633 = vadd.f32 %v3304, %v3632
      %3634 = vmatmul.bf16.gmra.mxu0 %v2215
      %v3635 = vpop.f32.mrf.mxu0
      %v3636 = vadd.f32 %v3307, %v3635
      %v3637 = vpop.f32.mrf.mxu0
      %v3638 = vadd.f32 %v3309, %v3637
      %3639 = vmatmul.bf16.gmra.mxu0 %v2221
      %v3640 = vpop.f32.mrf.mxu0
      %v3641 = vadd.f32 %v3312, %v3640
      %v3642 = vpop.f32.mrf.mxu0
      %v3643 = vadd.f32 %v3314, %v3642
      %3644 = vmatmul.bf16.gmra.mxu0 %v2227
      %v3645 = vpop.f32.mrf.mxu0
      %v3646 = vadd.f32 %v3317, %v3645
      %v3647 = vpop.f32.mrf.mxu0
      %v3648 = vadd.f32 %v3319, %v3647
      %3649 = vdwg.mxu0
      %3650 = vmatpush.bf16.msra.mxu0 %v2737
      %3651 = vmatpush.bf16.msra.mxu0 %v2736
      %3652 = vmatpush.bf16.msra.mxu0 %v2735
      %3653 = vmatpush.bf16.msra.mxu0 %v2734
      %3654 = vmatpush.bf16.msra.mxu0 %v2733
      %3655 = vmatpush.bf16.msra.mxu0 %v2732
      %3656 = vmatpush.bf16.msra.mxu0 %v2731
      %3657 = vmatpush.bf16.msra.mxu0 %v2730
      %3658 = vmatmul.bf16.gmra.mxu0 %v1850
      %v3659 = vpop.f32.mrf.mxu0
      %v3660 = vadd.f32 %v3331, %v3659
      %v3661 = vpop.f32.mrf.mxu0
      %v3662 = vadd.f32 %v3333, %v3661
      %3663 = vmatmul.bf16.gmra.mxu0 %v1856
      %v3664 = vpop.f32.mrf.mxu0
      %v3665 = vadd.f32 %v3336, %v3664
      %v3666 = vpop.f32.mrf.mxu0
      %v3667 = vadd.f32 %v3338, %v3666
      %3668 = vmatmul.bf16.gmra.mxu0 %v1862
      %v3669 = vpop.f32.mrf.mxu0
      %v3670 = vadd.f32 %v3341, %v3669
      %v3671 = vpop.f32.mrf.mxu0
      %v3672 = vadd.f32 %v3343, %v3671
      %3673 = vmatmul.bf16.gmra.mxu0 %v1868
      %v3674 = vpop.f32.mrf.mxu0
      %v3675 = vadd.f32 %v3346, %v3674
      %v3676 = vpop.f32.mrf.mxu0
      %v3677 = vadd.f32 %v3348, %v3676
      %3678 = vmatmul.bf16.gmra.mxu0 %v1874
      %v3679 = vpop.f32.mrf.mxu0
      %v3680 = vadd.f32 %v3351, %v3679
      %v3681 = vpop.f32.mrf.mxu0
      %v3682 = vadd.f32 %v3353, %v3681
      %3683 = vmatmul.bf16.gmra.mxu0 %v1880
      %v3684 = vpop.f32.mrf.mxu0
      %v3685 = vadd.f32 %v3356, %v3684
      %v3686 = vpop.f32.mrf.mxu0
      %v3687 = vadd.f32 %v3358, %v3686
      %3688 = vmatmul.bf16.gmra.mxu0 %v1886
      %v3689 = vpop.f32.mrf.mxu0
      %v3690 = vadd.f32 %v3361, %v3689
      %v3691 = vpop.f32.mrf.mxu0
      %v3692 = vadd.f32 %v3363, %v3691
      %3693 = vmatmul.bf16.gmra.mxu0 %v1892
      %v3694 = vpop.f32.mrf.mxu0
      %v3695 = vadd.f32 %v3366, %v3694
      %v3696 = vpop.f32.mrf.mxu0
      %v3697 = vadd.f32 %v3368, %v3696
      %3698 = vmatmul.bf16.gmra.mxu0 %v1898
      %v3699 = vpop.f32.mrf.mxu0
      %v3700 = vadd.f32 %v3371, %v3699
      %v3701 = vpop.f32.mrf.mxu0
      %v3702 = vadd.f32 %v3373, %v3701
      %3703 = vmatmul.bf16.gmra.mxu0 %v1904
      %v3704 = vpop.f32.mrf.mxu0
      %v3705 = vadd.f32 %v3376, %v3704
      %v3706 = vpop.f32.mrf.mxu0
      %v3707 = vadd.f32 %v3378, %v3706
      %3708 = vmatmul.bf16.gmra.mxu0 %v1910
      %v3709 = vpop.f32.mrf.mxu0
      %v3710 = vadd.f32 %v3381, %v3709
      %v3711 = vpop.f32.mrf.mxu0
      %v3712 = vadd.f32 %v3383, %v3711
      %3713 = vmatmul.bf16.gmra.mxu0 %v1916
      %v3714 = vpop.f32.mrf.mxu0
      %v3715 = vadd.f32 %v3386, %v3714
      %v3716 = vpop.f32.mrf.mxu0
      %v3717 = vadd.f32 %v3388, %v3716
      %3718 = vmatmul.bf16.gmra.mxu0 %v1922
      %v3719 = vpop.f32.mrf.mxu0
      %v3720 = vadd.f32 %v3391, %v3719
      %v3721 = vpop.f32.mrf.mxu0
      %v3722 = vadd.f32 %v3393, %v3721
      %3723 = vmatmul.bf16.gmra.mxu0 %v1928
      %v3724 = vpop.f32.mrf.mxu0
      %v3725 = vadd.f32 %v3396, %v3724
      %v3726 = vpop.f32.mrf.mxu0
      %v3727 = vadd.f32 %v3398, %v3726
      %3728 = vmatmul.bf16.gmra.mxu0 %v1934
      %v3729 = vpop.f32.mrf.mxu0
      %v3730 = vadd.f32 %v3401, %v3729
      %v3731 = vpop.f32.mrf.mxu0
      %v3732 = vadd.f32 %v3403, %v3731
      %3733 = vmatmul.bf16.gmra.mxu0 %v1940
      %v3734 = vpop.f32.mrf.mxu0
      %v3735 = vadd.f32 %v3406, %v3734
      %v3736 = vpop.f32.mrf.mxu0
      %v3737 = vadd.f32 %v3408, %v3736
      %3738 = vmatmul.bf16.gmra.mxu0 %v1946
      %v3739 = vpop.f32.mrf.mxu0
      %v3740 = vadd.f32 %v3411, %v3739
      %v3741 = vpop.f32.mrf.mxu0
      %v3742 = vadd.f32 %v3413, %v3741
      %3743 = vmatmul.bf16.gmra.mxu0 %v1952
      %v3744 = vpop.f32.mrf.mxu0
      %v3745 = vadd.f32 %v3416, %v3744
      %v3746 = vpop.f32.mrf.mxu0
      %v3747 = vadd.f32 %v3418, %v3746
      %3748 = vmatmul.bf16.gmra.mxu0 %v1958
      %v3749 = vpop.f32.mrf.mxu0
      %v3750 = vadd.f32 %v3421, %v3749
      %v3751 = vpop.f32.mrf.mxu0
      %v3752 = vadd.f32 %v3423, %v3751
      %3753 = vmatmul.bf16.gmra.mxu0 %v1964
      %v3754 = vpop.f32.mrf.mxu0
      %v3755 = vadd.f32 %v3426, %v3754
      %v3756 = vpop.f32.mrf.mxu0
      %v3757 = vadd.f32 %v3428, %v3756
      %3758 = vmatmul.bf16.gmra.mxu0 %v1970
      %v3759 = vpop.f32.mrf.mxu0
      %v3760 = vadd.f32 %v3431, %v3759
      %v3761 = vpop.f32.mrf.mxu0
      %v3762 = vadd.f32 %v3433, %v3761
      %3763 = vmatmul.bf16.gmra.mxu0 %v1976
      %v3764 = vpop.f32.mrf.mxu0
      %v3765 = vadd.f32 %v3436, %v3764
      %v3766 = vpop.f32.mrf.mxu0
      %v3767 = vadd.f32 %v3438, %v3766
      %3768 = vmatmul.bf16.gmra.mxu0 %v1982
      %v3769 = vpop.f32.mrf.mxu0
      %v3770 = vadd.f32 %v3441, %v3769
      %v3771 = vpop.f32.mrf.mxu0
      %v3772 = vadd.f32 %v3443, %v3771
      %3773 = vmatmul.bf16.gmra.mxu0 %v1988
      %v3774 = vpop.f32.mrf.mxu0
      %v3775 = vadd.f32 %v3446, %v3774
      %v3776 = vpop.f32.mrf.mxu0
      %v3777 = vadd.f32 %v3448, %v3776
      %3778 = vmatmul.bf16.gmra.mxu0 %v1994
      %v3779 = vpop.f32.mrf.mxu0
      %v3780 = vadd.f32 %v3451, %v3779
      %v3781 = vpop.f32.mrf.mxu0
      %v3782 = vadd.f32 %v3453, %v3781
      %3783 = vmatmul.bf16.gmra.mxu0 %v2000
      %v3784 = vpop.f32.mrf.mxu0
      %v3785 = vadd.f32 %v3456, %v3784
      %v3786 = vpop.f32.mrf.mxu0
      %v3787 = vadd.f32 %v3458, %v3786
      %3788 = vmatmul.bf16.gmra.mxu0 %v2006
      %v3789 = vpop.f32.mrf.mxu0
      %v3790 = vadd.f32 %v3461, %v3789
      %v3791 = vpop.f32.mrf.mxu0
      %v3792 = vadd.f32 %v3463, %v3791
      %3793 = vmatmul.bf16.gmra.mxu0 %v2012
      %v3794 = vpop.f32.mrf.mxu0
      %v3795 = vadd.f32 %v3466, %v3794
      %v3796 = vpop.f32.mrf.mxu0
      %v3797 = vadd.f32 %v3468, %v3796
      %3798 = vmatmul.bf16.gmra.mxu0 %v2018
      %v3799 = vpop.f32.mrf.mxu0
      %v3800 = vadd.f32 %v3471, %v3799
      %v3801 = vpop.f32.mrf.mxu0
      %v3802 = vadd.f32 %v3473, %v3801
      %3803 = vmatmul.bf16.gmra.mxu0 %v2024
      %v3804 = vpop.f32.mrf.mxu0
      %v3805 = vadd.f32 %v3476, %v3804
      %v3806 = vpop.f32.mrf.mxu0
      %v3807 = vadd.f32 %v3478, %v3806
      %3808 = vmatmul.bf16.gmra.mxu0 %v2030
      %v3809 = vpop.f32.mrf.mxu0
      %v3810 = vadd.f32 %v3481, %v3809
      %v3811 = vpop.f32.mrf.mxu0
      %v3812 = vadd.f32 %v3483, %v3811
      %3813 = vmatmul.bf16.gmra.mxu0 %v2036
      %v3814 = vpop.f32.mrf.mxu0
      %v3815 = vadd.f32 %v3486, %v3814
      %v3816 = vpop.f32.mrf.mxu0
      %v3817 = vadd.f32 %v3488, %v3816
      %3818 = vmatmul.bf16.gmra.mxu0 %v2042
      %v3819 = vpop.f32.mrf.mxu0
      %v3820 = vadd.f32 %v3491, %v3819
      %v3821 = vpop.f32.mrf.mxu0
      %v3822 = vadd.f32 %v3493, %v3821
      %3823 = vmatmul.bf16.gmra.mxu0 %v2048
      %v3824 = vpop.f32.mrf.mxu0
      %v3825 = vadd.f32 %v3496, %v3824
      %v3826 = vpop.f32.mrf.mxu0
      %v3827 = vadd.f32 %v3498, %v3826
      %3828 = vmatmul.bf16.gmra.mxu0 %v2054
      %v3829 = vpop.f32.mrf.mxu0
      %v3830 = vadd.f32 %v3501, %v3829
      %v3831 = vpop.f32.mrf.mxu0
      %v3832 = vadd.f32 %v3503, %v3831
      %3833 = vmatmul.bf16.gmra.mxu0 %v2060
      %v3834 = vpop.f32.mrf.mxu0
      %v3835 = vadd.f32 %v3506, %v3834
      %v3836 = vpop.f32.mrf.mxu0
      %v3837 = vadd.f32 %v3508, %v3836
      %3838 = vmatmul.bf16.gmra.mxu0 %v2066
      %v3839 = vpop.f32.mrf.mxu0
      %v3840 = vadd.f32 %v3511, %v3839
      %v3841 = vpop.f32.mrf.mxu0
      %v3842 = vadd.f32 %v3513, %v3841
      %3843 = vmatmul.bf16.gmra.mxu0 %v2072
      %v3844 = vpop.f32.mrf.mxu0
      %v3845 = vadd.f32 %v3516, %v3844
      %v3846 = vpop.f32.mrf.mxu0
      %v3847 = vadd.f32 %v3518, %v3846
      %3848 = vmatmul.bf16.gmra.mxu0 %v2078
      %v3849 = vpop.f32.mrf.mxu0
      %v3850 = vadd.f32 %v3521, %v3849
      %v3851 = vpop.f32.mrf.mxu0
      %v3852 = vadd.f32 %v3523, %v3851
      %3853 = vmatmul.bf16.gmra.mxu0 %v2084
      %v3854 = vpop.f32.mrf.mxu0
      %v3855 = vadd.f32 %v3526, %v3854
      %v3856 = vpop.f32.mrf.mxu0
      %v3857 = vadd.f32 %v3528, %v3856
      %3858 = vmatmul.bf16.gmra.mxu0 %v2090
      %v3859 = vpop.f32.mrf.mxu0
      %v3860 = vadd.f32 %v3531, %v3859
      %v3861 = vpop.f32.mrf.mxu0
      %v3862 = vadd.f32 %v3533, %v3861
      %3863 = vmatmul.bf16.gmra.mxu0 %v2096
      %v3864 = vpop.f32.mrf.mxu0
      %v3865 = vadd.f32 %v3536, %v3864
      %v3866 = vpop.f32.mrf.mxu0
      %v3867 = vadd.f32 %v3538, %v3866
      %3868 = vmatmul.bf16.gmra.mxu0 %v2102
      %v3869 = vpop.f32.mrf.mxu0
      %v3870 = vadd.f32 %v3541, %v3869
      %v3871 = vpop.f32.mrf.mxu0
      %v3872 = vadd.f32 %v3543, %v3871
      %3873 = vmatmul.bf16.gmra.mxu0 %v2108
      %v3874 = vpop.f32.mrf.mxu0
      %v3875 = vadd.f32 %v3546, %v3874
      %v3876 = vpop.f32.mrf.mxu0
      %v3877 = vadd.f32 %v3548, %v3876
      %3878 = vmatmul.bf16.gmra.mxu0 %v2114
      %v3879 = vpop.f32.mrf.mxu0
      %v3880 = vadd.f32 %v3551, %v3879
      %v3881 = vpop.f32.mrf.mxu0
      %v3882 = vadd.f32 %v3553, %v3881
      %3883 = vmatmul.bf16.gmra.mxu0 %v2120
      %v3884 = vpop.f32.mrf.mxu0
      %v3885 = vadd.f32 %v3556, %v3884
      %v3886 = vpop.f32.mrf.mxu0
      %v3887 = vadd.f32 %v3558, %v3886
      %3888 = vmatmul.bf16.gmra.mxu0 %v2126
      %v3889 = vpop.f32.mrf.mxu0
      %v3890 = vadd.f32 %v3561, %v3889
      %v3891 = vpop.f32.mrf.mxu0
      %v3892 = vadd.f32 %v3563, %v3891
      %3893 = vmatmul.bf16.gmra.mxu0 %v2132
      %v3894 = vpop.f32.mrf.mxu0
      %v3895 = vadd.f32 %v3566, %v3894
      %v3896 = vpop.f32.mrf.mxu0
      %v3897 = vadd.f32 %v3568, %v3896
      %3898 = vmatmul.bf16.gmra.mxu0 %v2138
      %v3899 = vpop.f32.mrf.mxu0
      %v3900 = vadd.f32 %v3571, %v3899
      %v3901 = vpop.f32.mrf.mxu0
      %v3902 = vadd.f32 %v3573, %v3901
      %3903 = vmatmul.bf16.gmra.mxu0 %v2144
      %v3904 = vpop.f32.mrf.mxu0
      %v3905 = vadd.f32 %v3576, %v3904
      %v3906 = vpop.f32.mrf.mxu0
      %v3907 = vadd.f32 %v3578, %v3906
      %3908 = vmatmul.bf16.gmra.mxu0 %v2150
      %v3909 = vpop.f32.mrf.mxu0
      %v3910 = vadd.f32 %v3581, %v3909
      %v3911 = vpop.f32.mrf.mxu0
      %v3912 = vadd.f32 %v3583, %v3911
      %3913 = vmatmul.bf16.gmra.mxu0 %v2156
      %v3914 = vpop.f32.mrf.mxu0
      %v3915 = vadd.f32 %v3586, %v3914
      %v3916 = vpop.f32.mrf.mxu0
      %v3917 = vadd.f32 %v3588, %v3916
      %3918 = vmatmul.bf16.gmra.mxu0 %v2162
      %v3919 = vpop.f32.mrf.mxu0
      %v3920 = vadd.f32 %v3591, %v3919
      %v3921 = vpop.f32.mrf.mxu0
      %v3922 = vadd.f32 %v3593, %v3921
      %3923 = vmatmul.bf16.gmra.mxu0 %v2168
      %v3924 = vpop.f32.mrf.mxu0
      %v3925 = vadd.f32 %v3596, %v3924
      %v3926 = vpop.f32.mrf.mxu0
      %v3927 = vadd.f32 %v3598, %v3926
      %3928 = vmatmul.bf16.gmra.mxu0 %v2174
      %v3929 = vpop.f32.mrf.mxu0
      %v3930 = vadd.f32 %v3601, %v3929
      %v3931 = vpop.f32.mrf.mxu0
      %v3932 = vadd.f32 %v3603, %v3931
      %3933 = vmatmul.bf16.gmra.mxu0 %v2180
      %v3934 = vpop.f32.mrf.mxu0
      %v3935 = vadd.f32 %v3606, %v3934
      %v3936 = vpop.f32.mrf.mxu0
      %v3937 = vadd.f32 %v3608, %v3936
      %3938 = vmatmul.bf16.gmra.mxu0 %v2186
      %v3939 = vpop.f32.mrf.mxu0
      %v3940 = vadd.f32 %v3611, %v3939
      %v3941 = vpop.f32.mrf.mxu0
      %v3942 = vadd.f32 %v3613, %v3941
      %3943 = vmatmul.bf16.gmra.mxu0 %v2192
      %v3944 = vpop.f32.mrf.mxu0
      %v3945 = vadd.f32 %v3616, %v3944
      %v3946 = vpop.f32.mrf.mxu0
      %v3947 = vadd.f32 %v3618, %v3946
      %3948 = vmatmul.bf16.gmra.mxu0 %v2198
      %v3949 = vpop.f32.mrf.mxu0
      %v3950 = vadd.f32 %v3621, %v3949
      %v3951 = vpop.f32.mrf.mxu0
      %v3952 = vadd.f32 %v3623, %v3951
      %3953 = vmatmul.bf16.gmra.mxu0 %v2204
      %v3954 = vpop.f32.mrf.mxu0
      %v3955 = vadd.f32 %v3626, %v3954
      %v3956 = vpop.f32.mrf.mxu0
      %v3957 = vadd.f32 %v3628, %v3956
      %3958 = vmatmul.bf16.gmra.mxu0 %v2210
      %v3959 = vpop.f32.mrf.mxu0
      %v3960 = vadd.f32 %v3631, %v3959
      %v3961 = vpop.f32.mrf.mxu0
      %v3962 = vadd.f32 %v3633, %v3961
      %3963 = vmatmul.bf16.gmra.mxu0 %v2216
      %v3964 = vpop.f32.mrf.mxu0
      %v3965 = vadd.f32 %v3636, %v3964
      %v3966 = vpop.f32.mrf.mxu0
      %v3967 = vadd.f32 %v3638, %v3966
      %3968 = vmatmul.bf16.gmra.mxu0 %v2222
      %v3969 = vpop.f32.mrf.mxu0
      %v3970 = vadd.f32 %v3641, %v3969
      %v3971 = vpop.f32.mrf.mxu0
      %v3972 = vadd.f32 %v3643, %v3971
      %3973 = vmatmul.bf16.gmra.mxu0 %v2228
      %v3974 = vpop.f32.mrf.mxu0
      %v3975 = vadd.f32 %v3646, %v3974
      %v3976 = vpop.f32.mrf.mxu0
      %v3977 = vadd.f32 %v3648, %v3976
      %3978 = vdwg.mxu0
      %3979 = vmatpush.bf16.msra.mxu0 %v2745
      %3980 = vmatpush.bf16.msra.mxu0 %v2744
      %3981 = vmatpush.bf16.msra.mxu0 %v2743
      %3982 = vmatpush.bf16.msra.mxu0 %v2742
      %3983 = vmatpush.bf16.msra.mxu0 %v2741
      %3984 = vmatpush.bf16.msra.mxu0 %v2740
      %3985 = vmatpush.bf16.msra.mxu0 %v2739
      %3986 = vmatpush.bf16.msra.mxu0 %v2738
      %3987 = vmatmul.bf16.gmra.mxu0 %v1851
      %v3988 = vpop.f32.mrf.mxu0
      %v3989 = vadd.f32 %v3660, %v3988
      %v3990 = vpop.f32.mrf.mxu0
      %v3991 = vadd.f32 %v3662, %v3990
      %3992 = vmatmul.bf16.gmra.mxu0 %v1857
      %v3993 = vpop.f32.mrf.mxu0
      %v3994 = vadd.f32 %v3665, %v3993
      %v3995 = vpop.f32.mrf.mxu0
      %v3996 = vadd.f32 %v3667, %v3995
      %3997 = vmatmul.bf16.gmra.mxu0 %v1863
      %v3998 = vpop.f32.mrf.mxu0
      %v3999 = vadd.f32 %v3670, %v3998
      %v4000 = vpop.f32.mrf.mxu0
      %v4001 = vadd.f32 %v3672, %v4000
      %4002 = vmatmul.bf16.gmra.mxu0 %v1869
      %v4003 = vpop.f32.mrf.mxu0
      %v4004 = vadd.f32 %v3675, %v4003
      %v4005 = vpop.f32.mrf.mxu0
      %v4006 = vadd.f32 %v3677, %v4005
      %4007 = vmatmul.bf16.gmra.mxu0 %v1875
      %v4008 = vpop.f32.mrf.mxu0
      %v4009 = vadd.f32 %v3680, %v4008
      %v4010 = vpop.f32.mrf.mxu0
      %v4011 = vadd.f32 %v3682, %v4010
      %4012 = vmatmul.bf16.gmra.mxu0 %v1881
      %v4013 = vpop.f32.mrf.mxu0
      %v4014 = vadd.f32 %v3685, %v4013
      %v4015 = vpop.f32.mrf.mxu0
      %v4016 = vadd.f32 %v3687, %v4015
      %4017 = vmatmul.bf16.gmra.mxu0 %v1887
      %v4018 = vpop.f32.mrf.mxu0
      %v4019 = vadd.f32 %v3690, %v4018
      %v4020 = vpop.f32.mrf.mxu0
      %v4021 = vadd.f32 %v3692, %v4020
      %4022 = vmatmul.bf16.gmra.mxu0 %v1893
      %v4023 = vpop.f32.mrf.mxu0
      %v4024 = vadd.f32 %v3695, %v4023
      %v4025 = vpop.f32.mrf.mxu0
      %v4026 = vadd.f32 %v3697, %v4025
      %4027 = vmatmul.bf16.gmra.mxu0 %v1899
      %v4028 = vpop.f32.mrf.mxu0
      %v4029 = vadd.f32 %v3700, %v4028
      %v4030 = vpop.f32.mrf.mxu0
      %v4031 = vadd.f32 %v3702, %v4030
      %4032 = vmatmul.bf16.gmra.mxu0 %v1905
      %v4033 = vpop.f32.mrf.mxu0
      %v4034 = vadd.f32 %v3705, %v4033
      %v4035 = vpop.f32.mrf.mxu0
      %v4036 = vadd.f32 %v3707, %v4035
      %4037 = vmatmul.bf16.gmra.mxu0 %v1911
      %v4038 = vpop.f32.mrf.mxu0
      %v4039 = vadd.f32 %v3710, %v4038
      %v4040 = vpop.f32.mrf.mxu0
      %v4041 = vadd.f32 %v3712, %v4040
      %4042 = vmatmul.bf16.gmra.mxu0 %v1917
      %v4043 = vpop.f32.mrf.mxu0
      %v4044 = vadd.f32 %v3715, %v4043
      %v4045 = vpop.f32.mrf.mxu0
      %v4046 = vadd.f32 %v3717, %v4045
      %4047 = vmatmul.bf16.gmra.mxu0 %v1923
      %v4048 = vpop.f32.mrf.mxu0
      %v4049 = vadd.f32 %v3720, %v4048
      %v4050 = vpop.f32.mrf.mxu0
      %v4051 = vadd.f32 %v3722, %v4050
      %4052 = vmatmul.bf16.gmra.mxu0 %v1929
      %v4053 = vpop.f32.mrf.mxu0
      %v4054 = vadd.f32 %v3725, %v4053
      %v4055 = vpop.f32.mrf.mxu0
      %v4056 = vadd.f32 %v3727, %v4055
      %4057 = vmatmul.bf16.gmra.mxu0 %v1935
      %v4058 = vpop.f32.mrf.mxu0
      %v4059 = vadd.f32 %v3730, %v4058
      %v4060 = vpop.f32.mrf.mxu0
      %v4061 = vadd.f32 %v3732, %v4060
      %4062 = vmatmul.bf16.gmra.mxu0 %v1941
      %v4063 = vpop.f32.mrf.mxu0
      %v4064 = vadd.f32 %v3735, %v4063
      %v4065 = vpop.f32.mrf.mxu0
      %v4066 = vadd.f32 %v3737, %v4065
      %4067 = vmatmul.bf16.gmra.mxu0 %v1947
      %v4068 = vpop.f32.mrf.mxu0
      %v4069 = vadd.f32 %v3740, %v4068
      %v4070 = vpop.f32.mrf.mxu0
      %v4071 = vadd.f32 %v3742, %v4070
      %4072 = vmatmul.bf16.gmra.mxu0 %v1953
      %v4073 = vpop.f32.mrf.mxu0
      %v4074 = vadd.f32 %v3745, %v4073
      %v4075 = vpop.f32.mrf.mxu0
      %v4076 = vadd.f32 %v3747, %v4075
      %4077 = vmatmul.bf16.gmra.mxu0 %v1959
      %v4078 = vpop.f32.mrf.mxu0
      %v4079 = vadd.f32 %v3750, %v4078
      %v4080 = vpop.f32.mrf.mxu0
      %v4081 = vadd.f32 %v3752, %v4080
      %4082 = vmatmul.bf16.gmra.mxu0 %v1965
      %v4083 = vpop.f32.mrf.mxu0
      %v4084 = vadd.f32 %v3755, %v4083
      %v4085 = vpop.f32.mrf.mxu0
      %v4086 = vadd.f32 %v3757, %v4085
      %4087 = vmatmul.bf16.gmra.mxu0 %v1971
      %v4088 = vpop.f32.mrf.mxu0
      %v4089 = vadd.f32 %v3760, %v4088
      %v4090 = vpop.f32.mrf.mxu0
      %v4091 = vadd.f32 %v3762, %v4090
      %4092 = vmatmul.bf16.gmra.mxu0 %v1977
      %v4093 = vpop.f32.mrf.mxu0
      %v4094 = vadd.f32 %v3765, %v4093
      %v4095 = vpop.f32.mrf.mxu0
      %v4096 = vadd.f32 %v3767, %v4095
      %4097 = vmatmul.bf16.gmra.mxu0 %v1983
      %v4098 = vpop.f32.mrf.mxu0
      %v4099 = vadd.f32 %v3770, %v4098
      %v4100 = vpop.f32.mrf.mxu0
      %v4101 = vadd.f32 %v3772, %v4100
      %4102 = vmatmul.bf16.gmra.mxu0 %v1989
      %v4103 = vpop.f32.mrf.mxu0
      %v4104 = vadd.f32 %v3775, %v4103
      %v4105 = vpop.f32.mrf.mxu0
      %v4106 = vadd.f32 %v3777, %v4105
      %4107 = vmatmul.bf16.gmra.mxu0 %v1995
      %v4108 = vpop.f32.mrf.mxu0
      %v4109 = vadd.f32 %v3780, %v4108
      %v4110 = vpop.f32.mrf.mxu0
      %v4111 = vadd.f32 %v3782, %v4110
      %4112 = vmatmul.bf16.gmra.mxu0 %v2001
      %v4113 = vpop.f32.mrf.mxu0
      %v4114 = vadd.f32 %v3785, %v4113
      %v4115 = vpop.f32.mrf.mxu0
      %v4116 = vadd.f32 %v3787, %v4115
      %4117 = vmatmul.bf16.gmra.mxu0 %v2007
      %v4118 = vpop.f32.mrf.mxu0
      %v4119 = vadd.f32 %v3790, %v4118
      %v4120 = vpop.f32.mrf.mxu0
      %v4121 = vadd.f32 %v3792, %v4120
      %4122 = vmatmul.bf16.gmra.mxu0 %v2013
      %v4123 = vpop.f32.mrf.mxu0
      %v4124 = vadd.f32 %v3795, %v4123
      %v4125 = vpop.f32.mrf.mxu0
      %v4126 = vadd.f32 %v3797, %v4125
      %4127 = vmatmul.bf16.gmra.mxu0 %v2019
      %v4128 = vpop.f32.mrf.mxu0
      %v4129 = vadd.f32 %v3800, %v4128
      %v4130 = vpop.f32.mrf.mxu0
      %v4131 = vadd.f32 %v3802, %v4130
      %4132 = vmatmul.bf16.gmra.mxu0 %v2025
      %v4133 = vpop.f32.mrf.mxu0
      %v4134 = vadd.f32 %v3805, %v4133
      %v4135 = vpop.f32.mrf.mxu0
      %v4136 = vadd.f32 %v3807, %v4135
      %4137 = vmatmul.bf16.gmra.mxu0 %v2031
      %v4138 = vpop.f32.mrf.mxu0
      %v4139 = vadd.f32 %v3810, %v4138
      %v4140 = vpop.f32.mrf.mxu0
      %v4141 = vadd.f32 %v3812, %v4140
      %4142 = vmatmul.bf16.gmra.mxu0 %v2037
      %v4143 = vpop.f32.mrf.mxu0
      %v4144 = vadd.f32 %v3815, %v4143
      %v4145 = vpop.f32.mrf.mxu0
      %v4146 = vadd.f32 %v3817, %v4145
      %4147 = vmatmul.bf16.gmra.mxu0 %v2043
      %v4148 = vpop.f32.mrf.mxu0
      %v4149 = vadd.f32 %v3820, %v4148
      %v4150 = vpop.f32.mrf.mxu0
      %v4151 = vadd.f32 %v3822, %v4150
      %4152 = vmatmul.bf16.gmra.mxu0 %v2049
      %v4153 = vpop.f32.mrf.mxu0
      %v4154 = vadd.f32 %v3825, %v4153
      %v4155 = vpop.f32.mrf.mxu0
      %v4156 = vadd.f32 %v3827, %v4155
      %4157 = vmatmul.bf16.gmra.mxu0 %v2055
      %v4158 = vpop.f32.mrf.mxu0
      %v4159 = vadd.f32 %v3830, %v4158
      %v4160 = vpop.f32.mrf.mxu0
      %v4161 = vadd.f32 %v3832, %v4160
      %4162 = vmatmul.bf16.gmra.mxu0 %v2061
      %v4163 = vpop.f32.mrf.mxu0
      %v4164 = vadd.f32 %v3835, %v4163
      %v4165 = vpop.f32.mrf.mxu0
      %v4166 = vadd.f32 %v3837, %v4165
      %4167 = vmatmul.bf16.gmra.mxu0 %v2067
      %v4168 = vpop.f32.mrf.mxu0
      %v4169 = vadd.f32 %v3840, %v4168
      %v4170 = vpop.f32.mrf.mxu0
      %v4171 = vadd.f32 %v3842, %v4170
      %4172 = vmatmul.bf16.gmra.mxu0 %v2073
      %v4173 = vpop.f32.mrf.mxu0
      %v4174 = vadd.f32 %v3845, %v4173
      %v4175 = vpop.f32.mrf.mxu0
      %v4176 = vadd.f32 %v3847, %v4175
      %4177 = vmatmul.bf16.gmra.mxu0 %v2079
      %v4178 = vpop.f32.mrf.mxu0
      %v4179 = vadd.f32 %v3850, %v4178
      %v4180 = vpop.f32.mrf.mxu0
      %v4181 = vadd.f32 %v3852, %v4180
      %4182 = vmatmul.bf16.gmra.mxu0 %v2085
      %v4183 = vpop.f32.mrf.mxu0
      %v4184 = vadd.f32 %v3855, %v4183
      %v4185 = vpop.f32.mrf.mxu0
      %v4186 = vadd.f32 %v3857, %v4185
      %4187 = vmatmul.bf16.gmra.mxu0 %v2091
      %v4188 = vpop.f32.mrf.mxu0
      %v4189 = vadd.f32 %v3860, %v4188
      %v4190 = vpop.f32.mrf.mxu0
      %v4191 = vadd.f32 %v3862, %v4190
      %4192 = vmatmul.bf16.gmra.mxu0 %v2097
      %v4193 = vpop.f32.mrf.mxu0
      %v4194 = vadd.f32 %v3865, %v4193
      %v4195 = vpop.f32.mrf.mxu0
      %v4196 = vadd.f32 %v3867, %v4195
      %4197 = vmatmul.bf16.gmra.mxu0 %v2103
      %v4198 = vpop.f32.mrf.mxu0
      %v4199 = vadd.f32 %v3870, %v4198
      %v4200 = vpop.f32.mrf.mxu0
      %v4201 = vadd.f32 %v3872, %v4200
      %4202 = vmatmul.bf16.gmra.mxu0 %v2109
      %v4203 = vpop.f32.mrf.mxu0
      %v4204 = vadd.f32 %v3875, %v4203
      %v4205 = vpop.f32.mrf.mxu0
      %v4206 = vadd.f32 %v3877, %v4205
      %4207 = vmatmul.bf16.gmra.mxu0 %v2115
      %v4208 = vpop.f32.mrf.mxu0
      %v4209 = vadd.f32 %v3880, %v4208
      %v4210 = vpop.f32.mrf.mxu0
      %v4211 = vadd.f32 %v3882, %v4210
      %4212 = vmatmul.bf16.gmra.mxu0 %v2121
      %v4213 = vpop.f32.mrf.mxu0
      %v4214 = vadd.f32 %v3885, %v4213
      %v4215 = vpop.f32.mrf.mxu0
      %v4216 = vadd.f32 %v3887, %v4215
      %4217 = vmatmul.bf16.gmra.mxu0 %v2127
      %v4218 = vpop.f32.mrf.mxu0
      %v4219 = vadd.f32 %v3890, %v4218
      %v4220 = vpop.f32.mrf.mxu0
      %v4221 = vadd.f32 %v3892, %v4220
      %4222 = vmatmul.bf16.gmra.mxu0 %v2133
      %v4223 = vpop.f32.mrf.mxu0
      %v4224 = vadd.f32 %v3895, %v4223
      %v4225 = vpop.f32.mrf.mxu0
      %v4226 = vadd.f32 %v3897, %v4225
      %4227 = vmatmul.bf16.gmra.mxu0 %v2139
      %v4228 = vpop.f32.mrf.mxu0
      %v4229 = vadd.f32 %v3900, %v4228
      %v4230 = vpop.f32.mrf.mxu0
      %v4231 = vadd.f32 %v3902, %v4230
      %4232 = vmatmul.bf16.gmra.mxu0 %v2145
      %v4233 = vpop.f32.mrf.mxu0
      %v4234 = vadd.f32 %v3905, %v4233
      %v4235 = vpop.f32.mrf.mxu0
      %v4236 = vadd.f32 %v3907, %v4235
      %4237 = vmatmul.bf16.gmra.mxu0 %v2151
      %v4238 = vpop.f32.mrf.mxu0
      %v4239 = vadd.f32 %v3910, %v4238
      %v4240 = vpop.f32.mrf.mxu0
      %v4241 = vadd.f32 %v3912, %v4240
      %4242 = vmatmul.bf16.gmra.mxu0 %v2157
      %v4243 = vpop.f32.mrf.mxu0
      %v4244 = vadd.f32 %v3915, %v4243
      %v4245 = vpop.f32.mrf.mxu0
      %v4246 = vadd.f32 %v3917, %v4245
      %4247 = vmatmul.bf16.gmra.mxu0 %v2163
      %v4248 = vpop.f32.mrf.mxu0
      %v4249 = vadd.f32 %v3920, %v4248
      %v4250 = vpop.f32.mrf.mxu0
      %v4251 = vadd.f32 %v3922, %v4250
      %4252 = vmatmul.bf16.gmra.mxu0 %v2169
      %v4253 = vpop.f32.mrf.mxu0
      %v4254 = vadd.f32 %v3925, %v4253
      %v4255 = vpop.f32.mrf.mxu0
      %v4256 = vadd.f32 %v3927, %v4255
      %4257 = vmatmul.bf16.gmra.mxu0 %v2175
      %v4258 = vpop.f32.mrf.mxu0
      %v4259 = vadd.f32 %v3930, %v4258
      %v4260 = vpop.f32.mrf.mxu0
      %v4261 = vadd.f32 %v3932, %v4260
      %4262 = vmatmul.bf16.gmra.mxu0 %v2181
      %v4263 = vpop.f32.mrf.mxu0
      %v4264 = vadd.f32 %v3935, %v4263
      %v4265 = vpop.f32.mrf.mxu0
      %v4266 = vadd.f32 %v3937, %v4265
      %4267 = vmatmul.bf16.gmra.mxu0 %v2187
      %v4268 = vpop.f32.mrf.mxu0
      %v4269 = vadd.f32 %v3940, %v4268
      %v4270 = vpop.f32.mrf.mxu0
      %v4271 = vadd.f32 %v3942, %v4270
      %4272 = vmatmul.bf16.gmra.mxu0 %v2193
      %v4273 = vpop.f32.mrf.mxu0
      %v4274 = vadd.f32 %v3945, %v4273
      %v4275 = vpop.f32.mrf.mxu0
      %v4276 = vadd.f32 %v3947, %v4275
      %4277 = vmatmul.bf16.gmra.mxu0 %v2199
      %v4278 = vpop.f32.mrf.mxu0
      %v4279 = vadd.f32 %v3950, %v4278
      %v4280 = vpop.f32.mrf.mxu0
      %v4281 = vadd.f32 %v3952, %v4280
      %4282 = vmatmul.bf16.gmra.mxu0 %v2205
      %v4283 = vpop.f32.mrf.mxu0
      %v4284 = vadd.f32 %v3955, %v4283
      %v4285 = vpop.f32.mrf.mxu0
      %v4286 = vadd.f32 %v3957, %v4285
      %4287 = vmatmul.bf16.gmra.mxu0 %v2211
      %v4288 = vpop.f32.mrf.mxu0
      %v4289 = vadd.f32 %v3960, %v4288
      %v4290 = vpop.f32.mrf.mxu0
      %v4291 = vadd.f32 %v3962, %v4290
      %4292 = vmatmul.bf16.gmra.mxu0 %v2217
      %v4293 = vpop.f32.mrf.mxu0
      %v4294 = vadd.f32 %v3965, %v4293
      %v4295 = vpop.f32.mrf.mxu0
      %v4296 = vadd.f32 %v3967, %v4295
      %4297 = vmatmul.bf16.gmra.mxu0 %v2223
      %v4298 = vpop.f32.mrf.mxu0
      %v4299 = vadd.f32 %v3970, %v4298
      %v4300 = vpop.f32.mrf.mxu0
      %v4301 = vadd.f32 %v3972, %v4300
      %4302 = vmatmul.bf16.gmra.mxu0 %v2229
      %v4303 = vpop.f32.mrf.mxu0
      %v4304 = vadd.f32 %v3975, %v4303
      %v4305 = vpop.f32.mrf.mxu0
      %v4306 = vadd.f32 %v3977, %v4305
      %4307 = vdwg.mxu0
      %4308 = vmatpush.bf16.msra.mxu0 %v2753
      %4309 = vmatpush.bf16.msra.mxu0 %v2752
      %4310 = vmatpush.bf16.msra.mxu0 %v2751
      %4311 = vmatpush.bf16.msra.mxu0 %v2750
      %4312 = vmatpush.bf16.msra.mxu0 %v2749
      %4313 = vmatpush.bf16.msra.mxu0 %v2748
      %4314 = vmatpush.bf16.msra.mxu0 %v2747
      %4315 = vmatpush.bf16.msra.mxu0 %v2746
      %4316 = vmatmul.bf16.gmra.mxu0 %v1852
      %v4317 = vpop.f32.mrf.mxu0
      %v4318 = vadd.f32 %v3989, %v4317
      %v4319 = vpop.f32.mrf.mxu0
      %v4320 = vadd.f32 %v3991, %v4319
      %4321 = vmatmul.bf16.gmra.mxu0 %v1858
      %v4322 = vpop.f32.mrf.mxu0
      %v4323 = vadd.f32 %v3994, %v4322
      %v4324 = vpop.f32.mrf.mxu0
      %v4325 = vadd.f32 %v3996, %v4324
      %4326 = vmatmul.bf16.gmra.mxu0 %v1864
      %v4327 = vpop.f32.mrf.mxu0
      %v4328 = vadd.f32 %v3999, %v4327
      %v4329 = vpop.f32.mrf.mxu0
      %v4330 = vadd.f32 %v4001, %v4329
      %4331 = vmatmul.bf16.gmra.mxu0 %v1870
      %v4332 = vpop.f32.mrf.mxu0
      %v4333 = vadd.f32 %v4004, %v4332
      %v4334 = vpop.f32.mrf.mxu0
      %v4335 = vadd.f32 %v4006, %v4334
      %4336 = vmatmul.bf16.gmra.mxu0 %v1876
      %v4337 = vpop.f32.mrf.mxu0
      %v4338 = vadd.f32 %v4009, %v4337
      %v4339 = vpop.f32.mrf.mxu0
      %v4340 = vadd.f32 %v4011, %v4339
      %4341 = vmatmul.bf16.gmra.mxu0 %v1882
      %v4342 = vpop.f32.mrf.mxu0
      %v4343 = vadd.f32 %v4014, %v4342
      %v4344 = vpop.f32.mrf.mxu0
      %v4345 = vadd.f32 %v4016, %v4344
      %4346 = vmatmul.bf16.gmra.mxu0 %v1888
      %v4347 = vpop.f32.mrf.mxu0
      %v4348 = vadd.f32 %v4019, %v4347
      %v4349 = vpop.f32.mrf.mxu0
      %v4350 = vadd.f32 %v4021, %v4349
      %4351 = vmatmul.bf16.gmra.mxu0 %v1894
      %v4352 = vpop.f32.mrf.mxu0
      %v4353 = vadd.f32 %v4024, %v4352
      %v4354 = vpop.f32.mrf.mxu0
      %v4355 = vadd.f32 %v4026, %v4354
      %4356 = vmatmul.bf16.gmra.mxu0 %v1900
      %v4357 = vpop.f32.mrf.mxu0
      %v4358 = vadd.f32 %v4029, %v4357
      %v4359 = vpop.f32.mrf.mxu0
      %v4360 = vadd.f32 %v4031, %v4359
      %4361 = vmatmul.bf16.gmra.mxu0 %v1906
      %v4362 = vpop.f32.mrf.mxu0
      %v4363 = vadd.f32 %v4034, %v4362
      %v4364 = vpop.f32.mrf.mxu0
      %v4365 = vadd.f32 %v4036, %v4364
      %4366 = vmatmul.bf16.gmra.mxu0 %v1912
      %v4367 = vpop.f32.mrf.mxu0
      %v4368 = vadd.f32 %v4039, %v4367
      %v4369 = vpop.f32.mrf.mxu0
      %v4370 = vadd.f32 %v4041, %v4369
      %4371 = vmatmul.bf16.gmra.mxu0 %v1918
      %v4372 = vpop.f32.mrf.mxu0
      %v4373 = vadd.f32 %v4044, %v4372
      %v4374 = vpop.f32.mrf.mxu0
      %v4375 = vadd.f32 %v4046, %v4374
      %4376 = vmatmul.bf16.gmra.mxu0 %v1924
      %v4377 = vpop.f32.mrf.mxu0
      %v4378 = vadd.f32 %v4049, %v4377
      %v4379 = vpop.f32.mrf.mxu0
      %v4380 = vadd.f32 %v4051, %v4379
      %4381 = vmatmul.bf16.gmra.mxu0 %v1930
      %v4382 = vpop.f32.mrf.mxu0
      %v4383 = vadd.f32 %v4054, %v4382
      %v4384 = vpop.f32.mrf.mxu0
      %v4385 = vadd.f32 %v4056, %v4384
      %4386 = vmatmul.bf16.gmra.mxu0 %v1936
      %v4387 = vpop.f32.mrf.mxu0
      %v4388 = vadd.f32 %v4059, %v4387
      %v4389 = vpop.f32.mrf.mxu0
      %v4390 = vadd.f32 %v4061, %v4389
      %4391 = vmatmul.bf16.gmra.mxu0 %v1942
      %v4392 = vpop.f32.mrf.mxu0
      %v4393 = vadd.f32 %v4064, %v4392
      %v4394 = vpop.f32.mrf.mxu0
      %v4395 = vadd.f32 %v4066, %v4394
      %4396 = vmatmul.bf16.gmra.mxu0 %v1948
      %v4397 = vpop.f32.mrf.mxu0
      %v4398 = vadd.f32 %v4069, %v4397
      %v4399 = vpop.f32.mrf.mxu0
      %v4400 = vadd.f32 %v4071, %v4399
      %4401 = vmatmul.bf16.gmra.mxu0 %v1954
      %v4402 = vpop.f32.mrf.mxu0
      %v4403 = vadd.f32 %v4074, %v4402
      %v4404 = vpop.f32.mrf.mxu0
      %v4405 = vadd.f32 %v4076, %v4404
      %4406 = vmatmul.bf16.gmra.mxu0 %v1960
      %v4407 = vpop.f32.mrf.mxu0
      %v4408 = vadd.f32 %v4079, %v4407
      %v4409 = vpop.f32.mrf.mxu0
      %v4410 = vadd.f32 %v4081, %v4409
      %4411 = vmatmul.bf16.gmra.mxu0 %v1966
      %v4412 = vpop.f32.mrf.mxu0
      %v4413 = vadd.f32 %v4084, %v4412
      %v4414 = vpop.f32.mrf.mxu0
      %v4415 = vadd.f32 %v4086, %v4414
      %4416 = vmatmul.bf16.gmra.mxu0 %v1972
      %v4417 = vpop.f32.mrf.mxu0
      %v4418 = vadd.f32 %v4089, %v4417
      %v4419 = vpop.f32.mrf.mxu0
      %v4420 = vadd.f32 %v4091, %v4419
      %4421 = vmatmul.bf16.gmra.mxu0 %v1978
      %v4422 = vpop.f32.mrf.mxu0
      %v4423 = vadd.f32 %v4094, %v4422
      %v4424 = vpop.f32.mrf.mxu0
      %v4425 = vadd.f32 %v4096, %v4424
      %4426 = vmatmul.bf16.gmra.mxu0 %v1984
      %v4427 = vpop.f32.mrf.mxu0
      %v4428 = vadd.f32 %v4099, %v4427
      %v4429 = vpop.f32.mrf.mxu0
      %v4430 = vadd.f32 %v4101, %v4429
      %4431 = vmatmul.bf16.gmra.mxu0 %v1990
      %v4432 = vpop.f32.mrf.mxu0
      %v4433 = vadd.f32 %v4104, %v4432
      %v4434 = vpop.f32.mrf.mxu0
      %v4435 = vadd.f32 %v4106, %v4434
      %4436 = vmatmul.bf16.gmra.mxu0 %v1996
      %v4437 = vpop.f32.mrf.mxu0
      %v4438 = vadd.f32 %v4109, %v4437
      %v4439 = vpop.f32.mrf.mxu0
      %v4440 = vadd.f32 %v4111, %v4439
      %4441 = vmatmul.bf16.gmra.mxu0 %v2002
      %v4442 = vpop.f32.mrf.mxu0
      %v4443 = vadd.f32 %v4114, %v4442
      %v4444 = vpop.f32.mrf.mxu0
      %v4445 = vadd.f32 %v4116, %v4444
      %4446 = vmatmul.bf16.gmra.mxu0 %v2008
      %v4447 = vpop.f32.mrf.mxu0
      %v4448 = vadd.f32 %v4119, %v4447
      %v4449 = vpop.f32.mrf.mxu0
      %v4450 = vadd.f32 %v4121, %v4449
      %4451 = vmatmul.bf16.gmra.mxu0 %v2014
      %v4452 = vpop.f32.mrf.mxu0
      %v4453 = vadd.f32 %v4124, %v4452
      %v4454 = vpop.f32.mrf.mxu0
      %v4455 = vadd.f32 %v4126, %v4454
      %4456 = vmatmul.bf16.gmra.mxu0 %v2020
      %v4457 = vpop.f32.mrf.mxu0
      %v4458 = vadd.f32 %v4129, %v4457
      %v4459 = vpop.f32.mrf.mxu0
      %v4460 = vadd.f32 %v4131, %v4459
      %4461 = vmatmul.bf16.gmra.mxu0 %v2026
      %v4462 = vpop.f32.mrf.mxu0
      %v4463 = vadd.f32 %v4134, %v4462
      %v4464 = vpop.f32.mrf.mxu0
      %v4465 = vadd.f32 %v4136, %v4464
      %4466 = vmatmul.bf16.gmra.mxu0 %v2032
      %v4467 = vpop.f32.mrf.mxu0
      %v4468 = vadd.f32 %v4139, %v4467
      %v4469 = vpop.f32.mrf.mxu0
      %v4470 = vadd.f32 %v4141, %v4469
      %4471 = vmatmul.bf16.gmra.mxu0 %v2038
      %v4472 = vpop.f32.mrf.mxu0
      %v4473 = vadd.f32 %v4144, %v4472
      %v4474 = vpop.f32.mrf.mxu0
      %v4475 = vadd.f32 %v4146, %v4474
      %4476 = vmatmul.bf16.gmra.mxu0 %v2044
      %v4477 = vpop.f32.mrf.mxu0
      %v4478 = vadd.f32 %v4149, %v4477
      %v4479 = vpop.f32.mrf.mxu0
      %v4480 = vadd.f32 %v4151, %v4479
      %4481 = vmatmul.bf16.gmra.mxu0 %v2050
      %v4482 = vpop.f32.mrf.mxu0
      %v4483 = vadd.f32 %v4154, %v4482
      %v4484 = vpop.f32.mrf.mxu0
      %v4485 = vadd.f32 %v4156, %v4484
      %4486 = vmatmul.bf16.gmra.mxu0 %v2056
      %v4487 = vpop.f32.mrf.mxu0
      %v4488 = vadd.f32 %v4159, %v4487
      %v4489 = vpop.f32.mrf.mxu0
      %v4490 = vadd.f32 %v4161, %v4489
      %4491 = vmatmul.bf16.gmra.mxu0 %v2062
      %v4492 = vpop.f32.mrf.mxu0
      %v4493 = vadd.f32 %v4164, %v4492
      %v4494 = vpop.f32.mrf.mxu0
      %v4495 = vadd.f32 %v4166, %v4494
      %4496 = vmatmul.bf16.gmra.mxu0 %v2068
      %v4497 = vpop.f32.mrf.mxu0
      %v4498 = vadd.f32 %v4169, %v4497
      %v4499 = vpop.f32.mrf.mxu0
      %v4500 = vadd.f32 %v4171, %v4499
      %4501 = vmatmul.bf16.gmra.mxu0 %v2074
      %v4502 = vpop.f32.mrf.mxu0
      %v4503 = vadd.f32 %v4174, %v4502
      %v4504 = vpop.f32.mrf.mxu0
      %v4505 = vadd.f32 %v4176, %v4504
      %4506 = vmatmul.bf16.gmra.mxu0 %v2080
      %v4507 = vpop.f32.mrf.mxu0
      %v4508 = vadd.f32 %v4179, %v4507
      %v4509 = vpop.f32.mrf.mxu0
      %v4510 = vadd.f32 %v4181, %v4509
      %4511 = vmatmul.bf16.gmra.mxu0 %v2086
      %v4512 = vpop.f32.mrf.mxu0
      %v4513 = vadd.f32 %v4184, %v4512
      %v4514 = vpop.f32.mrf.mxu0
      %v4515 = vadd.f32 %v4186, %v4514
      %4516 = vmatmul.bf16.gmra.mxu0 %v2092
      %v4517 = vpop.f32.mrf.mxu0
      %v4518 = vadd.f32 %v4189, %v4517
      %v4519 = vpop.f32.mrf.mxu0
      %v4520 = vadd.f32 %v4191, %v4519
      %4521 = vmatmul.bf16.gmra.mxu0 %v2098
      %v4522 = vpop.f32.mrf.mxu0
      %v4523 = vadd.f32 %v4194, %v4522
      %v4524 = vpop.f32.mrf.mxu0
      %v4525 = vadd.f32 %v4196, %v4524
      %4526 = vmatmul.bf16.gmra.mxu0 %v2104
      %v4527 = vpop.f32.mrf.mxu0
      %v4528 = vadd.f32 %v4199, %v4527
      %v4529 = vpop.f32.mrf.mxu0
      %v4530 = vadd.f32 %v4201, %v4529
      %4531 = vmatmul.bf16.gmra.mxu0 %v2110
      %v4532 = vpop.f32.mrf.mxu0
      %v4533 = vadd.f32 %v4204, %v4532
      %v4534 = vpop.f32.mrf.mxu0
      %v4535 = vadd.f32 %v4206, %v4534
      %4536 = vmatmul.bf16.gmra.mxu0 %v2116
      %v4537 = vpop.f32.mrf.mxu0
      %v4538 = vadd.f32 %v4209, %v4537
      %v4539 = vpop.f32.mrf.mxu0
      %v4540 = vadd.f32 %v4211, %v4539
      %4541 = vmatmul.bf16.gmra.mxu0 %v2122
      %v4542 = vpop.f32.mrf.mxu0
      %v4543 = vadd.f32 %v4214, %v4542
      %v4544 = vpop.f32.mrf.mxu0
      %v4545 = vadd.f32 %v4216, %v4544
      %4546 = vmatmul.bf16.gmra.mxu0 %v2128
      %v4547 = vpop.f32.mrf.mxu0
      %v4548 = vadd.f32 %v4219, %v4547
      %v4549 = vpop.f32.mrf.mxu0
      %v4550 = vadd.f32 %v4221, %v4549
      %4551 = vmatmul.bf16.gmra.mxu0 %v2134
      %v4552 = vpop.f32.mrf.mxu0
      %v4553 = vadd.f32 %v4224, %v4552
      %v4554 = vpop.f32.mrf.mxu0
      %v4555 = vadd.f32 %v4226, %v4554
      %4556 = vmatmul.bf16.gmra.mxu0 %v2140
      %v4557 = vpop.f32.mrf.mxu0
      %v4558 = vadd.f32 %v4229, %v4557
      %v4559 = vpop.f32.mrf.mxu0
      %v4560 = vadd.f32 %v4231, %v4559
      %4561 = vmatmul.bf16.gmra.mxu0 %v2146
      %v4562 = vpop.f32.mrf.mxu0
      %v4563 = vadd.f32 %v4234, %v4562
      %v4564 = vpop.f32.mrf.mxu0
      %v4565 = vadd.f32 %v4236, %v4564
      %4566 = vmatmul.bf16.gmra.mxu0 %v2152
      %v4567 = vpop.f32.mrf.mxu0
      %v4568 = vadd.f32 %v4239, %v4567
      %v4569 = vpop.f32.mrf.mxu0
      %v4570 = vadd.f32 %v4241, %v4569
      %4571 = vmatmul.bf16.gmra.mxu0 %v2158
      %v4572 = vpop.f32.mrf.mxu0
      %v4573 = vadd.f32 %v4244, %v4572
      %v4574 = vpop.f32.mrf.mxu0
      %v4575 = vadd.f32 %v4246, %v4574
      %4576 = vmatmul.bf16.gmra.mxu0 %v2164
      %v4577 = vpop.f32.mrf.mxu0
      %v4578 = vadd.f32 %v4249, %v4577
      %v4579 = vpop.f32.mrf.mxu0
      %v4580 = vadd.f32 %v4251, %v4579
      %4581 = vmatmul.bf16.gmra.mxu0 %v2170
      %v4582 = vpop.f32.mrf.mxu0
      %v4583 = vadd.f32 %v4254, %v4582
      %v4584 = vpop.f32.mrf.mxu0
      %v4585 = vadd.f32 %v4256, %v4584
      %4586 = vmatmul.bf16.gmra.mxu0 %v2176
      %v4587 = vpop.f32.mrf.mxu0
      %v4588 = vadd.f32 %v4259, %v4587
      %v4589 = vpop.f32.mrf.mxu0
      %v4590 = vadd.f32 %v4261, %v4589
      %4591 = vmatmul.bf16.gmra.mxu0 %v2182
      %v4592 = vpop.f32.mrf.mxu0
      %v4593 = vadd.f32 %v4264, %v4592
      %v4594 = vpop.f32.mrf.mxu0
      %v4595 = vadd.f32 %v4266, %v4594
      %4596 = vmatmul.bf16.gmra.mxu0 %v2188
      %v4597 = vpop.f32.mrf.mxu0
      %v4598 = vadd.f32 %v4269, %v4597
      %v4599 = vpop.f32.mrf.mxu0
      %v4600 = vadd.f32 %v4271, %v4599
      %4601 = vmatmul.bf16.gmra.mxu0 %v2194
      %v4602 = vpop.f32.mrf.mxu0
      %v4603 = vadd.f32 %v4274, %v4602
      %v4604 = vpop.f32.mrf.mxu0
      %v4605 = vadd.f32 %v4276, %v4604
      %4606 = vmatmul.bf16.gmra.mxu0 %v2200
      %v4607 = vpop.f32.mrf.mxu0
      %v4608 = vadd.f32 %v4279, %v4607
      %v4609 = vpop.f32.mrf.mxu0
      %v4610 = vadd.f32 %v4281, %v4609
      %4611 = vmatmul.bf16.gmra.mxu0 %v2206
      %v4612 = vpop.f32.mrf.mxu0
      %v4613 = vadd.f32 %v4284, %v4612
      %v4614 = vpop.f32.mrf.mxu0
      %v4615 = vadd.f32 %v4286, %v4614
      %4616 = vmatmul.bf16.gmra.mxu0 %v2212
      %v4617 = vpop.f32.mrf.mxu0
      %v4618 = vadd.f32 %v4289, %v4617
      %v4619 = vpop.f32.mrf.mxu0
      %v4620 = vadd.f32 %v4291, %v4619
      %4621 = vmatmul.bf16.gmra.mxu0 %v2218
      %v4622 = vpop.f32.mrf.mxu0
      %v4623 = vadd.f32 %v4294, %v4622
      %v4624 = vpop.f32.mrf.mxu0
      %v4625 = vadd.f32 %v4296, %v4624
      %4626 = vmatmul.bf16.gmra.mxu0 %v2224
      %v4627 = vpop.f32.mrf.mxu0
      %v4628 = vadd.f32 %v4299, %v4627
      %v4629 = vpop.f32.mrf.mxu0
      %v4630 = vadd.f32 %v4301, %v4629
      %4631 = vmatmul.bf16.gmra.mxu0 %v2230
      %v4632 = vpop.f32.mrf.mxu0
      %v4633 = vadd.f32 %v4304, %v4632
      %v4634 = vpop.f32.mrf.mxu0
      %v4635 = vadd.f32 %v4306, %v4634
      %4636 = vdwg.mxu0
      %4637 = vmatpush.bf16.msra.mxu0 0
      %4638 = vmatpush.bf16.msra.mxu0 0
      %4639 = vmatpush.bf16.msra.mxu0 0
      %4640 = vmatpush.bf16.msra.mxu0 0
      %4641 = vmatpush.bf16.msra.mxu0 0
      %4642 = vmatpush.bf16.msra.mxu0 0
      %4643 = vmatpush.bf16.msra.mxu0 0
      %4644 = vmatpush.bf16.msra.mxu0 %v2990
      %4645 = vmatmul.bf16.gmra.mxu0 %v2797
      %v4646 = vpop.f32.mrf.mxu0
      %v4647 = vadd.f32 %v4318, %v4646
      %v4648 = vpop.f32.mrf.mxu0
      %v4649 = vadd.f32 %v4320, %v4648
      %4650 = vmatmul.bf16.gmra.mxu0 %v2800
      %v4651 = vpop.f32.mrf.mxu0
      %v4652 = vadd.f32 %v4323, %v4651
      %v4653 = vpop.f32.mrf.mxu0
      %v4654 = vadd.f32 %v4325, %v4653
      %4655 = vmatmul.bf16.gmra.mxu0 %v2803
      %v4656 = vpop.f32.mrf.mxu0
      %v4657 = vadd.f32 %v4328, %v4656
      %v4658 = vpop.f32.mrf.mxu0
      %v4659 = vadd.f32 %v4330, %v4658
      %4660 = vmatmul.bf16.gmra.mxu0 %v2806
      %v4661 = vpop.f32.mrf.mxu0
      %v4662 = vadd.f32 %v4333, %v4661
      %v4663 = vpop.f32.mrf.mxu0
      %v4664 = vadd.f32 %v4335, %v4663
      %4665 = vmatmul.bf16.gmra.mxu0 %v2809
      %v4666 = vpop.f32.mrf.mxu0
      %v4667 = vadd.f32 %v4338, %v4666
      %v4668 = vpop.f32.mrf.mxu0
      %v4669 = vadd.f32 %v4340, %v4668
      %4670 = vmatmul.bf16.gmra.mxu0 %v2812
      %v4671 = vpop.f32.mrf.mxu0
      %v4672 = vadd.f32 %v4343, %v4671
      %v4673 = vpop.f32.mrf.mxu0
      %v4674 = vadd.f32 %v4345, %v4673
      %4675 = vmatmul.bf16.gmra.mxu0 %v2815
      %v4676 = vpop.f32.mrf.mxu0
      %v4677 = vadd.f32 %v4348, %v4676
      %v4678 = vpop.f32.mrf.mxu0
      %v4679 = vadd.f32 %v4350, %v4678
      %4680 = vmatmul.bf16.gmra.mxu0 %v2818
      %v4681 = vpop.f32.mrf.mxu0
      %v4682 = vadd.f32 %v4353, %v4681
      %v4683 = vpop.f32.mrf.mxu0
      %v4684 = vadd.f32 %v4355, %v4683
      %4685 = vmatmul.bf16.gmra.mxu0 %v2821
      %v4686 = vpop.f32.mrf.mxu0
      %v4687 = vadd.f32 %v4358, %v4686
      %v4688 = vpop.f32.mrf.mxu0
      %v4689 = vadd.f32 %v4360, %v4688
      %4690 = vmatmul.bf16.gmra.mxu0 %v2824
      %v4691 = vpop.f32.mrf.mxu0
      %v4692 = vadd.f32 %v4363, %v4691
      %v4693 = vpop.f32.mrf.mxu0
      %v4694 = vadd.f32 %v4365, %v4693
      %4695 = vmatmul.bf16.gmra.mxu0 %v2827
      %v4696 = vpop.f32.mrf.mxu0
      %v4697 = vadd.f32 %v4368, %v4696
      %v4698 = vpop.f32.mrf.mxu0
      %v4699 = vadd.f32 %v4370, %v4698
      %4700 = vmatmul.bf16.gmra.mxu0 %v2830
      %v4701 = vpop.f32.mrf.mxu0
      %v4702 = vadd.f32 %v4373, %v4701
      %v4703 = vpop.f32.mrf.mxu0
      %v4704 = vadd.f32 %v4375, %v4703
      %4705 = vmatmul.bf16.gmra.mxu0 %v2833
      %v4706 = vpop.f32.mrf.mxu0
      %v4707 = vadd.f32 %v4378, %v4706
      %v4708 = vpop.f32.mrf.mxu0
      %v4709 = vadd.f32 %v4380, %v4708
      %4710 = vmatmul.bf16.gmra.mxu0 %v2836
      %v4711 = vpop.f32.mrf.mxu0
      %v4712 = vadd.f32 %v4383, %v4711
      %v4713 = vpop.f32.mrf.mxu0
      %v4714 = vadd.f32 %v4385, %v4713
      %4715 = vmatmul.bf16.gmra.mxu0 %v2839
      %v4716 = vpop.f32.mrf.mxu0
      %v4717 = vadd.f32 %v4388, %v4716
      %v4718 = vpop.f32.mrf.mxu0
      %v4719 = vadd.f32 %v4390, %v4718
      %4720 = vmatmul.bf16.gmra.mxu0 %v2842
      %v4721 = vpop.f32.mrf.mxu0
      %v4722 = vadd.f32 %v4393, %v4721
      %v4723 = vpop.f32.mrf.mxu0
      %v4724 = vadd.f32 %v4395, %v4723
      %4725 = vmatmul.bf16.gmra.mxu0 %v2845
      %v4726 = vpop.f32.mrf.mxu0
      %v4727 = vadd.f32 %v4398, %v4726
      %v4728 = vpop.f32.mrf.mxu0
      %v4729 = vadd.f32 %v4400, %v4728
      %4730 = vmatmul.bf16.gmra.mxu0 %v2848
      %v4731 = vpop.f32.mrf.mxu0
      %v4732 = vadd.f32 %v4403, %v4731
      %v4733 = vpop.f32.mrf.mxu0
      %v4734 = vadd.f32 %v4405, %v4733
      %4735 = vmatmul.bf16.gmra.mxu0 %v2851
      %v4736 = vpop.f32.mrf.mxu0
      %v4737 = vadd.f32 %v4408, %v4736
      %v4738 = vpop.f32.mrf.mxu0
      %v4739 = vadd.f32 %v4410, %v4738
      %4740 = vmatmul.bf16.gmra.mxu0 %v2854
      %v4741 = vpop.f32.mrf.mxu0
      %v4742 = vadd.f32 %v4413, %v4741
      %v4743 = vpop.f32.mrf.mxu0
      %v4744 = vadd.f32 %v4415, %v4743
      %4745 = vmatmul.bf16.gmra.mxu0 %v2857
      %v4746 = vpop.f32.mrf.mxu0
      %v4747 = vadd.f32 %v4418, %v4746
      %v4748 = vpop.f32.mrf.mxu0
      %v4749 = vadd.f32 %v4420, %v4748
      %4750 = vmatmul.bf16.gmra.mxu0 %v2860
      %v4751 = vpop.f32.mrf.mxu0
      %v4752 = vadd.f32 %v4423, %v4751
      %v4753 = vpop.f32.mrf.mxu0
      %v4754 = vadd.f32 %v4425, %v4753
      %4755 = vmatmul.bf16.gmra.mxu0 %v2863
      %v4756 = vpop.f32.mrf.mxu0
      %v4757 = vadd.f32 %v4428, %v4756
      %v4758 = vpop.f32.mrf.mxu0
      %v4759 = vadd.f32 %v4430, %v4758
      %4760 = vmatmul.bf16.gmra.mxu0 %v2866
      %v4761 = vpop.f32.mrf.mxu0
      %v4762 = vadd.f32 %v4433, %v4761
      %v4763 = vpop.f32.mrf.mxu0
      %v4764 = vadd.f32 %v4435, %v4763
      %4765 = vmatmul.bf16.gmra.mxu0 %v2869
      %v4766 = vpop.f32.mrf.mxu0
      %v4767 = vadd.f32 %v4438, %v4766
      %v4768 = vpop.f32.mrf.mxu0
      %v4769 = vadd.f32 %v4440, %v4768
      %4770 = vmatmul.bf16.gmra.mxu0 %v2872
      %v4771 = vpop.f32.mrf.mxu0
      %v4772 = vadd.f32 %v4443, %v4771
      %v4773 = vpop.f32.mrf.mxu0
      %v4774 = vadd.f32 %v4445, %v4773
      %4775 = vmatmul.bf16.gmra.mxu0 %v2875
      %v4776 = vpop.f32.mrf.mxu0
      %v4777 = vadd.f32 %v4448, %v4776
      %v4778 = vpop.f32.mrf.mxu0
      %v4779 = vadd.f32 %v4450, %v4778
      %4780 = vmatmul.bf16.gmra.mxu0 %v2878
      %v4781 = vpop.f32.mrf.mxu0
      %v4782 = vadd.f32 %v4453, %v4781
      %v4783 = vpop.f32.mrf.mxu0
      %v4784 = vadd.f32 %v4455, %v4783
      %4785 = vmatmul.bf16.gmra.mxu0 %v2881
      %v4786 = vpop.f32.mrf.mxu0
      %v4787 = vadd.f32 %v4458, %v4786
      %v4788 = vpop.f32.mrf.mxu0
      %v4789 = vadd.f32 %v4460, %v4788
      %4790 = vmatmul.bf16.gmra.mxu0 %v2884
      %v4791 = vpop.f32.mrf.mxu0
      %v4792 = vadd.f32 %v4463, %v4791
      %v4793 = vpop.f32.mrf.mxu0
      %v4794 = vadd.f32 %v4465, %v4793
      %4795 = vmatmul.bf16.gmra.mxu0 %v2887
      %v4796 = vpop.f32.mrf.mxu0
      %v4797 = vadd.f32 %v4468, %v4796
      %v4798 = vpop.f32.mrf.mxu0
      %v4799 = vadd.f32 %v4470, %v4798
      %4800 = vmatmul.bf16.gmra.mxu0 %v2890
      %v4801 = vpop.f32.mrf.mxu0
      %v4802 = vadd.f32 %v4473, %v4801
      %v4803 = vpop.f32.mrf.mxu0
      %v4804 = vadd.f32 %v4475, %v4803
      %4805 = vmatmul.bf16.gmra.mxu0 %v2893
      %v4806 = vpop.f32.mrf.mxu0
      %v4807 = vadd.f32 %v4478, %v4806
      %v4808 = vpop.f32.mrf.mxu0
      %v4809 = vadd.f32 %v4480, %v4808
      %4810 = vmatmul.bf16.gmra.mxu0 %v2896
      %v4811 = vpop.f32.mrf.mxu0
      %v4812 = vadd.f32 %v4483, %v4811
      %v4813 = vpop.f32.mrf.mxu0
      %v4814 = vadd.f32 %v4485, %v4813
      %4815 = vmatmul.bf16.gmra.mxu0 %v2899
      %v4816 = vpop.f32.mrf.mxu0
      %v4817 = vadd.f32 %v4488, %v4816
      %v4818 = vpop.f32.mrf.mxu0
      %v4819 = vadd.f32 %v4490, %v4818
      %4820 = vmatmul.bf16.gmra.mxu0 %v2902
      %v4821 = vpop.f32.mrf.mxu0
      %v4822 = vadd.f32 %v4493, %v4821
      %v4823 = vpop.f32.mrf.mxu0
      %v4824 = vadd.f32 %v4495, %v4823
      %4825 = vmatmul.bf16.gmra.mxu0 %v2905
      %v4826 = vpop.f32.mrf.mxu0
      %v4827 = vadd.f32 %v4498, %v4826
      %v4828 = vpop.f32.mrf.mxu0
      %v4829 = vadd.f32 %v4500, %v4828
      %4830 = vmatmul.bf16.gmra.mxu0 %v2908
      %v4831 = vpop.f32.mrf.mxu0
      %v4832 = vadd.f32 %v4503, %v4831
      %v4833 = vpop.f32.mrf.mxu0
      %v4834 = vadd.f32 %v4505, %v4833
      %4835 = vmatmul.bf16.gmra.mxu0 %v2911
      %v4836 = vpop.f32.mrf.mxu0
      %v4837 = vadd.f32 %v4508, %v4836
      %v4838 = vpop.f32.mrf.mxu0
      %v4839 = vadd.f32 %v4510, %v4838
      %4840 = vmatmul.bf16.gmra.mxu0 %v2914
      %v4841 = vpop.f32.mrf.mxu0
      %v4842 = vadd.f32 %v4513, %v4841
      %v4843 = vpop.f32.mrf.mxu0
      %v4844 = vadd.f32 %v4515, %v4843
      %4845 = vmatmul.bf16.gmra.mxu0 %v2917
      %v4846 = vpop.f32.mrf.mxu0
      %v4847 = vadd.f32 %v4518, %v4846
      %v4848 = vpop.f32.mrf.mxu0
      %v4849 = vadd.f32 %v4520, %v4848
      %4850 = vmatmul.bf16.gmra.mxu0 %v2920
      %v4851 = vpop.f32.mrf.mxu0
      %v4852 = vadd.f32 %v4523, %v4851
      %v4853 = vpop.f32.mrf.mxu0
      %v4854 = vadd.f32 %v4525, %v4853
      %4855 = vmatmul.bf16.gmra.mxu0 %v2923
      %v4856 = vpop.f32.mrf.mxu0
      %v4857 = vadd.f32 %v4528, %v4856
      %v4858 = vpop.f32.mrf.mxu0
      %v4859 = vadd.f32 %v4530, %v4858
      %4860 = vmatmul.bf16.gmra.mxu0 %v2926
      %v4861 = vpop.f32.mrf.mxu0
      %v4862 = vadd.f32 %v4533, %v4861
      %v4863 = vpop.f32.mrf.mxu0
      %v4864 = vadd.f32 %v4535, %v4863
      %4865 = vmatmul.bf16.gmra.mxu0 %v2929
      %v4866 = vpop.f32.mrf.mxu0
      %v4867 = vadd.f32 %v4538, %v4866
      %v4868 = vpop.f32.mrf.mxu0
      %v4869 = vadd.f32 %v4540, %v4868
      %4870 = vmatmul.bf16.gmra.mxu0 %v2932
      %v4871 = vpop.f32.mrf.mxu0
      %v4872 = vadd.f32 %v4543, %v4871
      %v4873 = vpop.f32.mrf.mxu0
      %v4874 = vadd.f32 %v4545, %v4873
      %4875 = vmatmul.bf16.gmra.mxu0 %v2935
      %v4876 = vpop.f32.mrf.mxu0
      %v4877 = vadd.f32 %v4548, %v4876
      %v4878 = vpop.f32.mrf.mxu0
      %v4879 = vadd.f32 %v4550, %v4878
      %4880 = vmatmul.bf16.gmra.mxu0 %v2938
      %v4881 = vpop.f32.mrf.mxu0
      %v4882 = vadd.f32 %v4553, %v4881
      %v4883 = vpop.f32.mrf.mxu0
      %v4884 = vadd.f32 %v4555, %v4883
      %4885 = vmatmul.bf16.gmra.mxu0 %v2941
      %v4886 = vpop.f32.mrf.mxu0
      %v4887 = vadd.f32 %v4558, %v4886
      %v4888 = vpop.f32.mrf.mxu0
      %v4889 = vadd.f32 %v4560, %v4888
      %4890 = vmatmul.bf16.gmra.mxu0 %v2944
      %v4891 = vpop.f32.mrf.mxu0
      %v4892 = vadd.f32 %v4563, %v4891
      %v4893 = vpop.f32.mrf.mxu0
      %v4894 = vadd.f32 %v4565, %v4893
      %4895 = vmatmul.bf16.gmra.mxu0 %v2947
      %v4896 = vpop.f32.mrf.mxu0
      %v4897 = vadd.f32 %v4568, %v4896
      %v4898 = vpop.f32.mrf.mxu0
      %v4899 = vadd.f32 %v4570, %v4898
      %4900 = vmatmul.bf16.gmra.mxu0 %v2950
      %v4901 = vpop.f32.mrf.mxu0
      %v4902 = vadd.f32 %v4573, %v4901
      %v4903 = vpop.f32.mrf.mxu0
      %v4904 = vadd.f32 %v4575, %v4903
      %4905 = vmatmul.bf16.gmra.mxu0 %v2953
      %v4906 = vpop.f32.mrf.mxu0
      %v4907 = vadd.f32 %v4578, %v4906
      %v4908 = vpop.f32.mrf.mxu0
      %v4909 = vadd.f32 %v4580, %v4908
      %4910 = vmatmul.bf16.gmra.mxu0 %v2956
      %v4911 = vpop.f32.mrf.mxu0
      %v4912 = vadd.f32 %v4583, %v4911
      %v4913 = vpop.f32.mrf.mxu0
      %v4914 = vadd.f32 %v4585, %v4913
      %4915 = vmatmul.bf16.gmra.mxu0 %v2959
      %v4916 = vpop.f32.mrf.mxu0
      %v4917 = vadd.f32 %v4588, %v4916
      %v4918 = vpop.f32.mrf.mxu0
      %v4919 = vadd.f32 %v4590, %v4918
      %4920 = vmatmul.bf16.gmra.mxu0 %v2962
      %v4921 = vpop.f32.mrf.mxu0
      %v4922 = vadd.f32 %v4593, %v4921
      %v4923 = vpop.f32.mrf.mxu0
      %v4924 = vadd.f32 %v4595, %v4923
      %4925 = vmatmul.bf16.gmra.mxu0 %v2965
      %v4926 = vpop.f32.mrf.mxu0
      %v4927 = vadd.f32 %v4598, %v4926
      %v4928 = vpop.f32.mrf.mxu0
      %v4929 = vadd.f32 %v4600, %v4928
      %4930 = vmatmul.bf16.gmra.mxu0 %v2968
      %v4931 = vpop.f32.mrf.mxu0
      %v4932 = vadd.f32 %v4603, %v4931
      %v4933 = vpop.f32.mrf.mxu0
      %v4934 = vadd.f32 %v4605, %v4933
      %4935 = vmatmul.bf16.gmra.mxu0 %v2971
      %v4936 = vpop.f32.mrf.mxu0
      %v4937 = vadd.f32 %v4608, %v4936
      %v4938 = vpop.f32.mrf.mxu0
      %v4939 = vadd.f32 %v4610, %v4938
      %4940 = vmatmul.bf16.gmra.mxu0 %v2974
      %v4941 = vpop.f32.mrf.mxu0
      %v4942 = vadd.f32 %v4613, %v4941
      %v4943 = vpop.f32.mrf.mxu0
      %v4944 = vadd.f32 %v4615, %v4943
      %4945 = vmatmul.bf16.gmra.mxu0 %v2977
      %v4946 = vpop.f32.mrf.mxu0
      %v4947 = vadd.f32 %v4618, %v4946
      %v4948 = vpop.f32.mrf.mxu0
      %v4949 = vadd.f32 %v4620, %v4948
      %4950 = vmatmul.bf16.gmra.mxu0 %v2980
      %v4951 = vpop.f32.mrf.mxu0
      %v4952 = vadd.f32 %v4623, %v4951
      %v4953 = vpop.f32.mrf.mxu0
      %v4954 = vadd.f32 %v4625, %v4953
      %4955 = vmatmul.bf16.gmra.mxu0 %v2983
      %v4956 = vpop.f32.mrf.mxu0
      %v4957 = vadd.f32 %v4628, %v4956
      %v4958 = vpop.f32.mrf.mxu0
      %v4959 = vadd.f32 %v4630, %v4958
      %4960 = vmatmul.bf16.gmra.mxu0 %v2986
      %v4961 = vpop.f32.mrf.mxu0
      %v4962 = vadd.f32 %v4633, %v4961
      %v4963 = vpop.f32.mrf.mxu0
      %v4964 = vadd.f32 %v4635, %v4963
      %4965 = vdwg.mxu0
      %v4966 = vld [vmem:[%s218] sm:$0xff]
      %v4967 = vld [vmem:[%s218 + $0x8] sm:$0xff]
      %v4968 = vld [vmem:[%s218 + $0x10] sm:$0xff]
      %v4969 = vld [vmem:[%s218 + $0x18] sm:$0xff]
      %v4970 = vld [vmem:[%s218 + $0x20] sm:$0xff]
      %v4971 = vld [vmem:[%s218 + $0x28] sm:$0xff]
      %v4972 = vld [vmem:[%s218 + $0x30] sm:$0xff]
      %v4973 = vld [vmem:[%s218 + $0x38] sm:$0xff]
      %v4974 = vld [vmem:[%s218 + $0x40] sm:$0xff]
      %v4975 = vld [vmem:[%s218 + $0x48] sm:$0xff]
      %v4976 = vld [vmem:[%s218 + $0x50] sm:$0xff]
      %v4977 = vld [vmem:[%s218 + $0x58] sm:$0xff]
      %v4978 = vld [vmem:[%s218 + $0x60] sm:$0xff]
      %v4979 = vld [vmem:[%s218 + $0x68] sm:$0xff]
      %v4980 = vld [vmem:[%s218 + $0x70] sm:$0xff]
      %v4981 = vld [vmem:[%s218 + $0x78] sm:$0xff]
      %v4982 = vld [vmem:[%s218 + $0x80] sm:$0xff]
      %v4983 = vld [vmem:[%s218 + $0x88] sm:$0xff]
      %v4984 = vld [vmem:[%s218 + $0x90] sm:$0xff]
      %v4985 = vld [vmem:[%s218 + $0x98] sm:$0xff]
      %v4986 = vld [vmem:[%s218 + $0xa0] sm:$0xff]
      %v4987 = vld [vmem:[%s218 + $0xa8] sm:$0xff]
      %v4988 = vld [vmem:[%s218 + $0xb0] sm:$0xff]
      %v4989 = vld [vmem:[%s218 + $0xb8] sm:$0xff]
      %v4990 = vld [vmem:[%s218 + $0xc0] sm:$0xff]
      %v4991 = vld [vmem:[%s218 + $0xc8] sm:$0xff]
      %v4992 = vld [vmem:[%s218 + $0xd0] sm:$0xff]
      %v4993 = vld [vmem:[%s218 + $0xd8] sm:$0xff]
      %v4994 = vld [vmem:[%s218 + $0xe0] sm:$0xff]
      %v4995 = vld [vmem:[%s218 + $0xe8] sm:$0xff]
      %v4996 = vld [vmem:[%s218 + $0xf0] sm:$0xff]
      %v4997 = vld [vmem:[%s218 + $0xf8] sm:$0xff]
      %v4998 = vld [vmem:[%s218 + $0x100] sm:$0xff]
      %v4999 = vld [vmem:[%s218 + $0x108] sm:$0xff]
      %v5000 = vld [vmem:[%s218 + $0x110] sm:$0xff]
      %v5001 = vld [vmem:[%s218 + $0x118] sm:$0xff]
      %v5002 = vld [vmem:[%s218 + $0x120] sm:$0xff]
      %v5003 = vld [vmem:[%s218 + $0x128] sm:$0xff]
      %v5004 = vld [vmem:[%s218 + $0x130] sm:$0xff]
      %v5005 = vld [vmem:[%s218 + $0x138] sm:$0xff]
      %v5006 = vld [vmem:[%s218 + $0x140] sm:$0xff]
      %v5007 = vld [vmem:[%s218 + $0x148] sm:$0xff]
      %v5008 = vld [vmem:[%s218 + $0x150] sm:$0xff]
      %v5009 = vld [vmem:[%s218 + $0x158] sm:$0xff]
      %v5010 = vld [vmem:[%s218 + $0x160] sm:$0xff]
      %v5011 = vld [vmem:[%s218 + $0x168] sm:$0xff]
      %v5012 = vld [vmem:[%s218 + $0x170] sm:$0xff]
      %v5013 = vld [vmem:[%s218 + $0x178] sm:$0xff]
      %v5014 = vld [vmem:[%s218 + $0x180] sm:$0xff]
      %v5015 = vld [vmem:[%s218 + $0x188] sm:$0xff]
      %v5016 = vld [vmem:[%s218 + $0x190] sm:$0xff]
      %v5017 = vld [vmem:[%s218 + $0x198] sm:$0xff]
      %v5018 = vld [vmem:[%s218 + $0x1a0] sm:$0xff]
      %v5019 = vld [vmem:[%s218 + $0x1a8] sm:$0xff]
      %v5020 = vld [vmem:[%s218 + $0x1b0] sm:$0xff]
      %v5021 = vld [vmem:[%s218 + $0x1b8] sm:$0xff]
      %v5022 = vld [vmem:[%s218 + $0x1c0] sm:$0xff]
      %v5023 = vld [vmem:[%s218 + $0x1c8] sm:$0xff]
      %v5024 = vld [vmem:[%s218 + $0x1d0] sm:$0xff]
      %v5025 = vld [vmem:[%s218 + $0x1d8] sm:$0xff]
      %v5026 = vld [vmem:[%s218 + $0x1e0] sm:$0xff]
      %v5027 = vld [vmem:[%s218 + $0x1e8] sm:$0xff]
      %v5028 = vld [vmem:[%s218 + $0x1f0] sm:$0xff]
      %v5029 = vld [vmem:[%s218 + $0x1f8] sm:$0xff]
      %v5030 = vld [vmem:[%s218 + $0x200] sm:$0xff]
      %v5031 = vld [vmem:[%s218 + $0x208] sm:$0xff]
      %v5032 = vld [vmem:[%s218 + $0x210] sm:$0xff]
      %v5033 = vld [vmem:[%s218 + $0x218] sm:$0xff]
      %v5034 = vld [vmem:[%s218 + $0x220] sm:$0xff]
      %v5035 = vld [vmem:[%s218 + $0x228] sm:$0xff]
      %v5036 = vld [vmem:[%s218 + $0x230] sm:$0xff]
      %v5037 = vld [vmem:[%s218 + $0x238] sm:$0xff]
      %v5038 = vld [vmem:[%s218 + $0x240] sm:$0xff]
      %v5039 = vld [vmem:[%s218 + $0x248] sm:$0xff]
      %v5040 = vld [vmem:[%s218 + $0x250] sm:$0xff]
      %v5041 = vld [vmem:[%s218 + $0x258] sm:$0xff]
      %v5042 = vld [vmem:[%s218 + $0x260] sm:$0xff]
      %v5043 = vld [vmem:[%s218 + $0x268] sm:$0xff]
      %v5044 = vld [vmem:[%s218 + $0x270] sm:$0xff]
      %v5045 = vld [vmem:[%s218 + $0x278] sm:$0xff]
      %v5046 = vld [vmem:[%s218 + $0x280] sm:$0xff]
      %v5047 = vld [vmem:[%s218 + $0x288] sm:$0xff]
      %v5048 = vld [vmem:[%s218 + $0x290] sm:$0xff]
      %v5049 = vld [vmem:[%s218 + $0x298] sm:$0xff]
      %v5050 = vld [vmem:[%s218 + $0x2a0] sm:$0xff]
      %v5051 = vld [vmem:[%s218 + $0x2a8] sm:$0xff]
      %v5052 = vld [vmem:[%s218 + $0x2b0] sm:$0xff]
      %v5053 = vld [vmem:[%s218 + $0x2b8] sm:$0xff]
      %v5054 = vld [vmem:[%s218 + $0x2c0] sm:$0xff]
      %v5055 = vld [vmem:[%s218 + $0x2c8] sm:$0xff]
      %v5056 = vld [vmem:[%s218 + $0x2d0] sm:$0xff]
      %v5057 = vld [vmem:[%s218 + $0x2d8] sm:$0xff]
      %v5058 = vld [vmem:[%s218 + $0x2e0] sm:$0xff]
      %v5059 = vld [vmem:[%s218 + $0x2e8] sm:$0xff]
      %v5060 = vld [vmem:[%s218 + $0x2f0] sm:$0xff]
      %v5061 = vld [vmem:[%s218 + $0x2f8] sm:$0xff]
      %v5062 = vld [vmem:[%s218 + $0x300] sm:$0xff]
      %v5063 = vld [vmem:[%s218 + $0x308] sm:$0xff]
      %v5064 = vld [vmem:[%s218 + $0x310] sm:$0xff]
      %v5065 = vld [vmem:[%s218 + $0x318] sm:$0xff]
      %v5066 = vld [vmem:[%s218 + $0x320] sm:$0xff]
      %v5067 = vld [vmem:[%s218 + $0x328] sm:$0xff]
      %v5068 = vld [vmem:[%s218 + $0x330] sm:$0xff]
      %v5069 = vld [vmem:[%s218 + $0x338] sm:$0xff]
      %v5070 = vld [vmem:[%s218 + $0x340] sm:$0xff]
      %v5071 = vld [vmem:[%s218 + $0x348] sm:$0xff]
      %v5072 = vld [vmem:[%s218 + $0x350] sm:$0xff]
      %v5073 = vld [vmem:[%s218 + $0x358] sm:$0xff]
      %v5074 = vld [vmem:[%s218 + $0x360] sm:$0xff]
      %v5075 = vld [vmem:[%s218 + $0x368] sm:$0xff]
      %v5076 = vld [vmem:[%s218 + $0x370] sm:$0xff]
      %v5077 = vld [vmem:[%s218 + $0x378] sm:$0xff]
      %v5078 = vld [vmem:[%s218 + $0x380] sm:$0xff]
      %v5079 = vld [vmem:[%s218 + $0x388] sm:$0xff]
      %v5080 = vld [vmem:[%s218 + $0x390] sm:$0xff]
      %v5081 = vld [vmem:[%s218 + $0x398] sm:$0xff]
      %v5082 = vld [vmem:[%s218 + $0x3a0] sm:$0xff]
      %v5083 = vld [vmem:[%s218 + $0x3a8] sm:$0xff]
      %v5084 = vld [vmem:[%s218 + $0x3b0] sm:$0xff]
      %v5085 = vld [vmem:[%s218 + $0x3b8] sm:$0xff]
      %v5086 = vld [vmem:[%s218 + $0x3c0] sm:$0xff]
      %v5087 = vld [vmem:[%s218 + $0x3c8] sm:$0xff]
      %v5088 = vld [vmem:[%s218 + $0x3d0] sm:$0xff]
      %v5089 = vld [vmem:[%s218 + $0x3d8] sm:$0xff]
      %v5090 = vld [vmem:[%s218 + $0x3e0] sm:$0xff]
      %v5091 = vld [vmem:[%s218 + $0x3e8] sm:$0xff]
      %v5092 = vld [vmem:[%s218 + $0x3f0] sm:$0xff]
      %v5093 = vld [vmem:[%s218 + $0x3f8] sm:$0xff]
      %v5094 = vadd.f32 %v4647, %v4966
      %v5095 = vadd.f32 %v4649, %v4967
      %v5096 = vadd.f32 %v4652, %v4968
      %v5097 = vadd.f32 %v4654, %v4969
      %v5098 = vadd.f32 %v4657, %v4970
      %v5099 = vadd.f32 %v4659, %v4971
      %v5100 = vadd.f32 %v4662, %v4972
      %v5101 = vadd.f32 %v4664, %v4973
      %v5102 = vadd.f32 %v4667, %v4974
      %v5103 = vadd.f32 %v4669, %v4975
      %v5104 = vadd.f32 %v4672, %v4976
      %v5105 = vadd.f32 %v4674, %v4977
      %v5106 = vadd.f32 %v4677, %v4978
      %v5107 = vadd.f32 %v4679, %v4979
      %v5108 = vadd.f32 %v4682, %v4980
      %v5109 = vadd.f32 %v4684, %v4981
      %v5110 = vadd.f32 %v4687, %v4982
      %v5111 = vadd.f32 %v4689, %v4983
      %v5112 = vadd.f32 %v4692, %v4984
      %v5113 = vadd.f32 %v4694, %v4985
      %v5114 = vadd.f32 %v4697, %v4986
      %v5115 = vadd.f32 %v4699, %v4987
      %v5116 = vadd.f32 %v4702, %v4988
      %v5117 = vadd.f32 %v4704, %v4989
      %v5118 = vadd.f32 %v4707, %v4990
      %v5119 = vadd.f32 %v4709, %v4991
      %v5120 = vadd.f32 %v4712, %v4992
      %v5121 = vadd.f32 %v4714, %v4993
      %v5122 = vadd.f32 %v4717, %v4994
      %v5123 = vadd.f32 %v4719, %v4995
      %v5124 = vadd.f32 %v4722, %v4996
      %v5125 = vadd.f32 %v4724, %v4997
      %v5126 = vadd.f32 %v4727, %v4998
      %v5127 = vadd.f32 %v4729, %v4999
      %v5128 = vadd.f32 %v4732, %v5000
      %v5129 = vadd.f32 %v4734, %v5001
      %v5130 = vadd.f32 %v4737, %v5002
      %v5131 = vadd.f32 %v4739, %v5003
      %v5132 = vadd.f32 %v4742, %v5004
      %v5133 = vadd.f32 %v4744, %v5005
      %v5134 = vadd.f32 %v4747, %v5006
      %v5135 = vadd.f32 %v4749, %v5007
      %v5136 = vadd.f32 %v4752, %v5008
      %v5137 = vadd.f32 %v4754, %v5009
      %v5138 = vadd.f32 %v4757, %v5010
      %v5139 = vadd.f32 %v4759, %v5011
      %v5140 = vadd.f32 %v4762, %v5012
      %v5141 = vadd.f32 %v4764, %v5013
      %v5142 = vadd.f32 %v4767, %v5014
      %v5143 = vadd.f32 %v4769, %v5015
      %v5144 = vadd.f32 %v4772, %v5016
      %v5145 = vadd.f32 %v4774, %v5017
      %v5146 = vadd.f32 %v4777, %v5018
      %v5147 = vadd.f32 %v4779, %v5019
      %v5148 = vadd.f32 %v4782, %v5020
      %v5149 = vadd.f32 %v4784, %v5021
      %v5150 = vadd.f32 %v4787, %v5022
      %v5151 = vadd.f32 %v4789, %v5023
      %v5152 = vadd.f32 %v4792, %v5024
      %v5153 = vadd.f32 %v4794, %v5025
      %v5154 = vadd.f32 %v4797, %v5026
      %v5155 = vadd.f32 %v4799, %v5027
      %v5156 = vadd.f32 %v4802, %v5028
      %v5157 = vadd.f32 %v4804, %v5029
      %v5158 = vadd.f32 %v4807, %v5030
      %v5159 = vadd.f32 %v4809, %v5031
      %v5160 = vadd.f32 %v4812, %v5032
      %v5161 = vadd.f32 %v4814, %v5033
      %v5162 = vadd.f32 %v4817, %v5034
      %v5163 = vadd.f32 %v4819, %v5035
      %v5164 = vadd.f32 %v4822, %v5036
      %v5165 = vadd.f32 %v4824, %v5037
      %v5166 = vadd.f32 %v4827, %v5038
      %v5167 = vadd.f32 %v4829, %v5039
      %v5168 = vadd.f32 %v4832, %v5040
      %v5169 = vadd.f32 %v4834, %v5041
      %v5170 = vadd.f32 %v4837, %v5042
      %v5171 = vadd.f32 %v4839, %v5043
      %v5172 = vadd.f32 %v4842, %v5044
      %v5173 = vadd.f32 %v4844, %v5045
      %v5174 = vadd.f32 %v4847, %v5046
      %v5175 = vadd.f32 %v4849, %v5047
      %v5176 = vadd.f32 %v4852, %v5048
      %v5177 = vadd.f32 %v4854, %v5049
      %v5178 = vadd.f32 %v4857, %v5050
      %v5179 = vadd.f32 %v4859, %v5051
      %v5180 = vadd.f32 %v4862, %v5052
      %v5181 = vadd.f32 %v4864, %v5053
      %v5182 = vadd.f32 %v4867, %v5054
      %v5183 = vadd.f32 %v4869, %v5055
      %v5184 = vadd.f32 %v4872, %v5056
      %v5185 = vadd.f32 %v4874, %v5057
      %v5186 = vadd.f32 %v4877, %v5058
      %v5187 = vadd.f32 %v4879, %v5059
      %v5188 = vadd.f32 %v4882, %v5060
      %v5189 = vadd.f32 %v4884, %v5061
      %v5190 = vadd.f32 %v4887, %v5062
      %v5191 = vadd.f32 %v4889, %v5063
      %v5192 = vadd.f32 %v4892, %v5064
      %v5193 = vadd.f32 %v4894, %v5065
      %v5194 = vadd.f32 %v4897, %v5066
      %v5195 = vadd.f32 %v4899, %v5067
      %v5196 = vadd.f32 %v4902, %v5068
      %v5197 = vadd.f32 %v4904, %v5069
      %v5198 = vadd.f32 %v4907, %v5070
      %v5199 = vadd.f32 %v4909, %v5071
      %v5200 = vadd.f32 %v4912, %v5072
      %v5201 = vadd.f32 %v4914, %v5073
      %v5202 = vadd.f32 %v4917, %v5074
      %v5203 = vadd.f32 %v4919, %v5075
      %v5204 = vadd.f32 %v4922, %v5076
      %v5205 = vadd.f32 %v4924, %v5077
      %v5206 = vadd.f32 %v4927, %v5078
      %v5207 = vadd.f32 %v4929, %v5079
      %v5208 = vadd.f32 %v4932, %v5080
      %v5209 = vadd.f32 %v4934, %v5081
      %v5210 = vadd.f32 %v4937, %v5082
      %v5211 = vadd.f32 %v4939, %v5083
      %v5212 = vadd.f32 %v4942, %v5084
      %v5213 = vadd.f32 %v4944, %v5085
      %v5214 = vadd.f32 %v4947, %v5086
      %v5215 = vadd.f32 %v4949, %v5087
      %v5216 = vadd.f32 %v4952, %v5088
      %v5217 = vadd.f32 %v4954, %v5089
      %v5218 = vadd.f32 %v4957, %v5090
      %v5219 = vadd.f32 %v4959, %v5091
      %v5220 = vadd.f32 %v4962, %v5092
      %v5221 = vadd.f32 %v4964, %v5093
      %5222 = vst.msk [vmem:[%s224] sm:$0xff] %vm2795, %v5094
      %5223 = vst.msk [vmem:[%s224 + $0x8] sm:$0xff] %vm2795, %v5095
      %5224 = vst.msk [vmem:[%s224 + $0x10] sm:$0xff] %vm2795, %v5096
      %5225 = vst.msk [vmem:[%s224 + $0x18] sm:$0xff] %vm2795, %v5097
      %5226 = vst.msk [vmem:[%s224 + $0x20] sm:$0xff] %vm2795, %v5098
      %5227 = vst.msk [vmem:[%s224 + $0x28] sm:$0xff] %vm2795, %v5099
      %5228 = vst.msk [vmem:[%s224 + $0x30] sm:$0xff] %vm2795, %v5100
      %5229 = vst.msk [vmem:[%s224 + $0x38] sm:$0xff] %vm2795, %v5101
      %5230 = vst.msk [vmem:[%s224 + $0x40] sm:$0xff] %vm2795, %v5102
      %5231 = vst.msk [vmem:[%s224 + $0x48] sm:$0xff] %vm2795, %v5103
      %5232 = vst.msk [vmem:[%s224 + $0x50] sm:$0xff] %vm2795, %v5104
      %5233 = vst.msk [vmem:[%s224 + $0x58] sm:$0xff] %vm2795, %v5105
      %5234 = vst.msk [vmem:[%s224 + $0x60] sm:$0xff] %vm2795, %v5106
      %5235 = vst.msk [vmem:[%s224 + $0x68] sm:$0xff] %vm2795, %v5107
      %5236 = vst.msk [vmem:[%s224 + $0x70] sm:$0xff] %vm2795, %v5108
      %5237 = vst.msk [vmem:[%s224 + $0x78] sm:$0xff] %vm2795, %v5109
      %5238 = vst.msk [vmem:[%s224 + $0x80] sm:$0xff] %vm2795, %v5110
      %5239 = vst.msk [vmem:[%s224 + $0x88] sm:$0xff] %vm2795, %v5111
      %5240 = vst.msk [vmem:[%s224 + $0x90] sm:$0xff] %vm2795, %v5112
      %5241 = vst.msk [vmem:[%s224 + $0x98] sm:$0xff] %vm2795, %v5113
      %5242 = vst.msk [vmem:[%s224 + $0xa0] sm:$0xff] %vm2795, %v5114
      %5243 = vst.msk [vmem:[%s224 + $0xa8] sm:$0xff] %vm2795, %v5115
      %5244 = vst.msk [vmem:[%s224 + $0xb0] sm:$0xff] %vm2795, %v5116
      %5245 = vst.msk [vmem:[%s224 + $0xb8] sm:$0xff] %vm2795, %v5117
      %5246 = vst.msk [vmem:[%s224 + $0xc0] sm:$0xff] %vm2795, %v5118
      %5247 = vst.msk [vmem:[%s224 + $0xc8] sm:$0xff] %vm2795, %v5119
      %5248 = vst.msk [vmem:[%s224 + $0xd0] sm:$0xff] %vm2795, %v5120
      %5249 = vst.msk [vmem:[%s224 + $0xd8] sm:$0xff] %vm2795, %v5121
      %5250 = vst.msk [vmem:[%s224 + $0xe0] sm:$0xff] %vm2795, %v5122
      %5251 = vst.msk [vmem:[%s224 + $0xe8] sm:$0xff] %vm2795, %v5123
      %5252 = vst.msk [vmem:[%s224 + $0xf0] sm:$0xff] %vm2795, %v5124
      %5253 = vst.msk [vmem:[%s224 + $0xf8] sm:$0xff] %vm2795, %v5125
      %5254 = vst.msk [vmem:[%s224 + $0x100] sm:$0xff] %vm2795, %v5126
      %5255 = vst.msk [vmem:[%s224 + $0x108] sm:$0xff] %vm2795, %v5127
      %5256 = vst.msk [vmem:[%s224 + $0x110] sm:$0xff] %vm2795, %v5128
      %5257 = vst.msk [vmem:[%s224 + $0x118] sm:$0xff] %vm2795, %v5129
      %5258 = vst.msk [vmem:[%s224 + $0x120] sm:$0xff] %vm2795, %v5130
      %5259 = vst.msk [vmem:[%s224 + $0x128] sm:$0xff] %vm2795, %v5131
      %5260 = vst.msk [vmem:[%s224 + $0x130] sm:$0xff] %vm2795, %v5132
      %5261 = vst.msk [vmem:[%s224 + $0x138] sm:$0xff] %vm2795, %v5133
      %5262 = vst.msk [vmem:[%s224 + $0x140] sm:$0xff] %vm2795, %v5134
      %5263 = vst.msk [vmem:[%s224 + $0x148] sm:$0xff] %vm2795, %v5135
      %5264 = vst.msk [vmem:[%s224 + $0x150] sm:$0xff] %vm2795, %v5136
      %5265 = vst.msk [vmem:[%s224 + $0x158] sm:$0xff] %vm2795, %v5137
      %5266 = vst.msk [vmem:[%s224 + $0x160] sm:$0xff] %vm2795, %v5138
      %5267 = vst.msk [vmem:[%s224 + $0x168] sm:$0xff] %vm2795, %v5139
      %5268 = vst.msk [vmem:[%s224 + $0x170] sm:$0xff] %vm2795, %v5140
      %5269 = vst.msk [vmem:[%s224 + $0x178] sm:$0xff] %vm2795, %v5141
      %5270 = vst.msk [vmem:[%s224 + $0x180] sm:$0xff] %vm2795, %v5142
      %5271 = vst.msk [vmem:[%s224 + $0x188] sm:$0xff] %vm2795, %v5143
      %5272 = vst.msk [vmem:[%s224 + $0x190] sm:$0xff] %vm2795, %v5144
      %5273 = vst.msk [vmem:[%s224 + $0x198] sm:$0xff] %vm2795, %v5145
      %5274 = vst.msk [vmem:[%s224 + $0x1a0] sm:$0xff] %vm2795, %v5146
      %5275 = vst.msk [vmem:[%s224 + $0x1a8] sm:$0xff] %vm2795, %v5147
      %5276 = vst.msk [vmem:[%s224 + $0x1b0] sm:$0xff] %vm2795, %v5148
      %5277 = vst.msk [vmem:[%s224 + $0x1b8] sm:$0xff] %vm2795, %v5149
      %5278 = vst.msk [vmem:[%s224 + $0x1c0] sm:$0xff] %vm2795, %v5150
      %5279 = vst.msk [vmem:[%s224 + $0x1c8] sm:$0xff] %vm2795, %v5151
      %5280 = vst.msk [vmem:[%s224 + $0x1d0] sm:$0xff] %vm2795, %v5152
      %5281 = vst.msk [vmem:[%s224 + $0x1d8] sm:$0xff] %vm2795, %v5153
      %5282 = vst.msk [vmem:[%s224 + $0x1e0] sm:$0xff] %vm2795, %v5154
      %5283 = vst.msk [vmem:[%s224 + $0x1e8] sm:$0xff] %vm2795, %v5155
      %5284 = vst.msk [vmem:[%s224 + $0x1f0] sm:$0xff] %vm2795, %v5156
      %5285 = vst.msk [vmem:[%s224 + $0x1f8] sm:$0xff] %vm2795, %v5157
      %5286 = vst.msk [vmem:[%s224 + $0x200] sm:$0xff] %vm2795, %v5158
      %5287 = vst.msk [vmem:[%s224 + $0x208] sm:$0xff] %vm2795, %v5159
      %5288 = vst.msk [vmem:[%s224 + $0x210] sm:$0xff] %vm2795, %v5160
      %5289 = vst.msk [vmem:[%s224 + $0x218] sm:$0xff] %vm2795, %v5161
      %5290 = vst.msk [vmem:[%s224 + $0x220] sm:$0xff] %vm2795, %v5162
      %5291 = vst.msk [vmem:[%s224 + $0x228] sm:$0xff] %vm2795, %v5163
      %5292 = vst.msk [vmem:[%s224 + $0x230] sm:$0xff] %vm2795, %v5164
      %5293 = vst.msk [vmem:[%s224 + $0x238] sm:$0xff] %vm2795, %v5165
      %5294 = vst.msk [vmem:[%s224 + $0x240] sm:$0xff] %vm2795, %v5166
      %5295 = vst.msk [vmem:[%s224 + $0x248] sm:$0xff] %vm2795, %v5167
      %5296 = vst.msk [vmem:[%s224 + $0x250] sm:$0xff] %vm2795, %v5168
      %5297 = vst.msk [vmem:[%s224 + $0x258] sm:$0xff] %vm2795, %v5169
      %5298 = vst.msk [vmem:[%s224 + $0x260] sm:$0xff] %vm2795, %v5170
      %5299 = vst.msk [vmem:[%s224 + $0x268] sm:$0xff] %vm2795, %v5171
      %5300 = vst.msk [vmem:[%s224 + $0x270] sm:$0xff] %vm2795, %v5172
      %5301 = vst.msk [vmem:[%s224 + $0x278] sm:$0xff] %vm2795, %v5173
      %5302 = vst.msk [vmem:[%s224 + $0x280] sm:$0xff] %vm2795, %v5174
      %5303 = vst.msk [vmem:[%s224 + $0x288] sm:$0xff] %vm2795, %v5175
      %5304 = vst.msk [vmem:[%s224 + $0x290] sm:$0xff] %vm2795, %v5176
      %5305 = vst.msk [vmem:[%s224 + $0x298] sm:$0xff] %vm2795, %v5177
      %5306 = vst.msk [vmem:[%s224 + $0x2a0] sm:$0xff] %vm2795, %v5178
      %5307 = vst.msk [vmem:[%s224 + $0x2a8] sm:$0xff] %vm2795, %v5179
      %5308 = vst.msk [vmem:[%s224 + $0x2b0] sm:$0xff] %vm2795, %v5180
      %5309 = vst.msk [vmem:[%s224 + $0x2b8] sm:$0xff] %vm2795, %v5181
      %5310 = vst.msk [vmem:[%s224 + $0x2c0] sm:$0xff] %vm2795, %v5182
      %5311 = vst.msk [vmem:[%s224 + $0x2c8] sm:$0xff] %vm2795, %v5183
      %5312 = vst.msk [vmem:[%s224 + $0x2d0] sm:$0xff] %vm2795, %v5184
      %5313 = vst.msk [vmem:[%s224 + $0x2d8] sm:$0xff] %vm2795, %v5185
      %5314 = vst.msk [vmem:[%s224 + $0x2e0] sm:$0xff] %vm2795, %v5186
      %5315 = vst.msk [vmem:[%s224 + $0x2e8] sm:$0xff] %vm2795, %v5187
      %5316 = vst.msk [vmem:[%s224 + $0x2f0] sm:$0xff] %vm2795, %v5188
      %5317 = vst.msk [vmem:[%s224 + $0x2f8] sm:$0xff] %vm2795, %v5189
      %5318 = vst.msk [vmem:[%s224 + $0x300] sm:$0xff] %vm2795, %v5190
      %5319 = vst.msk [vmem:[%s224 + $0x308] sm:$0xff] %vm2795, %v5191
      %5320 = vst.msk [vmem:[%s224 + $0x310] sm:$0xff] %vm2795, %v5192
      %5321 = vst.msk [vmem:[%s224 + $0x318] sm:$0xff] %vm2795, %v5193
      %5322 = vst.msk [vmem:[%s224 + $0x320] sm:$0xff] %vm2795, %v5194
      %5323 = vst.msk [vmem:[%s224 + $0x328] sm:$0xff] %vm2795, %v5195
      %5324 = vst.msk [vmem:[%s224 + $0x330] sm:$0xff] %vm2795, %v5196
      %5325 = vst.msk [vmem:[%s224 + $0x338] sm:$0xff] %vm2795, %v5197
      %5326 = vst.msk [vmem:[%s224 + $0x340] sm:$0xff] %vm2795, %v5198
      %5327 = vst.msk [vmem:[%s224 + $0x348] sm:$0xff] %vm2795, %v5199
      %5328 = vst.msk [vmem:[%s224 + $0x350] sm:$0xff] %vm2795, %v5200
      %5329 = vst.msk [vmem:[%s224 + $0x358] sm:$0xff] %vm2795, %v5201
      %5330 = vst.msk [vmem:[%s224 + $0x360] sm:$0xff] %vm2795, %v5202
      %5331 = vst.msk [vmem:[%s224 + $0x368] sm:$0xff] %vm2795, %v5203
      %5332 = vst.msk [vmem:[%s224 + $0x370] sm:$0xff] %vm2795, %v5204
      %5333 = vst.msk [vmem:[%s224 + $0x378] sm:$0xff] %vm2795, %v5205
      %5334 = vst.msk [vmem:[%s224 + $0x380] sm:$0xff] %vm2795, %v5206
      %5335 = vst.msk [vmem:[%s224 + $0x388] sm:$0xff] %vm2795, %v5207
      %5336 = vst.msk [vmem:[%s224 + $0x390] sm:$0xff] %vm2795, %v5208
      %5337 = vst.msk [vmem:[%s224 + $0x398] sm:$0xff] %vm2795, %v5209
      %5338 = vst.msk [vmem:[%s224 + $0x3a0] sm:$0xff] %vm2795, %v5210
      %5339 = vst.msk [vmem:[%s224 + $0x3a8] sm:$0xff] %vm2795, %v5211
      %5340 = vst.msk [vmem:[%s224 + $0x3b0] sm:$0xff] %vm2795, %v5212
      %5341 = vst.msk [vmem:[%s224 + $0x3b8] sm:$0xff] %vm2795, %v5213
      %5342 = vst.msk [vmem:[%s224 + $0x3c0] sm:$0xff] %vm2795, %v5214
      %5343 = vst.msk [vmem:[%s224 + $0x3c8] sm:$0xff] %vm2795, %v5215
      %5344 = vst.msk [vmem:[%s224 + $0x3d0] sm:$0xff] %vm2795, %v5216
      %5345 = vst.msk [vmem:[%s224 + $0x3d8] sm:$0xff] %vm2795, %v5217
      %5346 = vst.msk [vmem:[%s224 + $0x3e0] sm:$0xff] %vm2795, %v5218
      %5347 = vst.msk [vmem:[%s224 + $0x3e8] sm:$0xff] %vm2795, %v5219
      %5348 = vst.msk [vmem:[%s224 + $0x3f0] sm:$0xff] %vm2795, %v5220
      %5349 = vst.msk [vmem:[%s224 + $0x3f8] sm:$0xff] %vm2795, %v5221
      %s5350 = smul.u32 128, %s15
      %p5351 = scmp.lt.s32.totalorder %s5350, 511
      %s5352 = scalar_select %p5351, %s5350, 511
      %s5353 = smul.addr %s5352, 8
      %s5354 = scalar_lea.vmem %s4, %s5353
      // Predicated region
      $region37: #{inception_layer_plus.5} parent=35 // pred_check
        %p5355 = pneg %p127
      $region38: #{inception_layer_plus.5} parent=35 // pred_check_branch
        %5357 = sbr.rel (%p5355) target = $region40
      $region39: #{inception_layer_plus.5} parent=35 // pred_region
        %s5358 = smul.u32 128, %s15
      $region40: #{inception_layer_plus.5} parent=35 // pred_fallthru
        _
    $region36: #{inception_layer_plus.5} parent=5 // pred_fallthru
      _
    %p5359 = scmp.le.s32.totalorder 2, %s10
    // Predicated region
    $region41: #{inception_layer_plus.5} parent=5 // pred_check
      %p5360 = pneg %p5359
    $region42: #{inception_layer_plus.5} parent=5 // pred_check_branch
      %5362 = sbr.rel (%p5360) target = $region44
    $region43: #{inception_layer_plus.5} parent=5 // pred_region
      %s5363 = ssub.s32 %s10, 2
      // Predicated region
      $region45: #{inception_layer_plus.5} parent=43 // pred_check
        %p5364 = pneg %p133
      $region46: #{inception_layer_plus.5} parent=43 // pred_check_branch
        %5366 = sbr.rel (%p5364) target = $region48
      $region47: #{inception_layer_plus.5} parent=43 // pred_region
        %s5367 = smul.u32 128, %s16
        %p5368 = scmp.lt.s32.totalorder %s5367, 511
        %s5369 = scalar_select %p5368, %s5367, 511
        %s5370 = smul.addr %s5369, 8
        %s5371 = scalar_lea.vmem %s4, %s5370
      $region48: #{inception_layer_plus.5} parent=43 // pred_fallthru
        _
    $region44: #{inception_layer_plus.5} parent=5 // pred_fallthru
      _
  $region6: #{inception_layer_plus.5} parent=0 // loop_footer
    %s14 = sadd.s32 1, %s10
  $region7: #{inception_layer_plus.5} parent=0 // loop_footer_branch
    %9 = sbr.rel target = $region3
  $region8: #{inception_layer_plus.5} parent=0 // loop_exit
    _

</llo_original>
